<compile_context>
chip_gen: v7x
topology: tpu7x:2x2x1
jax: 0.10.0
libtpu: 0.0.40
codegen_flags: <defaults>
</compile_context>

<pallas_src>
import functools

import jax
import jax.numpy as jnp
from jax import lax
from jax.experimental import pallas as pl
from jax.experimental.pallas import tpu as pltpu

EPS = 1e-5
LANE = 128


def _round_up(v, m):
    return (v + m - 1) // m * m


def fold_bn(gamma, beta, mean, var):
    scale = gamma / jnp.sqrt(var + EPS)
    bias = beta - mean * scale
    return scale, bias


# ---------------------------------------------------------------------------
# Fused kernel: conv1(1x1)+bn1+relu -> conv2(3x3)+bn2+relu -> conv3(1x1)+bn3
#               -> *(1-block_drop) -> +identity -> relu.
# One grid step == one batch image; all intermediates stay in VMEM.
# ---------------------------------------------------------------------------
def _bottleneck_kernel(x_ref, w1_ref, b1_ref, w2_ref, b2_ref, w3_ref, b3_ref,
                       o_ref, h1_ref, *, H, W, keep):
    # x_ref : (1, H*W, Cp)  f32  channels-last image, spatial flattened, lane-padded C
    # w*_ref: BN-folded weights in the matmul compute dtype (bf16 or f32)
    # b*_ref: (1, C) f32 biases
    # o_ref : (1, H*W, Cp)  f32
    # h1_ref: ((H+3)*(W+2), Cmid) f32 scratch: zero-padded conv1 output, stored row-major
    #         as flat index (padded_row * Wp + padded_col).  The extra Wp rows at the end
    #         keep the shifted reads of the 3x3 stage in bounds; they only ever feed the
    #         two discarded padding columns of each output row.
    Wp = W + 2
    cdtype = w1_ref.dtype
    xv = x_ref.at[0]      # (H*W, Cp) view — no load
    ov = o_ref.at[0]      # (H*W, Cp) view

    # ---- stage 1: 1x1 conv + bn1 + relu, scattered into the zero-padded layout -------
    h1_ref[...] = jnp.zeros_like(h1_ref)
    G1 = max(1, 64 // W)                       # image rows per matmul (register-pressure knob)
    for g in range(0, H, G1):
        rg = min(G1, H - g)
        rows = xv[pl.ds(g * W, rg * W), :].astype(cdtype)
        y = jnp.dot(rows, w1_ref[...], preferred_element_type=jnp.float32)
        y = jnp.maximum(y + b1_ref[...], 0.0)
        for r in range(rg):                    # each image row -> its padded-buffer rows
            h1_ref[pl.ds((g + r + 1) * Wp + 1, W), :] = y[r * W:(r + 1) * W, :]

    # ---- stage 2+3: 3x3 conv (+bn2+relu), 1x1 conv (+bn3), block-drop, residual, relu --
    # For output rows [g, g+rg) the flat accumulator index is p = r*Wp + w; the (ky, kx)
    # tap is the contiguous slice starting at (g+ky)*Wp + kx  ->  nine plain 2-D matmuls
    # per row group, accumulated in f32.
    G2 = max(1, 64 // Wp)                      # image rows per group
    for g in range(0, H, G2):
        rg = min(G2, H - g)
        nrows = rg * Wp
        acc = jnp.zeros((nrows, w2_ref.shape[-1]), jnp.float32)
        for k in range(9):
            ky, kx = divmod(k, 3)
            tap = h1_ref[pl.ds((g + ky) * Wp + kx, nrows), :].astype(cdtype)
            acc = acc + jnp.dot(tap, w2_ref[k], preferred_element_type=jnp.float32)
        acc = jnp.maximum(acc + b2_ref[...], 0.0)                       # bn2 bias + relu
        y = jnp.dot(acc.astype(cdtype), w3_ref[...],
                    preferred_element_type=jnp.float32)
        y = (y + b3_ref[...]) * keep                                    # bn3 bias + (1-block_drop)
        for r in range(rg):                    # drop the 2 pad columns per row, add residual
            h = g + r
            res = xv[pl.ds(h * W, W), :]       # identity (Cin == Cout, f32)
            ov[pl.ds(h * W, W), :] = jnp.maximum(
                y[r * Wp:r * Wp + W, :] + res, 0.0).astype(o_ref.dtype)


# ---------------------------------------------------------------------------
# Parameter preparation: fold BN into weights, transpose to matmul layout, lane-pad.
# ---------------------------------------------------------------------------
def _prep_params(p, compute_dtype):
    Cmid, Cin = p["w1"].shape[0], p["w1"].shape[1]
    Cout = p["w3"].shape[0]
    assert Cin == Cout, "downsample=None requires in_channels == out_channels"

    s1, b1 = fold_bn(p["g1"], p["b1"], p["m1"], p["v1"])
    s2, b2 = fold_bn(p["g2"], p["b2"], p["m2"], p["v2"])
    s3, b3 = fold_bn(p["g3"], p["b3"], p["m3"], p["v3"])

    w1 = jnp.transpose(p["w1"][:, :, 0, 0], (1, 0)) * s1[None, :]           # (Cin, Cmid)
    w2 = jnp.transpose(p["w2"], (2, 3, 1, 0)) * s2[None, None, None, :]     # (3,3,Cmid,Cmid)
    w3 = jnp.transpose(p["w3"][:, :, 0, 0], (1, 0)) * s3[None, :]           # (Cmid, Cout)

    Cp = _round_up(Cin, LANE)
    Cm = _round_up(Cmid, LANE)
    w1p = jnp.zeros((Cp, Cm), jnp.float32).at[:Cin, :Cmid].set(w1)
    w2p = jnp.zeros((9, Cm, Cm), jnp.float32).at[:, :Cmid, :Cmid].set(
        w2.reshape(9, Cmid, Cmid))
    w3p = jnp.zeros((Cm, Cp), jnp.float32).at[:Cmid, :Cout].set(w3)
    b1p = jnp.zeros((1, Cm), jnp.float32).at[0, :Cmid].set(b1)
    b2p = jnp.zeros((1, Cm), jnp.float32).at[0, :Cmid].set(b2)
    b3p = jnp.zeros((1, Cp), jnp.float32).at[0, :Cout].set(b3)
    return (w1p.astype(compute_dtype), b1p, w2p.astype(compute_dtype), b2p,
            w3p.astype(compute_dtype), b3p, Cp, Cm)


def bottleneck_forward(x_nchw, p, block_drop=0.0, compute_dtype=jnp.bfloat16):
    """Eval-mode Bottleneck forward (stride=1, groups=1, downsample=None).

    x_nchw: (N, Cin, H, W) float32 -> (N, Cout, H, W) float32.
    compute_dtype: MXU operand dtype (bf16 for performance, f32 for exact verification);
    accumulation and epilogues are always f32.
    """
    N, Cin, H, W = x_nchw.shape
    Wp = W + 2
    # In production the folded / lane-padded weights would be prepared once and cached.
    w1, b1, w2, b2, w3, b3, Cp, Cm = _prep_params(p, compute_dtype)

    # NCHW -> channels-last, lane-pad channels, flatten spatial.  x stays f32 so the
    # residual add is exact; the kernel casts matmul operands to `compute_dtype`.
    # TODO(synk): if the surrounding network were channels-last these transposes vanish.
    x_nhwc = jnp.transpose(x_nchw, (0, 2, 3, 1)).astype(jnp.float32)
    if Cp != Cin:
        x_nhwc = jnp.pad(x_nhwc, ((0, 0), (0, 0), (0, 0), (0, Cp - Cin)))
    x3 = x_nhwc.reshape(N, H * W, Cp)

    kern = functools.partial(_bottleneck_kernel, H=H, W=W,
                             keep=float(1.0 - block_drop))

    itemsize = jnp.dtype(compute_dtype).itemsize
    vmem_est = (2 * 2 * (H * W * Cp * 4)                                 # 2x-buffered x & out
                + 2 * itemsize * (Cp * Cm + 9 * Cm * Cm + Cm * Cp)       # weights
                + (H + 3) * Wp * Cm * 4)                                 # conv1 scratch
    vmem_limit = int(min(64 * 2 ** 20, max(16 * 2 ** 20, 4 * vmem_est)))  # v7x physical = 64 MiB

    out3 = pl.pallas_call(
        kern,
        out_shape=jax.ShapeDtypeStruct((N, H * W, Cp), jnp.float32),
        grid=(N,),
        in_specs=[
            pl.BlockSpec((1, H * W, Cp), lambda n: (n, 0, 0)),   # x (one image per step)
            pl.BlockSpec((Cp, Cm), lambda n: (0, 0)),            # w1 (resident across steps)
            pl.BlockSpec((1, Cm), lambda n: (0, 0)),             # b1
            pl.BlockSpec((9, Cm, Cm), lambda n: (0, 0, 0)),      # w2 (9 taps)
            pl.BlockSpec((1, Cm), lambda n: (0, 0)),             # b2
            pl.BlockSpec((Cm, Cp), lambda n: (0, 0)),            # w3
            pl.BlockSpec((1, Cp), lambda n: (0, 0)),             # b3
        ],
        out_specs=pl.BlockSpec((1, H * W, Cp), lambda n: (n, 0, 0)),
        scratch_shapes=[pltpu.VMEM(((H + 3) * Wp, Cm), jnp.float32)],
        compiler_params=pltpu.CompilerParams(
            dimension_semantics=("parallel",),     # pipeline across images; 2 TCs on v7x
            vmem_limit_bytes=vmem_limit,
        ),
    )(x3, w1, b1, w2, b2, w3, b3)

    out = out3.reshape(N, H, W, Cp)[..., :Cin]
    return jnp.transpose(out, (0, 3, 1, 2))                      # back to NCHW


# ---------------------------------------------------------------------------
# Pure-JAX reference (mirrors the PyTorch eval forward) and test params
# ---------------------------------------------------------------------------
def reference_forward(x, p, block_drop=0.0):
    def bn(y, g, b, m, v):
        g, b, m, v = (a[None, :, None, None] for a in (g, b, m, v))
        return (y - m) / jnp.sqrt(v + EPS) * g + b

    dn = ("NCHW", "OIHW", "NCHW")
    out = lax.conv_general_dilated(x, p["w1"], (1, 1), "VALID", dimension_numbers=dn)
    out = jnp.maximum(bn(out, p["g1"], p["b1"], p["m1"], p["v1"]), 0.0)
    out = lax.conv_general_dilated(out, p["w2"], (1, 1), ((1, 1), (1, 1)),
                                   dimension_numbers=dn)
    out = jnp.maximum(bn(out, p["g2"], p["b2"], p["m2"], p["v2"]), 0.0)
    out = lax.conv_general_dilated(out, p["w3"], (1, 1), "VALID", dimension_numbers=dn)
    out = bn(out, p["g3"], p["b3"], p["m3"], p["v3"])
    out = out * (1.0 - block_drop) + x
    return jnp.maximum(out, 0.0)


def make_params(key, in_channels, bottleneck_channels, out_channels):
    ks = jax.random.split(key, 16)

    def u(k, shape, lo, hi):
        return jax.random.uniform(k, shape, jnp.float32, lo, hi)

    Cb, Ci, Co = bottleneck_channels, in_channels, out_channels
    return {
        "w1": 0.3 * jax.random.normal(ks[0], (Cb, Ci, 1, 1), jnp.float32),
        "w2": 0.3 * jax.random.normal(ks[1], (Cb, Cb, 3, 3), jnp.float32),
        "w3": 0.3 * jax.random.normal(ks[2], (Co, Cb, 1, 1), jnp.float32),
        "g1": u(ks[3], (Cb,), 0.5, 1.5), "b1": 0.1 * jax.random.normal(ks[4], (Cb,)),
        "m1": 0.1 * jax.random.normal(ks[5], (Cb,)), "v1": u(ks[6], (Cb,), 0.5, 1.5),
        "g2": u(ks[7], (Cb,), 0.5, 1.5), "b2": 0.1 * jax.random.normal(ks[8], (Cb,)),
        "m2": 0.1 * jax.random.normal(ks[9], (Cb,)), "v2": u(ks[10], (Cb,), 0.5, 1.5),
        "g3": u(ks[11], (Co,), 0.5, 1.5), "b3": 0.1 * jax.random.normal(ks[12], (Co,)),
        "m3": 0.1 * jax.random.normal(ks[13], (Co,)), "v3": u(ks[14], (Co,), 0.5, 1.5),
    }


if __name__ == "__main__":
    key = jax.random.PRNGKey(0)
    k_x, k_p = jax.random.split(key)

    N, C, H, W = 2, 4, 16, 16          # in_channels == out_channels (downsample=None)
    bottleneck_channels = 4
    block_drop = 0.2

    x = jax.random.normal(k_x, (N, C, H, W), jnp.float32)
    params = make_params(k_p, C, bottleneck_channels, C)

    ref = reference_forward(x, params, block_drop)

    # 1) Exactness: f32 matmul operands must match the f32 reference tightly.
    fwd_f32 = jax.jit(functools.partial(bottleneck_forward, block_drop=block_drop,
                                        compute_dtype=jnp.float32))
    out_f32 = jax.block_until_ready(fwd_f32(x, params))
    assert out_f32.shape == ref.shape == (N, C, H, W)
    err_f32 = float(jnp.max(jnp.abs(out_f32 - ref)))
    assert jnp.allclose(out_f32, ref, atol=1e-4, rtol=1e-4), err_f32

    # 2) Performance mode: bf16 MXU operands with f32 accumulation/epilogue.
    #    Structural correctness is proven by (1); here we only check the reduced-precision
    #    fast path stays within bf16-input error bounds of the f32 reference.
    fwd_bf16 = jax.jit(functools.partial(bottleneck_forward, block_drop=block_drop,
                                         compute_dtype=jnp.bfloat16))
    out_bf16 = jax.block_until_ready(fwd_bf16(x, params))
    err_bf16 = float(jnp.max(jnp.abs(out_bf16 - ref)))
    assert err_bf16 < 0.05 * float(jnp.max(jnp.abs(ref))) + 0.05, err_bf16

    print("KERNEL_OK")
</pallas_src>

<mosaic_0001>
module attributes {stable_mosaic.version = 11 : i64} {
  func.func @_bottleneck_kernel(%arg0: i32, %arg1: memref<1x256x128xf32, #tpu.memory_space<vmem>>, %arg2: memref<128x128xf32, #tpu.memory_space<vmem>>, %arg3: memref<1x128xf32, #tpu.memory_space<vmem>>, %arg4: memref<9x128x128xf32, #tpu.memory_space<vmem>>, %arg5: memref<1x128xf32, #tpu.memory_space<vmem>>, %arg6: memref<128x128xf32, #tpu.memory_space<vmem>>, %arg7: memref<1x128xf32, #tpu.memory_space<vmem>>, %arg8: memref<1x256x128xf32, #tpu.memory_space<vmem>>, %arg9: memref<342x128xf32, #tpu.memory_space<vmem>>) attributes {dimension_semantics = [#tpu.dimension_semantics<parallel>], iteration_bounds = array<i64: 2>, scalar_prefetch = 0 : i64, scratch_operands = 1 : i64, tpu.core_type = #tpu.core_type<tc>, window_params = [{transform_indices = @transform_0, window_bounds = array<i64: 1, 256, 128>}, {pipeline_mode = #tpu.pipeline_mode<synchronous>, transform_indices = @transform_1, window_bounds = array<i64: 128, 128>}, {pipeline_mode = #tpu.pipeline_mode<synchronous>, transform_indices = @transform_2, window_bounds = array<i64: 1, 128>}, {pipeline_mode = #tpu.pipeline_mode<synchronous>, transform_indices = @transform_3, window_bounds = array<i64: 9, 128, 128>}, {pipeline_mode = #tpu.pipeline_mode<synchronous>, transform_indices = @transform_4, window_bounds = array<i64: 1, 128>}, {pipeline_mode = #tpu.pipeline_mode<synchronous>, transform_indices = @transform_5, window_bounds = array<i64: 128, 128>}, {pipeline_mode = #tpu.pipeline_mode<synchronous>, transform_indices = @transform_6, window_bounds = array<i64: 1, 128>}, {transform_indices = @transform_7, window_bounds = array<i64: 1, 256, 128>}]} {
    %cst = arith.constant 0.000000e+00 : f32
    %0 = vector.broadcast %cst : f32 to vector<342x128xf32>
    %c0 = arith.constant 0 : index
    %c0_0 = arith.constant 0 : index
    %1 = vector.load %arg9[%c0, %c0_0] : memref<342x128xf32, #tpu.memory_space<vmem>>, vector<342x128xf32>
    tpu.vector_store %arg9[%c0, %c0_0], %0 {strides = array<i32>} : memref<342x128xf32, #tpu.memory_space<vmem>>, vector<342x128xf32>,
    %c0_i32 = arith.constant 0 : i32
    %c0_i32_1 = arith.constant 0 : i32
    %c0_i32_2 = arith.constant 0 : i32
    %2 = tpu.memref_slice %arg1[%c0_i32, %c0_i32_1, %c0_i32_2] : memref<1x256x128xf32, #tpu.memory_space<vmem>> -> memref<1x256x128xf32, #tpu.memory_space<vmem>>
    %3 = tpu.memref_squeeze %2 : memref<1x256x128xf32, #tpu.memory_space<vmem>> -> memref<256x128xf32, #tpu.memory_space<vmem>>
    %c0_3 = arith.constant 0 : index
    %c0_4 = arith.constant 0 : index
    %4 = vector.load %3[%c0_3, %c0_4] : memref<256x128xf32, #tpu.memory_space<vmem>>, vector<64x128xf32>
    %c0_5 = arith.constant 0 : index
    %c0_6 = arith.constant 0 : index
    %5 = vector.load %arg2[%c0_5, %c0_6] : memref<128x128xf32, #tpu.memory_space<vmem>>, vector<128x128xf32>
    %cst_7 = arith.constant dense<0.000000e+00> : vector<64x128xf32>
    %6 = tpu.matmul %4, %5, %cst_7 {dimension_numbers = #tpu.dot_dimension_numbers<[1], [0], [0], [1], [0, 0, 1, 1], [], []>} : vector<64x128xf32>, vector<128x128xf32>, vector<64x128xf32> -> vector<64x128xf32>
    %c0_8 = arith.constant 0 : index
    %c0_9 = arith.constant 0 : index
    %7 = vector.load %arg3[%c0_8, %c0_9] : memref<1x128xf32, #tpu.memory_space<vmem>>, vector<1x128xf32>
    %8 = vector.broadcast %7 : vector<1x128xf32> to vector<64x128xf32>
    %9 = arith.addf %6, %8 : vector<64x128xf32>
    %cst_10 = arith.constant 0.000000e+00 : f32
    %10 = vector.broadcast %cst_10 : f32 to vector<64x128xf32>
    %11 = arith.maximumf %9, %10 : vector<64x128xf32>
    %12 = vector.extract_strided_slice %11 {offsets = [0, 0], sizes = [16, 128], strides = [1, 1]} : vector<64x128xf32> to vector<16x128xf32>
    %c19 = arith.constant 19 : index
    %c0_11 = arith.constant 0 : index
    %13 = vector.load %arg9[%c19, %c0_11] : memref<342x128xf32, #tpu.memory_space<vmem>>, vector<16x128xf32>
    tpu.vector_store %arg9[%c19, %c0_11], %12 {strides = array<i32>} : memref<342x128xf32, #tpu.memory_space<vmem>>, vector<16x128xf32>,
    %14 = vector.extract_strided_slice %11 {offsets = [16, 0], sizes = [16, 128], strides = [1, 1]} : vector<64x128xf32> to vector<16x128xf32>
    %c37 = arith.constant 37 : index
    %c0_12 = arith.constant 0 : index
    %15 = vector.load %arg9[%c37, %c0_12] : memref<342x128xf32, #tpu.memory_space<vmem>>, vector<16x128xf32>
    tpu.vector_store %arg9[%c37, %c0_12], %14 {strides = array<i32>} : memref<342x128xf32, #tpu.memory_space<vmem>>, vector<16x128xf32>,
    %16 = vector.extract_strided_slice %11 {offsets = [32, 0], sizes = [16, 128], strides = [1, 1]} : vector<64x128xf32> to vector<16x128xf32>
    %c55 = arith.constant 55 : index
    %c0_13 = arith.constant 0 : index
    %17 = vector.load %arg9[%c55, %c0_13] : memref<342x128xf32, #tpu.memory_space<vmem>>, vector<16x128xf32>
    tpu.vector_store %arg9[%c55, %c0_13], %16 {strides = array<i32>} : memref<342x128xf32, #tpu.memory_space<vmem>>, vector<16x128xf32>,
    %18 = vector.extract_strided_slice %11 {offsets = [48, 0], sizes = [16, 128], strides = [1, 1]} : vector<64x128xf32> to vector<16x128xf32>
    %c73 = arith.constant 73 : index
    %c0_14 = arith.constant 0 : index
    %19 = vector.load %arg9[%c73, %c0_14] : memref<342x128xf32, #tpu.memory_space<vmem>>, vector<16x128xf32>
    tpu.vector_store %arg9[%c73, %c0_14], %18 {strides = array<i32>} : memref<342x128xf32, #tpu.memory_space<vmem>>, vector<16x128xf32>,
    %c0_i32_15 = arith.constant 0 : i32
    %c0_i32_16 = arith.constant 0 : i32
    %c0_i32_17 = arith.constant 0 : i32
    %20 = tpu.memref_slice %arg1[%c0_i32_15, %c0_i32_16, %c0_i32_17] : memref<1x256x128xf32, #tpu.memory_space<vmem>> -> memref<1x256x128xf32, #tpu.memory_space<vmem>>
    %21 = tpu.memref_squeeze %20 : memref<1x256x128xf32, #tpu.memory_space<vmem>> -> memref<256x128xf32, #tpu.memory_space<vmem>>
    %c64 = arith.constant 64 : index
    %c0_18 = arith.constant 0 : index
    %22 = vector.load %21[%c64, %c0_18] : memref<256x128xf32, #tpu.memory_space<vmem>>, vector<64x128xf32>
    %c0_19 = arith.constant 0 : index
    %c0_20 = arith.constant 0 : index
    %23 = vector.load %arg2[%c0_19, %c0_20] : memref<128x128xf32, #tpu.memory_space<vmem>>, vector<128x128xf32>
    %cst_21 = arith.constant dense<0.000000e+00> : vector<64x128xf32>
    %24 = tpu.matmul %22, %23, %cst_21 {dimension_numbers = #tpu.dot_dimension_numbers<[1], [0], [0], [1], [0, 0, 1, 1], [], []>} : vector<64x128xf32>, vector<128x128xf32>, vector<64x128xf32> -> vector<64x128xf32>
    %c0_22 = arith.constant 0 : index
    %c0_23 = arith.constant 0 : index
    %25 = vector.load %arg3[%c0_22, %c0_23] : memref<1x128xf32, #tpu.memory_space<vmem>>, vector<1x128xf32>
    %26 = vector.broadcast %25 : vector<1x128xf32> to vector<64x128xf32>
    %27 = arith.addf %24, %26 : vector<64x128xf32>
    %cst_24 = arith.constant 0.000000e+00 : f32
    %28 = vector.broadcast %cst_24 : f32 to vector<64x128xf32>
    %29 = arith.maximumf %27, %28 : vector<64x128xf32>
    %30 = vector.extract_strided_slice %29 {offsets = [0, 0], sizes = [16, 128], strides = [1, 1]} : vector<64x128xf32> to vector<16x128xf32>
    %c91 = arith.constant 91 : index
    %c0_25 = arith.constant 0 : index
    %31 = vector.load %arg9[%c91, %c0_25] : memref<342x128xf32, #tpu.memory_space<vmem>>, vector<16x128xf32>
    tpu.vector_store %arg9[%c91, %c0_25], %30 {strides = array<i32>} : memref<342x128xf32, #tpu.memory_space<vmem>>, vector<16x128xf32>,
    %32 = vector.extract_strided_slice %29 {offsets = [16, 0], sizes = [16, 128], strides = [1, 1]} : vector<64x128xf32> to vector<16x128xf32>
    %c109 = arith.constant 109 : index
    %c0_26 = arith.constant 0 : index
    %33 = vector.load %arg9[%c109, %c0_26] : memref<342x128xf32, #tpu.memory_space<vmem>>, vector<16x128xf32>
    tpu.vector_store %arg9[%c109, %c0_26], %32 {strides = array<i32>} : memref<342x128xf32, #tpu.memory_space<vmem>>, vector<16x128xf32>,
    %34 = vector.extract_strided_slice %29 {offsets = [32, 0], sizes = [16, 128], strides = [1, 1]} : vector<64x128xf32> to vector<16x128xf32>
    %c127 = arith.constant 127 : index
    %c0_27 = arith.constant 0 : index
    %35 = vector.load %arg9[%c127, %c0_27] : memref<342x128xf32, #tpu.memory_space<vmem>>, vector<16x128xf32>
    tpu.vector_store %arg9[%c127, %c0_27], %34 {strides = array<i32>} : memref<342x128xf32, #tpu.memory_space<vmem>>, vector<16x128xf32>,
    %36 = vector.extract_strided_slice %29 {offsets = [48, 0], sizes = [16, 128], strides = [1, 1]} : vector<64x128xf32> to vector<16x128xf32>
    %c145 = arith.constant 145 : index
    %c0_28 = arith.constant 0 : index
    %37 = vector.load %arg9[%c145, %c0_28] : memref<342x128xf32, #tpu.memory_space<vmem>>, vector<16x128xf32>
    tpu.vector_store %arg9[%c145, %c0_28], %36 {strides = array<i32>} : memref<342x128xf32, #tpu.memory_space<vmem>>, vector<16x128xf32>,
    %c0_i32_29 = arith.constant 0 : i32
    %c0_i32_30 = arith.constant 0 : i32
    %c0_i32_31 = arith.constant 0 : i32
    %38 = tpu.memref_slice %arg1[%c0_i32_29, %c0_i32_30, %c0_i32_31] : memref<1x256x128xf32, #tpu.memory_space<vmem>> -> memref<1x256x128xf32, #tpu.memory_space<vmem>>
    %39 = tpu.memref_squeeze %38 : memref<1x256x128xf32, #tpu.memory_space<vmem>> -> memref<256x128xf32, #tpu.memory_space<vmem>>
    %c128 = arith.constant 128 : index
    %c0_32 = arith.constant 0 : index
    %40 = vector.load %39[%c128, %c0_32] : memref<256x128xf32, #tpu.memory_space<vmem>>, vector<64x128xf32>
    %c0_33 = arith.constant 0 : index
    %c0_34 = arith.constant 0 : index
    %41 = vector.load %arg2[%c0_33, %c0_34] : memref<128x128xf32, #tpu.memory_space<vmem>>, vector<128x128xf32>
    %cst_35 = arith.constant dense<0.000000e+00> : vector<64x128xf32>
    %42 = tpu.matmul %40, %41, %cst_35 {dimension_numbers = #tpu.dot_dimension_numbers<[1], [0], [0], [1], [0, 0, 1, 1], [], []>} : vector<64x128xf32>, vector<128x128xf32>, vector<64x128xf32> -> vector<64x128xf32>
    %c0_36 = arith.constant 0 : index
    %c0_37 = arith.constant 0 : index
    %43 = vector.load %arg3[%c0_36, %c0_37] : memref<1x128xf32, #tpu.memory_space<vmem>>, vector<1x128xf32>
    %44 = vector.broadcast %43 : vector<1x128xf32> to vector<64x128xf32>
    %45 = arith.addf %42, %44 : vector<64x128xf32>
    %cst_38 = arith.constant 0.000000e+00 : f32
    %46 = vector.broadcast %cst_38 : f32 to vector<64x128xf32>
    %47 = arith.maximumf %45, %46 : vector<64x128xf32>
    %48 = vector.extract_strided_slice %47 {offsets = [0, 0], sizes = [16, 128], strides = [1, 1]} : vector<64x128xf32> to vector<16x128xf32>
    %c163 = arith.constant 163 : index
    %c0_39 = arith.constant 0 : index
    %49 = vector.load %arg9[%c163, %c0_39] : memref<342x128xf32, #tpu.memory_space<vmem>>, vector<16x128xf32>
    tpu.vector_store %arg9[%c163, %c0_39], %48 {strides = array<i32>} : memref<342x128xf32, #tpu.memory_space<vmem>>, vector<16x128xf32>,
    %50 = vector.extract_strided_slice %47 {offsets = [16, 0], sizes = [16, 128], strides = [1, 1]} : vector<64x128xf32> to vector<16x128xf32>
    %c181 = arith.constant 181 : index
    %c0_40 = arith.constant 0 : index
    %51 = vector.load %arg9[%c181, %c0_40] : memref<342x128xf32, #tpu.memory_space<vmem>>, vector<16x128xf32>
    tpu.vector_store %arg9[%c181, %c0_40], %50 {strides = array<i32>} : memref<342x128xf32, #tpu.memory_space<vmem>>, vector<16x128xf32>,
    %52 = vector.extract_strided_slice %47 {offsets = [32, 0], sizes = [16, 128], strides = [1, 1]} : vector<64x128xf32> to vector<16x128xf32>
    %c199 = arith.constant 199 : index
    %c0_41 = arith.constant 0 : index
    %53 = vector.load %arg9[%c199, %c0_41] : memref<342x128xf32, #tpu.memory_space<vmem>>, vector<16x128xf32>
    tpu.vector_store %arg9[%c199, %c0_41], %52 {strides = array<i32>} : memref<342x128xf32, #tpu.memory_space<vmem>>, vector<16x128xf32>,
    %54 = vector.extract_strided_slice %47 {offsets = [48, 0], sizes = [16, 128], strides = [1, 1]} : vector<64x128xf32> to vector<16x128xf32>
    %c217 = arith.constant 217 : index
    %c0_42 = arith.constant 0 : index
    %55 = vector.load %arg9[%c217, %c0_42] : memref<342x128xf32, #tpu.memory_space<vmem>>, vector<16x128xf32>
    tpu.vector_store %arg9[%c217, %c0_42], %54 {strides = array<i32>} : memref<342x128xf32, #tpu.memory_space<vmem>>, vector<16x128xf32>,
    %c0_i32_43 = arith.constant 0 : i32
    %c0_i32_44 = arith.constant 0 : i32
    %c0_i32_45 = arith.constant 0 : i32
    %56 = tpu.memref_slice %arg1[%c0_i32_43, %c0_i32_44, %c0_i32_45] : memref<1x256x128xf32, #tpu.memory_space<vmem>> -> memref<1x256x128xf32, #tpu.memory_space<vmem>>
    %57 = tpu.memref_squeeze %56 : memref<1x256x128xf32, #tpu.memory_space<vmem>> -> memref<256x128xf32, #tpu.memory_space<vmem>>
    %c192 = arith.constant 192 : index
    %c0_46 = arith.constant 0 : index
    %58 = vector.load %57[%c192, %c0_46] : memref<256x128xf32, #tpu.memory_space<vmem>>, vector<64x128xf32>
    %c0_47 = arith.constant 0 : index
    %c0_48 = arith.constant 0 : index
    %59 = vector.load %arg2[%c0_47, %c0_48] : memref<128x128xf32, #tpu.memory_space<vmem>>, vector<128x128xf32>
    %cst_49 = arith.constant dense<0.000000e+00> : vector<64x128xf32>
    %60 = tpu.matmul %58, %59, %cst_49 {dimension_numbers = #tpu.dot_dimension_numbers<[1], [0], [0], [1], [0, 0, 1, 1], [], []>} : vector<64x128xf32>, vector<128x128xf32>, vector<64x128xf32> -> vector<64x128xf32>
    %c0_50 = arith.constant 0 : index
    %c0_51 = arith.constant 0 : index
    %61 = vector.load %arg3[%c0_50, %c0_51] : memref<1x128xf32, #tpu.memory_space<vmem>>, vector<1x128xf32>
    %62 = vector.broadcast %61 : vector<1x128xf32> to vector<64x128xf32>
    %63 = arith.addf %60, %62 : vector<64x128xf32>
    %cst_52 = arith.constant 0.000000e+00 : f32
    %64 = vector.broadcast %cst_52 : f32 to vector<64x128xf32>
    %65 = arith.maximumf %63, %64 : vector<64x128xf32>
    %66 = vector.extract_strided_slice %65 {offsets = [0, 0], sizes = [16, 128], strides = [1, 1]} : vector<64x128xf32> to vector<16x128xf32>
    %c235 = arith.constant 235 : index
    %c0_53 = arith.constant 0 : index
    %67 = vector.load %arg9[%c235, %c0_53] : memref<342x128xf32, #tpu.memory_space<vmem>>, vector<16x128xf32>
    tpu.vector_store %arg9[%c235, %c0_53], %66 {strides = array<i32>} : memref<342x128xf32, #tpu.memory_space<vmem>>, vector<16x128xf32>,
    %68 = vector.extract_strided_slice %65 {offsets = [16, 0], sizes = [16, 128], strides = [1, 1]} : vector<64x128xf32> to vector<16x128xf32>
    %c253 = arith.constant 253 : index
    %c0_54 = arith.constant 0 : index
    %69 = vector.load %arg9[%c253, %c0_54] : memref<342x128xf32, #tpu.memory_space<vmem>>, vector<16x128xf32>
    tpu.vector_store %arg9[%c253, %c0_54], %68 {strides = array<i32>} : memref<342x128xf32, #tpu.memory_space<vmem>>, vector<16x128xf32>,
    %70 = vector.extract_strided_slice %65 {offsets = [32, 0], sizes = [16, 128], strides = [1, 1]} : vector<64x128xf32> to vector<16x128xf32>
    %c271 = arith.constant 271 : index
    %c0_55 = arith.constant 0 : index
    %71 = vector.load %arg9[%c271, %c0_55] : memref<342x128xf32, #tpu.memory_space<vmem>>, vector<16x128xf32>
    tpu.vector_store %arg9[%c271, %c0_55], %70 {strides = array<i32>} : memref<342x128xf32, #tpu.memory_space<vmem>>, vector<16x128xf32>,
    %72 = vector.extract_strided_slice %65 {offsets = [48, 0], sizes = [16, 128], strides = [1, 1]} : vector<64x128xf32> to vector<16x128xf32>
    %c289 = arith.constant 289 : index
    %c0_56 = arith.constant 0 : index
    %73 = vector.load %arg9[%c289, %c0_56] : memref<342x128xf32, #tpu.memory_space<vmem>>, vector<16x128xf32>
    tpu.vector_store %arg9[%c289, %c0_56], %72 {strides = array<i32>} : memref<342x128xf32, #tpu.memory_space<vmem>>, vector<16x128xf32>,
    %cst_57 = arith.constant 0.000000e+00 : f32
    %74 = vector.broadcast %cst_57 : f32 to vector<54x128xf32>
    %c0_58 = arith.constant 0 : index
    %c0_59 = arith.constant 0 : index
    %75 = vector.load %arg9[%c0_58, %c0_59] : memref<342x128xf32, #tpu.memory_space<vmem>>, vector<54x128xf32>
    %c0_60 = arith.constant 0 : index
    %c0_61 = arith.constant 0 : index
    %c0_62 = arith.constant 0 : index
    %76 = vector.load %arg4[%c0_60, %c0_61, %c0_62] : memref<9x128x128xf32, #tpu.memory_space<vmem>>, vector<1x128x128xf32>
    %77 = vector.shape_cast %76 : vector<1x128x128xf32> to vector<128x128xf32>
    %cst_63 = arith.constant dense<0.000000e+00> : vector<54x128xf32>
    %78 = tpu.matmul %75, %77, %cst_63 {dimension_numbers = #tpu.dot_dimension_numbers<[1], [0], [0], [1], [0, 0, 1, 1], [], []>} : vector<54x128xf32>, vector<128x128xf32>, vector<54x128xf32> -> vector<54x128xf32>
    %79 = arith.addf %74, %78 : vector<54x128xf32>
    %c1 = arith.constant 1 : index
    %c0_64 = arith.constant 0 : index
    %80 = vector.load %arg9[%c1, %c0_64] : memref<342x128xf32, #tpu.memory_space<vmem>>, vector<54x128xf32>
    %c1_65 = arith.constant 1 : index
    %c0_66 = arith.constant 0 : index
    %c0_67 = arith.constant 0 : index
    %81 = vector.load %arg4[%c1_65, %c0_66, %c0_67] : memref<9x128x128xf32, #tpu.memory_space<vmem>>, vector<1x128x128xf32>
    %82 = vector.shape_cast %81 : vector<1x128x128xf32> to vector<128x128xf32>
    %cst_68 = arith.constant dense<0.000000e+00> : vector<54x128xf32>
    %83 = tpu.matmul %80, %82, %cst_68 {dimension_numbers = #tpu.dot_dimension_numbers<[1], [0], [0], [1], [0, 0, 1, 1], [], []>} : vector<54x128xf32>, vector<128x128xf32>, vector<54x128xf32> -> vector<54x128xf32>
    %84 = arith.addf %79, %83 : vector<54x128xf32>
    %c2 = arith.constant 2 : index
    %c0_69 = arith.constant 0 : index
    %85 = vector.load %arg9[%c2, %c0_69] : memref<342x128xf32, #tpu.memory_space<vmem>>, vector<54x128xf32>
    %c2_70 = arith.constant 2 : index
    %c0_71 = arith.constant 0 : index
    %c0_72 = arith.constant 0 : index
    %86 = vector.load %arg4[%c2_70, %c0_71, %c0_72] : memref<9x128x128xf32, #tpu.memory_space<vmem>>, vector<1x128x128xf32>
    %87 = vector.shape_cast %86 : vector<1x128x128xf32> to vector<128x128xf32>
    %cst_73 = arith.constant dense<0.000000e+00> : vector<54x128xf32>
    %88 = tpu.matmul %85, %87, %cst_73 {dimension_numbers = #tpu.dot_dimension_numbers<[1], [0], [0], [1], [0, 0, 1, 1], [], []>} : vector<54x128xf32>, vector<128x128xf32>, vector<54x128xf32> -> vector<54x128xf32>
    %89 = arith.addf %84, %88 : vector<54x128xf32>
    %c18 = arith.constant 18 : index
    %c0_74 = arith.constant 0 : index
    %90 = vector.load %arg9[%c18, %c0_74] : memref<342x128xf32, #tpu.memory_space<vmem>>, vector<54x128xf32>
    %c3 = arith.constant 3 : index
    %c0_75 = arith.constant 0 : index
    %c0_76 = arith.constant 0 : index
    %91 = vector.load %arg4[%c3, %c0_75, %c0_76] : memref<9x128x128xf32, #tpu.memory_space<vmem>>, vector<1x128x128xf32>
    %92 = vector.shape_cast %91 : vector<1x128x128xf32> to vector<128x128xf32>
    %cst_77 = arith.constant dense<0.000000e+00> : vector<54x128xf32>
    %93 = tpu.matmul %90, %92, %cst_77 {dimension_numbers = #tpu.dot_dimension_numbers<[1], [0], [0], [1], [0, 0, 1, 1], [], []>} : vector<54x128xf32>, vector<128x128xf32>, vector<54x128xf32> -> vector<54x128xf32>
    %94 = arith.addf %89, %93 : vector<54x128xf32>
    %c19_78 = arith.constant 19 : index
    %c0_79 = arith.constant 0 : index
    %95 = vector.load %arg9[%c19_78, %c0_79] : memref<342x128xf32, #tpu.memory_space<vmem>>, vector<54x128xf32>
    %c4 = arith.constant 4 : index
    %c0_80 = arith.constant 0 : index
    %c0_81 = arith.constant 0 : index
    %96 = vector.load %arg4[%c4, %c0_80, %c0_81] : memref<9x128x128xf32, #tpu.memory_space<vmem>>, vector<1x128x128xf32>
    %97 = vector.shape_cast %96 : vector<1x128x128xf32> to vector<128x128xf32>
    %cst_82 = arith.constant dense<0.000000e+00> : vector<54x128xf32>
    %98 = tpu.matmul %95, %97, %cst_82 {dimension_numbers = #tpu.dot_dimension_numbers<[1], [0], [0], [1], [0, 0, 1, 1], [], []>} : vector<54x128xf32>, vector<128x128xf32>, vector<54x128xf32> -> vector<54x128xf32>
    %99 = arith.addf %94, %98 : vector<54x128xf32>
    %c20 = arith.constant 20 : index
    %c0_83 = arith.constant 0 : index
    %100 = vector.load %arg9[%c20, %c0_83] : memref<342x128xf32, #tpu.memory_space<vmem>>, vector<54x128xf32>
    %c5 = arith.constant 5 : index
    %c0_84 = arith.constant 0 : index
    %c0_85 = arith.constant 0 : index
    %101 = vector.load %arg4[%c5, %c0_84, %c0_85] : memref<9x128x128xf32, #tpu.memory_space<vmem>>, vector<1x128x128xf32>
    %102 = vector.shape_cast %101 : vector<1x128x128xf32> to vector<128x128xf32>
    %cst_86 = arith.constant dense<0.000000e+00> : vector<54x128xf32>
    %103 = tpu.matmul %100, %102, %cst_86 {dimension_numbers = #tpu.dot_dimension_numbers<[1], [0], [0], [1], [0, 0, 1, 1], [], []>} : vector<54x128xf32>, vector<128x128xf32>, vector<54x128xf32> -> vector<54x128xf32>
    %104 = arith.addf %99, %103 : vector<54x128xf32>
    %c36 = arith.constant 36 : index
    %c0_87 = arith.constant 0 : index
    %105 = vector.load %arg9[%c36, %c0_87] : memref<342x128xf32, #tpu.memory_space<vmem>>, vector<54x128xf32>
    %c6 = arith.constant 6 : index
    %c0_88 = arith.constant 0 : index
    %c0_89 = arith.constant 0 : index
    %106 = vector.load %arg4[%c6, %c0_88, %c0_89] : memref<9x128x128xf32, #tpu.memory_space<vmem>>, vector<1x128x128xf32>
    %107 = vector.shape_cast %106 : vector<1x128x128xf32> to vector<128x128xf32>
    %cst_90 = arith.constant dense<0.000000e+00> : vector<54x128xf32>
    %108 = tpu.matmul %105, %107, %cst_90 {dimension_numbers = #tpu.dot_dimension_numbers<[1], [0], [0], [1], [0, 0, 1, 1], [], []>} : vector<54x128xf32>, vector<128x128xf32>, vector<54x128xf32> -> vector<54x128xf32>
    %109 = arith.addf %104, %108 : vector<54x128xf32>
    %c37_91 = arith.constant 37 : index
    %c0_92 = arith.constant 0 : index
    %110 = vector.load %arg9[%c37_91, %c0_92] : memref<342x128xf32, #tpu.memory_space<vmem>>, vector<54x128xf32>
    %c7 = arith.constant 7 : index
    %c0_93 = arith.constant 0 : index
    %c0_94 = arith.constant 0 : index
    %111 = vector.load %arg4[%c7, %c0_93, %c0_94] : memref<9x128x128xf32, #tpu.memory_space<vmem>>, vector<1x128x128xf32>
    %112 = vector.shape_cast %111 : vector<1x128x128xf32> to vector<128x128xf32>
    %cst_95 = arith.constant dense<0.000000e+00> : vector<54x128xf32>
    %113 = tpu.matmul %110, %112, %cst_95 {dimension_numbers = #tpu.dot_dimension_numbers<[1], [0], [0], [1], [0, 0, 1, 1], [], []>} : vector<54x128xf32>, vector<128x128xf32>, vector<54x128xf32> -> vector<54x128xf32>
    %114 = arith.addf %109, %113 : vector<54x128xf32>
    %c38 = arith.constant 38 : index
    %c0_96 = arith.constant 0 : index
    %115 = vector.load %arg9[%c38, %c0_96] : memref<342x128xf32, #tpu.memory_space<vmem>>, vector<54x128xf32>
    %c8 = arith.constant 8 : index
    %c0_97 = arith.constant 0 : index
    %c0_98 = arith.constant 0 : index
    %116 = vector.load %arg4[%c8, %c0_97, %c0_98] : memref<9x128x128xf32, #tpu.memory_space<vmem>>, vector<1x128x128xf32>
    %117 = vector.shape_cast %116 : vector<1x128x128xf32> to vector<128x128xf32>
    %cst_99 = arith.constant dense<0.000000e+00> : vector<54x128xf32>
    %118 = tpu.matmul %115, %117, %cst_99 {dimension_numbers = #tpu.dot_dimension_numbers<[1], [0], [0], [1], [0, 0, 1, 1], [], []>} : vector<54x128xf32>, vector<128x128xf32>, vector<54x128xf32> -> vector<54x128xf32>
    %119 = arith.addf %114, %118 : vector<54x128xf32>
    %c0_100 = arith.constant 0 : index
    %c0_101 = arith.constant 0 : index
    %120 = vector.load %arg5[%c0_100, %c0_101] : memref<1x128xf32, #tpu.memory_space<vmem>>, vector<1x128xf32>
    %121 = vector.broadcast %120 : vector<1x128xf32> to vector<54x128xf32>
    %122 = arith.addf %119, %121 : vector<54x128xf32>
    %cst_102 = arith.constant 0.000000e+00 : f32
    %123 = vector.broadcast %cst_102 : f32 to vector<54x128xf32>
    %124 = arith.maximumf %122, %123 : vector<54x128xf32>
    %c0_103 = arith.constant 0 : index
    %c0_104 = arith.constant 0 : index
    %125 = vector.load %arg6[%c0_103, %c0_104] : memref<128x128xf32, #tpu.memory_space<vmem>>, vector<128x128xf32>
    %cst_105 = arith.constant dense<0.000000e+00> : vector<54x128xf32>
    %126 = tpu.matmul %124, %125, %cst_105 {dimension_numbers = #tpu.dot_dimension_numbers<[1], [0], [0], [1], [0, 0, 1, 1], [], []>} : vector<54x128xf32>, vector<128x128xf32>, vector<54x128xf32> -> vector<54x128xf32>
    %c0_106 = arith.constant 0 : index
    %c0_107 = arith.constant 0 : index
    %127 = vector.load %arg7[%c0_106, %c0_107] : memref<1x128xf32, #tpu.memory_space<vmem>>, vector<1x128xf32>
    %128 = vector.broadcast %127 : vector<1x128xf32> to vector<54x128xf32>
    %129 = arith.addf %126, %128 : vector<54x128xf32>
    %cst_108 = arith.constant 8.000000e-01 : f32
    %130 = vector.broadcast %cst_108 : f32 to vector<54x128xf32>
    %131 = arith.mulf %129, %130 : vector<54x128xf32>
    %c0_i32_109 = arith.constant 0 : i32
    %c0_i32_110 = arith.constant 0 : i32
    %c0_i32_111 = arith.constant 0 : i32
    %132 = tpu.memref_slice %arg1[%c0_i32_109, %c0_i32_110, %c0_i32_111] : memref<1x256x128xf32, #tpu.memory_space<vmem>> -> memref<1x256x128xf32, #tpu.memory_space<vmem>>
    %133 = tpu.memref_squeeze %132 : memref<1x256x128xf32, #tpu.memory_space<vmem>> -> memref<256x128xf32, #tpu.memory_space<vmem>>
    %c0_112 = arith.constant 0 : index
    %c0_113 = arith.constant 0 : index
    %134 = vector.load %133[%c0_112, %c0_113] : memref<256x128xf32, #tpu.memory_space<vmem>>, vector<16x128xf32>
    %135 = vector.extract_strided_slice %131 {offsets = [0, 0], sizes = [16, 128], strides = [1, 1]} : vector<54x128xf32> to vector<16x128xf32>
    %136 = arith.addf %135, %134 : vector<16x128xf32>
    %cst_114 = arith.constant 0.000000e+00 : f32
    %137 = vector.broadcast %cst_114 : f32 to vector<16x128xf32>
    %138 = arith.maximumf %136, %137 : vector<16x128xf32>
    %c0_i32_115 = arith.constant 0 : i32
    %c0_i32_116 = arith.constant 0 : i32
    %c0_i32_117 = arith.constant 0 : i32
    %139 = tpu.memref_slice %arg8[%c0_i32_115, %c0_i32_116, %c0_i32_117] : memref<1x256x128xf32, #tpu.memory_space<vmem>> -> memref<1x256x128xf32, #tpu.memory_space<vmem>>
    %140 = tpu.memref_squeeze %139 : memref<1x256x128xf32, #tpu.memory_space<vmem>> -> memref<256x128xf32, #tpu.memory_space<vmem>>
    %c0_118 = arith.constant 0 : index
    %c0_119 = arith.constant 0 : index
    %141 = vector.load %140[%c0_118, %c0_119] : memref<256x128xf32, #tpu.memory_space<vmem>>, vector<16x128xf32>
    tpu.vector_store %140[%c0_118, %c0_119], %138 {strides = array<i32>} : memref<256x128xf32, #tpu.memory_space<vmem>>, vector<16x128xf32>,
    %c0_i32_120 = arith.constant 0 : i32
    %c0_i32_121 = arith.constant 0 : i32
    %c0_i32_122 = arith.constant 0 : i32
    %142 = tpu.memref_slice %arg1[%c0_i32_120, %c0_i32_121, %c0_i32_122] : memref<1x256x128xf32, #tpu.memory_space<vmem>> -> memref<1x256x128xf32, #tpu.memory_space<vmem>>
    %143 = tpu.memref_squeeze %142 : memref<1x256x128xf32, #tpu.memory_space<vmem>> -> memref<256x128xf32, #tpu.memory_space<vmem>>
    %c16 = arith.constant 16 : index
    %c0_123 = arith.constant 0 : index
    %144 = vector.load %143[%c16, %c0_123] : memref<256x128xf32, #tpu.memory_space<vmem>>, vector<16x128xf32>
    %145 = vector.extract_strided_slice %131 {offsets = [18, 0], sizes = [16, 128], strides = [1, 1]} : vector<54x128xf32> to vector<16x128xf32>
    %146 = arith.addf %145, %144 : vector<16x128xf32>
    %cst_124 = arith.constant 0.000000e+00 : f32
    %147 = vector.broadcast %cst_124 : f32 to vector<16x128xf32>
    %148 = arith.maximumf %146, %147 : vector<16x128xf32>
    %c0_i32_125 = arith.constant 0 : i32
    %c0_i32_126 = arith.constant 0 : i32
    %c0_i32_127 = arith.constant 0 : i32
    %149 = tpu.memref_slice %arg8[%c0_i32_125, %c0_i32_126, %c0_i32_127] : memref<1x256x128xf32, #tpu.memory_space<vmem>> -> memref<1x256x128xf32, #tpu.memory_space<vmem>>
    %150 = tpu.memref_squeeze %149 : memref<1x256x128xf32, #tpu.memory_space<vmem>> -> memref<256x128xf32, #tpu.memory_space<vmem>>
    %c16_128 = arith.constant 16 : index
    %c0_129 = arith.constant 0 : index
    %151 = vector.load %150[%c16_128, %c0_129] : memref<256x128xf32, #tpu.memory_space<vmem>>, vector<16x128xf32>
    tpu.vector_store %150[%c16_128, %c0_129], %148 {strides = array<i32>} : memref<256x128xf32, #tpu.memory_space<vmem>>, vector<16x128xf32>,
    %c0_i32_130 = arith.constant 0 : i32
    %c0_i32_131 = arith.constant 0 : i32
    %c0_i32_132 = arith.constant 0 : i32
    %152 = tpu.memref_slice %arg1[%c0_i32_130, %c0_i32_131, %c0_i32_132] : memref<1x256x128xf32, #tpu.memory_space<vmem>> -> memref<1x256x128xf32, #tpu.memory_space<vmem>>
    %153 = tpu.memref_squeeze %152 : memref<1x256x128xf32, #tpu.memory_space<vmem>> -> memref<256x128xf32, #tpu.memory_space<vmem>>
    %c32 = arith.constant 32 : index
    %c0_133 = arith.constant 0 : index
    %154 = vector.load %153[%c32, %c0_133] : memref<256x128xf32, #tpu.memory_space<vmem>>, vector<16x128xf32>
    %155 = vector.extract_strided_slice %131 {offsets = [36, 0], sizes = [16, 128], strides = [1, 1]} : vector<54x128xf32> to vector<16x128xf32>
    %156 = arith.addf %155, %154 : vector<16x128xf32>
    %cst_134 = arith.constant 0.000000e+00 : f32
    %157 = vector.broadcast %cst_134 : f32 to vector<16x128xf32>
    %158 = arith.maximumf %156, %157 : vector<16x128xf32>
    %c0_i32_135 = arith.constant 0 : i32
    %c0_i32_136 = arith.constant 0 : i32
    %c0_i32_137 = arith.constant 0 : i32
    %159 = tpu.memref_slice %arg8[%c0_i32_135, %c0_i32_136, %c0_i32_137] : memref<1x256x128xf32, #tpu.memory_space<vmem>> -> memref<1x256x128xf32, #tpu.memory_space<vmem>>
    %160 = tpu.memref_squeeze %159 : memref<1x256x128xf32, #tpu.memory_space<vmem>> -> memref<256x128xf32, #tpu.memory_space<vmem>>
    %c32_138 = arith.constant 32 : index
    %c0_139 = arith.constant 0 : index
    %161 = vector.load %160[%c32_138, %c0_139] : memref<256x128xf32, #tpu.memory_space<vmem>>, vector<16x128xf32>
    tpu.vector_store %160[%c32_138, %c0_139], %158 {strides = array<i32>} : memref<256x128xf32, #tpu.memory_space<vmem>>, vector<16x128xf32>,
    %cst_140 = arith.constant 0.000000e+00 : f32
    %162 = vector.broadcast %cst_140 : f32 to vector<54x128xf32>
    %c54 = arith.constant 54 : index
    %c0_141 = arith.constant 0 : index
    %163 = vector.load %arg9[%c54, %c0_141] : memref<342x128xf32, #tpu.memory_space<vmem>>, vector<54x128xf32>
    %c0_142 = arith.constant 0 : index
    %c0_143 = arith.constant 0 : index
    %c0_144 = arith.constant 0 : index
    %164 = vector.load %arg4[%c0_142, %c0_143, %c0_144] : memref<9x128x128xf32, #tpu.memory_space<vmem>>, vector<1x128x128xf32>
    %165 = vector.shape_cast %164 : vector<1x128x128xf32> to vector<128x128xf32>
    %cst_145 = arith.constant dense<0.000000e+00> : vector<54x128xf32>
    %166 = tpu.matmul %163, %165, %cst_145 {dimension_numbers = #tpu.dot_dimension_numbers<[1], [0], [0], [1], [0, 0, 1, 1], [], []>} : vector<54x128xf32>, vector<128x128xf32>, vector<54x128xf32> -> vector<54x128xf32>
    %167 = arith.addf %162, %166 : vector<54x128xf32>
    %c55_146 = arith.constant 55 : index
    %c0_147 = arith.constant 0 : index
    %168 = vector.load %arg9[%c55_146, %c0_147] : memref<342x128xf32, #tpu.memory_space<vmem>>, vector<54x128xf32>
    %c1_148 = arith.constant 1 : index
    %c0_149 = arith.constant 0 : index
    %c0_150 = arith.constant 0 : index
    %169 = vector.load %arg4[%c1_148, %c0_149, %c0_150] : memref<9x128x128xf32, #tpu.memory_space<vmem>>, vector<1x128x128xf32>
    %170 = vector.shape_cast %169 : vector<1x128x128xf32> to vector<128x128xf32>
    %cst_151 = arith.constant dense<0.000000e+00> : vector<54x128xf32>
    %171 = tpu.matmul %168, %170, %cst_151 {dimension_numbers = #tpu.dot_dimension_numbers<[1], [0], [0], [1], [0, 0, 1, 1], [], []>} : vector<54x128xf32>, vector<128x128xf32>, vector<54x128xf32> -> vector<54x128xf32>
    %172 = arith.addf %167, %171 : vector<54x128xf32>
    %c56 = arith.constant 56 : index
    %c0_152 = arith.constant 0 : index
    %173 = vector.load %arg9[%c56, %c0_152] : memref<342x128xf32, #tpu.memory_space<vmem>>, vector<54x128xf32>
    %c2_153 = arith.constant 2 : index
    %c0_154 = arith.constant 0 : index
    %c0_155 = arith.constant 0 : index
    %174 = vector.load %arg4[%c2_153, %c0_154, %c0_155] : memref<9x128x128xf32, #tpu.memory_space<vmem>>, vector<1x128x128xf32>
    %175 = vector.shape_cast %174 : vector<1x128x128xf32> to vector<128x128xf32>
    %cst_156 = arith.constant dense<0.000000e+00> : vector<54x128xf32>
    %176 = tpu.matmul %173, %175, %cst_156 {dimension_numbers = #tpu.dot_dimension_numbers<[1], [0], [0], [1], [0, 0, 1, 1], [], []>} : vector<54x128xf32>, vector<128x128xf32>, vector<54x128xf32> -> vector<54x128xf32>
    %177 = arith.addf %172, %176 : vector<54x128xf32>
    %c72 = arith.constant 72 : index
    %c0_157 = arith.constant 0 : index
    %178 = vector.load %arg9[%c72, %c0_157] : memref<342x128xf32, #tpu.memory_space<vmem>>, vector<54x128xf32>
    %c3_158 = arith.constant 3 : index
    %c0_159 = arith.constant 0 : index
    %c0_160 = arith.constant 0 : index
    %179 = vector.load %arg4[%c3_158, %c0_159, %c0_160] : memref<9x128x128xf32, #tpu.memory_space<vmem>>, vector<1x128x128xf32>
    %180 = vector.shape_cast %179 : vector<1x128x128xf32> to vector<128x128xf32>
    %cst_161 = arith.constant dense<0.000000e+00> : vector<54x128xf32>
    %181 = tpu.matmul %178, %180, %cst_161 {dimension_numbers = #tpu.dot_dimension_numbers<[1], [0], [0], [1], [0, 0, 1, 1], [], []>} : vector<54x128xf32>, vector<128x128xf32>, vector<54x128xf32> -> vector<54x128xf32>
    %182 = arith.addf %177, %181 : vector<54x128xf32>
    %c73_162 = arith.constant 73 : index
    %c0_163 = arith.constant 0 : index
    %183 = vector.load %arg9[%c73_162, %c0_163] : memref<342x128xf32, #tpu.memory_space<vmem>>, vector<54x128xf32>
    %c4_164 = arith.constant 4 : index
    %c0_165 = arith.constant 0 : index
    %c0_166 = arith.constant 0 : index
    %184 = vector.load %arg4[%c4_164, %c0_165, %c0_166] : memref<9x128x128xf32, #tpu.memory_space<vmem>>, vector<1x128x128xf32>
    %185 = vector.shape_cast %184 : vector<1x128x128xf32> to vector<128x128xf32>
    %cst_167 = arith.constant dense<0.000000e+00> : vector<54x128xf32>
    %186 = tpu.matmul %183, %185, %cst_167 {dimension_numbers = #tpu.dot_dimension_numbers<[1], [0], [0], [1], [0, 0, 1, 1], [], []>} : vector<54x128xf32>, vector<128x128xf32>, vector<54x128xf32> -> vector<54x128xf32>
    %187 = arith.addf %182, %186 : vector<54x128xf32>
    %c74 = arith.constant 74 : index
    %c0_168 = arith.constant 0 : index
    %188 = vector.load %arg9[%c74, %c0_168] : memref<342x128xf32, #tpu.memory_space<vmem>>, vector<54x128xf32>
    %c5_169 = arith.constant 5 : index
    %c0_170 = arith.constant 0 : index
    %c0_171 = arith.constant 0 : index
    %189 = vector.load %arg4[%c5_169, %c0_170, %c0_171] : memref<9x128x128xf32, #tpu.memory_space<vmem>>, vector<1x128x128xf32>
    %190 = vector.shape_cast %189 : vector<1x128x128xf32> to vector<128x128xf32>
    %cst_172 = arith.constant dense<0.000000e+00> : vector<54x128xf32>
    %191 = tpu.matmul %188, %190, %cst_172 {dimension_numbers = #tpu.dot_dimension_numbers<[1], [0], [0], [1], [0, 0, 1, 1], [], []>} : vector<54x128xf32>, vector<128x128xf32>, vector<54x128xf32> -> vector<54x128xf32>
    %192 = arith.addf %187, %191 : vector<54x128xf32>
    %c90 = arith.constant 90 : index
    %c0_173 = arith.constant 0 : index
    %193 = vector.load %arg9[%c90, %c0_173] : memref<342x128xf32, #tpu.memory_space<vmem>>, vector<54x128xf32>
    %c6_174 = arith.constant 6 : index
    %c0_175 = arith.constant 0 : index
    %c0_176 = arith.constant 0 : index
    %194 = vector.load %arg4[%c6_174, %c0_175, %c0_176] : memref<9x128x128xf32, #tpu.memory_space<vmem>>, vector<1x128x128xf32>
    %195 = vector.shape_cast %194 : vector<1x128x128xf32> to vector<128x128xf32>
    %cst_177 = arith.constant dense<0.000000e+00> : vector<54x128xf32>
    %196 = tpu.matmul %193, %195, %cst_177 {dimension_numbers = #tpu.dot_dimension_numbers<[1], [0], [0], [1], [0, 0, 1, 1], [], []>} : vector<54x128xf32>, vector<128x128xf32>, vector<54x128xf32> -> vector<54x128xf32>
    %197 = arith.addf %192, %196 : vector<54x128xf32>
    %c91_178 = arith.constant 91 : index
    %c0_179 = arith.constant 0 : index
    %198 = vector.load %arg9[%c91_178, %c0_179] : memref<342x128xf32, #tpu.memory_space<vmem>>, vector<54x128xf32>
    %c7_180 = arith.constant 7 : index
    %c0_181 = arith.constant 0 : index
    %c0_182 = arith.constant 0 : index
    %199 = vector.load %arg4[%c7_180, %c0_181, %c0_182] : memref<9x128x128xf32, #tpu.memory_space<vmem>>, vector<1x128x128xf32>
    %200 = vector.shape_cast %199 : vector<1x128x128xf32> to vector<128x128xf32>
    %cst_183 = arith.constant dense<0.000000e+00> : vector<54x128xf32>
    %201 = tpu.matmul %198, %200, %cst_183 {dimension_numbers = #tpu.dot_dimension_numbers<[1], [0], [0], [1], [0, 0, 1, 1], [], []>} : vector<54x128xf32>, vector<128x128xf32>, vector<54x128xf32> -> vector<54x128xf32>
    %202 = arith.addf %197, %201 : vector<54x128xf32>
    %c92 = arith.constant 92 : index
    %c0_184 = arith.constant 0 : index
    %203 = vector.load %arg9[%c92, %c0_184] : memref<342x128xf32, #tpu.memory_space<vmem>>, vector<54x128xf32>
    %c8_185 = arith.constant 8 : index
    %c0_186 = arith.constant 0 : index
    %c0_187 = arith.constant 0 : index
    %204 = vector.load %arg4[%c8_185, %c0_186, %c0_187] : memref<9x128x128xf32, #tpu.memory_space<vmem>>, vector<1x128x128xf32>
    %205 = vector.shape_cast %204 : vector<1x128x128xf32> to vector<128x128xf32>
    %cst_188 = arith.constant dense<0.000000e+00> : vector<54x128xf32>
    %206 = tpu.matmul %203, %205, %cst_188 {dimension_numbers = #tpu.dot_dimension_numbers<[1], [0], [0], [1], [0, 0, 1, 1], [], []>} : vector<54x128xf32>, vector<128x128xf32>, vector<54x128xf32> -> vector<54x128xf32>
    %207 = arith.addf %202, %206 : vector<54x128xf32>
    %c0_189 = arith.constant 0 : index
    %c0_190 = arith.constant 0 : index
    %208 = vector.load %arg5[%c0_189, %c0_190] : memref<1x128xf32, #tpu.memory_space<vmem>>, vector<1x128xf32>
    %209 = vector.broadcast %208 : vector<1x128xf32> to vector<54x128xf32>
    %210 = arith.addf %207, %209 : vector<54x128xf32>
    %cst_191 = arith.constant 0.000000e+00 : f32
    %211 = vector.broadcast %cst_191 : f32 to vector<54x128xf32>
    %212 = arith.maximumf %210, %211 : vector<54x128xf32>
    %c0_192 = arith.constant 0 : index
    %c0_193 = arith.constant 0 : index
    %213 = vector.load %arg6[%c0_192, %c0_193] : memref<128x128xf32, #tpu.memory_space<vmem>>, vector<128x128xf32>
    %cst_194 = arith.constant dense<0.000000e+00> : vector<54x128xf32>
    %214 = tpu.matmul %212, %213, %cst_194 {dimension_numbers = #tpu.dot_dimension_numbers<[1], [0], [0], [1], [0, 0, 1, 1], [], []>} : vector<54x128xf32>, vector<128x128xf32>, vector<54x128xf32> -> vector<54x128xf32>
    %c0_195 = arith.constant 0 : index
    %c0_196 = arith.constant 0 : index
    %215 = vector.load %arg7[%c0_195, %c0_196] : memref<1x128xf32, #tpu.memory_space<vmem>>, vector<1x128xf32>
    %216 = vector.broadcast %215 : vector<1x128xf32> to vector<54x128xf32>
    %217 = arith.addf %214, %216 : vector<54x128xf32>
    %cst_197 = arith.constant 8.000000e-01 : f32
    %218 = vector.broadcast %cst_197 : f32 to vector<54x128xf32>
    %219 = arith.mulf %217, %218 : vector<54x128xf32>
    %c0_i32_198 = arith.constant 0 : i32
    %c0_i32_199 = arith.constant 0 : i32
    %c0_i32_200 = arith.constant 0 : i32
    %220 = tpu.memref_slice %arg1[%c0_i32_198, %c0_i32_199, %c0_i32_200] : memref<1x256x128xf32, #tpu.memory_space<vmem>> -> memref<1x256x128xf32, #tpu.memory_space<vmem>>
    %221 = tpu.memref_squeeze %220 : memref<1x256x128xf32, #tpu.memory_space<vmem>> -> memref<256x128xf32, #tpu.memory_space<vmem>>
    %c48 = arith.constant 48 : index
    %c0_201 = arith.constant 0 : index
    %222 = vector.load %221[%c48, %c0_201] : memref<256x128xf32, #tpu.memory_space<vmem>>, vector<16x128xf32>
    %223 = vector.extract_strided_slice %219 {offsets = [0, 0], sizes = [16, 128], strides = [1, 1]} : vector<54x128xf32> to vector<16x128xf32>
    %224 = arith.addf %223, %222 : vector<16x128xf32>
    %cst_202 = arith.constant 0.000000e+00 : f32
    %225 = vector.broadcast %cst_202 : f32 to vector<16x128xf32>
    %226 = arith.maximumf %224, %225 : vector<16x128xf32>
    %c0_i32_203 = arith.constant 0 : i32
    %c0_i32_204 = arith.constant 0 : i32
    %c0_i32_205 = arith.constant 0 : i32
    %227 = tpu.memref_slice %arg8[%c0_i32_203, %c0_i32_204, %c0_i32_205] : memref<1x256x128xf32, #tpu.memory_space<vmem>> -> memref<1x256x128xf32, #tpu.memory_space<vmem>>
    %228 = tpu.memref_squeeze %227 : memref<1x256x128xf32, #tpu.memory_space<vmem>> -> memref<256x128xf32, #tpu.memory_space<vmem>>
    %c48_206 = arith.constant 48 : index
    %c0_207 = arith.constant 0 : index
    %229 = vector.load %228[%c48_206, %c0_207] : memref<256x128xf32, #tpu.memory_space<vmem>>, vector<16x128xf32>
    tpu.vector_store %228[%c48_206, %c0_207], %226 {strides = array<i32>} : memref<256x128xf32, #tpu.memory_space<vmem>>, vector<16x128xf32>,
    %c0_i32_208 = arith.constant 0 : i32
    %c0_i32_209 = arith.constant 0 : i32
    %c0_i32_210 = arith.constant 0 : i32
    %230 = tpu.memref_slice %arg1[%c0_i32_208, %c0_i32_209, %c0_i32_210] : memref<1x256x128xf32, #tpu.memory_space<vmem>> -> memref<1x256x128xf32, #tpu.memory_space<vmem>>
    %231 = tpu.memref_squeeze %230 : memref<1x256x128xf32, #tpu.memory_space<vmem>> -> memref<256x128xf32, #tpu.memory_space<vmem>>
    %c64_211 = arith.constant 64 : index
    %c0_212 = arith.constant 0 : index
    %232 = vector.load %231[%c64_211, %c0_212] : memref<256x128xf32, #tpu.memory_space<vmem>>, vector<16x128xf32>
    %233 = vector.extract_strided_slice %219 {offsets = [18, 0], sizes = [16, 128], strides = [1, 1]} : vector<54x128xf32> to vector<16x128xf32>
    %234 = arith.addf %233, %232 : vector<16x128xf32>
    %cst_213 = arith.constant 0.000000e+00 : f32
    %235 = vector.broadcast %cst_213 : f32 to vector<16x128xf32>
    %236 = arith.maximumf %234, %235 : vector<16x128xf32>
    %c0_i32_214 = arith.constant 0 : i32
    %c0_i32_215 = arith.constant 0 : i32
    %c0_i32_216 = arith.constant 0 : i32
    %237 = tpu.memref_slice %arg8[%c0_i32_214, %c0_i32_215, %c0_i32_216] : memref<1x256x128xf32, #tpu.memory_space<vmem>> -> memref<1x256x128xf32, #tpu.memory_space<vmem>>
    %238 = tpu.memref_squeeze %237 : memref<1x256x128xf32, #tpu.memory_space<vmem>> -> memref<256x128xf32, #tpu.memory_space<vmem>>
    %c64_217 = arith.constant 64 : index
    %c0_218 = arith.constant 0 : index
    %239 = vector.load %238[%c64_217, %c0_218] : memref<256x128xf32, #tpu.memory_space<vmem>>, vector<16x128xf32>
    tpu.vector_store %238[%c64_217, %c0_218], %236 {strides = array<i32>} : memref<256x128xf32, #tpu.memory_space<vmem>>, vector<16x128xf32>,
    %c0_i32_219 = arith.constant 0 : i32
    %c0_i32_220 = arith.constant 0 : i32
    %c0_i32_221 = arith.constant 0 : i32
    %240 = tpu.memref_slice %arg1[%c0_i32_219, %c0_i32_220, %c0_i32_221] : memref<1x256x128xf32, #tpu.memory_space<vmem>> -> memref<1x256x128xf32, #tpu.memory_space<vmem>>
    %241 = tpu.memref_squeeze %240 : memref<1x256x128xf32, #tpu.memory_space<vmem>> -> memref<256x128xf32, #tpu.memory_space<vmem>>
    %c80 = arith.constant 80 : index
    %c0_222 = arith.constant 0 : index
    %242 = vector.load %241[%c80, %c0_222] : memref<256x128xf32, #tpu.memory_space<vmem>>, vector<16x128xf32>
    %243 = vector.extract_strided_slice %219 {offsets = [36, 0], sizes = [16, 128], strides = [1, 1]} : vector<54x128xf32> to vector<16x128xf32>
    %244 = arith.addf %243, %242 : vector<16x128xf32>
    %cst_223 = arith.constant 0.000000e+00 : f32
    %245 = vector.broadcast %cst_223 : f32 to vector<16x128xf32>
    %246 = arith.maximumf %244, %245 : vector<16x128xf32>
    %c0_i32_224 = arith.constant 0 : i32
    %c0_i32_225 = arith.constant 0 : i32
    %c0_i32_226 = arith.constant 0 : i32
    %247 = tpu.memref_slice %arg8[%c0_i32_224, %c0_i32_225, %c0_i32_226] : memref<1x256x128xf32, #tpu.memory_space<vmem>> -> memref<1x256x128xf32, #tpu.memory_space<vmem>>
    %248 = tpu.memref_squeeze %247 : memref<1x256x128xf32, #tpu.memory_space<vmem>> -> memref<256x128xf32, #tpu.memory_space<vmem>>
    %c80_227 = arith.constant 80 : index
    %c0_228 = arith.constant 0 : index
    %249 = vector.load %248[%c80_227, %c0_228] : memref<256x128xf32, #tpu.memory_space<vmem>>, vector<16x128xf32>
    tpu.vector_store %248[%c80_227, %c0_228], %246 {strides = array<i32>} : memref<256x128xf32, #tpu.memory_space<vmem>>, vector<16x128xf32>,
    %cst_229 = arith.constant 0.000000e+00 : f32
    %250 = vector.broadcast %cst_229 : f32 to vector<54x128xf32>
    %c108 = arith.constant 108 : index
    %c0_230 = arith.constant 0 : index
    %251 = vector.load %arg9[%c108, %c0_230] : memref<342x128xf32, #tpu.memory_space<vmem>>, vector<54x128xf32>
    %c0_231 = arith.constant 0 : index
    %c0_232 = arith.constant 0 : index
    %c0_233 = arith.constant 0 : index
    %252 = vector.load %arg4[%c0_231, %c0_232, %c0_233] : memref<9x128x128xf32, #tpu.memory_space<vmem>>, vector<1x128x128xf32>
    %253 = vector.shape_cast %252 : vector<1x128x128xf32> to vector<128x128xf32>
    %cst_234 = arith.constant dense<0.000000e+00> : vector<54x128xf32>
    %254 = tpu.matmul %251, %253, %cst_234 {dimension_numbers = #tpu.dot_dimension_numbers<[1], [0], [0], [1], [0, 0, 1, 1], [], []>} : vector<54x128xf32>, vector<128x128xf32>, vector<54x128xf32> -> vector<54x128xf32>
    %255 = arith.addf %250, %254 : vector<54x128xf32>
    %c109_235 = arith.constant 109 : index
    %c0_236 = arith.constant 0 : index
    %256 = vector.load %arg9[%c109_235, %c0_236] : memref<342x128xf32, #tpu.memory_space<vmem>>, vector<54x128xf32>
    %c1_237 = arith.constant 1 : index
    %c0_238 = arith.constant 0 : index
    %c0_239 = arith.constant 0 : index
    %257 = vector.load %arg4[%c1_237, %c0_238, %c0_239] : memref<9x128x128xf32, #tpu.memory_space<vmem>>, vector<1x128x128xf32>
    %258 = vector.shape_cast %257 : vector<1x128x128xf32> to vector<128x128xf32>
    %cst_240 = arith.constant dense<0.000000e+00> : vector<54x128xf32>
    %259 = tpu.matmul %256, %258, %cst_240 {dimension_numbers = #tpu.dot_dimension_numbers<[1], [0], [0], [1], [0, 0, 1, 1], [], []>} : vector<54x128xf32>, vector<128x128xf32>, vector<54x128xf32> -> vector<54x128xf32>
    %260 = arith.addf %255, %259 : vector<54x128xf32>
    %c110 = arith.constant 110 : index
    %c0_241 = arith.constant 0 : index
    %261 = vector.load %arg9[%c110, %c0_241] : memref<342x128xf32, #tpu.memory_space<vmem>>, vector<54x128xf32>
    %c2_242 = arith.constant 2 : index
    %c0_243 = arith.constant 0 : index
    %c0_244 = arith.constant 0 : index
    %262 = vector.load %arg4[%c2_242, %c0_243, %c0_244] : memref<9x128x128xf32, #tpu.memory_space<vmem>>, vector<1x128x128xf32>
    %263 = vector.shape_cast %262 : vector<1x128x128xf32> to vector<128x128xf32>
    %cst_245 = arith.constant dense<0.000000e+00> : vector<54x128xf32>
    %264 = tpu.matmul %261, %263, %cst_245 {dimension_numbers = #tpu.dot_dimension_numbers<[1], [0], [0], [1], [0, 0, 1, 1], [], []>} : vector<54x128xf32>, vector<128x128xf32>, vector<54x128xf32> -> vector<54x128xf32>
    %265 = arith.addf %260, %264 : vector<54x128xf32>
    %c126 = arith.constant 126 : index
    %c0_246 = arith.constant 0 : index
    %266 = vector.load %arg9[%c126, %c0_246] : memref<342x128xf32, #tpu.memory_space<vmem>>, vector<54x128xf32>
    %c3_247 = arith.constant 3 : index
    %c0_248 = arith.constant 0 : index
    %c0_249 = arith.constant 0 : index
    %267 = vector.load %arg4[%c3_247, %c0_248, %c0_249] : memref<9x128x128xf32, #tpu.memory_space<vmem>>, vector<1x128x128xf32>
    %268 = vector.shape_cast %267 : vector<1x128x128xf32> to vector<128x128xf32>
    %cst_250 = arith.constant dense<0.000000e+00> : vector<54x128xf32>
    %269 = tpu.matmul %266, %268, %cst_250 {dimension_numbers = #tpu.dot_dimension_numbers<[1], [0], [0], [1], [0, 0, 1, 1], [], []>} : vector<54x128xf32>, vector<128x128xf32>, vector<54x128xf32> -> vector<54x128xf32>
    %270 = arith.addf %265, %269 : vector<54x128xf32>
    %c127_251 = arith.constant 127 : index
    %c0_252 = arith.constant 0 : index
    %271 = vector.load %arg9[%c127_251, %c0_252] : memref<342x128xf32, #tpu.memory_space<vmem>>, vector<54x128xf32>
    %c4_253 = arith.constant 4 : index
    %c0_254 = arith.constant 0 : index
    %c0_255 = arith.constant 0 : index
    %272 = vector.load %arg4[%c4_253, %c0_254, %c0_255] : memref<9x128x128xf32, #tpu.memory_space<vmem>>, vector<1x128x128xf32>
    %273 = vector.shape_cast %272 : vector<1x128x128xf32> to vector<128x128xf32>
    %cst_256 = arith.constant dense<0.000000e+00> : vector<54x128xf32>
    %274 = tpu.matmul %271, %273, %cst_256 {dimension_numbers = #tpu.dot_dimension_numbers<[1], [0], [0], [1], [0, 0, 1, 1], [], []>} : vector<54x128xf32>, vector<128x128xf32>, vector<54x128xf32> -> vector<54x128xf32>
    %275 = arith.addf %270, %274 : vector<54x128xf32>
    %c128_257 = arith.constant 128 : index
    %c0_258 = arith.constant 0 : index
    %276 = vector.load %arg9[%c128_257, %c0_258] : memref<342x128xf32, #tpu.memory_space<vmem>>, vector<54x128xf32>
    %c5_259 = arith.constant 5 : index
    %c0_260 = arith.constant 0 : index
    %c0_261 = arith.constant 0 : index
    %277 = vector.load %arg4[%c5_259, %c0_260, %c0_261] : memref<9x128x128xf32, #tpu.memory_space<vmem>>, vector<1x128x128xf32>
    %278 = vector.shape_cast %277 : vector<1x128x128xf32> to vector<128x128xf32>
    %cst_262 = arith.constant dense<0.000000e+00> : vector<54x128xf32>
    %279 = tpu.matmul %276, %278, %cst_262 {dimension_numbers = #tpu.dot_dimension_numbers<[1], [0], [0], [1], [0, 0, 1, 1], [], []>} : vector<54x128xf32>, vector<128x128xf32>, vector<54x128xf32> -> vector<54x128xf32>
    %280 = arith.addf %275, %279 : vector<54x128xf32>
    %c144 = arith.constant 144 : index
    %c0_263 = arith.constant 0 : index
    %281 = vector.load %arg9[%c144, %c0_263] : memref<342x128xf32, #tpu.memory_space<vmem>>, vector<54x128xf32>
    %c6_264 = arith.constant 6 : index
    %c0_265 = arith.constant 0 : index
    %c0_266 = arith.constant 0 : index
    %282 = vector.load %arg4[%c6_264, %c0_265, %c0_266] : memref<9x128x128xf32, #tpu.memory_space<vmem>>, vector<1x128x128xf32>
    %283 = vector.shape_cast %282 : vector<1x128x128xf32> to vector<128x128xf32>
    %cst_267 = arith.constant dense<0.000000e+00> : vector<54x128xf32>
    %284 = tpu.matmul %281, %283, %cst_267 {dimension_numbers = #tpu.dot_dimension_numbers<[1], [0], [0], [1], [0, 0, 1, 1], [], []>} : vector<54x128xf32>, vector<128x128xf32>, vector<54x128xf32> -> vector<54x128xf32>
    %285 = arith.addf %280, %284 : vector<54x128xf32>
    %c145_268 = arith.constant 145 : index
    %c0_269 = arith.constant 0 : index
    %286 = vector.load %arg9[%c145_268, %c0_269] : memref<342x128xf32, #tpu.memory_space<vmem>>, vector<54x128xf32>
    %c7_270 = arith.constant 7 : index
    %c0_271 = arith.constant 0 : index
    %c0_272 = arith.constant 0 : index
    %287 = vector.load %arg4[%c7_270, %c0_271, %c0_272] : memref<9x128x128xf32, #tpu.memory_space<vmem>>, vector<1x128x128xf32>
    %288 = vector.shape_cast %287 : vector<1x128x128xf32> to vector<128x128xf32>
    %cst_273 = arith.constant dense<0.000000e+00> : vector<54x128xf32>
    %289 = tpu.matmul %286, %288, %cst_273 {dimension_numbers = #tpu.dot_dimension_numbers<[1], [0], [0], [1], [0, 0, 1, 1], [], []>} : vector<54x128xf32>, vector<128x128xf32>, vector<54x128xf32> -> vector<54x128xf32>
    %290 = arith.addf %285, %289 : vector<54x128xf32>
    %c146 = arith.constant 146 : index
    %c0_274 = arith.constant 0 : index
    %291 = vector.load %arg9[%c146, %c0_274] : memref<342x128xf32, #tpu.memory_space<vmem>>, vector<54x128xf32>
    %c8_275 = arith.constant 8 : index
    %c0_276 = arith.constant 0 : index
    %c0_277 = arith.constant 0 : index
    %292 = vector.load %arg4[%c8_275, %c0_276, %c0_277] : memref<9x128x128xf32, #tpu.memory_space<vmem>>, vector<1x128x128xf32>
    %293 = vector.shape_cast %292 : vector<1x128x128xf32> to vector<128x128xf32>
    %cst_278 = arith.constant dense<0.000000e+00> : vector<54x128xf32>
    %294 = tpu.matmul %291, %293, %cst_278 {dimension_numbers = #tpu.dot_dimension_numbers<[1], [0], [0], [1], [0, 0, 1, 1], [], []>} : vector<54x128xf32>, vector<128x128xf32>, vector<54x128xf32> -> vector<54x128xf32>
    %295 = arith.addf %290, %294 : vector<54x128xf32>
    %c0_279 = arith.constant 0 : index
    %c0_280 = arith.constant 0 : index
    %296 = vector.load %arg5[%c0_279, %c0_280] : memref<1x128xf32, #tpu.memory_space<vmem>>, vector<1x128xf32>
    %297 = vector.broadcast %296 : vector<1x128xf32> to vector<54x128xf32>
    %298 = arith.addf %295, %297 : vector<54x128xf32>
    %cst_281 = arith.constant 0.000000e+00 : f32
    %299 = vector.broadcast %cst_281 : f32 to vector<54x128xf32>
    %300 = arith.maximumf %298, %299 : vector<54x128xf32>
    %c0_282 = arith.constant 0 : index
    %c0_283 = arith.constant 0 : index
    %301 = vector.load %arg6[%c0_282, %c0_283] : memref<128x128xf32, #tpu.memory_space<vmem>>, vector<128x128xf32>
    %cst_284 = arith.constant dense<0.000000e+00> : vector<54x128xf32>
    %302 = tpu.matmul %300, %301, %cst_284 {dimension_numbers = #tpu.dot_dimension_numbers<[1], [0], [0], [1], [0, 0, 1, 1], [], []>} : vector<54x128xf32>, vector<128x128xf32>, vector<54x128xf32> -> vector<54x128xf32>
    %c0_285 = arith.constant 0 : index
    %c0_286 = arith.constant 0 : index
    %303 = vector.load %arg7[%c0_285, %c0_286] : memref<1x128xf32, #tpu.memory_space<vmem>>, vector<1x128xf32>
    %304 = vector.broadcast %303 : vector<1x128xf32> to vector<54x128xf32>
    %305 = arith.addf %302, %304 : vector<54x128xf32>
    %cst_287 = arith.constant 8.000000e-01 : f32
    %306 = vector.broadcast %cst_287 : f32 to vector<54x128xf32>
    %307 = arith.mulf %305, %306 : vector<54x128xf32>
    %c0_i32_288 = arith.constant 0 : i32
    %c0_i32_289 = arith.constant 0 : i32
    %c0_i32_290 = arith.constant 0 : i32
    %308 = tpu.memref_slice %arg1[%c0_i32_288, %c0_i32_289, %c0_i32_290] : memref<1x256x128xf32, #tpu.memory_space<vmem>> -> memref<1x256x128xf32, #tpu.memory_space<vmem>>
    %309 = tpu.memref_squeeze %308 : memref<1x256x128xf32, #tpu.memory_space<vmem>> -> memref<256x128xf32, #tpu.memory_space<vmem>>
    %c96 = arith.constant 96 : index
    %c0_291 = arith.constant 0 : index
    %310 = vector.load %309[%c96, %c0_291] : memref<256x128xf32, #tpu.memory_space<vmem>>, vector<16x128xf32>
    %311 = vector.extract_strided_slice %307 {offsets = [0, 0], sizes = [16, 128], strides = [1, 1]} : vector<54x128xf32> to vector<16x128xf32>
    %312 = arith.addf %311, %310 : vector<16x128xf32>
    %cst_292 = arith.constant 0.000000e+00 : f32
    %313 = vector.broadcast %cst_292 : f32 to vector<16x128xf32>
    %314 = arith.maximumf %312, %313 : vector<16x128xf32>
    %c0_i32_293 = arith.constant 0 : i32
    %c0_i32_294 = arith.constant 0 : i32
    %c0_i32_295 = arith.constant 0 : i32
    %315 = tpu.memref_slice %arg8[%c0_i32_293, %c0_i32_294, %c0_i32_295] : memref<1x256x128xf32, #tpu.memory_space<vmem>> -> memref<1x256x128xf32, #tpu.memory_space<vmem>>
    %316 = tpu.memref_squeeze %315 : memref<1x256x128xf32, #tpu.memory_space<vmem>> -> memref<256x128xf32, #tpu.memory_space<vmem>>
    %c96_296 = arith.constant 96 : index
    %c0_297 = arith.constant 0 : index
    %317 = vector.load %316[%c96_296, %c0_297] : memref<256x128xf32, #tpu.memory_space<vmem>>, vector<16x128xf32>
    tpu.vector_store %316[%c96_296, %c0_297], %314 {strides = array<i32>} : memref<256x128xf32, #tpu.memory_space<vmem>>, vector<16x128xf32>,
    %c0_i32_298 = arith.constant 0 : i32
    %c0_i32_299 = arith.constant 0 : i32
    %c0_i32_300 = arith.constant 0 : i32
    %318 = tpu.memref_slice %arg1[%c0_i32_298, %c0_i32_299, %c0_i32_300] : memref<1x256x128xf32, #tpu.memory_space<vmem>> -> memref<1x256x128xf32, #tpu.memory_space<vmem>>
    %319 = tpu.memref_squeeze %318 : memref<1x256x128xf32, #tpu.memory_space<vmem>> -> memref<256x128xf32, #tpu.memory_space<vmem>>
    %c112 = arith.constant 112 : index
    %c0_301 = arith.constant 0 : index
    %320 = vector.load %319[%c112, %c0_301] : memref<256x128xf32, #tpu.memory_space<vmem>>, vector<16x128xf32>
    %321 = vector.extract_strided_slice %307 {offsets = [18, 0], sizes = [16, 128], strides = [1, 1]} : vector<54x128xf32> to vector<16x128xf32>
    %322 = arith.addf %321, %320 : vector<16x128xf32>
    %cst_302 = arith.constant 0.000000e+00 : f32
    %323 = vector.broadcast %cst_302 : f32 to vector<16x128xf32>
    %324 = arith.maximumf %322, %323 : vector<16x128xf32>
    %c0_i32_303 = arith.constant 0 : i32
    %c0_i32_304 = arith.constant 0 : i32
    %c0_i32_305 = arith.constant 0 : i32
    %325 = tpu.memref_slice %arg8[%c0_i32_303, %c0_i32_304, %c0_i32_305] : memref<1x256x128xf32, #tpu.memory_space<vmem>> -> memref<1x256x128xf32, #tpu.memory_space<vmem>>
    %326 = tpu.memref_squeeze %325 : memref<1x256x128xf32, #tpu.memory_space<vmem>> -> memref<256x128xf32, #tpu.memory_space<vmem>>
    %c112_306 = arith.constant 112 : index
    %c0_307 = arith.constant 0 : index
    %327 = vector.load %326[%c112_306, %c0_307] : memref<256x128xf32, #tpu.memory_space<vmem>>, vector<16x128xf32>
    tpu.vector_store %326[%c112_306, %c0_307], %324 {strides = array<i32>} : memref<256x128xf32, #tpu.memory_space<vmem>>, vector<16x128xf32>,
    %c0_i32_308 = arith.constant 0 : i32
    %c0_i32_309 = arith.constant 0 : i32
    %c0_i32_310 = arith.constant 0 : i32
    %328 = tpu.memref_slice %arg1[%c0_i32_308, %c0_i32_309, %c0_i32_310] : memref<1x256x128xf32, #tpu.memory_space<vmem>> -> memref<1x256x128xf32, #tpu.memory_space<vmem>>
    %329 = tpu.memref_squeeze %328 : memref<1x256x128xf32, #tpu.memory_space<vmem>> -> memref<256x128xf32, #tpu.memory_space<vmem>>
    %c128_311 = arith.constant 128 : index
    %c0_312 = arith.constant 0 : index
    %330 = vector.load %329[%c128_311, %c0_312] : memref<256x128xf32, #tpu.memory_space<vmem>>, vector<16x128xf32>
    %331 = vector.extract_strided_slice %307 {offsets = [36, 0], sizes = [16, 128], strides = [1, 1]} : vector<54x128xf32> to vector<16x128xf32>
    %332 = arith.addf %331, %330 : vector<16x128xf32>
    %cst_313 = arith.constant 0.000000e+00 : f32
    %333 = vector.broadcast %cst_313 : f32 to vector<16x128xf32>
    %334 = arith.maximumf %332, %333 : vector<16x128xf32>
    %c0_i32_314 = arith.constant 0 : i32
    %c0_i32_315 = arith.constant 0 : i32
    %c0_i32_316 = arith.constant 0 : i32
    %335 = tpu.memref_slice %arg8[%c0_i32_314, %c0_i32_315, %c0_i32_316] : memref<1x256x128xf32, #tpu.memory_space<vmem>> -> memref<1x256x128xf32, #tpu.memory_space<vmem>>
    %336 = tpu.memref_squeeze %335 : memref<1x256x128xf32, #tpu.memory_space<vmem>> -> memref<256x128xf32, #tpu.memory_space<vmem>>
    %c128_317 = arith.constant 128 : index
    %c0_318 = arith.constant 0 : index
    %337 = vector.load %336[%c128_317, %c0_318] : memref<256x128xf32, #tpu.memory_space<vmem>>, vector<16x128xf32>
    tpu.vector_store %336[%c128_317, %c0_318], %334 {strides = array<i32>} : memref<256x128xf32, #tpu.memory_space<vmem>>, vector<16x128xf32>,
    %cst_319 = arith.constant 0.000000e+00 : f32
    %338 = vector.broadcast %cst_319 : f32 to vector<54x128xf32>
    %c162 = arith.constant 162 : index
    %c0_320 = arith.constant 0 : index
    %339 = vector.load %arg9[%c162, %c0_320] : memref<342x128xf32, #tpu.memory_space<vmem>>, vector<54x128xf32>
    %c0_321 = arith.constant 0 : index
    %c0_322 = arith.constant 0 : index
    %c0_323 = arith.constant 0 : index
    %340 = vector.load %arg4[%c0_321, %c0_322, %c0_323] : memref<9x128x128xf32, #tpu.memory_space<vmem>>, vector<1x128x128xf32>
    %341 = vector.shape_cast %340 : vector<1x128x128xf32> to vector<128x128xf32>
    %cst_324 = arith.constant dense<0.000000e+00> : vector<54x128xf32>
    %342 = tpu.matmul %339, %341, %cst_324 {dimension_numbers = #tpu.dot_dimension_numbers<[1], [0], [0], [1], [0, 0, 1, 1], [], []>} : vector<54x128xf32>, vector<128x128xf32>, vector<54x128xf32> -> vector<54x128xf32>
    %343 = arith.addf %338, %342 : vector<54x128xf32>
    %c163_325 = arith.constant 163 : index
    %c0_326 = arith.constant 0 : index
    %344 = vector.load %arg9[%c163_325, %c0_326] : memref<342x128xf32, #tpu.memory_space<vmem>>, vector<54x128xf32>
    %c1_327 = arith.constant 1 : index
    %c0_328 = arith.constant 0 : index
    %c0_329 = arith.constant 0 : index
    %345 = vector.load %arg4[%c1_327, %c0_328, %c0_329] : memref<9x128x128xf32, #tpu.memory_space<vmem>>, vector<1x128x128xf32>
    %346 = vector.shape_cast %345 : vector<1x128x128xf32> to vector<128x128xf32>
    %cst_330 = arith.constant dense<0.000000e+00> : vector<54x128xf32>
    %347 = tpu.matmul %344, %346, %cst_330 {dimension_numbers = #tpu.dot_dimension_numbers<[1], [0], [0], [1], [0, 0, 1, 1], [], []>} : vector<54x128xf32>, vector<128x128xf32>, vector<54x128xf32> -> vector<54x128xf32>
    %348 = arith.addf %343, %347 : vector<54x128xf32>
    %c164 = arith.constant 164 : index
    %c0_331 = arith.constant 0 : index
    %349 = vector.load %arg9[%c164, %c0_331] : memref<342x128xf32, #tpu.memory_space<vmem>>, vector<54x128xf32>
    %c2_332 = arith.constant 2 : index
    %c0_333 = arith.constant 0 : index
    %c0_334 = arith.constant 0 : index
    %350 = vector.load %arg4[%c2_332, %c0_333, %c0_334] : memref<9x128x128xf32, #tpu.memory_space<vmem>>, vector<1x128x128xf32>
    %351 = vector.shape_cast %350 : vector<1x128x128xf32> to vector<128x128xf32>
    %cst_335 = arith.constant dense<0.000000e+00> : vector<54x128xf32>
    %352 = tpu.matmul %349, %351, %cst_335 {dimension_numbers = #tpu.dot_dimension_numbers<[1], [0], [0], [1], [0, 0, 1, 1], [], []>} : vector<54x128xf32>, vector<128x128xf32>, vector<54x128xf32> -> vector<54x128xf32>
    %353 = arith.addf %348, %352 : vector<54x128xf32>
    %c180 = arith.constant 180 : index
    %c0_336 = arith.constant 0 : index
    %354 = vector.load %arg9[%c180, %c0_336] : memref<342x128xf32, #tpu.memory_space<vmem>>, vector<54x128xf32>
    %c3_337 = arith.constant 3 : index
    %c0_338 = arith.constant 0 : index
    %c0_339 = arith.constant 0 : index
    %355 = vector.load %arg4[%c3_337, %c0_338, %c0_339] : memref<9x128x128xf32, #tpu.memory_space<vmem>>, vector<1x128x128xf32>
    %356 = vector.shape_cast %355 : vector<1x128x128xf32> to vector<128x128xf32>
    %cst_340 = arith.constant dense<0.000000e+00> : vector<54x128xf32>
    %357 = tpu.matmul %354, %356, %cst_340 {dimension_numbers = #tpu.dot_dimension_numbers<[1], [0], [0], [1], [0, 0, 1, 1], [], []>} : vector<54x128xf32>, vector<128x128xf32>, vector<54x128xf32> -> vector<54x128xf32>
    %358 = arith.addf %353, %357 : vector<54x128xf32>
    %c181_341 = arith.constant 181 : index
    %c0_342 = arith.constant 0 : index
    %359 = vector.load %arg9[%c181_341, %c0_342] : memref<342x128xf32, #tpu.memory_space<vmem>>, vector<54x128xf32>
    %c4_343 = arith.constant 4 : index
    %c0_344 = arith.constant 0 : index
    %c0_345 = arith.constant 0 : index
    %360 = vector.load %arg4[%c4_343, %c0_344, %c0_345] : memref<9x128x128xf32, #tpu.memory_space<vmem>>, vector<1x128x128xf32>
    %361 = vector.shape_cast %360 : vector<1x128x128xf32> to vector<128x128xf32>
    %cst_346 = arith.constant dense<0.000000e+00> : vector<54x128xf32>
    %362 = tpu.matmul %359, %361, %cst_346 {dimension_numbers = #tpu.dot_dimension_numbers<[1], [0], [0], [1], [0, 0, 1, 1], [], []>} : vector<54x128xf32>, vector<128x128xf32>, vector<54x128xf32> -> vector<54x128xf32>
    %363 = arith.addf %358, %362 : vector<54x128xf32>
    %c182 = arith.constant 182 : index
    %c0_347 = arith.constant 0 : index
    %364 = vector.load %arg9[%c182, %c0_347] : memref<342x128xf32, #tpu.memory_space<vmem>>, vector<54x128xf32>
    %c5_348 = arith.constant 5 : index
    %c0_349 = arith.constant 0 : index
    %c0_350 = arith.constant 0 : index
    %365 = vector.load %arg4[%c5_348, %c0_349, %c0_350] : memref<9x128x128xf32, #tpu.memory_space<vmem>>, vector<1x128x128xf32>
    %366 = vector.shape_cast %365 : vector<1x128x128xf32> to vector<128x128xf32>
    %cst_351 = arith.constant dense<0.000000e+00> : vector<54x128xf32>
    %367 = tpu.matmul %364, %366, %cst_351 {dimension_numbers = #tpu.dot_dimension_numbers<[1], [0], [0], [1], [0, 0, 1, 1], [], []>} : vector<54x128xf32>, vector<128x128xf32>, vector<54x128xf32> -> vector<54x128xf32>
    %368 = arith.addf %363, %367 : vector<54x128xf32>
    %c198 = arith.constant 198 : index
    %c0_352 = arith.constant 0 : index
    %369 = vector.load %arg9[%c198, %c0_352] : memref<342x128xf32, #tpu.memory_space<vmem>>, vector<54x128xf32>
    %c6_353 = arith.constant 6 : index
    %c0_354 = arith.constant 0 : index
    %c0_355 = arith.constant 0 : index
    %370 = vector.load %arg4[%c6_353, %c0_354, %c0_355] : memref<9x128x128xf32, #tpu.memory_space<vmem>>, vector<1x128x128xf32>
    %371 = vector.shape_cast %370 : vector<1x128x128xf32> to vector<128x128xf32>
    %cst_356 = arith.constant dense<0.000000e+00> : vector<54x128xf32>
    %372 = tpu.matmul %369, %371, %cst_356 {dimension_numbers = #tpu.dot_dimension_numbers<[1], [0], [0], [1], [0, 0, 1, 1], [], []>} : vector<54x128xf32>, vector<128x128xf32>, vector<54x128xf32> -> vector<54x128xf32>
    %373 = arith.addf %368, %372 : vector<54x128xf32>
    %c199_357 = arith.constant 199 : index
    %c0_358 = arith.constant 0 : index
    %374 = vector.load %arg9[%c199_357, %c0_358] : memref<342x128xf32, #tpu.memory_space<vmem>>, vector<54x128xf32>
    %c7_359 = arith.constant 7 : index
    %c0_360 = arith.constant 0 : index
    %c0_361 = arith.constant 0 : index
    %375 = vector.load %arg4[%c7_359, %c0_360, %c0_361] : memref<9x128x128xf32, #tpu.memory_space<vmem>>, vector<1x128x128xf32>
    %376 = vector.shape_cast %375 : vector<1x128x128xf32> to vector<128x128xf32>
    %cst_362 = arith.constant dense<0.000000e+00> : vector<54x128xf32>
    %377 = tpu.matmul %374, %376, %cst_362 {dimension_numbers = #tpu.dot_dimension_numbers<[1], [0], [0], [1], [0, 0, 1, 1], [], []>} : vector<54x128xf32>, vector<128x128xf32>, vector<54x128xf32> -> vector<54x128xf32>
    %378 = arith.addf %373, %377 : vector<54x128xf32>
    %c200 = arith.constant 200 : index
    %c0_363 = arith.constant 0 : index
    %379 = vector.load %arg9[%c200, %c0_363] : memref<342x128xf32, #tpu.memory_space<vmem>>, vector<54x128xf32>
    %c8_364 = arith.constant 8 : index
    %c0_365 = arith.constant 0 : index
    %c0_366 = arith.constant 0 : index
    %380 = vector.load %arg4[%c8_364, %c0_365, %c0_366] : memref<9x128x128xf32, #tpu.memory_space<vmem>>, vector<1x128x128xf32>
    %381 = vector.shape_cast %380 : vector<1x128x128xf32> to vector<128x128xf32>
    %cst_367 = arith.constant dense<0.000000e+00> : vector<54x128xf32>
    %382 = tpu.matmul %379, %381, %cst_367 {dimension_numbers = #tpu.dot_dimension_numbers<[1], [0], [0], [1], [0, 0, 1, 1], [], []>} : vector<54x128xf32>, vector<128x128xf32>, vector<54x128xf32> -> vector<54x128xf32>
    %383 = arith.addf %378, %382 : vector<54x128xf32>
    %c0_368 = arith.constant 0 : index
    %c0_369 = arith.constant 0 : index
    %384 = vector.load %arg5[%c0_368, %c0_369] : memref<1x128xf32, #tpu.memory_space<vmem>>, vector<1x128xf32>
    %385 = vector.broadcast %384 : vector<1x128xf32> to vector<54x128xf32>
    %386 = arith.addf %383, %385 : vector<54x128xf32>
    %cst_370 = arith.constant 0.000000e+00 : f32
    %387 = vector.broadcast %cst_370 : f32 to vector<54x128xf32>
    %388 = arith.maximumf %386, %387 : vector<54x128xf32>
    %c0_371 = arith.constant 0 : index
    %c0_372 = arith.constant 0 : index
    %389 = vector.load %arg6[%c0_371, %c0_372] : memref<128x128xf32, #tpu.memory_space<vmem>>, vector<128x128xf32>
    %cst_373 = arith.constant dense<0.000000e+00> : vector<54x128xf32>
    %390 = tpu.matmul %388, %389, %cst_373 {dimension_numbers = #tpu.dot_dimension_numbers<[1], [0], [0], [1], [0, 0, 1, 1], [], []>} : vector<54x128xf32>, vector<128x128xf32>, vector<54x128xf32> -> vector<54x128xf32>
    %c0_374 = arith.constant 0 : index
    %c0_375 = arith.constant 0 : index
    %391 = vector.load %arg7[%c0_374, %c0_375] : memref<1x128xf32, #tpu.memory_space<vmem>>, vector<1x128xf32>
    %392 = vector.broadcast %391 : vector<1x128xf32> to vector<54x128xf32>
    %393 = arith.addf %390, %392 : vector<54x128xf32>
    %cst_376 = arith.constant 8.000000e-01 : f32
    %394 = vector.broadcast %cst_376 : f32 to vector<54x128xf32>
    %395 = arith.mulf %393, %394 : vector<54x128xf32>
    %c0_i32_377 = arith.constant 0 : i32
    %c0_i32_378 = arith.constant 0 : i32
    %c0_i32_379 = arith.constant 0 : i32
    %396 = tpu.memref_slice %arg1[%c0_i32_377, %c0_i32_378, %c0_i32_379] : memref<1x256x128xf32, #tpu.memory_space<vmem>> -> memref<1x256x128xf32, #tpu.memory_space<vmem>>
    %397 = tpu.memref_squeeze %396 : memref<1x256x128xf32, #tpu.memory_space<vmem>> -> memref<256x128xf32, #tpu.memory_space<vmem>>
    %c144_380 = arith.constant 144 : index
    %c0_381 = arith.constant 0 : index
    %398 = vector.load %397[%c144_380, %c0_381] : memref<256x128xf32, #tpu.memory_space<vmem>>, vector<16x128xf32>
    %399 = vector.extract_strided_slice %395 {offsets = [0, 0], sizes = [16, 128], strides = [1, 1]} : vector<54x128xf32> to vector<16x128xf32>
    %400 = arith.addf %399, %398 : vector<16x128xf32>
    %cst_382 = arith.constant 0.000000e+00 : f32
    %401 = vector.broadcast %cst_382 : f32 to vector<16x128xf32>
    %402 = arith.maximumf %400, %401 : vector<16x128xf32>
    %c0_i32_383 = arith.constant 0 : i32
    %c0_i32_384 = arith.constant 0 : i32
    %c0_i32_385 = arith.constant 0 : i32
    %403 = tpu.memref_slice %arg8[%c0_i32_383, %c0_i32_384, %c0_i32_385] : memref<1x256x128xf32, #tpu.memory_space<vmem>> -> memref<1x256x128xf32, #tpu.memory_space<vmem>>
    %404 = tpu.memref_squeeze %403 : memref<1x256x128xf32, #tpu.memory_space<vmem>> -> memref<256x128xf32, #tpu.memory_space<vmem>>
    %c144_386 = arith.constant 144 : index
    %c0_387 = arith.constant 0 : index
    %405 = vector.load %404[%c144_386, %c0_387] : memref<256x128xf32, #tpu.memory_space<vmem>>, vector<16x128xf32>
    tpu.vector_store %404[%c144_386, %c0_387], %402 {strides = array<i32>} : memref<256x128xf32, #tpu.memory_space<vmem>>, vector<16x128xf32>,
    %c0_i32_388 = arith.constant 0 : i32
    %c0_i32_389 = arith.constant 0 : i32
    %c0_i32_390 = arith.constant 0 : i32
    %406 = tpu.memref_slice %arg1[%c0_i32_388, %c0_i32_389, %c0_i32_390] : memref<1x256x128xf32, #tpu.memory_space<vmem>> -> memref<1x256x128xf32, #tpu.memory_space<vmem>>
    %407 = tpu.memref_squeeze %406 : memref<1x256x128xf32, #tpu.memory_space<vmem>> -> memref<256x128xf32, #tpu.memory_space<vmem>>
    %c160 = arith.constant 160 : index
    %c0_391 = arith.constant 0 : index
    %408 = vector.load %407[%c160, %c0_391] : memref<256x128xf32, #tpu.memory_space<vmem>>, vector<16x128xf32>
    %409 = vector.extract_strided_slice %395 {offsets = [18, 0], sizes = [16, 128], strides = [1, 1]} : vector<54x128xf32> to vector<16x128xf32>
    %410 = arith.addf %409, %408 : vector<16x128xf32>
    %cst_392 = arith.constant 0.000000e+00 : f32
    %411 = vector.broadcast %cst_392 : f32 to vector<16x128xf32>
    %412 = arith.maximumf %410, %411 : vector<16x128xf32>
    %c0_i32_393 = arith.constant 0 : i32
    %c0_i32_394 = arith.constant 0 : i32
    %c0_i32_395 = arith.constant 0 : i32
    %413 = tpu.memref_slice %arg8[%c0_i32_393, %c0_i32_394, %c0_i32_395] : memref<1x256x128xf32, #tpu.memory_space<vmem>> -> memref<1x256x128xf32, #tpu.memory_space<vmem>>
    %414 = tpu.memref_squeeze %413 : memref<1x256x128xf32, #tpu.memory_space<vmem>> -> memref<256x128xf32, #tpu.memory_space<vmem>>
    %c160_396 = arith.constant 160 : index
    %c0_397 = arith.constant 0 : index
    %415 = vector.load %414[%c160_396, %c0_397] : memref<256x128xf32, #tpu.memory_space<vmem>>, vector<16x128xf32>
    tpu.vector_store %414[%c160_396, %c0_397], %412 {strides = array<i32>} : memref<256x128xf32, #tpu.memory_space<vmem>>, vector<16x128xf32>,
    %c0_i32_398 = arith.constant 0 : i32
    %c0_i32_399 = arith.constant 0 : i32
    %c0_i32_400 = arith.constant 0 : i32
    %416 = tpu.memref_slice %arg1[%c0_i32_398, %c0_i32_399, %c0_i32_400] : memref<1x256x128xf32, #tpu.memory_space<vmem>> -> memref<1x256x128xf32, #tpu.memory_space<vmem>>
    %417 = tpu.memref_squeeze %416 : memref<1x256x128xf32, #tpu.memory_space<vmem>> -> memref<256x128xf32, #tpu.memory_space<vmem>>
    %c176 = arith.constant 176 : index
    %c0_401 = arith.constant 0 : index
    %418 = vector.load %417[%c176, %c0_401] : memref<256x128xf32, #tpu.memory_space<vmem>>, vector<16x128xf32>
    %419 = vector.extract_strided_slice %395 {offsets = [36, 0], sizes = [16, 128], strides = [1, 1]} : vector<54x128xf32> to vector<16x128xf32>
    %420 = arith.addf %419, %418 : vector<16x128xf32>
    %cst_402 = arith.constant 0.000000e+00 : f32
    %421 = vector.broadcast %cst_402 : f32 to vector<16x128xf32>
    %422 = arith.maximumf %420, %421 : vector<16x128xf32>
    %c0_i32_403 = arith.constant 0 : i32
    %c0_i32_404 = arith.constant 0 : i32
    %c0_i32_405 = arith.constant 0 : i32
    %423 = tpu.memref_slice %arg8[%c0_i32_403, %c0_i32_404, %c0_i32_405] : memref<1x256x128xf32, #tpu.memory_space<vmem>> -> memref<1x256x128xf32, #tpu.memory_space<vmem>>
    %424 = tpu.memref_squeeze %423 : memref<1x256x128xf32, #tpu.memory_space<vmem>> -> memref<256x128xf32, #tpu.memory_space<vmem>>
    %c176_406 = arith.constant 176 : index
    %c0_407 = arith.constant 0 : index
    %425 = vector.load %424[%c176_406, %c0_407] : memref<256x128xf32, #tpu.memory_space<vmem>>, vector<16x128xf32>
    tpu.vector_store %424[%c176_406, %c0_407], %422 {strides = array<i32>} : memref<256x128xf32, #tpu.memory_space<vmem>>, vector<16x128xf32>,
    %cst_408 = arith.constant 0.000000e+00 : f32
    %426 = vector.broadcast %cst_408 : f32 to vector<54x128xf32>
    %c216 = arith.constant 216 : index
    %c0_409 = arith.constant 0 : index
    %427 = vector.load %arg9[%c216, %c0_409] : memref<342x128xf32, #tpu.memory_space<vmem>>, vector<54x128xf32>
    %c0_410 = arith.constant 0 : index
    %c0_411 = arith.constant 0 : index
    %c0_412 = arith.constant 0 : index
    %428 = vector.load %arg4[%c0_410, %c0_411, %c0_412] : memref<9x128x128xf32, #tpu.memory_space<vmem>>, vector<1x128x128xf32>
    %429 = vector.shape_cast %428 : vector<1x128x128xf32> to vector<128x128xf32>
    %cst_413 = arith.constant dense<0.000000e+00> : vector<54x128xf32>
    %430 = tpu.matmul %427, %429, %cst_413 {dimension_numbers = #tpu.dot_dimension_numbers<[1], [0], [0], [1], [0, 0, 1, 1], [], []>} : vector<54x128xf32>, vector<128x128xf32>, vector<54x128xf32> -> vector<54x128xf32>
    %431 = arith.addf %426, %430 : vector<54x128xf32>
    %c217_414 = arith.constant 217 : index
    %c0_415 = arith.constant 0 : index
    %432 = vector.load %arg9[%c217_414, %c0_415] : memref<342x128xf32, #tpu.memory_space<vmem>>, vector<54x128xf32>
    %c1_416 = arith.constant 1 : index
    %c0_417 = arith.constant 0 : index
    %c0_418 = arith.constant 0 : index
    %433 = vector.load %arg4[%c1_416, %c0_417, %c0_418] : memref<9x128x128xf32, #tpu.memory_space<vmem>>, vector<1x128x128xf32>
    %434 = vector.shape_cast %433 : vector<1x128x128xf32> to vector<128x128xf32>
    %cst_419 = arith.constant dense<0.000000e+00> : vector<54x128xf32>
    %435 = tpu.matmul %432, %434, %cst_419 {dimension_numbers = #tpu.dot_dimension_numbers<[1], [0], [0], [1], [0, 0, 1, 1], [], []>} : vector<54x128xf32>, vector<128x128xf32>, vector<54x128xf32> -> vector<54x128xf32>
    %436 = arith.addf %431, %435 : vector<54x128xf32>
    %c218 = arith.constant 218 : index
    %c0_420 = arith.constant 0 : index
    %437 = vector.load %arg9[%c218, %c0_420] : memref<342x128xf32, #tpu.memory_space<vmem>>, vector<54x128xf32>
    %c2_421 = arith.constant 2 : index
    %c0_422 = arith.constant 0 : index
    %c0_423 = arith.constant 0 : index
    %438 = vector.load %arg4[%c2_421, %c0_422, %c0_423] : memref<9x128x128xf32, #tpu.memory_space<vmem>>, vector<1x128x128xf32>
    %439 = vector.shape_cast %438 : vector<1x128x128xf32> to vector<128x128xf32>
    %cst_424 = arith.constant dense<0.000000e+00> : vector<54x128xf32>
    %440 = tpu.matmul %437, %439, %cst_424 {dimension_numbers = #tpu.dot_dimension_numbers<[1], [0], [0], [1], [0, 0, 1, 1], [], []>} : vector<54x128xf32>, vector<128x128xf32>, vector<54x128xf32> -> vector<54x128xf32>
    %441 = arith.addf %436, %440 : vector<54x128xf32>
    %c234 = arith.constant 234 : index
    %c0_425 = arith.constant 0 : index
    %442 = vector.load %arg9[%c234, %c0_425] : memref<342x128xf32, #tpu.memory_space<vmem>>, vector<54x128xf32>
    %c3_426 = arith.constant 3 : index
    %c0_427 = arith.constant 0 : index
    %c0_428 = arith.constant 0 : index
    %443 = vector.load %arg4[%c3_426, %c0_427, %c0_428] : memref<9x128x128xf32, #tpu.memory_space<vmem>>, vector<1x128x128xf32>
    %444 = vector.shape_cast %443 : vector<1x128x128xf32> to vector<128x128xf32>
    %cst_429 = arith.constant dense<0.000000e+00> : vector<54x128xf32>
    %445 = tpu.matmul %442, %444, %cst_429 {dimension_numbers = #tpu.dot_dimension_numbers<[1], [0], [0], [1], [0, 0, 1, 1], [], []>} : vector<54x128xf32>, vector<128x128xf32>, vector<54x128xf32> -> vector<54x128xf32>
    %446 = arith.addf %441, %445 : vector<54x128xf32>
    %c235_430 = arith.constant 235 : index
    %c0_431 = arith.constant 0 : index
    %447 = vector.load %arg9[%c235_430, %c0_431] : memref<342x128xf32, #tpu.memory_space<vmem>>, vector<54x128xf32>
    %c4_432 = arith.constant 4 : index
    %c0_433 = arith.constant 0 : index
    %c0_434 = arith.constant 0 : index
    %448 = vector.load %arg4[%c4_432, %c0_433, %c0_434] : memref<9x128x128xf32, #tpu.memory_space<vmem>>, vector<1x128x128xf32>
    %449 = vector.shape_cast %448 : vector<1x128x128xf32> to vector<128x128xf32>
    %cst_435 = arith.constant dense<0.000000e+00> : vector<54x128xf32>
    %450 = tpu.matmul %447, %449, %cst_435 {dimension_numbers = #tpu.dot_dimension_numbers<[1], [0], [0], [1], [0, 0, 1, 1], [], []>} : vector<54x128xf32>, vector<128x128xf32>, vector<54x128xf32> -> vector<54x128xf32>
    %451 = arith.addf %446, %450 : vector<54x128xf32>
    %c236 = arith.constant 236 : index
    %c0_436 = arith.constant 0 : index
    %452 = vector.load %arg9[%c236, %c0_436] : memref<342x128xf32, #tpu.memory_space<vmem>>, vector<54x128xf32>
    %c5_437 = arith.constant 5 : index
    %c0_438 = arith.constant 0 : index
    %c0_439 = arith.constant 0 : index
    %453 = vector.load %arg4[%c5_437, %c0_438, %c0_439] : memref<9x128x128xf32, #tpu.memory_space<vmem>>, vector<1x128x128xf32>
    %454 = vector.shape_cast %453 : vector<1x128x128xf32> to vector<128x128xf32>
    %cst_440 = arith.constant dense<0.000000e+00> : vector<54x128xf32>
    %455 = tpu.matmul %452, %454, %cst_440 {dimension_numbers = #tpu.dot_dimension_numbers<[1], [0], [0], [1], [0, 0, 1, 1], [], []>} : vector<54x128xf32>, vector<128x128xf32>, vector<54x128xf32> -> vector<54x128xf32>
    %456 = arith.addf %451, %455 : vector<54x128xf32>
    %c252 = arith.constant 252 : index
    %c0_441 = arith.constant 0 : index
    %457 = vector.load %arg9[%c252, %c0_441] : memref<342x128xf32, #tpu.memory_space<vmem>>, vector<54x128xf32>
    %c6_442 = arith.constant 6 : index
    %c0_443 = arith.constant 0 : index
    %c0_444 = arith.constant 0 : index
    %458 = vector.load %arg4[%c6_442, %c0_443, %c0_444] : memref<9x128x128xf32, #tpu.memory_space<vmem>>, vector<1x128x128xf32>
    %459 = vector.shape_cast %458 : vector<1x128x128xf32> to vector<128x128xf32>
    %cst_445 = arith.constant dense<0.000000e+00> : vector<54x128xf32>
    %460 = tpu.matmul %457, %459, %cst_445 {dimension_numbers = #tpu.dot_dimension_numbers<[1], [0], [0], [1], [0, 0, 1, 1], [], []>} : vector<54x128xf32>, vector<128x128xf32>, vector<54x128xf32> -> vector<54x128xf32>
    %461 = arith.addf %456, %460 : vector<54x128xf32>
    %c253_446 = arith.constant 253 : index
    %c0_447 = arith.constant 0 : index
    %462 = vector.load %arg9[%c253_446, %c0_447] : memref<342x128xf32, #tpu.memory_space<vmem>>, vector<54x128xf32>
    %c7_448 = arith.constant 7 : index
    %c0_449 = arith.constant 0 : index
    %c0_450 = arith.constant 0 : index
    %463 = vector.load %arg4[%c7_448, %c0_449, %c0_450] : memref<9x128x128xf32, #tpu.memory_space<vmem>>, vector<1x128x128xf32>
    %464 = vector.shape_cast %463 : vector<1x128x128xf32> to vector<128x128xf32>
    %cst_451 = arith.constant dense<0.000000e+00> : vector<54x128xf32>
    %465 = tpu.matmul %462, %464, %cst_451 {dimension_numbers = #tpu.dot_dimension_numbers<[1], [0], [0], [1], [0, 0, 1, 1], [], []>} : vector<54x128xf32>, vector<128x128xf32>, vector<54x128xf32> -> vector<54x128xf32>
    %466 = arith.addf %461, %465 : vector<54x128xf32>
    %c254 = arith.constant 254 : index
    %c0_452 = arith.constant 0 : index
    %467 = vector.load %arg9[%c254, %c0_452] : memref<342x128xf32, #tpu.memory_space<vmem>>, vector<54x128xf32>
    %c8_453 = arith.constant 8 : index
    %c0_454 = arith.constant 0 : index
    %c0_455 = arith.constant 0 : index
    %468 = vector.load %arg4[%c8_453, %c0_454, %c0_455] : memref<9x128x128xf32, #tpu.memory_space<vmem>>, vector<1x128x128xf32>
    %469 = vector.shape_cast %468 : vector<1x128x128xf32> to vector<128x128xf32>
    %cst_456 = arith.constant dense<0.000000e+00> : vector<54x128xf32>
    %470 = tpu.matmul %467, %469, %cst_456 {dimension_numbers = #tpu.dot_dimension_numbers<[1], [0], [0], [1], [0, 0, 1, 1], [], []>} : vector<54x128xf32>, vector<128x128xf32>, vector<54x128xf32> -> vector<54x128xf32>
    %471 = arith.addf %466, %470 : vector<54x128xf32>
    %c0_457 = arith.constant 0 : index
    %c0_458 = arith.constant 0 : index
    %472 = vector.load %arg5[%c0_457, %c0_458] : memref<1x128xf32, #tpu.memory_space<vmem>>, vector<1x128xf32>
    %473 = vector.broadcast %472 : vector<1x128xf32> to vector<54x128xf32>
    %474 = arith.addf %471, %473 : vector<54x128xf32>
    %cst_459 = arith.constant 0.000000e+00 : f32
    %475 = vector.broadcast %cst_459 : f32 to vector<54x128xf32>
    %476 = arith.maximumf %474, %475 : vector<54x128xf32>
    %c0_460 = arith.constant 0 : index
    %c0_461 = arith.constant 0 : index
    %477 = vector.load %arg6[%c0_460, %c0_461] : memref<128x128xf32, #tpu.memory_space<vmem>>, vector<128x128xf32>
    %cst_462 = arith.constant dense<0.000000e+00> : vector<54x128xf32>
    %478 = tpu.matmul %476, %477, %cst_462 {dimension_numbers = #tpu.dot_dimension_numbers<[1], [0], [0], [1], [0, 0, 1, 1], [], []>} : vector<54x128xf32>, vector<128x128xf32>, vector<54x128xf32> -> vector<54x128xf32>
    %c0_463 = arith.constant 0 : index
    %c0_464 = arith.constant 0 : index
    %479 = vector.load %arg7[%c0_463, %c0_464] : memref<1x128xf32, #tpu.memory_space<vmem>>, vector<1x128xf32>
    %480 = vector.broadcast %479 : vector<1x128xf32> to vector<54x128xf32>
    %481 = arith.addf %478, %480 : vector<54x128xf32>
    %cst_465 = arith.constant 8.000000e-01 : f32
    %482 = vector.broadcast %cst_465 : f32 to vector<54x128xf32>
    %483 = arith.mulf %481, %482 : vector<54x128xf32>
    %c0_i32_466 = arith.constant 0 : i32
    %c0_i32_467 = arith.constant 0 : i32
    %c0_i32_468 = arith.constant 0 : i32
    %484 = tpu.memref_slice %arg1[%c0_i32_466, %c0_i32_467, %c0_i32_468] : memref<1x256x128xf32, #tpu.memory_space<vmem>> -> memref<1x256x128xf32, #tpu.memory_space<vmem>>
    %485 = tpu.memref_squeeze %484 : memref<1x256x128xf32, #tpu.memory_space<vmem>> -> memref<256x128xf32, #tpu.memory_space<vmem>>
    %c192_469 = arith.constant 192 : index
    %c0_470 = arith.constant 0 : index
    %486 = vector.load %485[%c192_469, %c0_470] : memref<256x128xf32, #tpu.memory_space<vmem>>, vector<16x128xf32>
    %487 = vector.extract_strided_slice %483 {offsets = [0, 0], sizes = [16, 128], strides = [1, 1]} : vector<54x128xf32> to vector<16x128xf32>
    %488 = arith.addf %487, %486 : vector<16x128xf32>
    %cst_471 = arith.constant 0.000000e+00 : f32
    %489 = vector.broadcast %cst_471 : f32 to vector<16x128xf32>
    %490 = arith.maximumf %488, %489 : vector<16x128xf32>
    %c0_i32_472 = arith.constant 0 : i32
    %c0_i32_473 = arith.constant 0 : i32
    %c0_i32_474 = arith.constant 0 : i32
    %491 = tpu.memref_slice %arg8[%c0_i32_472, %c0_i32_473, %c0_i32_474] : memref<1x256x128xf32, #tpu.memory_space<vmem>> -> memref<1x256x128xf32, #tpu.memory_space<vmem>>
    %492 = tpu.memref_squeeze %491 : memref<1x256x128xf32, #tpu.memory_space<vmem>> -> memref<256x128xf32, #tpu.memory_space<vmem>>
    %c192_475 = arith.constant 192 : index
    %c0_476 = arith.constant 0 : index
    %493 = vector.load %492[%c192_475, %c0_476] : memref<256x128xf32, #tpu.memory_space<vmem>>, vector<16x128xf32>
    tpu.vector_store %492[%c192_475, %c0_476], %490 {strides = array<i32>} : memref<256x128xf32, #tpu.memory_space<vmem>>, vector<16x128xf32>,
    %c0_i32_477 = arith.constant 0 : i32
    %c0_i32_478 = arith.constant 0 : i32
    %c0_i32_479 = arith.constant 0 : i32
    %494 = tpu.memref_slice %arg1[%c0_i32_477, %c0_i32_478, %c0_i32_479] : memref<1x256x128xf32, #tpu.memory_space<vmem>> -> memref<1x256x128xf32, #tpu.memory_space<vmem>>
    %495 = tpu.memref_squeeze %494 : memref<1x256x128xf32, #tpu.memory_space<vmem>> -> memref<256x128xf32, #tpu.memory_space<vmem>>
    %c208 = arith.constant 208 : index
    %c0_480 = arith.constant 0 : index
    %496 = vector.load %495[%c208, %c0_480] : memref<256x128xf32, #tpu.memory_space<vmem>>, vector<16x128xf32>
    %497 = vector.extract_strided_slice %483 {offsets = [18, 0], sizes = [16, 128], strides = [1, 1]} : vector<54x128xf32> to vector<16x128xf32>
    %498 = arith.addf %497, %496 : vector<16x128xf32>
    %cst_481 = arith.constant 0.000000e+00 : f32
    %499 = vector.broadcast %cst_481 : f32 to vector<16x128xf32>
    %500 = arith.maximumf %498, %499 : vector<16x128xf32>
    %c0_i32_482 = arith.constant 0 : i32
    %c0_i32_483 = arith.constant 0 : i32
    %c0_i32_484 = arith.constant 0 : i32
    %501 = tpu.memref_slice %arg8[%c0_i32_482, %c0_i32_483, %c0_i32_484] : memref<1x256x128xf32, #tpu.memory_space<vmem>> -> memref<1x256x128xf32, #tpu.memory_space<vmem>>
    %502 = tpu.memref_squeeze %501 : memref<1x256x128xf32, #tpu.memory_space<vmem>> -> memref<256x128xf32, #tpu.memory_space<vmem>>
    %c208_485 = arith.constant 208 : index
    %c0_486 = arith.constant 0 : index
    %503 = vector.load %502[%c208_485, %c0_486] : memref<256x128xf32, #tpu.memory_space<vmem>>, vector<16x128xf32>
    tpu.vector_store %502[%c208_485, %c0_486], %500 {strides = array<i32>} : memref<256x128xf32, #tpu.memory_space<vmem>>, vector<16x128xf32>,
    %c0_i32_487 = arith.constant 0 : i32
    %c0_i32_488 = arith.constant 0 : i32
    %c0_i32_489 = arith.constant 0 : i32
    %504 = tpu.memref_slice %arg1[%c0_i32_487, %c0_i32_488, %c0_i32_489] : memref<1x256x128xf32, #tpu.memory_space<vmem>> -> memref<1x256x128xf32, #tpu.memory_space<vmem>>
    %505 = tpu.memref_squeeze %504 : memref<1x256x128xf32, #tpu.memory_space<vmem>> -> memref<256x128xf32, #tpu.memory_space<vmem>>
    %c224 = arith.constant 224 : index
    %c0_490 = arith.constant 0 : index
    %506 = vector.load %505[%c224, %c0_490] : memref<256x128xf32, #tpu.memory_space<vmem>>, vector<16x128xf32>
    %507 = vector.extract_strided_slice %483 {offsets = [36, 0], sizes = [16, 128], strides = [1, 1]} : vector<54x128xf32> to vector<16x128xf32>
    %508 = arith.addf %507, %506 : vector<16x128xf32>
    %cst_491 = arith.constant 0.000000e+00 : f32
    %509 = vector.broadcast %cst_491 : f32 to vector<16x128xf32>
    %510 = arith.maximumf %508, %509 : vector<16x128xf32>
    %c0_i32_492 = arith.constant 0 : i32
    %c0_i32_493 = arith.constant 0 : i32
    %c0_i32_494 = arith.constant 0 : i32
    %511 = tpu.memref_slice %arg8[%c0_i32_492, %c0_i32_493, %c0_i32_494] : memref<1x256x128xf32, #tpu.memory_space<vmem>> -> memref<1x256x128xf32, #tpu.memory_space<vmem>>
    %512 = tpu.memref_squeeze %511 : memref<1x256x128xf32, #tpu.memory_space<vmem>> -> memref<256x128xf32, #tpu.memory_space<vmem>>
    %c224_495 = arith.constant 224 : index
    %c0_496 = arith.constant 0 : index
    %513 = vector.load %512[%c224_495, %c0_496] : memref<256x128xf32, #tpu.memory_space<vmem>>, vector<16x128xf32>
    tpu.vector_store %512[%c224_495, %c0_496], %510 {strides = array<i32>} : memref<256x128xf32, #tpu.memory_space<vmem>>, vector<16x128xf32>,
    %cst_497 = arith.constant 0.000000e+00 : f32
    %514 = vector.broadcast %cst_497 : f32 to vector<18x128xf32>
    %c270 = arith.constant 270 : index
    %c0_498 = arith.constant 0 : index
    %515 = vector.load %arg9[%c270, %c0_498] : memref<342x128xf32, #tpu.memory_space<vmem>>, vector<18x128xf32>
    %c0_499 = arith.constant 0 : index
    %c0_500 = arith.constant 0 : index
    %c0_501 = arith.constant 0 : index
    %516 = vector.load %arg4[%c0_499, %c0_500, %c0_501] : memref<9x128x128xf32, #tpu.memory_space<vmem>>, vector<1x128x128xf32>
    %517 = vector.shape_cast %516 : vector<1x128x128xf32> to vector<128x128xf32>
    %cst_502 = arith.constant dense<0.000000e+00> : vector<18x128xf32>
    %518 = tpu.matmul %515, %517, %cst_502 {dimension_numbers = #tpu.dot_dimension_numbers<[1], [0], [0], [1], [0, 0, 1, 1], [], []>} : vector<18x128xf32>, vector<128x128xf32>, vector<18x128xf32> -> vector<18x128xf32>
    %519 = arith.addf %514, %518 : vector<18x128xf32>
    %c271_503 = arith.constant 271 : index
    %c0_504 = arith.constant 0 : index
    %520 = vector.load %arg9[%c271_503, %c0_504] : memref<342x128xf32, #tpu.memory_space<vmem>>, vector<18x128xf32>
    %c1_505 = arith.constant 1 : index
    %c0_506 = arith.constant 0 : index
    %c0_507 = arith.constant 0 : index
    %521 = vector.load %arg4[%c1_505, %c0_506, %c0_507] : memref<9x128x128xf32, #tpu.memory_space<vmem>>, vector<1x128x128xf32>
    %522 = vector.shape_cast %521 : vector<1x128x128xf32> to vector<128x128xf32>
    %cst_508 = arith.constant dense<0.000000e+00> : vector<18x128xf32>
    %523 = tpu.matmul %520, %522, %cst_508 {dimension_numbers = #tpu.dot_dimension_numbers<[1], [0], [0], [1], [0, 0, 1, 1], [], []>} : vector<18x128xf32>, vector<128x128xf32>, vector<18x128xf32> -> vector<18x128xf32>
    %524 = arith.addf %519, %523 : vector<18x128xf32>
    %c272 = arith.constant 272 : index
    %c0_509 = arith.constant 0 : index
    %525 = vector.load %arg9[%c272, %c0_509] : memref<342x128xf32, #tpu.memory_space<vmem>>, vector<18x128xf32>
    %c2_510 = arith.constant 2 : index
    %c0_511 = arith.constant 0 : index
    %c0_512 = arith.constant 0 : index
    %526 = vector.load %arg4[%c2_510, %c0_511, %c0_512] : memref<9x128x128xf32, #tpu.memory_space<vmem>>, vector<1x128x128xf32>
    %527 = vector.shape_cast %526 : vector<1x128x128xf32> to vector<128x128xf32>
    %cst_513 = arith.constant dense<0.000000e+00> : vector<18x128xf32>
    %528 = tpu.matmul %525, %527, %cst_513 {dimension_numbers = #tpu.dot_dimension_numbers<[1], [0], [0], [1], [0, 0, 1, 1], [], []>} : vector<18x128xf32>, vector<128x128xf32>, vector<18x128xf32> -> vector<18x128xf32>
    %529 = arith.addf %524, %528 : vector<18x128xf32>
    %c288 = arith.constant 288 : index
    %c0_514 = arith.constant 0 : index
    %530 = vector.load %arg9[%c288, %c0_514] : memref<342x128xf32, #tpu.memory_space<vmem>>, vector<18x128xf32>
    %c3_515 = arith.constant 3 : index
    %c0_516 = arith.constant 0 : index
    %c0_517 = arith.constant 0 : index
    %531 = vector.load %arg4[%c3_515, %c0_516, %c0_517] : memref<9x128x128xf32, #tpu.memory_space<vmem>>, vector<1x128x128xf32>
    %532 = vector.shape_cast %531 : vector<1x128x128xf32> to vector<128x128xf32>
    %cst_518 = arith.constant dense<0.000000e+00> : vector<18x128xf32>
    %533 = tpu.matmul %530, %532, %cst_518 {dimension_numbers = #tpu.dot_dimension_numbers<[1], [0], [0], [1], [0, 0, 1, 1], [], []>} : vector<18x128xf32>, vector<128x128xf32>, vector<18x128xf32> -> vector<18x128xf32>
    %534 = arith.addf %529, %533 : vector<18x128xf32>
    %c289_519 = arith.constant 289 : index
    %c0_520 = arith.constant 0 : index
    %535 = vector.load %arg9[%c289_519, %c0_520] : memref<342x128xf32, #tpu.memory_space<vmem>>, vector<18x128xf32>
    %c4_521 = arith.constant 4 : index
    %c0_522 = arith.constant 0 : index
    %c0_523 = arith.constant 0 : index
    %536 = vector.load %arg4[%c4_521, %c0_522, %c0_523] : memref<9x128x128xf32, #tpu.memory_space<vmem>>, vector<1x128x128xf32>
    %537 = vector.shape_cast %536 : vector<1x128x128xf32> to vector<128x128xf32>
    %cst_524 = arith.constant dense<0.000000e+00> : vector<18x128xf32>
    %538 = tpu.matmul %535, %537, %cst_524 {dimension_numbers = #tpu.dot_dimension_numbers<[1], [0], [0], [1], [0, 0, 1, 1], [], []>} : vector<18x128xf32>, vector<128x128xf32>, vector<18x128xf32> -> vector<18x128xf32>
    %539 = arith.addf %534, %538 : vector<18x128xf32>
    %c290 = arith.constant 290 : index
    %c0_525 = arith.constant 0 : index
    %540 = vector.load %arg9[%c290, %c0_525] : memref<342x128xf32, #tpu.memory_space<vmem>>, vector<18x128xf32>
    %c5_526 = arith.constant 5 : index
    %c0_527 = arith.constant 0 : index
    %c0_528 = arith.constant 0 : index
    %541 = vector.load %arg4[%c5_526, %c0_527, %c0_528] : memref<9x128x128xf32, #tpu.memory_space<vmem>>, vector<1x128x128xf32>
    %542 = vector.shape_cast %541 : vector<1x128x128xf32> to vector<128x128xf32>
    %cst_529 = arith.constant dense<0.000000e+00> : vector<18x128xf32>
    %543 = tpu.matmul %540, %542, %cst_529 {dimension_numbers = #tpu.dot_dimension_numbers<[1], [0], [0], [1], [0, 0, 1, 1], [], []>} : vector<18x128xf32>, vector<128x128xf32>, vector<18x128xf32> -> vector<18x128xf32>
    %544 = arith.addf %539, %543 : vector<18x128xf32>
    %c306 = arith.constant 306 : index
    %c0_530 = arith.constant 0 : index
    %545 = vector.load %arg9[%c306, %c0_530] : memref<342x128xf32, #tpu.memory_space<vmem>>, vector<18x128xf32>
    %c6_531 = arith.constant 6 : index
    %c0_532 = arith.constant 0 : index
    %c0_533 = arith.constant 0 : index
    %546 = vector.load %arg4[%c6_531, %c0_532, %c0_533] : memref<9x128x128xf32, #tpu.memory_space<vmem>>, vector<1x128x128xf32>
    %547 = vector.shape_cast %546 : vector<1x128x128xf32> to vector<128x128xf32>
    %cst_534 = arith.constant dense<0.000000e+00> : vector<18x128xf32>
    %548 = tpu.matmul %545, %547, %cst_534 {dimension_numbers = #tpu.dot_dimension_numbers<[1], [0], [0], [1], [0, 0, 1, 1], [], []>} : vector<18x128xf32>, vector<128x128xf32>, vector<18x128xf32> -> vector<18x128xf32>
    %549 = arith.addf %544, %548 : vector<18x128xf32>
    %c307 = arith.constant 307 : index
    %c0_535 = arith.constant 0 : index
    %550 = vector.load %arg9[%c307, %c0_535] : memref<342x128xf32, #tpu.memory_space<vmem>>, vector<18x128xf32>
    %c7_536 = arith.constant 7 : index
    %c0_537 = arith.constant 0 : index
    %c0_538 = arith.constant 0 : index
    %551 = vector.load %arg4[%c7_536, %c0_537, %c0_538] : memref<9x128x128xf32, #tpu.memory_space<vmem>>, vector<1x128x128xf32>
    %552 = vector.shape_cast %551 : vector<1x128x128xf32> to vector<128x128xf32>
    %cst_539 = arith.constant dense<0.000000e+00> : vector<18x128xf32>
    %553 = tpu.matmul %550, %552, %cst_539 {dimension_numbers = #tpu.dot_dimension_numbers<[1], [0], [0], [1], [0, 0, 1, 1], [], []>} : vector<18x128xf32>, vector<128x128xf32>, vector<18x128xf32> -> vector<18x128xf32>
    %554 = arith.addf %549, %553 : vector<18x128xf32>
    %c308 = arith.constant 308 : index
    %c0_540 = arith.constant 0 : index
    %555 = vector.load %arg9[%c308, %c0_540] : memref<342x128xf32, #tpu.memory_space<vmem>>, vector<18x128xf32>
    %c8_541 = arith.constant 8 : index
    %c0_542 = arith.constant 0 : index
    %c0_543 = arith.constant 0 : index
    %556 = vector.load %arg4[%c8_541, %c0_542, %c0_543] : memref<9x128x128xf32, #tpu.memory_space<vmem>>, vector<1x128x128xf32>
    %557 = vector.shape_cast %556 : vector<1x128x128xf32> to vector<128x128xf32>
    %cst_544 = arith.constant dense<0.000000e+00> : vector<18x128xf32>
    %558 = tpu.matmul %555, %557, %cst_544 {dimension_numbers = #tpu.dot_dimension_numbers<[1], [0], [0], [1], [0, 0, 1, 1], [], []>} : vector<18x128xf32>, vector<128x128xf32>, vector<18x128xf32> -> vector<18x128xf32>
    %559 = arith.addf %554, %558 : vector<18x128xf32>
    %c0_545 = arith.constant 0 : index
    %c0_546 = arith.constant 0 : index
    %560 = vector.load %arg5[%c0_545, %c0_546] : memref<1x128xf32, #tpu.memory_space<vmem>>, vector<1x128xf32>
    %561 = vector.broadcast %560 : vector<1x128xf32> to vector<18x128xf32>
    %562 = arith.addf %559, %561 : vector<18x128xf32>
    %cst_547 = arith.constant 0.000000e+00 : f32
    %563 = vector.broadcast %cst_547 : f32 to vector<18x128xf32>
    %564 = arith.maximumf %562, %563 : vector<18x128xf32>
    %c0_548 = arith.constant 0 : index
    %c0_549 = arith.constant 0 : index
    %565 = vector.load %arg6[%c0_548, %c0_549] : memref<128x128xf32, #tpu.memory_space<vmem>>, vector<128x128xf32>
    %cst_550 = arith.constant dense<0.000000e+00> : vector<18x128xf32>
    %566 = tpu.matmul %564, %565, %cst_550 {dimension_numbers = #tpu.dot_dimension_numbers<[1], [0], [0], [1], [0, 0, 1, 1], [], []>} : vector<18x128xf32>, vector<128x128xf32>, vector<18x128xf32> -> vector<18x128xf32>
    %c0_551 = arith.constant 0 : index
    %c0_552 = arith.constant 0 : index
    %567 = vector.load %arg7[%c0_551, %c0_552] : memref<1x128xf32, #tpu.memory_space<vmem>>, vector<1x128xf32>
    %568 = vector.broadcast %567 : vector<1x128xf32> to vector<18x128xf32>
    %569 = arith.addf %566, %568 : vector<18x128xf32>
    %cst_553 = arith.constant 8.000000e-01 : f32
    %570 = vector.broadcast %cst_553 : f32 to vector<18x128xf32>
    %571 = arith.mulf %569, %570 : vector<18x128xf32>
    %c0_i32_554 = arith.constant 0 : i32
    %c0_i32_555 = arith.constant 0 : i32
    %c0_i32_556 = arith.constant 0 : i32
    %572 = tpu.memref_slice %arg1[%c0_i32_554, %c0_i32_555, %c0_i32_556] : memref<1x256x128xf32, #tpu.memory_space<vmem>> -> memref<1x256x128xf32, #tpu.memory_space<vmem>>
    %573 = tpu.memref_squeeze %572 : memref<1x256x128xf32, #tpu.memory_space<vmem>> -> memref<256x128xf32, #tpu.memory_space<vmem>>
    %c240 = arith.constant 240 : index
    %c0_557 = arith.constant 0 : index
    %574 = vector.load %573[%c240, %c0_557] : memref<256x128xf32, #tpu.memory_space<vmem>>, vector<16x128xf32>
    %575 = vector.extract_strided_slice %571 {offsets = [0, 0], sizes = [16, 128], strides = [1, 1]} : vector<18x128xf32> to vector<16x128xf32>
    %576 = arith.addf %575, %574 : vector<16x128xf32>
    %cst_558 = arith.constant 0.000000e+00 : f32
    %577 = vector.broadcast %cst_558 : f32 to vector<16x128xf32>
    %578 = arith.maximumf %576, %577 : vector<16x128xf32>
    %c0_i32_559 = arith.constant 0 : i32
    %c0_i32_560 = arith.constant 0 : i32
    %c0_i32_561 = arith.constant 0 : i32
    %579 = tpu.memref_slice %arg8[%c0_i32_559, %c0_i32_560, %c0_i32_561] : memref<1x256x128xf32, #tpu.memory_space<vmem>> -> memref<1x256x128xf32, #tpu.memory_space<vmem>>
    %580 = tpu.memref_squeeze %579 : memref<1x256x128xf32, #tpu.memory_space<vmem>> -> memref<256x128xf32, #tpu.memory_space<vmem>>
    %c240_562 = arith.constant 240 : index
    %c0_563 = arith.constant 0 : index
    %581 = vector.load %580[%c240_562, %c0_563] : memref<256x128xf32, #tpu.memory_space<vmem>>, vector<16x128xf32>
    tpu.vector_store %580[%c240_562, %c0_563], %578 {strides = array<i32>} : memref<256x128xf32, #tpu.memory_space<vmem>>, vector<16x128xf32>,
    return
  }
  func.func @transform_0(%arg0: i32) -> (i32, i32, i32) {
    %c0_i32 = arith.constant 0 : i32
    %c0_i32_0 = arith.constant 0 : i32
    %c0_i32_1 = arith.constant 0 : i32
    return %arg0, %c0_i32, %c0_i32_0 : i32, i32, i32
  }
  func.func @transform_1(%arg0: i32) -> (i32, i32) {
    %c0_i32 = arith.constant 0 : i32
    %c0_i32_0 = arith.constant 0 : i32
    %c0_i32_1 = arith.constant 0 : i32
    return %c0_i32, %c0_i32_0 : i32, i32
  }
  func.func @transform_2(%arg0: i32) -> (i32, i32) {
    %c0_i32 = arith.constant 0 : i32
    %c0_i32_0 = arith.constant 0 : i32
    %c0_i32_1 = arith.constant 0 : i32
    return %c0_i32, %c0_i32_0 : i32, i32
  }
  func.func @transform_3(%arg0: i32) -> (i32, i32, i32) {
    %c0_i32 = arith.constant 0 : i32
    %c0_i32_0 = arith.constant 0 : i32
    %c0_i32_1 = arith.constant 0 : i32
    %c0_i32_2 = arith.constant 0 : i32
    return %c0_i32, %c0_i32_0, %c0_i32_1 : i32, i32, i32
  }
  func.func @transform_4(%arg0: i32) -> (i32, i32) {
    %c0_i32 = arith.constant 0 : i32
    %c0_i32_0 = arith.constant 0 : i32
    %c0_i32_1 = arith.constant 0 : i32
    return %c0_i32, %c0_i32_0 : i32, i32
  }
  func.func @transform_5(%arg0: i32) -> (i32, i32) {
    %c0_i32 = arith.constant 0 : i32
    %c0_i32_0 = arith.constant 0 : i32
    %c0_i32_1 = arith.constant 0 : i32
    return %c0_i32, %c0_i32_0 : i32, i32
  }
  func.func @transform_6(%arg0: i32) -> (i32, i32) {
    %c0_i32 = arith.constant 0 : i32
    %c0_i32_0 = arith.constant 0 : i32
    %c0_i32_1 = arith.constant 0 : i32
    return %c0_i32, %c0_i32_0 : i32, i32
  }
  func.func @transform_7(%arg0: i32) -> (i32, i32, i32) {
    %c0_i32 = arith.constant 0 : i32
    %c0_i32_0 = arith.constant 0 : i32
    %c0_i32_1 = arith.constant 0 : i32
    return %arg0, %c0_i32, %c0_i32_0 : i32, i32, i32
  }
}

</mosaic_0001>

<llo_original>
// kernel: bottleneck_forward.1
$region0: #{bottleneck_forward.1}
  #allocation0 [shape = 'u32[]', space=smem, size = 0x4, offset = 0x4, fixed_abs, tag = 'smem constant byte address 0x4 - core index']
  #allocation1 [shape = 'u32[144,128]{1,0:T(1,128)}', space=vmem, size = 0x12000, scoped, tag = 'internal scratch']
  #allocation2 [shape = 'f32[342,128]{1,0:T(8,128)}', space=vmem, size = 0x2b000, scoped, tag = 'scratch operand']
  %s0 = inlined_call_operand.vmem [shape: f32[2,256,128], index: 0, kind: input, shape index: {}]
  %s1 = inlined_call_operand.vmem [shape: f32[128,128], index: 1, kind: input, shape index: {}]
  %s2 = inlined_call_operand.vmem [shape: f32[1,128], index: 2, kind: input, shape index: {}]
  %s3 = inlined_call_operand.vmem [shape: f32[9,128,128], index: 3, kind: input, shape index: {}]
  %s4 = inlined_call_operand.vmem [shape: f32[1,128], index: 4, kind: input, shape index: {}]
  %s5 = inlined_call_operand.vmem [shape: f32[128,128], index: 5, kind: input, shape index: {}]
  %s6 = inlined_call_operand.vmem [shape: f32[1,128], index: 6, kind: input, shape index: {}]
  %s7 = inlined_call_operand.vmem [shape: f32[2,256,128], index: 7, kind: output, shape index: {}]
  %s8 = sld [smem:[#allocation0]]
  $region61: #{bottleneck_forward.1} parent=0
    _
  %s10 = ssub.s32 1, %s8
  %s11 = scalar_select 0, %s10, %s8
  loop: start=0, step=1, limit=4
  $region2: #{bottleneck_forward.1} parent=0 // loop_pre_header
    _
  $region3: #{bottleneck_forward.1} parent=0 // loop_header
    %s13 = sphi 0, %s17
    %p14 = scmp.ge.s32.totalorder %s13, 4
    %s23 = sphi 0, %s25
    %s26 = sphi 0, %s23
    %s27 = sphi 0, %s26
    %s43 = sphi 0, %s27
    %s47 = sphi 0, %s47
    %s49 = sphi 0, %s47
    %s50 = sphi 0, %s49
    %s64 = sphi 0, %s50
    %s68 = sphi 0, %s68
    %s70 = sphi 0, %s68
    %s71 = sphi 0, %s70
    %s85 = sphi 0, %s71
    %s89 = sphi 0, %s89
    %s91 = sphi 0, %s89
    %s92 = sphi 0, %s91
    %s106 = sphi 0, %s92
    %s110 = sphi 0, %s110
    %s112 = sphi 0, %s110
    %s113 = sphi 0, %s112
    %s127 = sphi 0, %s113
    %s131 = sphi 0, %s131
    %s133 = sphi 0, %s131
    %s134 = sphi 0, %s133
    %s148 = sphi 0, %s134
    %s152 = sphi 0, %s152
    %s154 = sphi 0, %s152
    %s155 = sphi 0, %s154
    %s169 = sphi 0, %s155
    %s175 = sphi 0, %s177
    %s178 = sphi 0, %s175
    %s179 = sphi 0, %s178
    %s195 = sphi 0, %s179
  $region4: #{bottleneck_forward.1} parent=0 // loop_header_branch
    %16 = sbr.rel (%p14) target = $region8
  $region5: #{bottleneck_forward.1} parent=0 // loop_body
    %s18 = ssub.s32 %s13, 1
    %s19 = ssub.s32 %s13, 2
    %s20 = sadd.s32 %s13, 1
    %s21 = ssub.s32 %s13, %s20
    %p22 = scmp.eq.s32.totalorder %s21, 0
    %s24 = sadd.s32 %s23, 1
    %s25 = scalar_select %p22, %s23, %s24
    %p28 = pneg %p22
    %p29 = scmp.eq.s32.totalorder %s13, 1
    %p30 = por %p28, %p29
    %p31 = scmp.ne.s32.totalorder %s23, %s26
    %p32 = scmp.eq.s32.totalorder %s13, 0
    %p33 = por %p31, %p32
    %p34 = scmp.ne.s32.totalorder %s23, %s26
    %p35 = scmp.eq.s32.totalorder %s18, 1
    %p36 = por %p34, %p35
    %p37 = scmp.ne.s32.totalorder %s26, %s27
    %p38 = scmp.eq.s32.totalorder %s18, 0
    %p39 = por %p37, %p38
    %p40 = scmp.ne.s32.totalorder %s26, %s27
    %p41 = scmp.eq.s32.totalorder %s19, 1
    %p42 = por %p40, %p41
    %p44 = scmp.ne.s32.totalorder %s27, %s43
    %p45 = scmp.eq.s32.totalorder %s19, 0
    %p46 = por %p44, %p45
    %s48 = sadd.s32 %s47, 1
    %p51 = scmp.eq.s32.totalorder %s13, 1
    %p52 = scmp.ne.s32.totalorder %s47, %s49
    %p53 = scmp.eq.s32.totalorder %s13, 0
    %p54 = por %p52, %p53
    %p55 = scmp.ne.s32.totalorder %s47, %s49
    %p56 = scmp.eq.s32.totalorder %s18, 1
    %p57 = por %p55, %p56
    %p58 = scmp.ne.s32.totalorder %s49, %s50
    %p59 = scmp.eq.s32.totalorder %s18, 0
    %p60 = por %p58, %p59
    %p61 = scmp.ne.s32.totalorder %s49, %s50
    %p62 = scmp.eq.s32.totalorder %s19, 1
    %p63 = por %p61, %p62
    %p65 = scmp.ne.s32.totalorder %s50, %s64
    %p66 = scmp.eq.s32.totalorder %s19, 0
    %p67 = por %p65, %p66
    %s69 = sadd.s32 %s68, 1
    %p72 = scmp.eq.s32.totalorder %s13, 1
    %p73 = scmp.ne.s32.totalorder %s68, %s70
    %p74 = scmp.eq.s32.totalorder %s13, 0
    %p75 = por %p73, %p74
    %p76 = scmp.ne.s32.totalorder %s68, %s70
    %p77 = scmp.eq.s32.totalorder %s18, 1
    %p78 = por %p76, %p77
    %p79 = scmp.ne.s32.totalorder %s70, %s71
    %p80 = scmp.eq.s32.totalorder %s18, 0
    %p81 = por %p79, %p80
    %p82 = scmp.ne.s32.totalorder %s70, %s71
    %p83 = scmp.eq.s32.totalorder %s19, 1
    %p84 = por %p82, %p83
    %p86 = scmp.ne.s32.totalorder %s71, %s85
    %p87 = scmp.eq.s32.totalorder %s19, 0
    %p88 = por %p86, %p87
    %s90 = sadd.s32 %s89, 1
    %p93 = scmp.eq.s32.totalorder %s13, 1
    %p94 = scmp.ne.s32.totalorder %s89, %s91
    %p95 = scmp.eq.s32.totalorder %s13, 0
    %p96 = por %p94, %p95
    %p97 = scmp.ne.s32.totalorder %s89, %s91
    %p98 = scmp.eq.s32.totalorder %s18, 1
    %p99 = por %p97, %p98
    %p100 = scmp.ne.s32.totalorder %s91, %s92
    %p101 = scmp.eq.s32.totalorder %s18, 0
    %p102 = por %p100, %p101
    %p103 = scmp.ne.s32.totalorder %s91, %s92
    %p104 = scmp.eq.s32.totalorder %s19, 1
    %p105 = por %p103, %p104
    %p107 = scmp.ne.s32.totalorder %s92, %s106
    %p108 = scmp.eq.s32.totalorder %s19, 0
    %p109 = por %p107, %p108
    %s111 = sadd.s32 %s110, 1
    %p114 = scmp.eq.s32.totalorder %s13, 1
    %p115 = scmp.ne.s32.totalorder %s110, %s112
    %p116 = scmp.eq.s32.totalorder %s13, 0
    %p117 = por %p115, %p116
    %p118 = scmp.ne.s32.totalorder %s110, %s112
    %p119 = scmp.eq.s32.totalorder %s18, 1
    %p120 = por %p118, %p119
    %p121 = scmp.ne.s32.totalorder %s112, %s113
    %p122 = scmp.eq.s32.totalorder %s18, 0
    %p123 = por %p121, %p122
    %p124 = scmp.ne.s32.totalorder %s112, %s113
    %p125 = scmp.eq.s32.totalorder %s19, 1
    %p126 = por %p124, %p125
    %p128 = scmp.ne.s32.totalorder %s113, %s127
    %p129 = scmp.eq.s32.totalorder %s19, 0
    %p130 = por %p128, %p129
    %s132 = sadd.s32 %s131, 1
    %p135 = scmp.eq.s32.totalorder %s13, 1
    %p136 = scmp.ne.s32.totalorder %s131, %s133
    %p137 = scmp.eq.s32.totalorder %s13, 0
    %p138 = por %p136, %p137
    %p139 = scmp.ne.s32.totalorder %s131, %s133
    %p140 = scmp.eq.s32.totalorder %s18, 1
    %p141 = por %p139, %p140
    %p142 = scmp.ne.s32.totalorder %s133, %s134
    %p143 = scmp.eq.s32.totalorder %s18, 0
    %p144 = por %p142, %p143
    %p145 = scmp.ne.s32.totalorder %s133, %s134
    %p146 = scmp.eq.s32.totalorder %s19, 1
    %p147 = por %p145, %p146
    %p149 = scmp.ne.s32.totalorder %s134, %s148
    %p150 = scmp.eq.s32.totalorder %s19, 0
    %p151 = por %p149, %p150
    %s153 = sadd.s32 %s152, 1
    %p156 = scmp.eq.s32.totalorder %s13, 1
    %p157 = scmp.ne.s32.totalorder %s152, %s154
    %p158 = scmp.eq.s32.totalorder %s13, 0
    %p159 = por %p157, %p158
    %p160 = scmp.ne.s32.totalorder %s152, %s154
    %p161 = scmp.eq.s32.totalorder %s18, 1
    %p162 = por %p160, %p161
    %p163 = scmp.ne.s32.totalorder %s154, %s155
    %p164 = scmp.eq.s32.totalorder %s18, 0
    %p165 = por %p163, %p164
    %p166 = scmp.ne.s32.totalorder %s154, %s155
    %p167 = scmp.eq.s32.totalorder %s19, 1
    %p168 = por %p166, %p167
    %p170 = scmp.ne.s32.totalorder %s155, %s169
    %p171 = scmp.eq.s32.totalorder %s19, 0
    %p172 = por %p170, %p171
    %s173 = ssub.s32 %s13, %s20
    %p174 = scmp.eq.s32.totalorder %s173, 0
    %s176 = sadd.s32 %s175, 1
    %s177 = scalar_select %p174, %s175, %s176
    %p180 = pneg %p174
    %p181 = scmp.eq.s32.totalorder %s13, 1
    %p182 = por %p180, %p181
    %p183 = scmp.ne.s32.totalorder %s175, %s178
    %p184 = scmp.eq.s32.totalorder %s13, 0
    %p185 = por %p183, %p184
    %p186 = scmp.ne.s32.totalorder %s175, %s178
    %p187 = scmp.eq.s32.totalorder %s18, 1
    %p188 = por %p186, %p187
    %p189 = scmp.ne.s32.totalorder %s178, %s179
    %p190 = scmp.eq.s32.totalorder %s18, 0
    %p191 = por %p189, %p190
    %p192 = scmp.ne.s32.totalorder %s178, %s179
    %p193 = scmp.eq.s32.totalorder %s19, 1
    %p194 = por %p192, %p193
    %p196 = scmp.ne.s32.totalorder %s179, %s195
    %p197 = scmp.eq.s32.totalorder %s19, 0
    %p198 = por %p196, %p197
    %p199 = scmp.le.s32.totalorder 1, %s13
    %p200 = scmp.lt.s32.totalorder %s13, 3
    %p201 = pnand %p199, %p200
    %p202 = pneg %p201
    // Predicated region
    $region9: #{bottleneck_forward.1} parent=5 // pred_check
      _
    $region10: #{bottleneck_forward.1} parent=5 // pred_check_branch
      %204 = sbr.rel (%p201) target = $region12
    $region11: #{bottleneck_forward.1} parent=5 // pred_region
      %s205 = ssub.s32 %s13, 1
      // Predicated region
      $region13: #{bottleneck_forward.1} parent=11 // pred_check
        %p206 = pneg %p60
      $region14: #{bottleneck_forward.1} parent=11 // pred_check_branch
        %208 = sbr.rel (%p206) target = $region16
      $region15: #{bottleneck_forward.1} parent=11 // pred_region
        _
      $region16: #{bottleneck_forward.1} parent=11 // pred_fallthru
        _
      // Predicated region
      $region17: #{bottleneck_forward.1} parent=11 // pred_check
        %p209 = pneg %p81
      $region18: #{bottleneck_forward.1} parent=11 // pred_check_branch
        %211 = sbr.rel (%p209) target = $region20
      $region19: #{bottleneck_forward.1} parent=11 // pred_region
        _
      $region20: #{bottleneck_forward.1} parent=11 // pred_fallthru
        _
      // Predicated region
      $region21: #{bottleneck_forward.1} parent=11 // pred_check
        %p212 = pneg %p102
      $region22: #{bottleneck_forward.1} parent=11 // pred_check_branch
        %214 = sbr.rel (%p212) target = $region24
      $region23: #{bottleneck_forward.1} parent=11 // pred_region
        _
      $region24: #{bottleneck_forward.1} parent=11 // pred_fallthru
        _
      // Predicated region
      $region25: #{bottleneck_forward.1} parent=11 // pred_check
        %p215 = pneg %p123
      $region26: #{bottleneck_forward.1} parent=11 // pred_check_branch
        %217 = sbr.rel (%p215) target = $region28
      $region27: #{bottleneck_forward.1} parent=11 // pred_region
        _
      $region28: #{bottleneck_forward.1} parent=11 // pred_fallthru
        _
      // Predicated region
      $region29: #{bottleneck_forward.1} parent=11 // pred_check
        %p218 = pneg %p144
      $region30: #{bottleneck_forward.1} parent=11 // pred_check_branch
        %220 = sbr.rel (%p218) target = $region32
      $region31: #{bottleneck_forward.1} parent=11 // pred_region
        _
      $region32: #{bottleneck_forward.1} parent=11 // pred_fallthru
        _
      // Predicated region
      $region33: #{bottleneck_forward.1} parent=11 // pred_check
        %p221 = pneg %p165
      $region34: #{bottleneck_forward.1} parent=11 // pred_check_branch
        %223 = sbr.rel (%p221) target = $region36
      $region35: #{bottleneck_forward.1} parent=11 // pred_region
        _
      $region36: #{bottleneck_forward.1} parent=11 // pred_fallthru
        _
    $region12: #{bottleneck_forward.1} parent=5 // pred_fallthru
      _
    %p224 = scmp.lt.s32.totalorder %s13, 2
    // Predicated region
    $region37: #{bottleneck_forward.1} parent=5 // pred_check
      %p225 = pneg %p224
    $region38: #{bottleneck_forward.1} parent=5 // pred_check_branch
      %227 = sbr.rel (%p225) target = $region40
    $region39: #{bottleneck_forward.1} parent=5 // pred_region
      // Predicated region
      $region41: #{bottleneck_forward.1} parent=39 // pred_check
        %p228 = pneg %p33
      $region42: #{bottleneck_forward.1} parent=39 // pred_check_branch
        %230 = sbr.rel (%p228) target = $region44
      $region43: #{bottleneck_forward.1} parent=39 // pred_region
        %p231 = scmp.lt.s32.totalorder %s13, 1
        %s232 = scalar_select %p231, %s13, 1
        %s233 = smul.addr %s232, 32
        %s234 = smul.addr %s233, 8
        %s235 = scalar_lea.vmem %s0, %s234
      $region44: #{bottleneck_forward.1} parent=39 // pred_fallthru
        _
    $region40: #{bottleneck_forward.1} parent=5 // pred_fallthru
      _
    %p236 = scmp.le.s32.totalorder 1, %s13
    %p237 = scmp.lt.s32.totalorder %s13, 3
    %p238 = pnand %p236, %p237
    %p239 = pneg %p238
    // Predicated region
    $region45: #{bottleneck_forward.1} parent=5 // pred_check
      _
    $region46: #{bottleneck_forward.1} parent=5 // pred_check_branch
      %241 = sbr.rel (%p238) target = $region48
    $region47: #{bottleneck_forward.1} parent=5 // pred_region
      %s242 = ssub.s32 %s13, 1
      %p243 = scmp.lt.s32.totalorder %s18, 1
      %s244 = scalar_select %p243, %s18, 1
      %s245 = smul.addr %s244, 32
      %s246 = smul.addr %s245, 8
      %s247 = scalar_lea.vmem %s0, %s246
      %p248 = pneg %p39
      %p249 = pneg %p36
      %p250 = pneg %p60
      %p251 = pneg %p57
      %p252 = pneg %p81
      %p253 = pneg %p78
      %p254 = pneg %p102
      %p255 = pneg %p99
      %p256 = pneg %p123
      %p257 = pneg %p120
      %p258 = pneg %p144
      %p259 = pneg %p141
      %p260 = pneg %p165
      %p261 = pneg %p162
      %p262 = pneg %p191
      %p263 = pneg %p188
      %p264 = scmp.lt.s32.totalorder %s18, 1
      %s265 = scalar_select %p264, %s18, 1
      %s266 = smul.addr %s265, 32
      %s267 = smul.addr %s266, 8
      %s268 = scalar_lea.vmem %s7, %s267
      %p269 = scmp.lt.s32.totalorder %s18, 1
      %s270 = scalar_select %p269, %s18, 1
      %s271 = smul.addr %s270, 32
      %s272 = smul.addr %s271, 8
      %s273 = scalar_lea.vmem %s0, %s272
      %p274 = scmp.lt.s32.totalorder %s18, 1
      %s275 = scalar_select %p274, %s18, 1
      %s276 = smul.addr %s275, 32
      %s277 = smul.addr %s276, 8
      %s278 = scalar_lea.vmem %s7, %s277
      %279 = vst [vmem:[#allocation2] sm:$0xff] 0.0
      %280 = vst [vmem:[#allocation2 + $0x8] sm:$0xff] 0.0
      %281 = vst [vmem:[#allocation2 + $0x10] sm:$0xff] 0.0
      %282 = vst [vmem:[#allocation2 + $0x18] sm:$0xff] 0.0
      %283 = vst [vmem:[#allocation2 + $0x20] sm:$0xff] 0.0
      %284 = vst [vmem:[#allocation2 + $0x28] sm:$0xff] 0.0
      %285 = vst [vmem:[#allocation2 + $0x30] sm:$0xff] 0.0
      %286 = vst [vmem:[#allocation2 + $0x38] sm:$0xff] 0.0
      %287 = vst [vmem:[#allocation2 + $0x40] sm:$0xff] 0.0
      %288 = vst [vmem:[#allocation2 + $0x48] sm:$0xff] 0.0
      %289 = vst [vmem:[#allocation2 + $0x50] sm:$0xff] 0.0
      %290 = vst [vmem:[#allocation2 + $0x58] sm:$0xff] 0.0
      %291 = vst [vmem:[#allocation2 + $0x60] sm:$0xff] 0.0
      %292 = vst [vmem:[#allocation2 + $0x68] sm:$0xff] 0.0
      %293 = vst [vmem:[#allocation2 + $0x70] sm:$0xff] 0.0
      %294 = vst [vmem:[#allocation2 + $0x78] sm:$0xff] 0.0
      %295 = vst [vmem:[#allocation2 + $0x80] sm:$0xff] 0.0
      %296 = vst [vmem:[#allocation2 + $0x88] sm:$0xff] 0.0
      %297 = vst [vmem:[#allocation2 + $0x90] sm:$0xff] 0.0
      %298 = vst [vmem:[#allocation2 + $0x98] sm:$0xff] 0.0
      %299 = vst [vmem:[#allocation2 + $0xa0] sm:$0xff] 0.0
      %300 = vst [vmem:[#allocation2 + $0xa8] sm:$0xff] 0.0
      %301 = vst [vmem:[#allocation2 + $0xb0] sm:$0xff] 0.0
      %302 = vst [vmem:[#allocation2 + $0xb8] sm:$0xff] 0.0
      %303 = vst [vmem:[#allocation2 + $0xc0] sm:$0xff] 0.0
      %304 = vst [vmem:[#allocation2 + $0xc8] sm:$0xff] 0.0
      %305 = vst [vmem:[#allocation2 + $0xd0] sm:$0xff] 0.0
      %306 = vst [vmem:[#allocation2 + $0xd8] sm:$0xff] 0.0
      %307 = vst [vmem:[#allocation2 + $0xe0] sm:$0xff] 0.0
      %308 = vst [vmem:[#allocation2 + $0xe8] sm:$0xff] 0.0
      %309 = vst [vmem:[#allocation2 + $0xf0] sm:$0xff] 0.0
      %310 = vst [vmem:[#allocation2 + $0xf8] sm:$0xff] 0.0
      %311 = vst [vmem:[#allocation2 + $0x100] sm:$0xff] 0.0
      %312 = vst [vmem:[#allocation2 + $0x108] sm:$0xff] 0.0
      %313 = vst [vmem:[#allocation2 + $0x110] sm:$0xff] 0.0
      %314 = vst [vmem:[#allocation2 + $0x118] sm:$0xff] 0.0
      %315 = vst [vmem:[#allocation2 + $0x120] sm:$0xff] 0.0
      %316 = vst [vmem:[#allocation2 + $0x128] sm:$0xff] 0.0
      %317 = vst [vmem:[#allocation2 + $0x130] sm:$0xff] 0.0
      %318 = vst [vmem:[#allocation2 + $0x138] sm:$0xff] 0.0
      %319 = vst [vmem:[#allocation2 + $0x140] sm:$0xff] 0.0
      %320 = vst [vmem:[#allocation2 + $0x148] sm:$0xff] 0.0
      %321 = vst [vmem:[#allocation2 + $0x150] sm:$0x3f] 0.0
      %v322 = vld [vmem:[%s273] sm:$0xff]
      %v323 = vld [vmem:[%s273 + $0x8] sm:$0xff]
      %v324 = vld [vmem:[%s273 + $0x10] sm:$0xff]
      %v325 = vld [vmem:[%s273 + $0x18] sm:$0xff]
      %v326 = vld [vmem:[%s273 + $0x20] sm:$0xff]
      %v327 = vld [vmem:[%s273 + $0x28] sm:$0xff]
      %v328 = vld [vmem:[%s273 + $0x30] sm:$0xff]
      %v329 = vld [vmem:[%s273 + $0x38] sm:$0xff]
      %v330 = vld [vmem:[%s1] sm:$0xff]
      %v331 = vld [vmem:[%s1 + $0x8] sm:$0xff]
      %v332 = vld [vmem:[%s1 + $0x10] sm:$0xff]
      %v333 = vld [vmem:[%s1 + $0x18] sm:$0xff]
      %v334 = vld [vmem:[%s1 + $0x20] sm:$0xff]
      %v335 = vld [vmem:[%s1 + $0x28] sm:$0xff]
      %v336 = vld [vmem:[%s1 + $0x30] sm:$0xff]
      %v337 = vld [vmem:[%s1 + $0x38] sm:$0xff]
      %v338 = vld [vmem:[%s1 + $0x40] sm:$0xff]
      %v339 = vld [vmem:[%s1 + $0x48] sm:$0xff]
      %v340 = vld [vmem:[%s1 + $0x50] sm:$0xff]
      %v341 = vld [vmem:[%s1 + $0x58] sm:$0xff]
      %v342 = vld [vmem:[%s1 + $0x60] sm:$0xff]
      %v343 = vld [vmem:[%s1 + $0x68] sm:$0xff]
      %v344 = vld [vmem:[%s1 + $0x70] sm:$0xff]
      %v345 = vld [vmem:[%s1 + $0x78] sm:$0xff]
      %v346 = vld [vmem:[%s2] sm:$0x1]
      %v348 = vlaneseq
      %v349 = vshrl.u32 %v348, 7
      %v350 = vsub.s32 0, %v349
      %v351 = vrot.slane %v346, %v350
      %353 = vmatprep.subr.mxu0 0.0
      %354 = vmatpush1.msra.mxu0 %v330
      %355 = vmatprep.subr.mxu0 0.0
      %356 = vmatpush1.msra.mxu0 %v331
      %357 = vmatprep.subr.mxu0 0.0
      %358 = vmatpush1.msra.mxu0 %v332
      %359 = vmatprep.subr.mxu0 0.0
      %360 = vmatpush1.msra.mxu0 %v333
      %361 = vmatprep.subr.mxu0 0.0
      %362 = vmatpush1.msra.mxu0 %v334
      %363 = vmatprep.subr.mxu0 0.0
      %364 = vmatpush1.msra.mxu0 %v335
      %365 = vmatprep.subr.mxu0 0.0
      %366 = vmatpush1.msra.mxu0 %v336
      %367 = vmatprep.subr.mxu0 0.0
      %368 = vmatpush1.msra.mxu0 %v337
      %369 = vmatprep.subr.mxu0 0.0
      %370 = vmatpush1.msra.mxu0 %v338
      %371 = vmatprep.subr.mxu0 0.0
      %372 = vmatpush1.msra.mxu0 %v339
      %373 = vmatprep.subr.mxu0 0.0
      %374 = vmatpush1.msra.mxu0 %v340
      %375 = vmatprep.subr.mxu0 0.0
      %376 = vmatpush1.msra.mxu0 %v341
      %377 = vmatprep.subr.mxu0 0.0
      %378 = vmatpush1.msra.mxu0 %v342
      %379 = vmatprep.subr.mxu0 0.0
      %380 = vmatpush1.msra.mxu0 %v343
      %381 = vmatprep.subr.mxu0 0.0
      %382 = vmatpush1.msra.mxu0 %v344
      %383 = vmatprep.subr.mxu0 0.0
      %384 = vmatpush1.msra.mxu0 %v345
      %385 = vmatprep.subr.mxu0 0.0
      %386 = vmatpush1.msra.mxu0 0.0
      %387 = vmatprep.subr.mxu0 0.0
      %388 = vmatpush1.msra.mxu0 0.0
      %389 = vmatprep.subr.mxu0 0.0
      %390 = vmatpush1.msra.mxu0 0.0
      %391 = vmatprep.subr.mxu0 0.0
      %392 = vmatpush1.msra.mxu0 0.0
      %393 = vmatprep.subr.mxu0 0.0
      %394 = vmatpush1.msra.mxu0 0.0
      %395 = vmatprep.subr.mxu0 0.0
      %396 = vmatpush1.msra.mxu0 0.0
      %397 = vmatprep.subr.mxu0 0.0
      %398 = vmatpush1.msra.mxu0 0.0
      %399 = vmatprep.subr.mxu0 0.0
      %400 = vmatpush1.msra.mxu0 0.0
      %401 = vmatprep.subr.mxu0 0.0
      %402 = vmatpush1.msra.mxu0 0.0
      %403 = vmatprep.subr.mxu0 0.0
      %404 = vmatpush1.msra.mxu0 0.0
      %405 = vmatprep.subr.mxu0 0.0
      %406 = vmatpush1.msra.mxu0 0.0
      %407 = vmatprep.subr.mxu0 0.0
      %408 = vmatpush1.msra.mxu0 0.0
      %409 = vmatprep.subr.mxu0 0.0
      %410 = vmatpush1.msra.mxu0 0.0
      %411 = vmatprep.subr.mxu0 0.0
      %412 = vmatpush1.msra.mxu0 0.0
      %413 = vmatprep.subr.mxu0 0.0
      %414 = vmatpush1.msra.mxu0 0.0
      %415 = vmatprep.subr.mxu0 0.0
      %416 = vmatpush1.msra.mxu0 0.0
      %417 = vmatprep.mubr.f32.mxu0 0.0
      %418 = vmatmul.mubr.f32.gmra.mrb[0].mxu0 %v322
      %v419 = vpop.f32.mrb[0].mxu0
      %v420 = vadd.f32 %v351, %v419
      %v421 = vpop.f32.mrb[0].mxu0
      %422 = vmatprep.mubr.f32.mxu0 0.0
      %423 = vmatmul.mubr.f32.gmra.mrb[0].mxu0 %v323
      %v424 = vpop.f32.mrb[0].mxu0
      %v425 = vadd.f32 %v351, %v424
      %v426 = vpop.f32.mrb[0].mxu0
      %427 = vmatprep.mubr.f32.mxu0 0.0
      %428 = vmatmul.mubr.f32.gmra.mrb[0].mxu0 %v324
      %v429 = vpop.f32.mrb[0].mxu0
      %v430 = vadd.f32 %v351, %v429
      %v431 = vpop.f32.mrb[0].mxu0
      %432 = vmatprep.mubr.f32.mxu0 0.0
      %433 = vmatmul.mubr.f32.gmra.mrb[0].mxu0 %v325
      %v434 = vpop.f32.mrb[0].mxu0
      %v435 = vadd.f32 %v351, %v434
      %v436 = vpop.f32.mrb[0].mxu0
      %437 = vmatprep.mubr.f32.mxu0 0.0
      %438 = vmatmul.mubr.f32.gmra.mrb[0].mxu0 %v326
      %v439 = vpop.f32.mrb[0].mxu0
      %v440 = vadd.f32 %v351, %v439
      %v441 = vpop.f32.mrb[0].mxu0
      %442 = vmatprep.mubr.f32.mxu0 0.0
      %443 = vmatmul.mubr.f32.gmra.mrb[0].mxu0 %v327
      %v444 = vpop.f32.mrb[0].mxu0
      %v445 = vadd.f32 %v351, %v444
      %v446 = vpop.f32.mrb[0].mxu0
      %447 = vmatprep.mubr.f32.mxu0 0.0
      %448 = vmatmul.mubr.f32.gmra.mrb[0].mxu0 %v328
      %v449 = vpop.f32.mrb[0].mxu0
      %v450 = vadd.f32 %v351, %v449
      %v451 = vpop.f32.mrb[0].mxu0
      %452 = vmatprep.mubr.f32.mxu0 0.0
      %453 = vmatmul.mubr.f32.gmra.mrb[0].mxu0 %v329
      %v454 = vpop.f32.mrb[0].mxu0
      %v455 = vadd.f32 %v351, %v454
      %v456 = vpop.f32.mrb[0].mxu0
      %457 = vdwg.mxu0
      %v458 = vmax.f32 %v420, 0.0
      %v459 = vmax.f32 %v425, 0.0
      %v460 = vmax.f32 %v430, 0.0
      %v461 = vmax.f32 %v435, 0.0
      %v462 = vmax.f32 %v440, 0.0
      %v463 = vmax.f32 %v445, 0.0
      %v464 = vmax.f32 %v450, 0.0
      %v465 = vmax.f32 %v455, 0.0
      %466 = vst [vmem:[#allocation2 + $0x13] sm:$0xff] %v458
      %467 = vst [vmem:[#allocation2 + $0x1b] sm:$0xff] %v459
      %468 = vst [vmem:[#allocation2 + $0x25] sm:$0xff] %v460
      %469 = vst [vmem:[#allocation2 + $0x2d] sm:$0xff] %v461
      %470 = vst [vmem:[#allocation2 + $0x37] sm:$0xff] %v462
      %471 = vst [vmem:[#allocation2 + $0x3f] sm:$0xff] %v463
      %472 = vst [vmem:[#allocation2 + $0x49] sm:$0xff] %v464
      %473 = vst [vmem:[#allocation2 + $0x51] sm:$0xff] %v465
      %v474 = vld [vmem:[%s273 + $0x40] sm:$0xff]
      %v475 = vld [vmem:[%s273 + $0x48] sm:$0xff]
      %v476 = vld [vmem:[%s273 + $0x50] sm:$0xff]
      %v477 = vld [vmem:[%s273 + $0x58] sm:$0xff]
      %v478 = vld [vmem:[%s273 + $0x60] sm:$0xff]
      %v479 = vld [vmem:[%s273 + $0x68] sm:$0xff]
      %v480 = vld [vmem:[%s273 + $0x70] sm:$0xff]
      %v481 = vld [vmem:[%s273 + $0x78] sm:$0xff]
      %v482 = vld [vmem:[%s1] sm:$0xff]
      %v483 = vld [vmem:[%s1 + $0x8] sm:$0xff]
      %v484 = vld [vmem:[%s1 + $0x10] sm:$0xff]
      %v485 = vld [vmem:[%s1 + $0x18] sm:$0xff]
      %v486 = vld [vmem:[%s1 + $0x20] sm:$0xff]
      %v487 = vld [vmem:[%s1 + $0x28] sm:$0xff]
      %v488 = vld [vmem:[%s1 + $0x30] sm:$0xff]
      %v489 = vld [vmem:[%s1 + $0x38] sm:$0xff]
      %v490 = vld [vmem:[%s1 + $0x40] sm:$0xff]
      %v491 = vld [vmem:[%s1 + $0x48] sm:$0xff]
      %v492 = vld [vmem:[%s1 + $0x50] sm:$0xff]
      %v493 = vld [vmem:[%s1 + $0x58] sm:$0xff]
      %v494 = vld [vmem:[%s1 + $0x60] sm:$0xff]
      %v495 = vld [vmem:[%s1 + $0x68] sm:$0xff]
      %v496 = vld [vmem:[%s1 + $0x70] sm:$0xff]
      %v497 = vld [vmem:[%s1 + $0x78] sm:$0xff]
      %v498 = vld [vmem:[%s2] sm:$0x1]
      %v500 = vlaneseq
      %v501 = vshrl.u32 %v500, 7
      %v502 = vsub.s32 0, %v501
      %v503 = vrot.slane %v498, %v502
      %505 = vmatprep.subr.mxu0 0.0
      %506 = vmatpush1.msra.mxu0 %v482
      %507 = vmatprep.subr.mxu0 0.0
      %508 = vmatpush1.msra.mxu0 %v483
      %509 = vmatprep.subr.mxu0 0.0
      %510 = vmatpush1.msra.mxu0 %v484
      %511 = vmatprep.subr.mxu0 0.0
      %512 = vmatpush1.msra.mxu0 %v485
      %513 = vmatprep.subr.mxu0 0.0
      %514 = vmatpush1.msra.mxu0 %v486
      %515 = vmatprep.subr.mxu0 0.0
      %516 = vmatpush1.msra.mxu0 %v487
      %517 = vmatprep.subr.mxu0 0.0
      %518 = vmatpush1.msra.mxu0 %v488
      %519 = vmatprep.subr.mxu0 0.0
      %520 = vmatpush1.msra.mxu0 %v489
      %521 = vmatprep.subr.mxu0 0.0
      %522 = vmatpush1.msra.mxu0 %v490
      %523 = vmatprep.subr.mxu0 0.0
      %524 = vmatpush1.msra.mxu0 %v491
      %525 = vmatprep.subr.mxu0 0.0
      %526 = vmatpush1.msra.mxu0 %v492
      %527 = vmatprep.subr.mxu0 0.0
      %528 = vmatpush1.msra.mxu0 %v493
      %529 = vmatprep.subr.mxu0 0.0
      %530 = vmatpush1.msra.mxu0 %v494
      %531 = vmatprep.subr.mxu0 0.0
      %532 = vmatpush1.msra.mxu0 %v495
      %533 = vmatprep.subr.mxu0 0.0
      %534 = vmatpush1.msra.mxu0 %v496
      %535 = vmatprep.subr.mxu0 0.0
      %536 = vmatpush1.msra.mxu0 %v497
      %537 = vmatprep.subr.mxu0 0.0
      %538 = vmatpush1.msra.mxu0 0.0
      %539 = vmatprep.subr.mxu0 0.0
      %540 = vmatpush1.msra.mxu0 0.0
      %541 = vmatprep.subr.mxu0 0.0
      %542 = vmatpush1.msra.mxu0 0.0
      %543 = vmatprep.subr.mxu0 0.0
      %544 = vmatpush1.msra.mxu0 0.0
      %545 = vmatprep.subr.mxu0 0.0
      %546 = vmatpush1.msra.mxu0 0.0
      %547 = vmatprep.subr.mxu0 0.0
      %548 = vmatpush1.msra.mxu0 0.0
      %549 = vmatprep.subr.mxu0 0.0
      %550 = vmatpush1.msra.mxu0 0.0
      %551 = vmatprep.subr.mxu0 0.0
      %552 = vmatpush1.msra.mxu0 0.0
      %553 = vmatprep.subr.mxu0 0.0
      %554 = vmatpush1.msra.mxu0 0.0
      %555 = vmatprep.subr.mxu0 0.0
      %556 = vmatpush1.msra.mxu0 0.0
      %557 = vmatprep.subr.mxu0 0.0
      %558 = vmatpush1.msra.mxu0 0.0
      %559 = vmatprep.subr.mxu0 0.0
      %560 = vmatpush1.msra.mxu0 0.0
      %561 = vmatprep.subr.mxu0 0.0
      %562 = vmatpush1.msra.mxu0 0.0
      %563 = vmatprep.subr.mxu0 0.0
      %564 = vmatpush1.msra.mxu0 0.0
      %565 = vmatprep.subr.mxu0 0.0
      %566 = vmatpush1.msra.mxu0 0.0
      %567 = vmatprep.subr.mxu0 0.0
      %568 = vmatpush1.msra.mxu0 0.0
      %569 = vmatprep.mubr.f32.mxu0 0.0
      %570 = vmatmul.mubr.f32.gmra.mrb[0].mxu0 %v474
      %v571 = vpop.f32.mrb[0].mxu0
      %v572 = vadd.f32 %v503, %v571
      %v573 = vpop.f32.mrb[0].mxu0
      %574 = vmatprep.mubr.f32.mxu0 0.0
      %575 = vmatmul.mubr.f32.gmra.mrb[0].mxu0 %v475
      %v576 = vpop.f32.mrb[0].mxu0
      %v577 = vadd.f32 %v503, %v576
      %v578 = vpop.f32.mrb[0].mxu0
      %579 = vmatprep.mubr.f32.mxu0 0.0
      %580 = vmatmul.mubr.f32.gmra.mrb[0].mxu0 %v476
      %v581 = vpop.f32.mrb[0].mxu0
      %v582 = vadd.f32 %v503, %v581
      %v583 = vpop.f32.mrb[0].mxu0
      %584 = vmatprep.mubr.f32.mxu0 0.0
      %585 = vmatmul.mubr.f32.gmra.mrb[0].mxu0 %v477
      %v586 = vpop.f32.mrb[0].mxu0
      %v587 = vadd.f32 %v503, %v586
      %v588 = vpop.f32.mrb[0].mxu0
      %589 = vmatprep.mubr.f32.mxu0 0.0
      %590 = vmatmul.mubr.f32.gmra.mrb[0].mxu0 %v478
      %v591 = vpop.f32.mrb[0].mxu0
      %v592 = vadd.f32 %v503, %v591
      %v593 = vpop.f32.mrb[0].mxu0
      %594 = vmatprep.mubr.f32.mxu0 0.0
      %595 = vmatmul.mubr.f32.gmra.mrb[0].mxu0 %v479
      %v596 = vpop.f32.mrb[0].mxu0
      %v597 = vadd.f32 %v503, %v596
      %v598 = vpop.f32.mrb[0].mxu0
      %599 = vmatprep.mubr.f32.mxu0 0.0
      %600 = vmatmul.mubr.f32.gmra.mrb[0].mxu0 %v480
      %v601 = vpop.f32.mrb[0].mxu0
      %v602 = vadd.f32 %v503, %v601
      %v603 = vpop.f32.mrb[0].mxu0
      %604 = vmatprep.mubr.f32.mxu0 0.0
      %605 = vmatmul.mubr.f32.gmra.mrb[0].mxu0 %v481
      %v606 = vpop.f32.mrb[0].mxu0
      %v607 = vadd.f32 %v503, %v606
      %v608 = vpop.f32.mrb[0].mxu0
      %609 = vdwg.mxu0
      %v610 = vmax.f32 %v572, 0.0
      %v611 = vmax.f32 %v577, 0.0
      %v612 = vmax.f32 %v582, 0.0
      %v613 = vmax.f32 %v587, 0.0
      %v614 = vmax.f32 %v592, 0.0
      %v615 = vmax.f32 %v597, 0.0
      %v616 = vmax.f32 %v602, 0.0
      %v617 = vmax.f32 %v607, 0.0
      %618 = vst [vmem:[#allocation2 + $0x5b] sm:$0xff] %v610
      %619 = vst [vmem:[#allocation2 + $0x63] sm:$0xff] %v611
      %620 = vst [vmem:[#allocation2 + $0x6d] sm:$0xff] %v612
      %621 = vst [vmem:[#allocation2 + $0x75] sm:$0xff] %v613
      %622 = vst [vmem:[#allocation2 + $0x7f] sm:$0xff] %v614
      %623 = vst [vmem:[#allocation2 + $0x87] sm:$0xff] %v615
      %624 = vst [vmem:[#allocation2 + $0x91] sm:$0xff] %v616
      %625 = vst [vmem:[#allocation2 + $0x99] sm:$0xff] %v617
      %v626 = vld [vmem:[%s273 + $0x80] sm:$0xff]
      %v627 = vld [vmem:[%s273 + $0x88] sm:$0xff]
      %v628 = vld [vmem:[%s273 + $0x90] sm:$0xff]
      %v629 = vld [vmem:[%s273 + $0x98] sm:$0xff]
      %v630 = vld [vmem:[%s273 + $0xa0] sm:$0xff]
      %v631 = vld [vmem:[%s273 + $0xa8] sm:$0xff]
      %v632 = vld [vmem:[%s273 + $0xb0] sm:$0xff]
      %v633 = vld [vmem:[%s273 + $0xb8] sm:$0xff]
      %v634 = vld [vmem:[%s1] sm:$0xff]
      %v635 = vld [vmem:[%s1 + $0x8] sm:$0xff]
      %v636 = vld [vmem:[%s1 + $0x10] sm:$0xff]
      %v637 = vld [vmem:[%s1 + $0x18] sm:$0xff]
      %v638 = vld [vmem:[%s1 + $0x20] sm:$0xff]
      %v639 = vld [vmem:[%s1 + $0x28] sm:$0xff]
      %v640 = vld [vmem:[%s1 + $0x30] sm:$0xff]
      %v641 = vld [vmem:[%s1 + $0x38] sm:$0xff]
      %v642 = vld [vmem:[%s1 + $0x40] sm:$0xff]
      %v643 = vld [vmem:[%s1 + $0x48] sm:$0xff]
      %v644 = vld [vmem:[%s1 + $0x50] sm:$0xff]
      %v645 = vld [vmem:[%s1 + $0x58] sm:$0xff]
      %v646 = vld [vmem:[%s1 + $0x60] sm:$0xff]
      %v647 = vld [vmem:[%s1 + $0x68] sm:$0xff]
      %v648 = vld [vmem:[%s1 + $0x70] sm:$0xff]
      %v649 = vld [vmem:[%s1 + $0x78] sm:$0xff]
      %v650 = vld [vmem:[%s2] sm:$0x1]
      %v652 = vlaneseq
      %v653 = vshrl.u32 %v652, 7
      %v654 = vsub.s32 0, %v653
      %v655 = vrot.slane %v650, %v654
      %657 = vmatprep.subr.mxu0 0.0
      %658 = vmatpush1.msra.mxu0 %v634
      %659 = vmatprep.subr.mxu0 0.0
      %660 = vmatpush1.msra.mxu0 %v635
      %661 = vmatprep.subr.mxu0 0.0
      %662 = vmatpush1.msra.mxu0 %v636
      %663 = vmatprep.subr.mxu0 0.0
      %664 = vmatpush1.msra.mxu0 %v637
      %665 = vmatprep.subr.mxu0 0.0
      %666 = vmatpush1.msra.mxu0 %v638
      %667 = vmatprep.subr.mxu0 0.0
      %668 = vmatpush1.msra.mxu0 %v639
      %669 = vmatprep.subr.mxu0 0.0
      %670 = vmatpush1.msra.mxu0 %v640
      %671 = vmatprep.subr.mxu0 0.0
      %672 = vmatpush1.msra.mxu0 %v641
      %673 = vmatprep.subr.mxu0 0.0
      %674 = vmatpush1.msra.mxu0 %v642
      %675 = vmatprep.subr.mxu0 0.0
      %676 = vmatpush1.msra.mxu0 %v643
      %677 = vmatprep.subr.mxu0 0.0
      %678 = vmatpush1.msra.mxu0 %v644
      %679 = vmatprep.subr.mxu0 0.0
      %680 = vmatpush1.msra.mxu0 %v645
      %681 = vmatprep.subr.mxu0 0.0
      %682 = vmatpush1.msra.mxu0 %v646
      %683 = vmatprep.subr.mxu0 0.0
      %684 = vmatpush1.msra.mxu0 %v647
      %685 = vmatprep.subr.mxu0 0.0
      %686 = vmatpush1.msra.mxu0 %v648
      %687 = vmatprep.subr.mxu0 0.0
      %688 = vmatpush1.msra.mxu0 %v649
      %689 = vmatprep.subr.mxu0 0.0
      %690 = vmatpush1.msra.mxu0 0.0
      %691 = vmatprep.subr.mxu0 0.0
      %692 = vmatpush1.msra.mxu0 0.0
      %693 = vmatprep.subr.mxu0 0.0
      %694 = vmatpush1.msra.mxu0 0.0
      %695 = vmatprep.subr.mxu0 0.0
      %696 = vmatpush1.msra.mxu0 0.0
      %697 = vmatprep.subr.mxu0 0.0
      %698 = vmatpush1.msra.mxu0 0.0
      %699 = vmatprep.subr.mxu0 0.0
      %700 = vmatpush1.msra.mxu0 0.0
      %701 = vmatprep.subr.mxu0 0.0
      %702 = vmatpush1.msra.mxu0 0.0
      %703 = vmatprep.subr.mxu0 0.0
      %704 = vmatpush1.msra.mxu0 0.0
      %705 = vmatprep.subr.mxu0 0.0
      %706 = vmatpush1.msra.mxu0 0.0
      %707 = vmatprep.subr.mxu0 0.0
      %708 = vmatpush1.msra.mxu0 0.0
      %709 = vmatprep.subr.mxu0 0.0
      %710 = vmatpush1.msra.mxu0 0.0
      %711 = vmatprep.subr.mxu0 0.0
      %712 = vmatpush1.msra.mxu0 0.0
      %713 = vmatprep.subr.mxu0 0.0
      %714 = vmatpush1.msra.mxu0 0.0
      %715 = vmatprep.subr.mxu0 0.0
      %716 = vmatpush1.msra.mxu0 0.0
      %717 = vmatprep.subr.mxu0 0.0
      %718 = vmatpush1.msra.mxu0 0.0
      %719 = vmatprep.subr.mxu0 0.0
      %720 = vmatpush1.msra.mxu0 0.0
      %721 = vmatprep.mubr.f32.mxu0 0.0
      %722 = vmatmul.mubr.f32.gmra.mrb[0].mxu0 %v626
      %v723 = vpop.f32.mrb[0].mxu0
      %v724 = vadd.f32 %v655, %v723
      %v725 = vpop.f32.mrb[0].mxu0
      %726 = vmatprep.mubr.f32.mxu0 0.0
      %727 = vmatmul.mubr.f32.gmra.mrb[0].mxu0 %v627
      %v728 = vpop.f32.mrb[0].mxu0
      %v729 = vadd.f32 %v655, %v728
      %v730 = vpop.f32.mrb[0].mxu0
      %731 = vmatprep.mubr.f32.mxu0 0.0
      %732 = vmatmul.mubr.f32.gmra.mrb[0].mxu0 %v628
      %v733 = vpop.f32.mrb[0].mxu0
      %v734 = vadd.f32 %v655, %v733
      %v735 = vpop.f32.mrb[0].mxu0
      %736 = vmatprep.mubr.f32.mxu0 0.0
      %737 = vmatmul.mubr.f32.gmra.mrb[0].mxu0 %v629
      %v738 = vpop.f32.mrb[0].mxu0
      %v739 = vadd.f32 %v655, %v738
      %v740 = vpop.f32.mrb[0].mxu0
      %741 = vmatprep.mubr.f32.mxu0 0.0
      %742 = vmatmul.mubr.f32.gmra.mrb[0].mxu0 %v630
      %v743 = vpop.f32.mrb[0].mxu0
      %v744 = vadd.f32 %v655, %v743
      %v745 = vpop.f32.mrb[0].mxu0
      %746 = vmatprep.mubr.f32.mxu0 0.0
      %747 = vmatmul.mubr.f32.gmra.mrb[0].mxu0 %v631
      %v748 = vpop.f32.mrb[0].mxu0
      %v749 = vadd.f32 %v655, %v748
      %v750 = vpop.f32.mrb[0].mxu0
      %751 = vmatprep.mubr.f32.mxu0 0.0
      %752 = vmatmul.mubr.f32.gmra.mrb[0].mxu0 %v632
      %v753 = vpop.f32.mrb[0].mxu0
      %v754 = vadd.f32 %v655, %v753
      %v755 = vpop.f32.mrb[0].mxu0
      %756 = vmatprep.mubr.f32.mxu0 0.0
      %757 = vmatmul.mubr.f32.gmra.mrb[0].mxu0 %v633
      %v758 = vpop.f32.mrb[0].mxu0
      %v759 = vadd.f32 %v655, %v758
      %v760 = vpop.f32.mrb[0].mxu0
      %761 = vdwg.mxu0
      %v762 = vmax.f32 %v724, 0.0
      %v763 = vmax.f32 %v729, 0.0
      %v764 = vmax.f32 %v734, 0.0
      %v765 = vmax.f32 %v739, 0.0
      %v766 = vmax.f32 %v744, 0.0
      %v767 = vmax.f32 %v749, 0.0
      %v768 = vmax.f32 %v754, 0.0
      %v769 = vmax.f32 %v759, 0.0
      %770 = vst [vmem:[#allocation2 + $0xa3] sm:$0xff] %v762
      %771 = vst [vmem:[#allocation2 + $0xab] sm:$0xff] %v763
      %772 = vst [vmem:[#allocation2 + $0xb5] sm:$0xff] %v764
      %773 = vst [vmem:[#allocation2 + $0xbd] sm:$0xff] %v765
      %774 = vst [vmem:[#allocation2 + $0xc7] sm:$0xff] %v766
      %775 = vst [vmem:[#allocation2 + $0xcf] sm:$0xff] %v767
      %776 = vst [vmem:[#allocation2 + $0xd9] sm:$0xff] %v768
      %777 = vst [vmem:[#allocation2 + $0xe1] sm:$0xff] %v769
      %v778 = vld [vmem:[%s273 + $0xc0] sm:$0xff]
      %v779 = vld [vmem:[%s273 + $0xc8] sm:$0xff]
      %v780 = vld [vmem:[%s273 + $0xd0] sm:$0xff]
      %v781 = vld [vmem:[%s273 + $0xd8] sm:$0xff]
      %v782 = vld [vmem:[%s273 + $0xe0] sm:$0xff]
      %v783 = vld [vmem:[%s273 + $0xe8] sm:$0xff]
      %v784 = vld [vmem:[%s273 + $0xf0] sm:$0xff]
      %v785 = vld [vmem:[%s273 + $0xf8] sm:$0xff]
      %v786 = vld [vmem:[%s1] sm:$0xff]
      %v787 = vld [vmem:[%s1 + $0x8] sm:$0xff]
      %v788 = vld [vmem:[%s1 + $0x10] sm:$0xff]
      %v789 = vld [vmem:[%s1 + $0x18] sm:$0xff]
      %v790 = vld [vmem:[%s1 + $0x20] sm:$0xff]
      %v791 = vld [vmem:[%s1 + $0x28] sm:$0xff]
      %v792 = vld [vmem:[%s1 + $0x30] sm:$0xff]
      %v793 = vld [vmem:[%s1 + $0x38] sm:$0xff]
      %v794 = vld [vmem:[%s1 + $0x40] sm:$0xff]
      %v795 = vld [vmem:[%s1 + $0x48] sm:$0xff]
      %v796 = vld [vmem:[%s1 + $0x50] sm:$0xff]
      %v797 = vld [vmem:[%s1 + $0x58] sm:$0xff]
      %v798 = vld [vmem:[%s1 + $0x60] sm:$0xff]
      %v799 = vld [vmem:[%s1 + $0x68] sm:$0xff]
      %v800 = vld [vmem:[%s1 + $0x70] sm:$0xff]
      %v801 = vld [vmem:[%s1 + $0x78] sm:$0xff]
      %v802 = vld [vmem:[%s2] sm:$0x1]
      %v804 = vlaneseq
      %v805 = vshrl.u32 %v804, 7
      %v806 = vsub.s32 0, %v805
      %v807 = vrot.slane %v802, %v806
      %809 = vmatprep.subr.mxu0 0.0
      %810 = vmatpush1.msra.mxu0 %v786
      %811 = vmatprep.subr.mxu0 0.0
      %812 = vmatpush1.msra.mxu0 %v787
      %813 = vmatprep.subr.mxu0 0.0
      %814 = vmatpush1.msra.mxu0 %v788
      %815 = vmatprep.subr.mxu0 0.0
      %816 = vmatpush1.msra.mxu0 %v789
      %817 = vmatprep.subr.mxu0 0.0
      %818 = vmatpush1.msra.mxu0 %v790
      %819 = vmatprep.subr.mxu0 0.0
      %820 = vmatpush1.msra.mxu0 %v791
      %821 = vmatprep.subr.mxu0 0.0
      %822 = vmatpush1.msra.mxu0 %v792
      %823 = vmatprep.subr.mxu0 0.0
      %824 = vmatpush1.msra.mxu0 %v793
      %825 = vmatprep.subr.mxu0 0.0
      %826 = vmatpush1.msra.mxu0 %v794
      %827 = vmatprep.subr.mxu0 0.0
      %828 = vmatpush1.msra.mxu0 %v795
      %829 = vmatprep.subr.mxu0 0.0
      %830 = vmatpush1.msra.mxu0 %v796
      %831 = vmatprep.subr.mxu0 0.0
      %832 = vmatpush1.msra.mxu0 %v797
      %833 = vmatprep.subr.mxu0 0.0
      %834 = vmatpush1.msra.mxu0 %v798
      %835 = vmatprep.subr.mxu0 0.0
      %836 = vmatpush1.msra.mxu0 %v799
      %837 = vmatprep.subr.mxu0 0.0
      %838 = vmatpush1.msra.mxu0 %v800
      %839 = vmatprep.subr.mxu0 0.0
      %840 = vmatpush1.msra.mxu0 %v801
      %841 = vmatprep.subr.mxu0 0.0
      %842 = vmatpush1.msra.mxu0 0.0
      %843 = vmatprep.subr.mxu0 0.0
      %844 = vmatpush1.msra.mxu0 0.0
      %845 = vmatprep.subr.mxu0 0.0
      %846 = vmatpush1.msra.mxu0 0.0
      %847 = vmatprep.subr.mxu0 0.0
      %848 = vmatpush1.msra.mxu0 0.0
      %849 = vmatprep.subr.mxu0 0.0
      %850 = vmatpush1.msra.mxu0 0.0
      %851 = vmatprep.subr.mxu0 0.0
      %852 = vmatpush1.msra.mxu0 0.0
      %853 = vmatprep.subr.mxu0 0.0
      %854 = vmatpush1.msra.mxu0 0.0
      %855 = vmatprep.subr.mxu0 0.0
      %856 = vmatpush1.msra.mxu0 0.0
      %857 = vmatprep.subr.mxu0 0.0
      %858 = vmatpush1.msra.mxu0 0.0
      %859 = vmatprep.subr.mxu0 0.0
      %860 = vmatpush1.msra.mxu0 0.0
      %861 = vmatprep.subr.mxu0 0.0
      %862 = vmatpush1.msra.mxu0 0.0
      %863 = vmatprep.subr.mxu0 0.0
      %864 = vmatpush1.msra.mxu0 0.0
      %865 = vmatprep.subr.mxu0 0.0
      %866 = vmatpush1.msra.mxu0 0.0
      %867 = vmatprep.subr.mxu0 0.0
      %868 = vmatpush1.msra.mxu0 0.0
      %869 = vmatprep.subr.mxu0 0.0
      %870 = vmatpush1.msra.mxu0 0.0
      %871 = vmatprep.subr.mxu0 0.0
      %872 = vmatpush1.msra.mxu0 0.0
      %873 = vmatprep.mubr.f32.mxu0 0.0
      %874 = vmatmul.mubr.f32.gmra.mrb[0].mxu0 %v778
      %v875 = vpop.f32.mrb[0].mxu0
      %v876 = vadd.f32 %v807, %v875
      %v877 = vpop.f32.mrb[0].mxu0
      %878 = vmatprep.mubr.f32.mxu0 0.0
      %879 = vmatmul.mubr.f32.gmra.mrb[0].mxu0 %v779
      %v880 = vpop.f32.mrb[0].mxu0
      %v881 = vadd.f32 %v807, %v880
      %v882 = vpop.f32.mrb[0].mxu0
      %883 = vmatprep.mubr.f32.mxu0 0.0
      %884 = vmatmul.mubr.f32.gmra.mrb[0].mxu0 %v780
      %v885 = vpop.f32.mrb[0].mxu0
      %v886 = vadd.f32 %v807, %v885
      %v887 = vpop.f32.mrb[0].mxu0
      %888 = vmatprep.mubr.f32.mxu0 0.0
      %889 = vmatmul.mubr.f32.gmra.mrb[0].mxu0 %v781
      %v890 = vpop.f32.mrb[0].mxu0
      %v891 = vadd.f32 %v807, %v890
      %v892 = vpop.f32.mrb[0].mxu0
      %893 = vmatprep.mubr.f32.mxu0 0.0
      %894 = vmatmul.mubr.f32.gmra.mrb[0].mxu0 %v782
      %v895 = vpop.f32.mrb[0].mxu0
      %v896 = vadd.f32 %v807, %v895
      %v897 = vpop.f32.mrb[0].mxu0
      %898 = vmatprep.mubr.f32.mxu0 0.0
      %899 = vmatmul.mubr.f32.gmra.mrb[0].mxu0 %v783
      %v900 = vpop.f32.mrb[0].mxu0
      %v901 = vadd.f32 %v807, %v900
      %v902 = vpop.f32.mrb[0].mxu0
      %903 = vmatprep.mubr.f32.mxu0 0.0
      %904 = vmatmul.mubr.f32.gmra.mrb[0].mxu0 %v784
      %v905 = vpop.f32.mrb[0].mxu0
      %v906 = vadd.f32 %v807, %v905
      %v907 = vpop.f32.mrb[0].mxu0
      %908 = vmatprep.mubr.f32.mxu0 0.0
      %909 = vmatmul.mubr.f32.gmra.mrb[0].mxu0 %v785
      %v910 = vpop.f32.mrb[0].mxu0
      %v911 = vadd.f32 %v807, %v910
      %v912 = vpop.f32.mrb[0].mxu0
      %913 = vdwg.mxu0
      %v914 = vmax.f32 %v876, 0.0
      %v915 = vmax.f32 %v881, 0.0
      %v916 = vmax.f32 %v886, 0.0
      %v917 = vmax.f32 %v891, 0.0
      %v918 = vmax.f32 %v896, 0.0
      %v919 = vmax.f32 %v901, 0.0
      %v920 = vmax.f32 %v906, 0.0
      %v921 = vmax.f32 %v911, 0.0
      %922 = vst [vmem:[#allocation2 + $0xeb] sm:$0xff] %v914
      %923 = vst [vmem:[#allocation2 + $0xf3] sm:$0xff] %v915
      %924 = vst [vmem:[#allocation2 + $0xfd] sm:$0xff] %v916
      %925 = vst [vmem:[#allocation2 + $0x105] sm:$0xff] %v917
      %926 = vst [vmem:[#allocation2 + $0x10f] sm:$0xff] %v918
      %927 = vst [vmem:[#allocation2 + $0x117] sm:$0xff] %v919
      %928 = vst [vmem:[#allocation2 + $0x121] sm:$0xff] %v920
      %929 = vst [vmem:[#allocation2 + $0x129] sm:$0xff] %v921
      %v930 = vld [vmem:[#allocation2] sm:$0xff]
      %v931 = vld [vmem:[#allocation2 + $0x8] sm:$0xff]
      %v932 = vld [vmem:[#allocation2 + $0x10] sm:$0xff]
      %v933 = vld [vmem:[#allocation2 + $0x18] sm:$0xff]
      %v934 = vld [vmem:[#allocation2 + $0x20] sm:$0xff]
      %v935 = vld [vmem:[#allocation2 + $0x28] sm:$0xff]
      %v936 = vld [vmem:[#allocation2 + $0x30] sm:$0x3f]
      %v937 = vld [vmem:[%s3] sm:$0xff]
      %v938 = vld [vmem:[%s3 + $0x8] sm:$0xff]
      %v939 = vld [vmem:[%s3 + $0x10] sm:$0xff]
      %v940 = vld [vmem:[%s3 + $0x18] sm:$0xff]
      %v941 = vld [vmem:[%s3 + $0x20] sm:$0xff]
      %v942 = vld [vmem:[%s3 + $0x28] sm:$0xff]
      %v943 = vld [vmem:[%s3 + $0x30] sm:$0xff]
      %v944 = vld [vmem:[%s3 + $0x38] sm:$0xff]
      %v945 = vld [vmem:[%s3 + $0x40] sm:$0xff]
      %v946 = vld [vmem:[%s3 + $0x48] sm:$0xff]
      %v947 = vld [vmem:[%s3 + $0x50] sm:$0xff]
      %v948 = vld [vmem:[%s3 + $0x58] sm:$0xff]
      %v949 = vld [vmem:[%s3 + $0x60] sm:$0xff]
      %v950 = vld [vmem:[%s3 + $0x68] sm:$0xff]
      %v951 = vld [vmem:[%s3 + $0x70] sm:$0xff]
      %v952 = vld [vmem:[%s3 + $0x78] sm:$0xff]
      %v953 = vld [vmem:[#allocation2 + $0x1] sm:$0xff]
      %v954 = vld [vmem:[#allocation2 + $0x9] sm:$0xff]
      %v955 = vld [vmem:[#allocation2 + $0x11] sm:$0xff]
      %v956 = vld [vmem:[#allocation2 + $0x19] sm:$0xff]
      %v957 = vld [vmem:[#allocation2 + $0x21] sm:$0xff]
      %v958 = vld [vmem:[#allocation2 + $0x29] sm:$0xff]
      %v959 = vld [vmem:[#allocation2 + $0x31] sm:$0x3f]
      %s960 = scalar_lea.vmem %s3, 128
      %v961 = vld [vmem:[%s960] sm:$0xff]
      %v962 = vld [vmem:[%s960 + $0x8] sm:$0xff]
      %v963 = vld [vmem:[%s960 + $0x10] sm:$0xff]
      %v964 = vld [vmem:[%s960 + $0x18] sm:$0xff]
      %v965 = vld [vmem:[%s960 + $0x20] sm:$0xff]
      %v966 = vld [vmem:[%s960 + $0x28] sm:$0xff]
      %v967 = vld [vmem:[%s960 + $0x30] sm:$0xff]
      %v968 = vld [vmem:[%s960 + $0x38] sm:$0xff]
      %v969 = vld [vmem:[%s960 + $0x40] sm:$0xff]
      %v970 = vld [vmem:[%s960 + $0x48] sm:$0xff]
      %v971 = vld [vmem:[%s960 + $0x50] sm:$0xff]
      %v972 = vld [vmem:[%s960 + $0x58] sm:$0xff]
      %v973 = vld [vmem:[%s960 + $0x60] sm:$0xff]
      %v974 = vld [vmem:[%s960 + $0x68] sm:$0xff]
      %v975 = vld [vmem:[%s960 + $0x70] sm:$0xff]
      %v976 = vld [vmem:[%s960 + $0x78] sm:$0xff]
      %977 = vmatprep.subr.mxu0 0.0
      %978 = vmatpush1.msra.mxu0 %v961
      %979 = vmatprep.subr.mxu0 0.0
      %980 = vmatpush1.msra.mxu0 %v962
      %981 = vmatprep.subr.mxu0 0.0
      %982 = vmatpush1.msra.mxu0 %v963
      %983 = vmatprep.subr.mxu0 0.0
      %984 = vmatpush1.msra.mxu0 %v964
      %985 = vmatprep.subr.mxu0 0.0
      %986 = vmatpush1.msra.mxu0 %v965
      %987 = vmatprep.subr.mxu0 0.0
      %988 = vmatpush1.msra.mxu0 %v966
      %989 = vmatprep.subr.mxu0 0.0
      %990 = vmatpush1.msra.mxu0 %v967
      %991 = vmatprep.subr.mxu0 0.0
      %992 = vmatpush1.msra.mxu0 %v968
      %993 = vmatprep.subr.mxu0 0.0
      %994 = vmatpush1.msra.mxu0 %v969
      %995 = vmatprep.subr.mxu0 0.0
      %996 = vmatpush1.msra.mxu0 %v970
      %997 = vmatprep.subr.mxu0 0.0
      %998 = vmatpush1.msra.mxu0 %v971
      %999 = vmatprep.subr.mxu0 0.0
      %1000 = vmatpush1.msra.mxu0 %v972
      %1001 = vmatprep.subr.mxu0 0.0
      %1002 = vmatpush1.msra.mxu0 %v973
      %1003 = vmatprep.subr.mxu0 0.0
      %1004 = vmatpush1.msra.mxu0 %v974
      %1005 = vmatprep.subr.mxu0 0.0
      %1006 = vmatpush1.msra.mxu0 %v975
      %1007 = vmatprep.subr.mxu0 0.0
      %1008 = vmatpush1.msra.mxu0 %v976
      %1009 = vmatprep.subr.mxu0 0.0
      %1010 = vmatpush1.msra.mxu0 0.0
      %1011 = vmatprep.subr.mxu0 0.0
      %1012 = vmatpush1.msra.mxu0 0.0
      %1013 = vmatprep.subr.mxu0 0.0
      %1014 = vmatpush1.msra.mxu0 0.0
      %1015 = vmatprep.subr.mxu0 0.0
      %1016 = vmatpush1.msra.mxu0 0.0
      %1017 = vmatprep.subr.mxu0 0.0
      %1018 = vmatpush1.msra.mxu0 0.0
      %1019 = vmatprep.subr.mxu0 0.0
      %1020 = vmatpush1.msra.mxu0 0.0
      %1021 = vmatprep.subr.mxu0 0.0
      %1022 = vmatpush1.msra.mxu0 0.0
      %1023 = vmatprep.subr.mxu0 0.0
      %1024 = vmatpush1.msra.mxu0 0.0
      %1025 = vmatprep.subr.mxu0 0.0
      %1026 = vmatpush1.msra.mxu0 0.0
      %1027 = vmatprep.subr.mxu0 0.0
      %1028 = vmatpush1.msra.mxu0 0.0
      %1029 = vmatprep.subr.mxu0 0.0
      %1030 = vmatpush1.msra.mxu0 0.0
      %1031 = vmatprep.subr.mxu0 0.0
      %1032 = vmatpush1.msra.mxu0 0.0
      %1033 = vmatprep.subr.mxu0 0.0
      %1034 = vmatpush1.msra.mxu0 0.0
      %1035 = vmatprep.subr.mxu0 0.0
      %1036 = vmatpush1.msra.mxu0 0.0
      %1037 = vmatprep.subr.mxu0 0.0
      %1038 = vmatpush1.msra.mxu0 0.0
      %1039 = vmatprep.subr.mxu0 0.0
      %1040 = vmatpush1.msra.mxu0 0.0
      %1041 = vmatprep.mubr.f32.mxu0 0.0
      %1042 = vmatmul.mubr.f32.gmra.mrb[0].mxu0 %v953
      %v1043 = vpop.f32.mrb[0].mxu0
      %v1044 = vadd.f32 0.0, %v1043
      %v1045 = vpop.f32.mrb[0].mxu0
      %1046 = vmatprep.mubr.f32.mxu0 0.0
      %1047 = vmatmul.mubr.f32.gmra.mrb[0].mxu0 %v954
      %v1048 = vpop.f32.mrb[0].mxu0
      %v1049 = vadd.f32 0.0, %v1048
      %v1050 = vpop.f32.mrb[0].mxu0
      %1051 = vmatprep.mubr.f32.mxu0 0.0
      %1052 = vmatmul.mubr.f32.gmra.mrb[0].mxu0 %v955
      %v1053 = vpop.f32.mrb[0].mxu0
      %v1054 = vadd.f32 0.0, %v1053
      %v1055 = vpop.f32.mrb[0].mxu0
      %1056 = vmatprep.mubr.f32.mxu0 0.0
      %1057 = vmatmul.mubr.f32.gmra.mrb[0].mxu0 %v956
      %v1058 = vpop.f32.mrb[0].mxu0
      %v1059 = vadd.f32 0.0, %v1058
      %v1060 = vpop.f32.mrb[0].mxu0
      %1061 = vmatprep.mubr.f32.mxu0 0.0
      %1062 = vmatmul.mubr.f32.gmra.mrb[0].mxu0 %v957
      %v1063 = vpop.f32.mrb[0].mxu0
      %v1064 = vadd.f32 0.0, %v1063
      %v1065 = vpop.f32.mrb[0].mxu0
      %1066 = vmatprep.mubr.f32.mxu0 0.0
      %1067 = vmatmul.mubr.f32.gmra.mrb[0].mxu0 %v958
      %v1068 = vpop.f32.mrb[0].mxu0
      %v1069 = vadd.f32 0.0, %v1068
      %v1070 = vpop.f32.mrb[0].mxu0
      %1071 = vmatprep.mubr.f32.mxu0 0.0
      %1072 = vmatmul.mubr.f32.gmra.mrb[0].mxu0 %v959
      %v1073 = vpop.f32.mrb[0].mxu0
      %v1074 = vadd.f32 0.0, %v1073
      %v1075 = vpop.f32.mrb[0].mxu0
      %1076 = vdwg.mxu0
      %1077 = vmatprep.subr.mxu0 0.0
      %1078 = vmatpush1.msra.mxu0 %v937
      %1079 = vmatprep.subr.mxu0 0.0
      %1080 = vmatpush1.msra.mxu0 %v938
      %1081 = vmatprep.subr.mxu0 0.0
      %1082 = vmatpush1.msra.mxu0 %v939
      %1083 = vmatprep.subr.mxu0 0.0
      %1084 = vmatpush1.msra.mxu0 %v940
      %1085 = vmatprep.subr.mxu0 0.0
      %1086 = vmatpush1.msra.mxu0 %v941
      %1087 = vmatprep.subr.mxu0 0.0
      %1088 = vmatpush1.msra.mxu0 %v942
      %1089 = vmatprep.subr.mxu0 0.0
      %1090 = vmatpush1.msra.mxu0 %v943
      %1091 = vmatprep.subr.mxu0 0.0
      %1092 = vmatpush1.msra.mxu0 %v944
      %1093 = vmatprep.subr.mxu0 0.0
      %1094 = vmatpush1.msra.mxu0 %v945
      %1095 = vmatprep.subr.mxu0 0.0
      %1096 = vmatpush1.msra.mxu0 %v946
      %1097 = vmatprep.subr.mxu0 0.0
      %1098 = vmatpush1.msra.mxu0 %v947
      %1099 = vmatprep.subr.mxu0 0.0
      %1100 = vmatpush1.msra.mxu0 %v948
      %1101 = vmatprep.subr.mxu0 0.0
      %1102 = vmatpush1.msra.mxu0 %v949
      %1103 = vmatprep.subr.mxu0 0.0
      %1104 = vmatpush1.msra.mxu0 %v950
      %1105 = vmatprep.subr.mxu0 0.0
      %1106 = vmatpush1.msra.mxu0 %v951
      %1107 = vmatprep.subr.mxu0 0.0
      %1108 = vmatpush1.msra.mxu0 %v952
      %1109 = vmatprep.subr.mxu0 0.0
      %1110 = vmatpush1.msra.mxu0 0.0
      %1111 = vmatprep.subr.mxu0 0.0
      %1112 = vmatpush1.msra.mxu0 0.0
      %1113 = vmatprep.subr.mxu0 0.0
      %1114 = vmatpush1.msra.mxu0 0.0
      %1115 = vmatprep.subr.mxu0 0.0
      %1116 = vmatpush1.msra.mxu0 0.0
      %1117 = vmatprep.subr.mxu0 0.0
      %1118 = vmatpush1.msra.mxu0 0.0
      %1119 = vmatprep.subr.mxu0 0.0
      %1120 = vmatpush1.msra.mxu0 0.0
      %1121 = vmatprep.subr.mxu0 0.0
      %1122 = vmatpush1.msra.mxu0 0.0
      %1123 = vmatprep.subr.mxu0 0.0
      %1124 = vmatpush1.msra.mxu0 0.0
      %1125 = vmatprep.subr.mxu0 0.0
      %1126 = vmatpush1.msra.mxu0 0.0
      %1127 = vmatprep.subr.mxu0 0.0
      %1128 = vmatpush1.msra.mxu0 0.0
      %1129 = vmatprep.subr.mxu0 0.0
      %1130 = vmatpush1.msra.mxu0 0.0
      %1131 = vmatprep.subr.mxu0 0.0
      %1132 = vmatpush1.msra.mxu0 0.0
      %1133 = vmatprep.subr.mxu0 0.0
      %1134 = vmatpush1.msra.mxu0 0.0
      %1135 = vmatprep.subr.mxu0 0.0
      %1136 = vmatpush1.msra.mxu0 0.0
      %1137 = vmatprep.subr.mxu0 0.0
      %1138 = vmatpush1.msra.mxu0 0.0
      %1139 = vmatprep.subr.mxu0 0.0
      %1140 = vmatpush1.msra.mxu0 0.0
      %1141 = vmatprep.mubr.f32.mxu0 0.0
      %1142 = vmatmul.mubr.f32.gmra.mrb[0].mxu0 %v930
      %v1143 = vpop.f32.mrb[0].mxu0
      %v1144 = vadd.f32 %v1044, %v1143
      %v1145 = vpop.f32.mrb[0].mxu0
      %1146 = vmatprep.mubr.f32.mxu0 0.0
      %1147 = vmatmul.mubr.f32.gmra.mrb[0].mxu0 %v931
      %v1148 = vpop.f32.mrb[0].mxu0
      %v1149 = vadd.f32 %v1049, %v1148
      %v1150 = vpop.f32.mrb[0].mxu0
      %1151 = vmatprep.mubr.f32.mxu0 0.0
      %1152 = vmatmul.mubr.f32.gmra.mrb[0].mxu0 %v932
      %v1153 = vpop.f32.mrb[0].mxu0
      %v1154 = vadd.f32 %v1054, %v1153
      %v1155 = vpop.f32.mrb[0].mxu0
      %1156 = vmatprep.mubr.f32.mxu0 0.0
      %1157 = vmatmul.mubr.f32.gmra.mrb[0].mxu0 %v933
      %v1158 = vpop.f32.mrb[0].mxu0
      %v1159 = vadd.f32 %v1059, %v1158
      %v1160 = vpop.f32.mrb[0].mxu0
      %1161 = vmatprep.mubr.f32.mxu0 0.0
      %1162 = vmatmul.mubr.f32.gmra.mrb[0].mxu0 %v934
      %v1163 = vpop.f32.mrb[0].mxu0
      %v1164 = vadd.f32 %v1064, %v1163
      %v1165 = vpop.f32.mrb[0].mxu0
      %1166 = vmatprep.mubr.f32.mxu0 0.0
      %1167 = vmatmul.mubr.f32.gmra.mrb[0].mxu0 %v935
      %v1168 = vpop.f32.mrb[0].mxu0
      %v1169 = vadd.f32 %v1069, %v1168
      %v1170 = vpop.f32.mrb[0].mxu0
      %1171 = vmatprep.mubr.f32.mxu0 0.0
      %1172 = vmatmul.mubr.f32.gmra.mrb[0].mxu0 %v936
      %v1173 = vpop.f32.mrb[0].mxu0
      %v1174 = vadd.f32 %v1074, %v1173
      %v1175 = vpop.f32.mrb[0].mxu0
      %1176 = vdwg.mxu0
      %v1177 = vld [vmem:[#allocation2 + $0x2] sm:$0xff]
      %v1178 = vld [vmem:[#allocation2 + $0xa] sm:$0xff]
      %v1179 = vld [vmem:[#allocation2 + $0x12] sm:$0xff]
      %v1180 = vld [vmem:[#allocation2 + $0x1a] sm:$0xff]
      %v1181 = vld [vmem:[#allocation2 + $0x22] sm:$0xff]
      %v1182 = vld [vmem:[#allocation2 + $0x2a] sm:$0xff]
      %v1183 = vld [vmem:[#allocation2 + $0x32] sm:$0x3f]
      %s1184 = scalar_lea.vmem %s3, 256
      %v1185 = vld [vmem:[%s1184] sm:$0xff]
      %v1186 = vld [vmem:[%s1184 + $0x8] sm:$0xff]
      %v1187 = vld [vmem:[%s1184 + $0x10] sm:$0xff]
      %v1188 = vld [vmem:[%s1184 + $0x18] sm:$0xff]
      %v1189 = vld [vmem:[%s1184 + $0x20] sm:$0xff]
      %v1190 = vld [vmem:[%s1184 + $0x28] sm:$0xff]
      %v1191 = vld [vmem:[%s1184 + $0x30] sm:$0xff]
      %v1192 = vld [vmem:[%s1184 + $0x38] sm:$0xff]
      %v1193 = vld [vmem:[%s1184 + $0x40] sm:$0xff]
      %v1194 = vld [vmem:[%s1184 + $0x48] sm:$0xff]
      %v1195 = vld [vmem:[%s1184 + $0x50] sm:$0xff]
      %v1196 = vld [vmem:[%s1184 + $0x58] sm:$0xff]
      %v1197 = vld [vmem:[%s1184 + $0x60] sm:$0xff]
      %v1198 = vld [vmem:[%s1184 + $0x68] sm:$0xff]
      %v1199 = vld [vmem:[%s1184 + $0x70] sm:$0xff]
      %v1200 = vld [vmem:[%s1184 + $0x78] sm:$0xff]
      %1201 = vmatprep.subr.mxu0 0.0
      %1202 = vmatpush1.msra.mxu0 %v1185
      %1203 = vmatprep.subr.mxu0 0.0
      %1204 = vmatpush1.msra.mxu0 %v1186
      %1205 = vmatprep.subr.mxu0 0.0
      %1206 = vmatpush1.msra.mxu0 %v1187
      %1207 = vmatprep.subr.mxu0 0.0
      %1208 = vmatpush1.msra.mxu0 %v1188
      %1209 = vmatprep.subr.mxu0 0.0
      %1210 = vmatpush1.msra.mxu0 %v1189
      %1211 = vmatprep.subr.mxu0 0.0
      %1212 = vmatpush1.msra.mxu0 %v1190
      %1213 = vmatprep.subr.mxu0 0.0
      %1214 = vmatpush1.msra.mxu0 %v1191
      %1215 = vmatprep.subr.mxu0 0.0
      %1216 = vmatpush1.msra.mxu0 %v1192
      %1217 = vmatprep.subr.mxu0 0.0
      %1218 = vmatpush1.msra.mxu0 %v1193
      %1219 = vmatprep.subr.mxu0 0.0
      %1220 = vmatpush1.msra.mxu0 %v1194
      %1221 = vmatprep.subr.mxu0 0.0
      %1222 = vmatpush1.msra.mxu0 %v1195
      %1223 = vmatprep.subr.mxu0 0.0
      %1224 = vmatpush1.msra.mxu0 %v1196
      %1225 = vmatprep.subr.mxu0 0.0
      %1226 = vmatpush1.msra.mxu0 %v1197
      %1227 = vmatprep.subr.mxu0 0.0
      %1228 = vmatpush1.msra.mxu0 %v1198
      %1229 = vmatprep.subr.mxu0 0.0
      %1230 = vmatpush1.msra.mxu0 %v1199
      %1231 = vmatprep.subr.mxu0 0.0
      %1232 = vmatpush1.msra.mxu0 %v1200
      %1233 = vmatprep.subr.mxu0 0.0
      %1234 = vmatpush1.msra.mxu0 0.0
      %1235 = vmatprep.subr.mxu0 0.0
      %1236 = vmatpush1.msra.mxu0 0.0
      %1237 = vmatprep.subr.mxu0 0.0
      %1238 = vmatpush1.msra.mxu0 0.0
      %1239 = vmatprep.subr.mxu0 0.0
      %1240 = vmatpush1.msra.mxu0 0.0
      %1241 = vmatprep.subr.mxu0 0.0
      %1242 = vmatpush1.msra.mxu0 0.0
      %1243 = vmatprep.subr.mxu0 0.0
      %1244 = vmatpush1.msra.mxu0 0.0
      %1245 = vmatprep.subr.mxu0 0.0
      %1246 = vmatpush1.msra.mxu0 0.0
      %1247 = vmatprep.subr.mxu0 0.0
      %1248 = vmatpush1.msra.mxu0 0.0
      %1249 = vmatprep.subr.mxu0 0.0
      %1250 = vmatpush1.msra.mxu0 0.0
      %1251 = vmatprep.subr.mxu0 0.0
      %1252 = vmatpush1.msra.mxu0 0.0
      %1253 = vmatprep.subr.mxu0 0.0
      %1254 = vmatpush1.msra.mxu0 0.0
      %1255 = vmatprep.subr.mxu0 0.0
      %1256 = vmatpush1.msra.mxu0 0.0
      %1257 = vmatprep.subr.mxu0 0.0
      %1258 = vmatpush1.msra.mxu0 0.0
      %1259 = vmatprep.subr.mxu0 0.0
      %1260 = vmatpush1.msra.mxu0 0.0
      %1261 = vmatprep.subr.mxu0 0.0
      %1262 = vmatpush1.msra.mxu0 0.0
      %1263 = vmatprep.subr.mxu0 0.0
      %1264 = vmatpush1.msra.mxu0 0.0
      %1265 = vmatprep.mubr.f32.mxu0 0.0
      %1266 = vmatmul.mubr.f32.gmra.mrb[0].mxu0 %v1177
      %v1267 = vpop.f32.mrb[0].mxu0
      %v1268 = vadd.f32 0.0, %v1267
      %v1269 = vpop.f32.mrb[0].mxu0
      %1270 = vmatprep.mubr.f32.mxu0 0.0
      %1271 = vmatmul.mubr.f32.gmra.mrb[0].mxu0 %v1178
      %v1272 = vpop.f32.mrb[0].mxu0
      %v1273 = vadd.f32 0.0, %v1272
      %v1274 = vpop.f32.mrb[0].mxu0
      %1275 = vmatprep.mubr.f32.mxu0 0.0
      %1276 = vmatmul.mubr.f32.gmra.mrb[0].mxu0 %v1179
      %v1277 = vpop.f32.mrb[0].mxu0
      %v1278 = vadd.f32 0.0, %v1277
      %v1279 = vpop.f32.mrb[0].mxu0
      %1280 = vmatprep.mubr.f32.mxu0 0.0
      %1281 = vmatmul.mubr.f32.gmra.mrb[0].mxu0 %v1180
      %v1282 = vpop.f32.mrb[0].mxu0
      %v1283 = vadd.f32 0.0, %v1282
      %v1284 = vpop.f32.mrb[0].mxu0
      %1285 = vmatprep.mubr.f32.mxu0 0.0
      %1286 = vmatmul.mubr.f32.gmra.mrb[0].mxu0 %v1181
      %v1287 = vpop.f32.mrb[0].mxu0
      %v1288 = vadd.f32 0.0, %v1287
      %v1289 = vpop.f32.mrb[0].mxu0
      %1290 = vmatprep.mubr.f32.mxu0 0.0
      %1291 = vmatmul.mubr.f32.gmra.mrb[0].mxu0 %v1182
      %v1292 = vpop.f32.mrb[0].mxu0
      %v1293 = vadd.f32 0.0, %v1292
      %v1294 = vpop.f32.mrb[0].mxu0
      %1295 = vmatprep.mubr.f32.mxu0 0.0
      %1296 = vmatmul.mubr.f32.gmra.mrb[0].mxu0 %v1183
      %v1297 = vpop.f32.mrb[0].mxu0
      %v1298 = vadd.f32 0.0, %v1297
      %v1299 = vpop.f32.mrb[0].mxu0
      %1300 = vdwg.mxu0
      %v1301 = vadd.f32 %v1144, %v1268
      %v1302 = vadd.f32 %v1149, %v1273
      %v1303 = vadd.f32 %v1154, %v1278
      %v1304 = vadd.f32 %v1159, %v1283
      %v1305 = vadd.f32 %v1164, %v1288
      %v1306 = vadd.f32 %v1169, %v1293
      %v1307 = vadd.f32 %v1174, %v1298
      %v1308 = vld [vmem:[#allocation2 + $0x12] sm:$0xff]
      %v1309 = vld [vmem:[#allocation2 + $0x1a] sm:$0xff]
      %v1310 = vld [vmem:[#allocation2 + $0x22] sm:$0xff]
      %v1311 = vld [vmem:[#allocation2 + $0x2a] sm:$0xff]
      %v1312 = vld [vmem:[#allocation2 + $0x32] sm:$0xff]
      %v1313 = vld [vmem:[#allocation2 + $0x3a] sm:$0xff]
      %v1314 = vld [vmem:[#allocation2 + $0x42] sm:$0x3f]
      %s1315 = scalar_lea.vmem %s3, 384
      %v1316 = vld [vmem:[%s1315] sm:$0xff]
      %v1317 = vld [vmem:[%s1315 + $0x8] sm:$0xff]
      %v1318 = vld [vmem:[%s1315 + $0x10] sm:$0xff]
      %v1319 = vld [vmem:[%s1315 + $0x18] sm:$0xff]
      %v1320 = vld [vmem:[%s1315 + $0x20] sm:$0xff]
      %v1321 = vld [vmem:[%s1315 + $0x28] sm:$0xff]
      %v1322 = vld [vmem:[%s1315 + $0x30] sm:$0xff]
      %v1323 = vld [vmem:[%s1315 + $0x38] sm:$0xff]
      %v1324 = vld [vmem:[%s1315 + $0x40] sm:$0xff]
      %v1325 = vld [vmem:[%s1315 + $0x48] sm:$0xff]
      %v1326 = vld [vmem:[%s1315 + $0x50] sm:$0xff]
      %v1327 = vld [vmem:[%s1315 + $0x58] sm:$0xff]
      %v1328 = vld [vmem:[%s1315 + $0x60] sm:$0xff]
      %v1329 = vld [vmem:[%s1315 + $0x68] sm:$0xff]
      %v1330 = vld [vmem:[%s1315 + $0x70] sm:$0xff]
      %v1331 = vld [vmem:[%s1315 + $0x78] sm:$0xff]
      %1332 = vmatprep.subr.mxu0 0.0
      %1333 = vmatpush1.msra.mxu0 %v1316
      %1334 = vmatprep.subr.mxu0 0.0
      %1335 = vmatpush1.msra.mxu0 %v1317
      %1336 = vmatprep.subr.mxu0 0.0
      %1337 = vmatpush1.msra.mxu0 %v1318
      %1338 = vmatprep.subr.mxu0 0.0
      %1339 = vmatpush1.msra.mxu0 %v1319
      %1340 = vmatprep.subr.mxu0 0.0
      %1341 = vmatpush1.msra.mxu0 %v1320
      %1342 = vmatprep.subr.mxu0 0.0
      %1343 = vmatpush1.msra.mxu0 %v1321
      %1344 = vmatprep.subr.mxu0 0.0
      %1345 = vmatpush1.msra.mxu0 %v1322
      %1346 = vmatprep.subr.mxu0 0.0
      %1347 = vmatpush1.msra.mxu0 %v1323
      %1348 = vmatprep.subr.mxu0 0.0
      %1349 = vmatpush1.msra.mxu0 %v1324
      %1350 = vmatprep.subr.mxu0 0.0
      %1351 = vmatpush1.msra.mxu0 %v1325
      %1352 = vmatprep.subr.mxu0 0.0
      %1353 = vmatpush1.msra.mxu0 %v1326
      %1354 = vmatprep.subr.mxu0 0.0
      %1355 = vmatpush1.msra.mxu0 %v1327
      %1356 = vmatprep.subr.mxu0 0.0
      %1357 = vmatpush1.msra.mxu0 %v1328
      %1358 = vmatprep.subr.mxu0 0.0
      %1359 = vmatpush1.msra.mxu0 %v1329
      %1360 = vmatprep.subr.mxu0 0.0
      %1361 = vmatpush1.msra.mxu0 %v1330
      %1362 = vmatprep.subr.mxu0 0.0
      %1363 = vmatpush1.msra.mxu0 %v1331
      %1364 = vmatprep.subr.mxu0 0.0
      %1365 = vmatpush1.msra.mxu0 0.0
      %1366 = vmatprep.subr.mxu0 0.0
      %1367 = vmatpush1.msra.mxu0 0.0
      %1368 = vmatprep.subr.mxu0 0.0
      %1369 = vmatpush1.msra.mxu0 0.0
      %1370 = vmatprep.subr.mxu0 0.0
      %1371 = vmatpush1.msra.mxu0 0.0
      %1372 = vmatprep.subr.mxu0 0.0
      %1373 = vmatpush1.msra.mxu0 0.0
      %1374 = vmatprep.subr.mxu0 0.0
      %1375 = vmatpush1.msra.mxu0 0.0
      %1376 = vmatprep.subr.mxu0 0.0
      %1377 = vmatpush1.msra.mxu0 0.0
      %1378 = vmatprep.subr.mxu0 0.0
      %1379 = vmatpush1.msra.mxu0 0.0
      %1380 = vmatprep.subr.mxu0 0.0
      %1381 = vmatpush1.msra.mxu0 0.0
      %1382 = vmatprep.subr.mxu0 0.0
      %1383 = vmatpush1.msra.mxu0 0.0
      %1384 = vmatprep.subr.mxu0 0.0
      %1385 = vmatpush1.msra.mxu0 0.0
      %1386 = vmatprep.subr.mxu0 0.0
      %1387 = vmatpush1.msra.mxu0 0.0
      %1388 = vmatprep.subr.mxu0 0.0
      %1389 = vmatpush1.msra.mxu0 0.0
      %1390 = vmatprep.subr.mxu0 0.0
      %1391 = vmatpush1.msra.mxu0 0.0
      %1392 = vmatprep.subr.mxu0 0.0
      %1393 = vmatpush1.msra.mxu0 0.0
      %1394 = vmatprep.subr.mxu0 0.0
      %1395 = vmatpush1.msra.mxu0 0.0
      %1396 = vmatprep.mubr.f32.mxu0 0.0
      %1397 = vmatmul.mubr.f32.gmra.mrb[0].mxu0 %v1308
      %v1398 = vpop.f32.mrb[0].mxu0
      %v1399 = vadd.f32 0.0, %v1398
      %v1400 = vpop.f32.mrb[0].mxu0
      %1401 = vmatprep.mubr.f32.mxu0 0.0
      %1402 = vmatmul.mubr.f32.gmra.mrb[0].mxu0 %v1309
      %v1403 = vpop.f32.mrb[0].mxu0
      %v1404 = vadd.f32 0.0, %v1403
      %v1405 = vpop.f32.mrb[0].mxu0
      %1406 = vmatprep.mubr.f32.mxu0 0.0
      %1407 = vmatmul.mubr.f32.gmra.mrb[0].mxu0 %v1310
      %v1408 = vpop.f32.mrb[0].mxu0
      %v1409 = vadd.f32 0.0, %v1408
      %v1410 = vpop.f32.mrb[0].mxu0
      %1411 = vmatprep.mubr.f32.mxu0 0.0
      %1412 = vmatmul.mubr.f32.gmra.mrb[0].mxu0 %v1311
      %v1413 = vpop.f32.mrb[0].mxu0
      %v1414 = vadd.f32 0.0, %v1413
      %v1415 = vpop.f32.mrb[0].mxu0
      %1416 = vmatprep.mubr.f32.mxu0 0.0
      %1417 = vmatmul.mubr.f32.gmra.mrb[0].mxu0 %v1312
      %v1418 = vpop.f32.mrb[0].mxu0
      %v1419 = vadd.f32 0.0, %v1418
      %v1420 = vpop.f32.mrb[0].mxu0
      %1421 = vmatprep.mubr.f32.mxu0 0.0
      %1422 = vmatmul.mubr.f32.gmra.mrb[0].mxu0 %v1313
      %v1423 = vpop.f32.mrb[0].mxu0
      %v1424 = vadd.f32 0.0, %v1423
      %v1425 = vpop.f32.mrb[0].mxu0
      %1426 = vmatprep.mubr.f32.mxu0 0.0
      %1427 = vmatmul.mubr.f32.gmra.mrb[0].mxu0 %v1314
      %v1428 = vpop.f32.mrb[0].mxu0
      %v1429 = vadd.f32 0.0, %v1428
      %v1430 = vpop.f32.mrb[0].mxu0
      %1431 = vdwg.mxu0
      %v1432 = vadd.f32 %v1301, %v1399
      %v1433 = vadd.f32 %v1302, %v1404
      %v1434 = vadd.f32 %v1303, %v1409
      %v1435 = vadd.f32 %v1304, %v1414
      %v1436 = vadd.f32 %v1305, %v1419
      %v1437 = vadd.f32 %v1306, %v1424
      %v1438 = vadd.f32 %v1307, %v1429
      %v1439 = vld [vmem:[#allocation2 + $0x13] sm:$0xff]
      %v1440 = vld [vmem:[#allocation2 + $0x1b] sm:$0xff]
      %v1441 = vld [vmem:[#allocation2 + $0x23] sm:$0xff]
      %v1442 = vld [vmem:[#allocation2 + $0x2b] sm:$0xff]
      %v1443 = vld [vmem:[#allocation2 + $0x33] sm:$0xff]
      %v1444 = vld [vmem:[#allocation2 + $0x3b] sm:$0xff]
      %v1445 = vld [vmem:[#allocation2 + $0x43] sm:$0x3f]
      %s1446 = scalar_lea.vmem %s3, 512
      %v1447 = vld [vmem:[%s1446] sm:$0xff]
      %v1448 = vld [vmem:[%s1446 + $0x8] sm:$0xff]
      %v1449 = vld [vmem:[%s1446 + $0x10] sm:$0xff]
      %v1450 = vld [vmem:[%s1446 + $0x18] sm:$0xff]
      %v1451 = vld [vmem:[%s1446 + $0x20] sm:$0xff]
      %v1452 = vld [vmem:[%s1446 + $0x28] sm:$0xff]
      %v1453 = vld [vmem:[%s1446 + $0x30] sm:$0xff]
      %v1454 = vld [vmem:[%s1446 + $0x38] sm:$0xff]
      %v1455 = vld [vmem:[%s1446 + $0x40] sm:$0xff]
      %v1456 = vld [vmem:[%s1446 + $0x48] sm:$0xff]
      %v1457 = vld [vmem:[%s1446 + $0x50] sm:$0xff]
      %v1458 = vld [vmem:[%s1446 + $0x58] sm:$0xff]
      %v1459 = vld [vmem:[%s1446 + $0x60] sm:$0xff]
      %v1460 = vld [vmem:[%s1446 + $0x68] sm:$0xff]
      %v1461 = vld [vmem:[%s1446 + $0x70] sm:$0xff]
      %v1462 = vld [vmem:[%s1446 + $0x78] sm:$0xff]
      %1463 = vmatprep.subr.mxu0 0.0
      %1464 = vmatpush1.msra.mxu0 %v1447
      %1465 = vmatprep.subr.mxu0 0.0
      %1466 = vmatpush1.msra.mxu0 %v1448
      %1467 = vmatprep.subr.mxu0 0.0
      %1468 = vmatpush1.msra.mxu0 %v1449
      %1469 = vmatprep.subr.mxu0 0.0
      %1470 = vmatpush1.msra.mxu0 %v1450
      %1471 = vmatprep.subr.mxu0 0.0
      %1472 = vmatpush1.msra.mxu0 %v1451
      %1473 = vmatprep.subr.mxu0 0.0
      %1474 = vmatpush1.msra.mxu0 %v1452
      %1475 = vmatprep.subr.mxu0 0.0
      %1476 = vmatpush1.msra.mxu0 %v1453
      %1477 = vmatprep.subr.mxu0 0.0
      %1478 = vmatpush1.msra.mxu0 %v1454
      %1479 = vmatprep.subr.mxu0 0.0
      %1480 = vmatpush1.msra.mxu0 %v1455
      %1481 = vmatprep.subr.mxu0 0.0
      %1482 = vmatpush1.msra.mxu0 %v1456
      %1483 = vmatprep.subr.mxu0 0.0
      %1484 = vmatpush1.msra.mxu0 %v1457
      %1485 = vmatprep.subr.mxu0 0.0
      %1486 = vmatpush1.msra.mxu0 %v1458
      %1487 = vmatprep.subr.mxu0 0.0
      %1488 = vmatpush1.msra.mxu0 %v1459
      %1489 = vmatprep.subr.mxu0 0.0
      %1490 = vmatpush1.msra.mxu0 %v1460
      %1491 = vmatprep.subr.mxu0 0.0
      %1492 = vmatpush1.msra.mxu0 %v1461
      %1493 = vmatprep.subr.mxu0 0.0
      %1494 = vmatpush1.msra.mxu0 %v1462
      %1495 = vmatprep.subr.mxu0 0.0
      %1496 = vmatpush1.msra.mxu0 0.0
      %1497 = vmatprep.subr.mxu0 0.0
      %1498 = vmatpush1.msra.mxu0 0.0
      %1499 = vmatprep.subr.mxu0 0.0
      %1500 = vmatpush1.msra.mxu0 0.0
      %1501 = vmatprep.subr.mxu0 0.0
      %1502 = vmatpush1.msra.mxu0 0.0
      %1503 = vmatprep.subr.mxu0 0.0
      %1504 = vmatpush1.msra.mxu0 0.0
      %1505 = vmatprep.subr.mxu0 0.0
      %1506 = vmatpush1.msra.mxu0 0.0
      %1507 = vmatprep.subr.mxu0 0.0
      %1508 = vmatpush1.msra.mxu0 0.0
      %1509 = vmatprep.subr.mxu0 0.0
      %1510 = vmatpush1.msra.mxu0 0.0
      %1511 = vmatprep.subr.mxu0 0.0
      %1512 = vmatpush1.msra.mxu0 0.0
      %1513 = vmatprep.subr.mxu0 0.0
      %1514 = vmatpush1.msra.mxu0 0.0
      %1515 = vmatprep.subr.mxu0 0.0
      %1516 = vmatpush1.msra.mxu0 0.0
      %1517 = vmatprep.subr.mxu0 0.0
      %1518 = vmatpush1.msra.mxu0 0.0
      %1519 = vmatprep.subr.mxu0 0.0
      %1520 = vmatpush1.msra.mxu0 0.0
      %1521 = vmatprep.subr.mxu0 0.0
      %1522 = vmatpush1.msra.mxu0 0.0
      %1523 = vmatprep.subr.mxu0 0.0
      %1524 = vmatpush1.msra.mxu0 0.0
      %1525 = vmatprep.subr.mxu0 0.0
      %1526 = vmatpush1.msra.mxu0 0.0
      %1527 = vmatprep.mubr.f32.mxu0 0.0
      %1528 = vmatmul.mubr.f32.gmra.mrb[0].mxu0 %v1439
      %v1529 = vpop.f32.mrb[0].mxu0
      %v1530 = vadd.f32 0.0, %v1529
      %v1531 = vpop.f32.mrb[0].mxu0
      %1532 = vmatprep.mubr.f32.mxu0 0.0
      %1533 = vmatmul.mubr.f32.gmra.mrb[0].mxu0 %v1440
      %v1534 = vpop.f32.mrb[0].mxu0
      %v1535 = vadd.f32 0.0, %v1534
      %v1536 = vpop.f32.mrb[0].mxu0
      %1537 = vmatprep.mubr.f32.mxu0 0.0
      %1538 = vmatmul.mubr.f32.gmra.mrb[0].mxu0 %v1441
      %v1539 = vpop.f32.mrb[0].mxu0
      %v1540 = vadd.f32 0.0, %v1539
      %v1541 = vpop.f32.mrb[0].mxu0
      %1542 = vmatprep.mubr.f32.mxu0 0.0
      %1543 = vmatmul.mubr.f32.gmra.mrb[0].mxu0 %v1442
      %v1544 = vpop.f32.mrb[0].mxu0
      %v1545 = vadd.f32 0.0, %v1544
      %v1546 = vpop.f32.mrb[0].mxu0
      %1547 = vmatprep.mubr.f32.mxu0 0.0
      %1548 = vmatmul.mubr.f32.gmra.mrb[0].mxu0 %v1443
      %v1549 = vpop.f32.mrb[0].mxu0
      %v1550 = vadd.f32 0.0, %v1549
      %v1551 = vpop.f32.mrb[0].mxu0
      %1552 = vmatprep.mubr.f32.mxu0 0.0
      %1553 = vmatmul.mubr.f32.gmra.mrb[0].mxu0 %v1444
      %v1554 = vpop.f32.mrb[0].mxu0
      %v1555 = vadd.f32 0.0, %v1554
      %v1556 = vpop.f32.mrb[0].mxu0
      %1557 = vmatprep.mubr.f32.mxu0 0.0
      %1558 = vmatmul.mubr.f32.gmra.mrb[0].mxu0 %v1445
      %v1559 = vpop.f32.mrb[0].mxu0
      %v1560 = vadd.f32 0.0, %v1559
      %v1561 = vpop.f32.mrb[0].mxu0
      %1562 = vdwg.mxu0
      %v1563 = vadd.f32 %v1432, %v1530
      %v1564 = vadd.f32 %v1433, %v1535
      %v1565 = vadd.f32 %v1434, %v1540
      %v1566 = vadd.f32 %v1435, %v1545
      %v1567 = vadd.f32 %v1436, %v1550
      %v1568 = vadd.f32 %v1437, %v1555
      %v1569 = vadd.f32 %v1438, %v1560
      %v1570 = vld [vmem:[#allocation2 + $0x14] sm:$0xff]
      %v1571 = vld [vmem:[#allocation2 + $0x1c] sm:$0xff]
      %v1572 = vld [vmem:[#allocation2 + $0x24] sm:$0xff]
      %v1573 = vld [vmem:[#allocation2 + $0x2c] sm:$0xff]
      %v1574 = vld [vmem:[#allocation2 + $0x34] sm:$0xff]
      %v1575 = vld [vmem:[#allocation2 + $0x3c] sm:$0xff]
      %v1576 = vld [vmem:[#allocation2 + $0x44] sm:$0x3f]
      %s1577 = scalar_lea.vmem %s3, 640
      %v1578 = vld [vmem:[%s1577] sm:$0xff]
      %v1579 = vld [vmem:[%s1577 + $0x8] sm:$0xff]
      %v1580 = vld [vmem:[%s1577 + $0x10] sm:$0xff]
      %v1581 = vld [vmem:[%s1577 + $0x18] sm:$0xff]
      %v1582 = vld [vmem:[%s1577 + $0x20] sm:$0xff]
      %v1583 = vld [vmem:[%s1577 + $0x28] sm:$0xff]
      %v1584 = vld [vmem:[%s1577 + $0x30] sm:$0xff]
      %v1585 = vld [vmem:[%s1577 + $0x38] sm:$0xff]
      %v1586 = vld [vmem:[%s1577 + $0x40] sm:$0xff]
      %v1587 = vld [vmem:[%s1577 + $0x48] sm:$0xff]
      %v1588 = vld [vmem:[%s1577 + $0x50] sm:$0xff]
      %v1589 = vld [vmem:[%s1577 + $0x58] sm:$0xff]
      %v1590 = vld [vmem:[%s1577 + $0x60] sm:$0xff]
      %v1591 = vld [vmem:[%s1577 + $0x68] sm:$0xff]
      %v1592 = vld [vmem:[%s1577 + $0x70] sm:$0xff]
      %v1593 = vld [vmem:[%s1577 + $0x78] sm:$0xff]
      %1594 = vmatprep.subr.mxu0 0.0
      %1595 = vmatpush1.msra.mxu0 %v1578
      %1596 = vmatprep.subr.mxu0 0.0
      %1597 = vmatpush1.msra.mxu0 %v1579
      %1598 = vmatprep.subr.mxu0 0.0
      %1599 = vmatpush1.msra.mxu0 %v1580
      %1600 = vmatprep.subr.mxu0 0.0
      %1601 = vmatpush1.msra.mxu0 %v1581
      %1602 = vmatprep.subr.mxu0 0.0
      %1603 = vmatpush1.msra.mxu0 %v1582
      %1604 = vmatprep.subr.mxu0 0.0
      %1605 = vmatpush1.msra.mxu0 %v1583
      %1606 = vmatprep.subr.mxu0 0.0
      %1607 = vmatpush1.msra.mxu0 %v1584
      %1608 = vmatprep.subr.mxu0 0.0
      %1609 = vmatpush1.msra.mxu0 %v1585
      %1610 = vmatprep.subr.mxu0 0.0
      %1611 = vmatpush1.msra.mxu0 %v1586
      %1612 = vmatprep.subr.mxu0 0.0
      %1613 = vmatpush1.msra.mxu0 %v1587
      %1614 = vmatprep.subr.mxu0 0.0
      %1615 = vmatpush1.msra.mxu0 %v1588
      %1616 = vmatprep.subr.mxu0 0.0
      %1617 = vmatpush1.msra.mxu0 %v1589
      %1618 = vmatprep.subr.mxu0 0.0
      %1619 = vmatpush1.msra.mxu0 %v1590
      %1620 = vmatprep.subr.mxu0 0.0
      %1621 = vmatpush1.msra.mxu0 %v1591
      %1622 = vmatprep.subr.mxu0 0.0
      %1623 = vmatpush1.msra.mxu0 %v1592
      %1624 = vmatprep.subr.mxu0 0.0
      %1625 = vmatpush1.msra.mxu0 %v1593
      %1626 = vmatprep.subr.mxu0 0.0
      %1627 = vmatpush1.msra.mxu0 0.0
      %1628 = vmatprep.subr.mxu0 0.0
      %1629 = vmatpush1.msra.mxu0 0.0
      %1630 = vmatprep.subr.mxu0 0.0
      %1631 = vmatpush1.msra.mxu0 0.0
      %1632 = vmatprep.subr.mxu0 0.0
      %1633 = vmatpush1.msra.mxu0 0.0
      %1634 = vmatprep.subr.mxu0 0.0
      %1635 = vmatpush1.msra.mxu0 0.0
      %1636 = vmatprep.subr.mxu0 0.0
      %1637 = vmatpush1.msra.mxu0 0.0
      %1638 = vmatprep.subr.mxu0 0.0
      %1639 = vmatpush1.msra.mxu0 0.0
      %1640 = vmatprep.subr.mxu0 0.0
      %1641 = vmatpush1.msra.mxu0 0.0
      %1642 = vmatprep.subr.mxu0 0.0
      %1643 = vmatpush1.msra.mxu0 0.0
      %1644 = vmatprep.subr.mxu0 0.0
      %1645 = vmatpush1.msra.mxu0 0.0
      %1646 = vmatprep.subr.mxu0 0.0
      %1647 = vmatpush1.msra.mxu0 0.0
      %1648 = vmatprep.subr.mxu0 0.0
      %1649 = vmatpush1.msra.mxu0 0.0
      %1650 = vmatprep.subr.mxu0 0.0
      %1651 = vmatpush1.msra.mxu0 0.0
      %1652 = vmatprep.subr.mxu0 0.0
      %1653 = vmatpush1.msra.mxu0 0.0
      %1654 = vmatprep.subr.mxu0 0.0
      %1655 = vmatpush1.msra.mxu0 0.0
      %1656 = vmatprep.subr.mxu0 0.0
      %1657 = vmatpush1.msra.mxu0 0.0
      %1658 = vmatprep.mubr.f32.mxu0 0.0
      %1659 = vmatmul.mubr.f32.gmra.mrb[0].mxu0 %v1570
      %v1660 = vpop.f32.mrb[0].mxu0
      %v1661 = vadd.f32 0.0, %v1660
      %v1662 = vpop.f32.mrb[0].mxu0
      %1663 = vmatprep.mubr.f32.mxu0 0.0
      %1664 = vmatmul.mubr.f32.gmra.mrb[0].mxu0 %v1571
      %v1665 = vpop.f32.mrb[0].mxu0
      %v1666 = vadd.f32 0.0, %v1665
      %v1667 = vpop.f32.mrb[0].mxu0
      %1668 = vmatprep.mubr.f32.mxu0 0.0
      %1669 = vmatmul.mubr.f32.gmra.mrb[0].mxu0 %v1572
      %v1670 = vpop.f32.mrb[0].mxu0
      %v1671 = vadd.f32 0.0, %v1670
      %v1672 = vpop.f32.mrb[0].mxu0
      %1673 = vmatprep.mubr.f32.mxu0 0.0
      %1674 = vmatmul.mubr.f32.gmra.mrb[0].mxu0 %v1573
      %v1675 = vpop.f32.mrb[0].mxu0
      %v1676 = vadd.f32 0.0, %v1675
      %v1677 = vpop.f32.mrb[0].mxu0
      %1678 = vmatprep.mubr.f32.mxu0 0.0
      %1679 = vmatmul.mubr.f32.gmra.mrb[0].mxu0 %v1574
      %v1680 = vpop.f32.mrb[0].mxu0
      %v1681 = vadd.f32 0.0, %v1680
      %v1682 = vpop.f32.mrb[0].mxu0
      %1683 = vmatprep.mubr.f32.mxu0 0.0
      %1684 = vmatmul.mubr.f32.gmra.mrb[0].mxu0 %v1575
      %v1685 = vpop.f32.mrb[0].mxu0
      %v1686 = vadd.f32 0.0, %v1685
      %v1687 = vpop.f32.mrb[0].mxu0
      %1688 = vmatprep.mubr.f32.mxu0 0.0
      %1689 = vmatmul.mubr.f32.gmra.mrb[0].mxu0 %v1576
      %v1690 = vpop.f32.mrb[0].mxu0
      %v1691 = vadd.f32 0.0, %v1690
      %v1692 = vpop.f32.mrb[0].mxu0
      %1693 = vdwg.mxu0
      %v1694 = vadd.f32 %v1563, %v1661
      %v1695 = vadd.f32 %v1564, %v1666
      %v1696 = vadd.f32 %v1565, %v1671
      %v1697 = vadd.f32 %v1566, %v1676
      %v1698 = vadd.f32 %v1567, %v1681
      %v1699 = vadd.f32 %v1568, %v1686
      %v1700 = vadd.f32 %v1569, %v1691
      %v1701 = vld [vmem:[#allocation2 + $0x24] sm:$0xff]
      %v1702 = vld [vmem:[#allocation2 + $0x2c] sm:$0xff]
      %v1703 = vld [vmem:[#allocation2 + $0x34] sm:$0xff]
      %v1704 = vld [vmem:[#allocation2 + $0x3c] sm:$0xff]
      %v1705 = vld [vmem:[#allocation2 + $0x44] sm:$0xff]
      %v1706 = vld [vmem:[#allocation2 + $0x4c] sm:$0xff]
      %v1707 = vld [vmem:[#allocation2 + $0x54] sm:$0x3f]
      %s1708 = scalar_lea.vmem %s3, 768
      %v1709 = vld [vmem:[%s1708] sm:$0xff]
      %v1710 = vld [vmem:[%s1708 + $0x8] sm:$0xff]
      %v1711 = vld [vmem:[%s1708 + $0x10] sm:$0xff]
      %v1712 = vld [vmem:[%s1708 + $0x18] sm:$0xff]
      %v1713 = vld [vmem:[%s1708 + $0x20] sm:$0xff]
      %v1714 = vld [vmem:[%s1708 + $0x28] sm:$0xff]
      %v1715 = vld [vmem:[%s1708 + $0x30] sm:$0xff]
      %v1716 = vld [vmem:[%s1708 + $0x38] sm:$0xff]
      %v1717 = vld [vmem:[%s1708 + $0x40] sm:$0xff]
      %v1718 = vld [vmem:[%s1708 + $0x48] sm:$0xff]
      %v1719 = vld [vmem:[%s1708 + $0x50] sm:$0xff]
      %v1720 = vld [vmem:[%s1708 + $0x58] sm:$0xff]
      %v1721 = vld [vmem:[%s1708 + $0x60] sm:$0xff]
      %v1722 = vld [vmem:[%s1708 + $0x68] sm:$0xff]
      %v1723 = vld [vmem:[%s1708 + $0x70] sm:$0xff]
      %v1724 = vld [vmem:[%s1708 + $0x78] sm:$0xff]
      %1725 = vmatprep.subr.mxu0 0.0
      %1726 = vmatpush1.msra.mxu0 %v1709
      %1727 = vmatprep.subr.mxu0 0.0
      %1728 = vmatpush1.msra.mxu0 %v1710
      %1729 = vmatprep.subr.mxu0 0.0
      %1730 = vmatpush1.msra.mxu0 %v1711
      %1731 = vmatprep.subr.mxu0 0.0
      %1732 = vmatpush1.msra.mxu0 %v1712
      %1733 = vmatprep.subr.mxu0 0.0
      %1734 = vmatpush1.msra.mxu0 %v1713
      %1735 = vmatprep.subr.mxu0 0.0
      %1736 = vmatpush1.msra.mxu0 %v1714
      %1737 = vmatprep.subr.mxu0 0.0
      %1738 = vmatpush1.msra.mxu0 %v1715
      %1739 = vmatprep.subr.mxu0 0.0
      %1740 = vmatpush1.msra.mxu0 %v1716
      %1741 = vmatprep.subr.mxu0 0.0
      %1742 = vmatpush1.msra.mxu0 %v1717
      %1743 = vmatprep.subr.mxu0 0.0
      %1744 = vmatpush1.msra.mxu0 %v1718
      %1745 = vmatprep.subr.mxu0 0.0
      %1746 = vmatpush1.msra.mxu0 %v1719
      %1747 = vmatprep.subr.mxu0 0.0
      %1748 = vmatpush1.msra.mxu0 %v1720
      %1749 = vmatprep.subr.mxu0 0.0
      %1750 = vmatpush1.msra.mxu0 %v1721
      %1751 = vmatprep.subr.mxu0 0.0
      %1752 = vmatpush1.msra.mxu0 %v1722
      %1753 = vmatprep.subr.mxu0 0.0
      %1754 = vmatpush1.msra.mxu0 %v1723
      %1755 = vmatprep.subr.mxu0 0.0
      %1756 = vmatpush1.msra.mxu0 %v1724
      %1757 = vmatprep.subr.mxu0 0.0
      %1758 = vmatpush1.msra.mxu0 0.0
      %1759 = vmatprep.subr.mxu0 0.0
      %1760 = vmatpush1.msra.mxu0 0.0
      %1761 = vmatprep.subr.mxu0 0.0
      %1762 = vmatpush1.msra.mxu0 0.0
      %1763 = vmatprep.subr.mxu0 0.0
      %1764 = vmatpush1.msra.mxu0 0.0
      %1765 = vmatprep.subr.mxu0 0.0
      %1766 = vmatpush1.msra.mxu0 0.0
      %1767 = vmatprep.subr.mxu0 0.0
      %1768 = vmatpush1.msra.mxu0 0.0
      %1769 = vmatprep.subr.mxu0 0.0
      %1770 = vmatpush1.msra.mxu0 0.0
      %1771 = vmatprep.subr.mxu0 0.0
      %1772 = vmatpush1.msra.mxu0 0.0
      %1773 = vmatprep.subr.mxu0 0.0
      %1774 = vmatpush1.msra.mxu0 0.0
      %1775 = vmatprep.subr.mxu0 0.0
      %1776 = vmatpush1.msra.mxu0 0.0
      %1777 = vmatprep.subr.mxu0 0.0
      %1778 = vmatpush1.msra.mxu0 0.0
      %1779 = vmatprep.subr.mxu0 0.0
      %1780 = vmatpush1.msra.mxu0 0.0
      %1781 = vmatprep.subr.mxu0 0.0
      %1782 = vmatpush1.msra.mxu0 0.0
      %1783 = vmatprep.subr.mxu0 0.0
      %1784 = vmatpush1.msra.mxu0 0.0
      %1785 = vmatprep.subr.mxu0 0.0
      %1786 = vmatpush1.msra.mxu0 0.0
      %1787 = vmatprep.subr.mxu0 0.0
      %1788 = vmatpush1.msra.mxu0 0.0
      %1789 = vmatprep.mubr.f32.mxu0 0.0
      %1790 = vmatmul.mubr.f32.gmra.mrb[0].mxu0 %v1701
      %v1791 = vpop.f32.mrb[0].mxu0
      %v1792 = vadd.f32 0.0, %v1791
      %v1793 = vpop.f32.mrb[0].mxu0
      %1794 = vmatprep.mubr.f32.mxu0 0.0
      %1795 = vmatmul.mubr.f32.gmra.mrb[0].mxu0 %v1702
      %v1796 = vpop.f32.mrb[0].mxu0
      %v1797 = vadd.f32 0.0, %v1796
      %v1798 = vpop.f32.mrb[0].mxu0
      %1799 = vmatprep.mubr.f32.mxu0 0.0
      %1800 = vmatmul.mubr.f32.gmra.mrb[0].mxu0 %v1703
      %v1801 = vpop.f32.mrb[0].mxu0
      %v1802 = vadd.f32 0.0, %v1801
      %v1803 = vpop.f32.mrb[0].mxu0
      %1804 = vmatprep.mubr.f32.mxu0 0.0
      %1805 = vmatmul.mubr.f32.gmra.mrb[0].mxu0 %v1704
      %v1806 = vpop.f32.mrb[0].mxu0
      %v1807 = vadd.f32 0.0, %v1806
      %v1808 = vpop.f32.mrb[0].mxu0
      %1809 = vmatprep.mubr.f32.mxu0 0.0
      %1810 = vmatmul.mubr.f32.gmra.mrb[0].mxu0 %v1705
      %v1811 = vpop.f32.mrb[0].mxu0
      %v1812 = vadd.f32 0.0, %v1811
      %v1813 = vpop.f32.mrb[0].mxu0
      %1814 = vmatprep.mubr.f32.mxu0 0.0
      %1815 = vmatmul.mubr.f32.gmra.mrb[0].mxu0 %v1706
      %v1816 = vpop.f32.mrb[0].mxu0
      %v1817 = vadd.f32 0.0, %v1816
      %v1818 = vpop.f32.mrb[0].mxu0
      %1819 = vmatprep.mubr.f32.mxu0 0.0
      %1820 = vmatmul.mubr.f32.gmra.mrb[0].mxu0 %v1707
      %v1821 = vpop.f32.mrb[0].mxu0
      %v1822 = vadd.f32 0.0, %v1821
      %v1823 = vpop.f32.mrb[0].mxu0
      %1824 = vdwg.mxu0
      %v1825 = vadd.f32 %v1694, %v1792
      %v1826 = vadd.f32 %v1695, %v1797
      %v1827 = vadd.f32 %v1696, %v1802
      %v1828 = vadd.f32 %v1697, %v1807
      %v1829 = vadd.f32 %v1698, %v1812
      %v1830 = vadd.f32 %v1699, %v1817
      %v1831 = vadd.f32 %v1700, %v1822
      %v1832 = vld [vmem:[#allocation2 + $0x25] sm:$0xff]
      %v1833 = vld [vmem:[#allocation2 + $0x2d] sm:$0xff]
      %v1834 = vld [vmem:[#allocation2 + $0x35] sm:$0xff]
      %v1835 = vld [vmem:[#allocation2 + $0x3d] sm:$0xff]
      %v1836 = vld [vmem:[#allocation2 + $0x45] sm:$0xff]
      %v1837 = vld [vmem:[#allocation2 + $0x4d] sm:$0xff]
      %v1838 = vld [vmem:[#allocation2 + $0x55] sm:$0x3f]
      %s1839 = scalar_lea.vmem %s3, 896
      %v1840 = vld [vmem:[%s1839] sm:$0xff]
      %v1841 = vld [vmem:[%s1839 + $0x8] sm:$0xff]
      %v1842 = vld [vmem:[%s1839 + $0x10] sm:$0xff]
      %v1843 = vld [vmem:[%s1839 + $0x18] sm:$0xff]
      %v1844 = vld [vmem:[%s1839 + $0x20] sm:$0xff]
      %v1845 = vld [vmem:[%s1839 + $0x28] sm:$0xff]
      %v1846 = vld [vmem:[%s1839 + $0x30] sm:$0xff]
      %v1847 = vld [vmem:[%s1839 + $0x38] sm:$0xff]
      %v1848 = vld [vmem:[%s1839 + $0x40] sm:$0xff]
      %v1849 = vld [vmem:[%s1839 + $0x48] sm:$0xff]
      %v1850 = vld [vmem:[%s1839 + $0x50] sm:$0xff]
      %v1851 = vld [vmem:[%s1839 + $0x58] sm:$0xff]
      %v1852 = vld [vmem:[%s1839 + $0x60] sm:$0xff]
      %v1853 = vld [vmem:[%s1839 + $0x68] sm:$0xff]
      %v1854 = vld [vmem:[%s1839 + $0x70] sm:$0xff]
      %v1855 = vld [vmem:[%s1839 + $0x78] sm:$0xff]
      %1856 = vmatprep.subr.mxu0 0.0
      %1857 = vmatpush1.msra.mxu0 %v1840
      %1858 = vmatprep.subr.mxu0 0.0
      %1859 = vmatpush1.msra.mxu0 %v1841
      %1860 = vmatprep.subr.mxu0 0.0
      %1861 = vmatpush1.msra.mxu0 %v1842
      %1862 = vmatprep.subr.mxu0 0.0
      %1863 = vmatpush1.msra.mxu0 %v1843
      %1864 = vmatprep.subr.mxu0 0.0
      %1865 = vmatpush1.msra.mxu0 %v1844
      %1866 = vmatprep.subr.mxu0 0.0
      %1867 = vmatpush1.msra.mxu0 %v1845
      %1868 = vmatprep.subr.mxu0 0.0
      %1869 = vmatpush1.msra.mxu0 %v1846
      %1870 = vmatprep.subr.mxu0 0.0
      %1871 = vmatpush1.msra.mxu0 %v1847
      %1872 = vmatprep.subr.mxu0 0.0
      %1873 = vmatpush1.msra.mxu0 %v1848
      %1874 = vmatprep.subr.mxu0 0.0
      %1875 = vmatpush1.msra.mxu0 %v1849
      %1876 = vmatprep.subr.mxu0 0.0
      %1877 = vmatpush1.msra.mxu0 %v1850
      %1878 = vmatprep.subr.mxu0 0.0
      %1879 = vmatpush1.msra.mxu0 %v1851
      %1880 = vmatprep.subr.mxu0 0.0
      %1881 = vmatpush1.msra.mxu0 %v1852
      %1882 = vmatprep.subr.mxu0 0.0
      %1883 = vmatpush1.msra.mxu0 %v1853
      %1884 = vmatprep.subr.mxu0 0.0
      %1885 = vmatpush1.msra.mxu0 %v1854
      %1886 = vmatprep.subr.mxu0 0.0
      %1887 = vmatpush1.msra.mxu0 %v1855
      %1888 = vmatprep.subr.mxu0 0.0
      %1889 = vmatpush1.msra.mxu0 0.0
      %1890 = vmatprep.subr.mxu0 0.0
      %1891 = vmatpush1.msra.mxu0 0.0
      %1892 = vmatprep.subr.mxu0 0.0
      %1893 = vmatpush1.msra.mxu0 0.0
      %1894 = vmatprep.subr.mxu0 0.0
      %1895 = vmatpush1.msra.mxu0 0.0
      %1896 = vmatprep.subr.mxu0 0.0
      %1897 = vmatpush1.msra.mxu0 0.0
      %1898 = vmatprep.subr.mxu0 0.0
      %1899 = vmatpush1.msra.mxu0 0.0
      %1900 = vmatprep.subr.mxu0 0.0
      %1901 = vmatpush1.msra.mxu0 0.0
      %1902 = vmatprep.subr.mxu0 0.0
      %1903 = vmatpush1.msra.mxu0 0.0
      %1904 = vmatprep.subr.mxu0 0.0
      %1905 = vmatpush1.msra.mxu0 0.0
      %1906 = vmatprep.subr.mxu0 0.0
      %1907 = vmatpush1.msra.mxu0 0.0
      %1908 = vmatprep.subr.mxu0 0.0
      %1909 = vmatpush1.msra.mxu0 0.0
      %1910 = vmatprep.subr.mxu0 0.0
      %1911 = vmatpush1.msra.mxu0 0.0
      %1912 = vmatprep.subr.mxu0 0.0
      %1913 = vmatpush1.msra.mxu0 0.0
      %1914 = vmatprep.subr.mxu0 0.0
      %1915 = vmatpush1.msra.mxu0 0.0
      %1916 = vmatprep.subr.mxu0 0.0
      %1917 = vmatpush1.msra.mxu0 0.0
      %1918 = vmatprep.subr.mxu0 0.0
      %1919 = vmatpush1.msra.mxu0 0.0
      %1920 = vmatprep.mubr.f32.mxu0 0.0
      %1921 = vmatmul.mubr.f32.gmra.mrb[0].mxu0 %v1832
      %v1922 = vpop.f32.mrb[0].mxu0
      %v1923 = vadd.f32 0.0, %v1922
      %v1924 = vpop.f32.mrb[0].mxu0
      %1925 = vmatprep.mubr.f32.mxu0 0.0
      %1926 = vmatmul.mubr.f32.gmra.mrb[0].mxu0 %v1833
      %v1927 = vpop.f32.mrb[0].mxu0
      %v1928 = vadd.f32 0.0, %v1927
      %v1929 = vpop.f32.mrb[0].mxu0
      %1930 = vmatprep.mubr.f32.mxu0 0.0
      %1931 = vmatmul.mubr.f32.gmra.mrb[0].mxu0 %v1834
      %v1932 = vpop.f32.mrb[0].mxu0
      %v1933 = vadd.f32 0.0, %v1932
      %v1934 = vpop.f32.mrb[0].mxu0
      %1935 = vmatprep.mubr.f32.mxu0 0.0
      %1936 = vmatmul.mubr.f32.gmra.mrb[0].mxu0 %v1835
      %v1937 = vpop.f32.mrb[0].mxu0
      %v1938 = vadd.f32 0.0, %v1937
      %v1939 = vpop.f32.mrb[0].mxu0
      %1940 = vmatprep.mubr.f32.mxu0 0.0
      %1941 = vmatmul.mubr.f32.gmra.mrb[0].mxu0 %v1836
      %v1942 = vpop.f32.mrb[0].mxu0
      %v1943 = vadd.f32 0.0, %v1942
      %v1944 = vpop.f32.mrb[0].mxu0
      %1945 = vmatprep.mubr.f32.mxu0 0.0
      %1946 = vmatmul.mubr.f32.gmra.mrb[0].mxu0 %v1837
      %v1947 = vpop.f32.mrb[0].mxu0
      %v1948 = vadd.f32 0.0, %v1947
      %v1949 = vpop.f32.mrb[0].mxu0
      %1950 = vmatprep.mubr.f32.mxu0 0.0
      %1951 = vmatmul.mubr.f32.gmra.mrb[0].mxu0 %v1838
      %v1952 = vpop.f32.mrb[0].mxu0
      %v1953 = vadd.f32 0.0, %v1952
      %v1954 = vpop.f32.mrb[0].mxu0
      %1955 = vdwg.mxu0
      %v1956 = vadd.f32 %v1825, %v1923
      %v1957 = vadd.f32 %v1826, %v1928
      %v1958 = vadd.f32 %v1827, %v1933
      %v1959 = vadd.f32 %v1828, %v1938
      %v1960 = vadd.f32 %v1829, %v1943
      %v1961 = vadd.f32 %v1830, %v1948
      %v1962 = vadd.f32 %v1831, %v1953
      %v1963 = vld [vmem:[#allocation2 + $0x26] sm:$0xff]
      %v1964 = vld [vmem:[#allocation2 + $0x2e] sm:$0xff]
      %v1965 = vld [vmem:[#allocation2 + $0x36] sm:$0xff]
      %v1966 = vld [vmem:[#allocation2 + $0x3e] sm:$0xff]
      %v1967 = vld [vmem:[#allocation2 + $0x46] sm:$0xff]
      %v1968 = vld [vmem:[#allocation2 + $0x4e] sm:$0xff]
      %v1969 = vld [vmem:[#allocation2 + $0x56] sm:$0x3f]
      %s1970 = scalar_lea.vmem %s3, 1024
      %v1971 = vld [vmem:[%s1970] sm:$0xff]
      %v1972 = vld [vmem:[%s1970 + $0x8] sm:$0xff]
      %v1973 = vld [vmem:[%s1970 + $0x10] sm:$0xff]
      %v1974 = vld [vmem:[%s1970 + $0x18] sm:$0xff]
      %v1975 = vld [vmem:[%s1970 + $0x20] sm:$0xff]
      %v1976 = vld [vmem:[%s1970 + $0x28] sm:$0xff]
      %v1977 = vld [vmem:[%s1970 + $0x30] sm:$0xff]
      %v1978 = vld [vmem:[%s1970 + $0x38] sm:$0xff]
      %v1979 = vld [vmem:[%s1970 + $0x40] sm:$0xff]
      %v1980 = vld [vmem:[%s1970 + $0x48] sm:$0xff]
      %v1981 = vld [vmem:[%s1970 + $0x50] sm:$0xff]
      %v1982 = vld [vmem:[%s1970 + $0x58] sm:$0xff]
      %v1983 = vld [vmem:[%s1970 + $0x60] sm:$0xff]
      %v1984 = vld [vmem:[%s1970 + $0x68] sm:$0xff]
      %v1985 = vld [vmem:[%s1970 + $0x70] sm:$0xff]
      %v1986 = vld [vmem:[%s1970 + $0x78] sm:$0xff]
      %1987 = vmatprep.subr.mxu0 0.0
      %1988 = vmatpush1.msra.mxu0 %v1971
      %1989 = vmatprep.subr.mxu0 0.0
      %1990 = vmatpush1.msra.mxu0 %v1972
      %1991 = vmatprep.subr.mxu0 0.0
      %1992 = vmatpush1.msra.mxu0 %v1973
      %1993 = vmatprep.subr.mxu0 0.0
      %1994 = vmatpush1.msra.mxu0 %v1974
      %1995 = vmatprep.subr.mxu0 0.0
      %1996 = vmatpush1.msra.mxu0 %v1975
      %1997 = vmatprep.subr.mxu0 0.0
      %1998 = vmatpush1.msra.mxu0 %v1976
      %1999 = vmatprep.subr.mxu0 0.0
      %2000 = vmatpush1.msra.mxu0 %v1977
      %2001 = vmatprep.subr.mxu0 0.0
      %2002 = vmatpush1.msra.mxu0 %v1978
      %2003 = vmatprep.subr.mxu0 0.0
      %2004 = vmatpush1.msra.mxu0 %v1979
      %2005 = vmatprep.subr.mxu0 0.0
      %2006 = vmatpush1.msra.mxu0 %v1980
      %2007 = vmatprep.subr.mxu0 0.0
      %2008 = vmatpush1.msra.mxu0 %v1981
      %2009 = vmatprep.subr.mxu0 0.0
      %2010 = vmatpush1.msra.mxu0 %v1982
      %2011 = vmatprep.subr.mxu0 0.0
      %2012 = vmatpush1.msra.mxu0 %v1983
      %2013 = vmatprep.subr.mxu0 0.0
      %2014 = vmatpush1.msra.mxu0 %v1984
      %2015 = vmatprep.subr.mxu0 0.0
      %2016 = vmatpush1.msra.mxu0 %v1985
      %2017 = vmatprep.subr.mxu0 0.0
      %2018 = vmatpush1.msra.mxu0 %v1986
      %2019 = vmatprep.subr.mxu0 0.0
      %2020 = vmatpush1.msra.mxu0 0.0
      %2021 = vmatprep.subr.mxu0 0.0
      %2022 = vmatpush1.msra.mxu0 0.0
      %2023 = vmatprep.subr.mxu0 0.0
      %2024 = vmatpush1.msra.mxu0 0.0
      %2025 = vmatprep.subr.mxu0 0.0
      %2026 = vmatpush1.msra.mxu0 0.0
      %2027 = vmatprep.subr.mxu0 0.0
      %2028 = vmatpush1.msra.mxu0 0.0
      %2029 = vmatprep.subr.mxu0 0.0
      %2030 = vmatpush1.msra.mxu0 0.0
      %2031 = vmatprep.subr.mxu0 0.0
      %2032 = vmatpush1.msra.mxu0 0.0
      %2033 = vmatprep.subr.mxu0 0.0
      %2034 = vmatpush1.msra.mxu0 0.0
      %2035 = vmatprep.subr.mxu0 0.0
      %2036 = vmatpush1.msra.mxu0 0.0
      %2037 = vmatprep.subr.mxu0 0.0
      %2038 = vmatpush1.msra.mxu0 0.0
      %2039 = vmatprep.subr.mxu0 0.0
      %2040 = vmatpush1.msra.mxu0 0.0
      %2041 = vmatprep.subr.mxu0 0.0
      %2042 = vmatpush1.msra.mxu0 0.0
      %2043 = vmatprep.subr.mxu0 0.0
      %2044 = vmatpush1.msra.mxu0 0.0
      %2045 = vmatprep.subr.mxu0 0.0
      %2046 = vmatpush1.msra.mxu0 0.0
      %2047 = vmatprep.subr.mxu0 0.0
      %2048 = vmatpush1.msra.mxu0 0.0
      %2049 = vmatprep.subr.mxu0 0.0
      %2050 = vmatpush1.msra.mxu0 0.0
      %2051 = vmatprep.mubr.f32.mxu0 0.0
      %2052 = vmatmul.mubr.f32.gmra.mrb[0].mxu0 %v1963
      %v2053 = vpop.f32.mrb[0].mxu0
      %v2054 = vadd.f32 0.0, %v2053
      %v2055 = vpop.f32.mrb[0].mxu0
      %2056 = vmatprep.mubr.f32.mxu0 0.0
      %2057 = vmatmul.mubr.f32.gmra.mrb[0].mxu0 %v1964
      %v2058 = vpop.f32.mrb[0].mxu0
      %v2059 = vadd.f32 0.0, %v2058
      %v2060 = vpop.f32.mrb[0].mxu0
      %2061 = vmatprep.mubr.f32.mxu0 0.0
      %2062 = vmatmul.mubr.f32.gmra.mrb[0].mxu0 %v1965
      %v2063 = vpop.f32.mrb[0].mxu0
      %v2064 = vadd.f32 0.0, %v2063
      %v2065 = vpop.f32.mrb[0].mxu0
      %2066 = vmatprep.mubr.f32.mxu0 0.0
      %2067 = vmatmul.mubr.f32.gmra.mrb[0].mxu0 %v1966
      %v2068 = vpop.f32.mrb[0].mxu0
      %v2069 = vadd.f32 0.0, %v2068
      %v2070 = vpop.f32.mrb[0].mxu0
      %2071 = vmatprep.mubr.f32.mxu0 0.0
      %2072 = vmatmul.mubr.f32.gmra.mrb[0].mxu0 %v1967
      %v2073 = vpop.f32.mrb[0].mxu0
      %v2074 = vadd.f32 0.0, %v2073
      %v2075 = vpop.f32.mrb[0].mxu0
      %2076 = vmatprep.mubr.f32.mxu0 0.0
      %2077 = vmatmul.mubr.f32.gmra.mrb[0].mxu0 %v1968
      %v2078 = vpop.f32.mrb[0].mxu0
      %v2079 = vadd.f32 0.0, %v2078
      %v2080 = vpop.f32.mrb[0].mxu0
      %2081 = vmatprep.mubr.f32.mxu0 0.0
      %2082 = vmatmul.mubr.f32.gmra.mrb[0].mxu0 %v1969
      %v2083 = vpop.f32.mrb[0].mxu0
      %v2084 = vadd.f32 0.0, %v2083
      %v2085 = vpop.f32.mrb[0].mxu0
      %2086 = vdwg.mxu0
      %v2087 = vadd.f32 %v1956, %v2054
      %v2088 = vadd.f32 %v1957, %v2059
      %v2089 = vadd.f32 %v1958, %v2064
      %v2090 = vadd.f32 %v1959, %v2069
      %v2091 = vadd.f32 %v1960, %v2074
      %v2092 = vadd.f32 %v1961, %v2079
      %v2093 = vadd.f32 %v1962, %v2084
      %v2094 = vld [vmem:[%s4] sm:$0x1]
      %v2096 = vlaneseq
      %v2097 = vshrl.u32 %v2096, 7
      %v2098 = vsub.s32 0, %v2097
      %v2099 = vrot.slane %v2094, %v2098
      %v2101 = vadd.f32 %v2087, %v2099
      %v2102 = vadd.f32 %v2088, %v2099
      %v2103 = vadd.f32 %v2089, %v2099
      %v2104 = vadd.f32 %v2090, %v2099
      %v2105 = vadd.f32 %v2091, %v2099
      %v2106 = vadd.f32 %v2092, %v2099
      %v2107 = vadd.f32 %v2093, %v2099
      %v2108 = vmax.f32 %v2101, 0.0
      %v2109 = vmax.f32 %v2102, 0.0
      %v2110 = vmax.f32 %v2103, 0.0
      %v2111 = vmax.f32 %v2104, 0.0
      %v2112 = vmax.f32 %v2105, 0.0
      %v2113 = vmax.f32 %v2106, 0.0
      %v2114 = vmax.f32 %v2107, 0.0
      %v2115 = vld [vmem:[%s5] sm:$0xff]
      %v2116 = vld [vmem:[%s5 + $0x8] sm:$0xff]
      %v2117 = vld [vmem:[%s5 + $0x10] sm:$0xff]
      %v2118 = vld [vmem:[%s5 + $0x18] sm:$0xff]
      %v2119 = vld [vmem:[%s5 + $0x20] sm:$0xff]
      %v2120 = vld [vmem:[%s5 + $0x28] sm:$0xff]
      %v2121 = vld [vmem:[%s5 + $0x30] sm:$0xff]
      %v2122 = vld [vmem:[%s5 + $0x38] sm:$0xff]
      %v2123 = vld [vmem:[%s5 + $0x40] sm:$0xff]
      %v2124 = vld [vmem:[%s5 + $0x48] sm:$0xff]
      %v2125 = vld [vmem:[%s5 + $0x50] sm:$0xff]
      %v2126 = vld [vmem:[%s5 + $0x58] sm:$0xff]
      %v2127 = vld [vmem:[%s5 + $0x60] sm:$0xff]
      %v2128 = vld [vmem:[%s5 + $0x68] sm:$0xff]
      %v2129 = vld [vmem:[%s5 + $0x70] sm:$0xff]
      %v2130 = vld [vmem:[%s5 + $0x78] sm:$0xff]
      %v2131 = vld [vmem:[%s6] sm:$0x1]
      %v2133 = vlaneseq
      %v2134 = vshrl.u32 %v2133, 7
      %v2135 = vsub.s32 0, %v2134
      %v2136 = vrot.slane %v2131, %v2135
      %2138 = vmatprep.subr.mxu0 0.0
      %2139 = vmatpush1.msra.mxu0 %v2115
      %2140 = vmatprep.subr.mxu0 0.0
      %2141 = vmatpush1.msra.mxu0 %v2116
      %2142 = vmatprep.subr.mxu0 0.0
      %2143 = vmatpush1.msra.mxu0 %v2117
      %2144 = vmatprep.subr.mxu0 0.0
      %2145 = vmatpush1.msra.mxu0 %v2118
      %2146 = vmatprep.subr.mxu0 0.0
      %2147 = vmatpush1.msra.mxu0 %v2119
      %2148 = vmatprep.subr.mxu0 0.0
      %2149 = vmatpush1.msra.mxu0 %v2120
      %2150 = vmatprep.subr.mxu0 0.0
      %2151 = vmatpush1.msra.mxu0 %v2121
      %2152 = vmatprep.subr.mxu0 0.0
      %2153 = vmatpush1.msra.mxu0 %v2122
      %2154 = vmatprep.subr.mxu0 0.0
      %2155 = vmatpush1.msra.mxu0 %v2123
      %2156 = vmatprep.subr.mxu0 0.0
      %2157 = vmatpush1.msra.mxu0 %v2124
      %2158 = vmatprep.subr.mxu0 0.0
      %2159 = vmatpush1.msra.mxu0 %v2125
      %2160 = vmatprep.subr.mxu0 0.0
      %2161 = vmatpush1.msra.mxu0 %v2126
      %2162 = vmatprep.subr.mxu0 0.0
      %2163 = vmatpush1.msra.mxu0 %v2127
      %2164 = vmatprep.subr.mxu0 0.0
      %2165 = vmatpush1.msra.mxu0 %v2128
      %2166 = vmatprep.subr.mxu0 0.0
      %2167 = vmatpush1.msra.mxu0 %v2129
      %2168 = vmatprep.subr.mxu0 0.0
      %2169 = vmatpush1.msra.mxu0 %v2130
      %2170 = vmatprep.subr.mxu0 0.0
      %2171 = vmatpush1.msra.mxu0 0.0
      %2172 = vmatprep.subr.mxu0 0.0
      %2173 = vmatpush1.msra.mxu0 0.0
      %2174 = vmatprep.subr.mxu0 0.0
      %2175 = vmatpush1.msra.mxu0 0.0
      %2176 = vmatprep.subr.mxu0 0.0
      %2177 = vmatpush1.msra.mxu0 0.0
      %2178 = vmatprep.subr.mxu0 0.0
      %2179 = vmatpush1.msra.mxu0 0.0
      %2180 = vmatprep.subr.mxu0 0.0
      %2181 = vmatpush1.msra.mxu0 0.0
      %2182 = vmatprep.subr.mxu0 0.0
      %2183 = vmatpush1.msra.mxu0 0.0
      %2184 = vmatprep.subr.mxu0 0.0
      %2185 = vmatpush1.msra.mxu0 0.0
      %2186 = vmatprep.subr.mxu0 0.0
      %2187 = vmatpush1.msra.mxu0 0.0
      %2188 = vmatprep.subr.mxu0 0.0
      %2189 = vmatpush1.msra.mxu0 0.0
      %2190 = vmatprep.subr.mxu0 0.0
      %2191 = vmatpush1.msra.mxu0 0.0
      %2192 = vmatprep.subr.mxu0 0.0
      %2193 = vmatpush1.msra.mxu0 0.0
      %2194 = vmatprep.subr.mxu0 0.0
      %2195 = vmatpush1.msra.mxu0 0.0
      %2196 = vmatprep.subr.mxu0 0.0
      %2197 = vmatpush1.msra.mxu0 0.0
      %2198 = vmatprep.subr.mxu0 0.0
      %2199 = vmatpush1.msra.mxu0 0.0
      %2200 = vmatprep.subr.mxu0 0.0
      %2201 = vmatpush1.msra.mxu0 0.0
      %2202 = vmatprep.mubr.f32.mxu0 0.0
      %2203 = vmatmul.mubr.f32.gmra.mrb[0].mxu0 %v2108
      %v2204 = vpop.f32.mrb[0].mxu0
      %v2205 = vadd.f32 %v2136, %v2204
      %v2206 = vpop.f32.mrb[0].mxu0
      %2207 = vmatprep.mubr.f32.mxu0 0.0
      %2208 = vmatmul.mubr.f32.gmra.mrb[0].mxu0 %v2109
      %v2209 = vpop.f32.mrb[0].mxu0
      %v2210 = vadd.f32 %v2136, %v2209
      %v2211 = vpop.f32.mrb[0].mxu0
      %2212 = vmatprep.mubr.f32.mxu0 0.0
      %2213 = vmatmul.mubr.f32.gmra.mrb[0].mxu0 %v2110
      %v2214 = vpop.f32.mrb[0].mxu0
      %v2215 = vadd.f32 %v2136, %v2214
      %v2216 = vpop.f32.mrb[0].mxu0
      %2217 = vmatprep.mubr.f32.mxu0 0.0
      %2218 = vmatmul.mubr.f32.gmra.mrb[0].mxu0 %v2111
      %v2219 = vpop.f32.mrb[0].mxu0
      %v2220 = vadd.f32 %v2136, %v2219
      %v2221 = vpop.f32.mrb[0].mxu0
      %2222 = vmatprep.mubr.f32.mxu0 0.0
      %2223 = vmatmul.mubr.f32.gmra.mrb[0].mxu0 %v2112
      %v2224 = vpop.f32.mrb[0].mxu0
      %v2225 = vadd.f32 %v2136, %v2224
      %v2226 = vpop.f32.mrb[0].mxu0
      %2227 = vmatprep.mubr.f32.mxu0 0.0
      %2228 = vmatmul.mubr.f32.gmra.mrb[0].mxu0 %v2113
      %v2229 = vpop.f32.mrb[0].mxu0
      %v2230 = vadd.f32 %v2136, %v2229
      %v2231 = vpop.f32.mrb[0].mxu0
      %2232 = vmatprep.mubr.f32.mxu0 0.0
      %2233 = vmatmul.mubr.f32.gmra.mrb[0].mxu0 %v2114
      %v2234 = vpop.f32.mrb[0].mxu0
      %v2235 = vadd.f32 %v2136, %v2234
      %v2236 = vpop.f32.mrb[0].mxu0
      %2237 = vdwg.mxu0
      %v2238 = vmul.f32 %v2205, 0.8
      %v2239 = vmul.f32 %v2210, 0.8
      %v2240 = vmul.f32 %v2215, 0.8
      %v2241 = vmul.f32 %v2220, 0.8
      %v2242 = vmul.f32 %v2225, 0.8
      %v2243 = vmul.f32 %v2230, 0.8
      %v2244 = vmul.f32 %v2235, 0.8
      %v2245 = vld [vmem:[%s273] sm:$0xff]
      %v2246 = vld [vmem:[%s273 + $0x8] sm:$0xff]
      %v2247 = vadd.f32 %v2238, %v2245
      %v2248 = vadd.f32 %v2239, %v2246
      %v2249 = vmax.f32 %v2247, 0.0
      %v2250 = vmax.f32 %v2248, 0.0
      %2251 = vst [vmem:[%s278] sm:$0xff] %v2249
      %2252 = vst [vmem:[%s278 + $0x8] sm:$0xff] %v2250
      %v2253 = vld [vmem:[%s273 + $0x10] sm:$0xff]
      %v2254 = vld [vmem:[%s273 + $0x18] sm:$0xff]
      %vm2257 = vcmask 1041408
      %v2258 = vrot.slane %v2253, 6
      %v2259 = vrot.slane %v2254, 6
      %v2260 = vsel %vm2257, %v2258, %v2259
      %v2264 = vadd.f32 %v2240, %v2258
      %v2265 = vadd.f32 %v2241, %v2260
      %v2266 = vadd.f32 %v2242, %v2259
      %v2267 = vmax.f32 %v2264, 0.0
      %v2268 = vmax.f32 %v2265, 0.0
      %v2269 = vmax.f32 %v2266, 0.0
      %2270 = vst [vmem:[%s278 + $0xe] sm:$0xfc] %v2267
      %2271 = vst [vmem:[%s278 + $0x16] sm:$0xff] %v2268
      %2272 = vst [vmem:[%s278 + $0x1e] sm:$0x3] %v2269
      %v2273 = vld [vmem:[%s273 + $0x20] sm:$0xff]
      %v2274 = vld [vmem:[%s273 + $0x28] sm:$0xff]
      %vm2277 = vcmask 1043456
      %v2278 = vrot.slane %v2273, 4
      %v2279 = vrot.slane %v2274, 4
      %v2280 = vsel %vm2277, %v2278, %v2279
      %v2284 = vadd.f32 %v2242, %v2278
      %v2285 = vadd.f32 %v2243, %v2280
      %v2286 = vadd.f32 %v2244, %v2279
      %v2287 = vmax.f32 %v2284, 0.0
      %v2288 = vmax.f32 %v2285, 0.0
      %v2289 = vmax.f32 %v2286, 0.0
      %2290 = vst [vmem:[%s278 + $0x1c] sm:$0xf0] %v2287
      %2291 = vst [vmem:[%s278 + $0x24] sm:$0xff] %v2288
      %2292 = vst [vmem:[%s278 + $0x2c] sm:$0xf] %v2289
      %v2293 = vld [vmem:[#allocation2 + $0x36] sm:$0xff]
      %v2294 = vld [vmem:[#allocation2 + $0x3e] sm:$0xff]
      %v2295 = vld [vmem:[#allocation2 + $0x46] sm:$0xff]
      %v2296 = vld [vmem:[#allocation2 + $0x4e] sm:$0xff]
      %v2297 = vld [vmem:[#allocation2 + $0x56] sm:$0xff]
      %v2298 = vld [vmem:[#allocation2 + $0x5e] sm:$0xff]
      %v2299 = vld [vmem:[#allocation2 + $0x66] sm:$0x3f]
      %v2300 = vld [vmem:[%s3] sm:$0xff]
      %v2301 = vld [vmem:[%s3 + $0x8] sm:$0xff]
      %v2302 = vld [vmem:[%s3 + $0x10] sm:$0xff]
      %v2303 = vld [vmem:[%s3 + $0x18] sm:$0xff]
      %v2304 = vld [vmem:[%s3 + $0x20] sm:$0xff]
      %v2305 = vld [vmem:[%s3 + $0x28] sm:$0xff]
      %v2306 = vld [vmem:[%s3 + $0x30] sm:$0xff]
      %v2307 = vld [vmem:[%s3 + $0x38] sm:$0xff]
      %v2308 = vld [vmem:[%s3 + $0x40] sm:$0xff]
      %v2309 = vld [vmem:[%s3 + $0x48] sm:$0xff]
      %v2310 = vld [vmem:[%s3 + $0x50] sm:$0xff]
      %v2311 = vld [vmem:[%s3 + $0x58] sm:$0xff]
      %v2312 = vld [vmem:[%s3 + $0x60] sm:$0xff]
      %v2313 = vld [vmem:[%s3 + $0x68] sm:$0xff]
      %v2314 = vld [vmem:[%s3 + $0x70] sm:$0xff]
      %v2315 = vld [vmem:[%s3 + $0x78] sm:$0xff]
      %v2316 = vld [vmem:[#allocation2 + $0x37] sm:$0xff]
      %v2317 = vld [vmem:[#allocation2 + $0x3f] sm:$0xff]
      %v2318 = vld [vmem:[#allocation2 + $0x47] sm:$0xff]
      %v2319 = vld [vmem:[#allocation2 + $0x4f] sm:$0xff]
      %v2320 = vld [vmem:[#allocation2 + $0x57] sm:$0xff]
      %v2321 = vld [vmem:[#allocation2 + $0x5f] sm:$0xff]
      %v2322 = vld [vmem:[#allocation2 + $0x67] sm:$0x3f]
      %v2323 = vld [vmem:[%s960] sm:$0xff]
      %v2324 = vld [vmem:[%s960 + $0x8] sm:$0xff]
      %v2325 = vld [vmem:[%s960 + $0x10] sm:$0xff]
      %v2326 = vld [vmem:[%s960 + $0x18] sm:$0xff]
      %v2327 = vld [vmem:[%s960 + $0x20] sm:$0xff]
      %v2328 = vld [vmem:[%s960 + $0x28] sm:$0xff]
      %v2329 = vld [vmem:[%s960 + $0x30] sm:$0xff]
      %v2330 = vld [vmem:[%s960 + $0x38] sm:$0xff]
      %v2331 = vld [vmem:[%s960 + $0x40] sm:$0xff]
      %v2332 = vld [vmem:[%s960 + $0x48] sm:$0xff]
      %v2333 = vld [vmem:[%s960 + $0x50] sm:$0xff]
      %v2334 = vld [vmem:[%s960 + $0x58] sm:$0xff]
      %v2335 = vld [vmem:[%s960 + $0x60] sm:$0xff]
      %v2336 = vld [vmem:[%s960 + $0x68] sm:$0xff]
      %v2337 = vld [vmem:[%s960 + $0x70] sm:$0xff]
      %v2338 = vld [vmem:[%s960 + $0x78] sm:$0xff]
      %2339 = vmatprep.subr.mxu0 0.0
      %2340 = vmatpush1.msra.mxu0 %v2323
      %2341 = vmatprep.subr.mxu0 0.0
      %2342 = vmatpush1.msra.mxu0 %v2324
      %2343 = vmatprep.subr.mxu0 0.0
      %2344 = vmatpush1.msra.mxu0 %v2325
      %2345 = vmatprep.subr.mxu0 0.0
      %2346 = vmatpush1.msra.mxu0 %v2326
      %2347 = vmatprep.subr.mxu0 0.0
      %2348 = vmatpush1.msra.mxu0 %v2327
      %2349 = vmatprep.subr.mxu0 0.0
      %2350 = vmatpush1.msra.mxu0 %v2328
      %2351 = vmatprep.subr.mxu0 0.0
      %2352 = vmatpush1.msra.mxu0 %v2329
      %2353 = vmatprep.subr.mxu0 0.0
      %2354 = vmatpush1.msra.mxu0 %v2330
      %2355 = vmatprep.subr.mxu0 0.0
      %2356 = vmatpush1.msra.mxu0 %v2331
      %2357 = vmatprep.subr.mxu0 0.0
      %2358 = vmatpush1.msra.mxu0 %v2332
      %2359 = vmatprep.subr.mxu0 0.0
      %2360 = vmatpush1.msra.mxu0 %v2333
      %2361 = vmatprep.subr.mxu0 0.0
      %2362 = vmatpush1.msra.mxu0 %v2334
      %2363 = vmatprep.subr.mxu0 0.0
      %2364 = vmatpush1.msra.mxu0 %v2335
      %2365 = vmatprep.subr.mxu0 0.0
      %2366 = vmatpush1.msra.mxu0 %v2336
      %2367 = vmatprep.subr.mxu0 0.0
      %2368 = vmatpush1.msra.mxu0 %v2337
      %2369 = vmatprep.subr.mxu0 0.0
      %2370 = vmatpush1.msra.mxu0 %v2338
      %2371 = vmatprep.subr.mxu0 0.0
      %2372 = vmatpush1.msra.mxu0 0.0
      %2373 = vmatprep.subr.mxu0 0.0
      %2374 = vmatpush1.msra.mxu0 0.0
      %2375 = vmatprep.subr.mxu0 0.0
      %2376 = vmatpush1.msra.mxu0 0.0
      %2377 = vmatprep.subr.mxu0 0.0
      %2378 = vmatpush1.msra.mxu0 0.0
      %2379 = vmatprep.subr.mxu0 0.0
      %2380 = vmatpush1.msra.mxu0 0.0
      %2381 = vmatprep.subr.mxu0 0.0
      %2382 = vmatpush1.msra.mxu0 0.0
      %2383 = vmatprep.subr.mxu0 0.0
      %2384 = vmatpush1.msra.mxu0 0.0
      %2385 = vmatprep.subr.mxu0 0.0
      %2386 = vmatpush1.msra.mxu0 0.0
      %2387 = vmatprep.subr.mxu0 0.0
      %2388 = vmatpush1.msra.mxu0 0.0
      %2389 = vmatprep.subr.mxu0 0.0
      %2390 = vmatpush1.msra.mxu0 0.0
      %2391 = vmatprep.subr.mxu0 0.0
      %2392 = vmatpush1.msra.mxu0 0.0
      %2393 = vmatprep.subr.mxu0 0.0
      %2394 = vmatpush1.msra.mxu0 0.0
      %2395 = vmatprep.subr.mxu0 0.0
      %2396 = vmatpush1.msra.mxu0 0.0
      %2397 = vmatprep.subr.mxu0 0.0
      %2398 = vmatpush1.msra.mxu0 0.0
      %2399 = vmatprep.subr.mxu0 0.0
      %2400 = vmatpush1.msra.mxu0 0.0
      %2401 = vmatprep.subr.mxu0 0.0
      %2402 = vmatpush1.msra.mxu0 0.0
      %2403 = vmatprep.mubr.f32.mxu0 0.0
      %2404 = vmatmul.mubr.f32.gmra.mrb[0].mxu0 %v2316
      %v2405 = vpop.f32.mrb[0].mxu0
      %v2406 = vadd.f32 0.0, %v2405
      %v2407 = vpop.f32.mrb[0].mxu0
      %2408 = vmatprep.mubr.f32.mxu0 0.0
      %2409 = vmatmul.mubr.f32.gmra.mrb[0].mxu0 %v2317
      %v2410 = vpop.f32.mrb[0].mxu0
      %v2411 = vadd.f32 0.0, %v2410
      %v2412 = vpop.f32.mrb[0].mxu0
      %2413 = vmatprep.mubr.f32.mxu0 0.0
      %2414 = vmatmul.mubr.f32.gmra.mrb[0].mxu0 %v2318
      %v2415 = vpop.f32.mrb[0].mxu0
      %v2416 = vadd.f32 0.0, %v2415
      %v2417 = vpop.f32.mrb[0].mxu0
      %2418 = vmatprep.mubr.f32.mxu0 0.0
      %2419 = vmatmul.mubr.f32.gmra.mrb[0].mxu0 %v2319
      %v2420 = vpop.f32.mrb[0].mxu0
      %v2421 = vadd.f32 0.0, %v2420
      %v2422 = vpop.f32.mrb[0].mxu0
      %2423 = vmatprep.mubr.f32.mxu0 0.0
      %2424 = vmatmul.mubr.f32.gmra.mrb[0].mxu0 %v2320
      %v2425 = vpop.f32.mrb[0].mxu0
      %v2426 = vadd.f32 0.0, %v2425
      %v2427 = vpop.f32.mrb[0].mxu0
      %2428 = vmatprep.mubr.f32.mxu0 0.0
      %2429 = vmatmul.mubr.f32.gmra.mrb[0].mxu0 %v2321
      %v2430 = vpop.f32.mrb[0].mxu0
      %v2431 = vadd.f32 0.0, %v2430
      %v2432 = vpop.f32.mrb[0].mxu0
      %2433 = vmatprep.mubr.f32.mxu0 0.0
      %2434 = vmatmul.mubr.f32.gmra.mrb[0].mxu0 %v2322
      %v2435 = vpop.f32.mrb[0].mxu0
      %v2436 = vadd.f32 0.0, %v2435
      %v2437 = vpop.f32.mrb[0].mxu0
      %2438 = vdwg.mxu0
      %2439 = vmatprep.subr.mxu0 0.0
      %2440 = vmatpush1.msra.mxu0 %v2300
      %2441 = vmatprep.subr.mxu0 0.0
      %2442 = vmatpush1.msra.mxu0 %v2301
      %2443 = vmatprep.subr.mxu0 0.0
      %2444 = vmatpush1.msra.mxu0 %v2302
      %2445 = vmatprep.subr.mxu0 0.0
      %2446 = vmatpush1.msra.mxu0 %v2303
      %2447 = vmatprep.subr.mxu0 0.0
      %2448 = vmatpush1.msra.mxu0 %v2304
      %2449 = vmatprep.subr.mxu0 0.0
      %2450 = vmatpush1.msra.mxu0 %v2305
      %2451 = vmatprep.subr.mxu0 0.0
      %2452 = vmatpush1.msra.mxu0 %v2306
      %2453 = vmatprep.subr.mxu0 0.0
      %2454 = vmatpush1.msra.mxu0 %v2307
      %2455 = vmatprep.subr.mxu0 0.0
      %2456 = vmatpush1.msra.mxu0 %v2308
      %2457 = vmatprep.subr.mxu0 0.0
      %2458 = vmatpush1.msra.mxu0 %v2309
      %2459 = vmatprep.subr.mxu0 0.0
      %2460 = vmatpush1.msra.mxu0 %v2310
      %2461 = vmatprep.subr.mxu0 0.0
      %2462 = vmatpush1.msra.mxu0 %v2311
      %2463 = vmatprep.subr.mxu0 0.0
      %2464 = vmatpush1.msra.mxu0 %v2312
      %2465 = vmatprep.subr.mxu0 0.0
      %2466 = vmatpush1.msra.mxu0 %v2313
      %2467 = vmatprep.subr.mxu0 0.0
      %2468 = vmatpush1.msra.mxu0 %v2314
      %2469 = vmatprep.subr.mxu0 0.0
      %2470 = vmatpush1.msra.mxu0 %v2315
      %2471 = vmatprep.subr.mxu0 0.0
      %2472 = vmatpush1.msra.mxu0 0.0
      %2473 = vmatprep.subr.mxu0 0.0
      %2474 = vmatpush1.msra.mxu0 0.0
      %2475 = vmatprep.subr.mxu0 0.0
      %2476 = vmatpush1.msra.mxu0 0.0
      %2477 = vmatprep.subr.mxu0 0.0
      %2478 = vmatpush1.msra.mxu0 0.0
      %2479 = vmatprep.subr.mxu0 0.0
      %2480 = vmatpush1.msra.mxu0 0.0
      %2481 = vmatprep.subr.mxu0 0.0
      %2482 = vmatpush1.msra.mxu0 0.0
      %2483 = vmatprep.subr.mxu0 0.0
      %2484 = vmatpush1.msra.mxu0 0.0
      %2485 = vmatprep.subr.mxu0 0.0
      %2486 = vmatpush1.msra.mxu0 0.0
      %2487 = vmatprep.subr.mxu0 0.0
      %2488 = vmatpush1.msra.mxu0 0.0
      %2489 = vmatprep.subr.mxu0 0.0
      %2490 = vmatpush1.msra.mxu0 0.0
      %2491 = vmatprep.subr.mxu0 0.0
      %2492 = vmatpush1.msra.mxu0 0.0
      %2493 = vmatprep.subr.mxu0 0.0
      %2494 = vmatpush1.msra.mxu0 0.0
      %2495 = vmatprep.subr.mxu0 0.0
      %2496 = vmatpush1.msra.mxu0 0.0
      %2497 = vmatprep.subr.mxu0 0.0
      %2498 = vmatpush1.msra.mxu0 0.0
      %2499 = vmatprep.subr.mxu0 0.0
      %2500 = vmatpush1.msra.mxu0 0.0
      %2501 = vmatprep.subr.mxu0 0.0
      %2502 = vmatpush1.msra.mxu0 0.0
      %2503 = vmatprep.mubr.f32.mxu0 0.0
      %2504 = vmatmul.mubr.f32.gmra.mrb[0].mxu0 %v2293
      %v2505 = vpop.f32.mrb[0].mxu0
      %v2506 = vadd.f32 %v2406, %v2505
      %v2507 = vpop.f32.mrb[0].mxu0
      %2508 = vmatprep.mubr.f32.mxu0 0.0
      %2509 = vmatmul.mubr.f32.gmra.mrb[0].mxu0 %v2294
      %v2510 = vpop.f32.mrb[0].mxu0
      %v2511 = vadd.f32 %v2411, %v2510
      %v2512 = vpop.f32.mrb[0].mxu0
      %2513 = vmatprep.mubr.f32.mxu0 0.0
      %2514 = vmatmul.mubr.f32.gmra.mrb[0].mxu0 %v2295
      %v2515 = vpop.f32.mrb[0].mxu0
      %v2516 = vadd.f32 %v2416, %v2515
      %v2517 = vpop.f32.mrb[0].mxu0
      %2518 = vmatprep.mubr.f32.mxu0 0.0
      %2519 = vmatmul.mubr.f32.gmra.mrb[0].mxu0 %v2296
      %v2520 = vpop.f32.mrb[0].mxu0
      %v2521 = vadd.f32 %v2421, %v2520
      %v2522 = vpop.f32.mrb[0].mxu0
      %2523 = vmatprep.mubr.f32.mxu0 0.0
      %2524 = vmatmul.mubr.f32.gmra.mrb[0].mxu0 %v2297
      %v2525 = vpop.f32.mrb[0].mxu0
      %v2526 = vadd.f32 %v2426, %v2525
      %v2527 = vpop.f32.mrb[0].mxu0
      %2528 = vmatprep.mubr.f32.mxu0 0.0
      %2529 = vmatmul.mubr.f32.gmra.mrb[0].mxu0 %v2298
      %v2530 = vpop.f32.mrb[0].mxu0
      %v2531 = vadd.f32 %v2431, %v2530
      %v2532 = vpop.f32.mrb[0].mxu0
      %2533 = vmatprep.mubr.f32.mxu0 0.0
      %2534 = vmatmul.mubr.f32.gmra.mrb[0].mxu0 %v2299
      %v2535 = vpop.f32.mrb[0].mxu0
      %v2536 = vadd.f32 %v2436, %v2535
      %v2537 = vpop.f32.mrb[0].mxu0
      %2538 = vdwg.mxu0
      %v2539 = vld [vmem:[#allocation2 + $0x38] sm:$0xff]
      %v2540 = vld [vmem:[#allocation2 + $0x40] sm:$0xff]
      %v2541 = vld [vmem:[#allocation2 + $0x48] sm:$0xff]
      %v2542 = vld [vmem:[#allocation2 + $0x50] sm:$0xff]
      %v2543 = vld [vmem:[#allocation2 + $0x58] sm:$0xff]
      %v2544 = vld [vmem:[#allocation2 + $0x60] sm:$0xff]
      %v2545 = vld [vmem:[#allocation2 + $0x68] sm:$0x3f]
      %v2546 = vld [vmem:[%s1184] sm:$0xff]
      %v2547 = vld [vmem:[%s1184 + $0x8] sm:$0xff]
      %v2548 = vld [vmem:[%s1184 + $0x10] sm:$0xff]
      %v2549 = vld [vmem:[%s1184 + $0x18] sm:$0xff]
      %v2550 = vld [vmem:[%s1184 + $0x20] sm:$0xff]
      %v2551 = vld [vmem:[%s1184 + $0x28] sm:$0xff]
      %v2552 = vld [vmem:[%s1184 + $0x30] sm:$0xff]
      %v2553 = vld [vmem:[%s1184 + $0x38] sm:$0xff]
      %v2554 = vld [vmem:[%s1184 + $0x40] sm:$0xff]
      %v2555 = vld [vmem:[%s1184 + $0x48] sm:$0xff]
      %v2556 = vld [vmem:[%s1184 + $0x50] sm:$0xff]
      %v2557 = vld [vmem:[%s1184 + $0x58] sm:$0xff]
      %v2558 = vld [vmem:[%s1184 + $0x60] sm:$0xff]
      %v2559 = vld [vmem:[%s1184 + $0x68] sm:$0xff]
      %v2560 = vld [vmem:[%s1184 + $0x70] sm:$0xff]
      %v2561 = vld [vmem:[%s1184 + $0x78] sm:$0xff]
      %2562 = vmatprep.subr.mxu0 0.0
      %2563 = vmatpush1.msra.mxu0 %v2546
      %2564 = vmatprep.subr.mxu0 0.0
      %2565 = vmatpush1.msra.mxu0 %v2547
      %2566 = vmatprep.subr.mxu0 0.0
      %2567 = vmatpush1.msra.mxu0 %v2548
      %2568 = vmatprep.subr.mxu0 0.0
      %2569 = vmatpush1.msra.mxu0 %v2549
      %2570 = vmatprep.subr.mxu0 0.0
      %2571 = vmatpush1.msra.mxu0 %v2550
      %2572 = vmatprep.subr.mxu0 0.0
      %2573 = vmatpush1.msra.mxu0 %v2551
      %2574 = vmatprep.subr.mxu0 0.0
      %2575 = vmatpush1.msra.mxu0 %v2552
      %2576 = vmatprep.subr.mxu0 0.0
      %2577 = vmatpush1.msra.mxu0 %v2553
      %2578 = vmatprep.subr.mxu0 0.0
      %2579 = vmatpush1.msra.mxu0 %v2554
      %2580 = vmatprep.subr.mxu0 0.0
      %2581 = vmatpush1.msra.mxu0 %v2555
      %2582 = vmatprep.subr.mxu0 0.0
      %2583 = vmatpush1.msra.mxu0 %v2556
      %2584 = vmatprep.subr.mxu0 0.0
      %2585 = vmatpush1.msra.mxu0 %v2557
      %2586 = vmatprep.subr.mxu0 0.0
      %2587 = vmatpush1.msra.mxu0 %v2558
      %2588 = vmatprep.subr.mxu0 0.0
      %2589 = vmatpush1.msra.mxu0 %v2559
      %2590 = vmatprep.subr.mxu0 0.0
      %2591 = vmatpush1.msra.mxu0 %v2560
      %2592 = vmatprep.subr.mxu0 0.0
      %2593 = vmatpush1.msra.mxu0 %v2561
      %2594 = vmatprep.subr.mxu0 0.0
      %2595 = vmatpush1.msra.mxu0 0.0
      %2596 = vmatprep.subr.mxu0 0.0
      %2597 = vmatpush1.msra.mxu0 0.0
      %2598 = vmatprep.subr.mxu0 0.0
      %2599 = vmatpush1.msra.mxu0 0.0
      %2600 = vmatprep.subr.mxu0 0.0
      %2601 = vmatpush1.msra.mxu0 0.0
      %2602 = vmatprep.subr.mxu0 0.0
      %2603 = vmatpush1.msra.mxu0 0.0
      %2604 = vmatprep.subr.mxu0 0.0
      %2605 = vmatpush1.msra.mxu0 0.0
      %2606 = vmatprep.subr.mxu0 0.0
      %2607 = vmatpush1.msra.mxu0 0.0
      %2608 = vmatprep.subr.mxu0 0.0
      %2609 = vmatpush1.msra.mxu0 0.0
      %2610 = vmatprep.subr.mxu0 0.0
      %2611 = vmatpush1.msra.mxu0 0.0
      %2612 = vmatprep.subr.mxu0 0.0
      %2613 = vmatpush1.msra.mxu0 0.0
      %2614 = vmatprep.subr.mxu0 0.0
      %2615 = vmatpush1.msra.mxu0 0.0
      %2616 = vmatprep.subr.mxu0 0.0
      %2617 = vmatpush1.msra.mxu0 0.0
      %2618 = vmatprep.subr.mxu0 0.0
      %2619 = vmatpush1.msra.mxu0 0.0
      %2620 = vmatprep.subr.mxu0 0.0
      %2621 = vmatpush1.msra.mxu0 0.0
      %2622 = vmatprep.subr.mxu0 0.0
      %2623 = vmatpush1.msra.mxu0 0.0
      %2624 = vmatprep.subr.mxu0 0.0
      %2625 = vmatpush1.msra.mxu0 0.0
      %2626 = vmatprep.mubr.f32.mxu0 0.0
      %2627 = vmatmul.mubr.f32.gmra.mrb[0].mxu0 %v2539
      %v2628 = vpop.f32.mrb[0].mxu0
      %v2629 = vadd.f32 0.0, %v2628
      %v2630 = vpop.f32.mrb[0].mxu0
      %2631 = vmatprep.mubr.f32.mxu0 0.0
      %2632 = vmatmul.mubr.f32.gmra.mrb[0].mxu0 %v2540
      %v2633 = vpop.f32.mrb[0].mxu0
      %v2634 = vadd.f32 0.0, %v2633
      %v2635 = vpop.f32.mrb[0].mxu0
      %2636 = vmatprep.mubr.f32.mxu0 0.0
      %2637 = vmatmul.mubr.f32.gmra.mrb[0].mxu0 %v2541
      %v2638 = vpop.f32.mrb[0].mxu0
      %v2639 = vadd.f32 0.0, %v2638
      %v2640 = vpop.f32.mrb[0].mxu0
      %2641 = vmatprep.mubr.f32.mxu0 0.0
      %2642 = vmatmul.mubr.f32.gmra.mrb[0].mxu0 %v2542
      %v2643 = vpop.f32.mrb[0].mxu0
      %v2644 = vadd.f32 0.0, %v2643
      %v2645 = vpop.f32.mrb[0].mxu0
      %2646 = vmatprep.mubr.f32.mxu0 0.0
      %2647 = vmatmul.mubr.f32.gmra.mrb[0].mxu0 %v2543
      %v2648 = vpop.f32.mrb[0].mxu0
      %v2649 = vadd.f32 0.0, %v2648
      %v2650 = vpop.f32.mrb[0].mxu0
      %2651 = vmatprep.mubr.f32.mxu0 0.0
      %2652 = vmatmul.mubr.f32.gmra.mrb[0].mxu0 %v2544
      %v2653 = vpop.f32.mrb[0].mxu0
      %v2654 = vadd.f32 0.0, %v2653
      %v2655 = vpop.f32.mrb[0].mxu0
      %2656 = vmatprep.mubr.f32.mxu0 0.0
      %2657 = vmatmul.mubr.f32.gmra.mrb[0].mxu0 %v2545
      %v2658 = vpop.f32.mrb[0].mxu0
      %v2659 = vadd.f32 0.0, %v2658
      %v2660 = vpop.f32.mrb[0].mxu0
      %2661 = vdwg.mxu0
      %v2662 = vadd.f32 %v2506, %v2629
      %v2663 = vadd.f32 %v2511, %v2634
      %v2664 = vadd.f32 %v2516, %v2639
      %v2665 = vadd.f32 %v2521, %v2644
      %v2666 = vadd.f32 %v2526, %v2649
      %v2667 = vadd.f32 %v2531, %v2654
      %v2668 = vadd.f32 %v2536, %v2659
      %v2669 = vld [vmem:[#allocation2 + $0x48] sm:$0xff]
      %v2670 = vld [vmem:[#allocation2 + $0x50] sm:$0xff]
      %v2671 = vld [vmem:[#allocation2 + $0x58] sm:$0xff]
      %v2672 = vld [vmem:[#allocation2 + $0x60] sm:$0xff]
      %v2673 = vld [vmem:[#allocation2 + $0x68] sm:$0xff]
      %v2674 = vld [vmem:[#allocation2 + $0x70] sm:$0xff]
      %v2675 = vld [vmem:[#allocation2 + $0x78] sm:$0x3f]
      %v2676 = vld [vmem:[%s1315] sm:$0xff]
      %v2677 = vld [vmem:[%s1315 + $0x8] sm:$0xff]
      %v2678 = vld [vmem:[%s1315 + $0x10] sm:$0xff]
      %v2679 = vld [vmem:[%s1315 + $0x18] sm:$0xff]
      %v2680 = vld [vmem:[%s1315 + $0x20] sm:$0xff]
      %v2681 = vld [vmem:[%s1315 + $0x28] sm:$0xff]
      %v2682 = vld [vmem:[%s1315 + $0x30] sm:$0xff]
      %v2683 = vld [vmem:[%s1315 + $0x38] sm:$0xff]
      %v2684 = vld [vmem:[%s1315 + $0x40] sm:$0xff]
      %v2685 = vld [vmem:[%s1315 + $0x48] sm:$0xff]
      %v2686 = vld [vmem:[%s1315 + $0x50] sm:$0xff]
      %v2687 = vld [vmem:[%s1315 + $0x58] sm:$0xff]
      %v2688 = vld [vmem:[%s1315 + $0x60] sm:$0xff]
      %v2689 = vld [vmem:[%s1315 + $0x68] sm:$0xff]
      %v2690 = vld [vmem:[%s1315 + $0x70] sm:$0xff]
      %v2691 = vld [vmem:[%s1315 + $0x78] sm:$0xff]
      %2692 = vmatprep.subr.mxu0 0.0
      %2693 = vmatpush1.msra.mxu0 %v2676
      %2694 = vmatprep.subr.mxu0 0.0
      %2695 = vmatpush1.msra.mxu0 %v2677
      %2696 = vmatprep.subr.mxu0 0.0
      %2697 = vmatpush1.msra.mxu0 %v2678
      %2698 = vmatprep.subr.mxu0 0.0
      %2699 = vmatpush1.msra.mxu0 %v2679
      %2700 = vmatprep.subr.mxu0 0.0
      %2701 = vmatpush1.msra.mxu0 %v2680
      %2702 = vmatprep.subr.mxu0 0.0
      %2703 = vmatpush1.msra.mxu0 %v2681
      %2704 = vmatprep.subr.mxu0 0.0
      %2705 = vmatpush1.msra.mxu0 %v2682
      %2706 = vmatprep.subr.mxu0 0.0
      %2707 = vmatpush1.msra.mxu0 %v2683
      %2708 = vmatprep.subr.mxu0 0.0
      %2709 = vmatpush1.msra.mxu0 %v2684
      %2710 = vmatprep.subr.mxu0 0.0
      %2711 = vmatpush1.msra.mxu0 %v2685
      %2712 = vmatprep.subr.mxu0 0.0
      %2713 = vmatpush1.msra.mxu0 %v2686
      %2714 = vmatprep.subr.mxu0 0.0
      %2715 = vmatpush1.msra.mxu0 %v2687
      %2716 = vmatprep.subr.mxu0 0.0
      %2717 = vmatpush1.msra.mxu0 %v2688
      %2718 = vmatprep.subr.mxu0 0.0
      %2719 = vmatpush1.msra.mxu0 %v2689
      %2720 = vmatprep.subr.mxu0 0.0
      %2721 = vmatpush1.msra.mxu0 %v2690
      %2722 = vmatprep.subr.mxu0 0.0
      %2723 = vmatpush1.msra.mxu0 %v2691
      %2724 = vmatprep.subr.mxu0 0.0
      %2725 = vmatpush1.msra.mxu0 0.0
      %2726 = vmatprep.subr.mxu0 0.0
      %2727 = vmatpush1.msra.mxu0 0.0
      %2728 = vmatprep.subr.mxu0 0.0
      %2729 = vmatpush1.msra.mxu0 0.0
      %2730 = vmatprep.subr.mxu0 0.0
      %2731 = vmatpush1.msra.mxu0 0.0
      %2732 = vmatprep.subr.mxu0 0.0
      %2733 = vmatpush1.msra.mxu0 0.0
      %2734 = vmatprep.subr.mxu0 0.0
      %2735 = vmatpush1.msra.mxu0 0.0
      %2736 = vmatprep.subr.mxu0 0.0
      %2737 = vmatpush1.msra.mxu0 0.0
      %2738 = vmatprep.subr.mxu0 0.0
      %2739 = vmatpush1.msra.mxu0 0.0
      %2740 = vmatprep.subr.mxu0 0.0
      %2741 = vmatpush1.msra.mxu0 0.0
      %2742 = vmatprep.subr.mxu0 0.0
      %2743 = vmatpush1.msra.mxu0 0.0
      %2744 = vmatprep.subr.mxu0 0.0
      %2745 = vmatpush1.msra.mxu0 0.0
      %2746 = vmatprep.subr.mxu0 0.0
      %2747 = vmatpush1.msra.mxu0 0.0
      %2748 = vmatprep.subr.mxu0 0.0
      %2749 = vmatpush1.msra.mxu0 0.0
      %2750 = vmatprep.subr.mxu0 0.0
      %2751 = vmatpush1.msra.mxu0 0.0
      %2752 = vmatprep.subr.mxu0 0.0
      %2753 = vmatpush1.msra.mxu0 0.0
      %2754 = vmatprep.subr.mxu0 0.0
      %2755 = vmatpush1.msra.mxu0 0.0
      %2756 = vmatprep.mubr.f32.mxu0 0.0
      %2757 = vmatmul.mubr.f32.gmra.mrb[0].mxu0 %v2669
      %v2758 = vpop.f32.mrb[0].mxu0
      %v2759 = vadd.f32 0.0, %v2758
      %v2760 = vpop.f32.mrb[0].mxu0
      %2761 = vmatprep.mubr.f32.mxu0 0.0
      %2762 = vmatmul.mubr.f32.gmra.mrb[0].mxu0 %v2670
      %v2763 = vpop.f32.mrb[0].mxu0
      %v2764 = vadd.f32 0.0, %v2763
      %v2765 = vpop.f32.mrb[0].mxu0
      %2766 = vmatprep.mubr.f32.mxu0 0.0
      %2767 = vmatmul.mubr.f32.gmra.mrb[0].mxu0 %v2671
      %v2768 = vpop.f32.mrb[0].mxu0
      %v2769 = vadd.f32 0.0, %v2768
      %v2770 = vpop.f32.mrb[0].mxu0
      %2771 = vmatprep.mubr.f32.mxu0 0.0
      %2772 = vmatmul.mubr.f32.gmra.mrb[0].mxu0 %v2672
      %v2773 = vpop.f32.mrb[0].mxu0
      %v2774 = vadd.f32 0.0, %v2773
      %v2775 = vpop.f32.mrb[0].mxu0
      %2776 = vmatprep.mubr.f32.mxu0 0.0
      %2777 = vmatmul.mubr.f32.gmra.mrb[0].mxu0 %v2673
      %v2778 = vpop.f32.mrb[0].mxu0
      %v2779 = vadd.f32 0.0, %v2778
      %v2780 = vpop.f32.mrb[0].mxu0
      %2781 = vmatprep.mubr.f32.mxu0 0.0
      %2782 = vmatmul.mubr.f32.gmra.mrb[0].mxu0 %v2674
      %v2783 = vpop.f32.mrb[0].mxu0
      %v2784 = vadd.f32 0.0, %v2783
      %v2785 = vpop.f32.mrb[0].mxu0
      %2786 = vmatprep.mubr.f32.mxu0 0.0
      %2787 = vmatmul.mubr.f32.gmra.mrb[0].mxu0 %v2675
      %v2788 = vpop.f32.mrb[0].mxu0
      %v2789 = vadd.f32 0.0, %v2788
      %v2790 = vpop.f32.mrb[0].mxu0
      %2791 = vdwg.mxu0
      %v2792 = vadd.f32 %v2662, %v2759
      %v2793 = vadd.f32 %v2663, %v2764
      %v2794 = vadd.f32 %v2664, %v2769
      %v2795 = vadd.f32 %v2665, %v2774
      %v2796 = vadd.f32 %v2666, %v2779
      %v2797 = vadd.f32 %v2667, %v2784
      %v2798 = vadd.f32 %v2668, %v2789
      %v2799 = vld [vmem:[#allocation2 + $0x49] sm:$0xff]
      %v2800 = vld [vmem:[#allocation2 + $0x51] sm:$0xff]
      %v2801 = vld [vmem:[#allocation2 + $0x59] sm:$0xff]
      %v2802 = vld [vmem:[#allocation2 + $0x61] sm:$0xff]
      %v2803 = vld [vmem:[#allocation2 + $0x69] sm:$0xff]
      %v2804 = vld [vmem:[#allocation2 + $0x71] sm:$0xff]
      %v2805 = vld [vmem:[#allocation2 + $0x79] sm:$0x3f]
      %v2806 = vld [vmem:[%s1446] sm:$0xff]
      %v2807 = vld [vmem:[%s1446 + $0x8] sm:$0xff]
      %v2808 = vld [vmem:[%s1446 + $0x10] sm:$0xff]
      %v2809 = vld [vmem:[%s1446 + $0x18] sm:$0xff]
      %v2810 = vld [vmem:[%s1446 + $0x20] sm:$0xff]
      %v2811 = vld [vmem:[%s1446 + $0x28] sm:$0xff]
      %v2812 = vld [vmem:[%s1446 + $0x30] sm:$0xff]
      %v2813 = vld [vmem:[%s1446 + $0x38] sm:$0xff]
      %v2814 = vld [vmem:[%s1446 + $0x40] sm:$0xff]
      %v2815 = vld [vmem:[%s1446 + $0x48] sm:$0xff]
      %v2816 = vld [vmem:[%s1446 + $0x50] sm:$0xff]
      %v2817 = vld [vmem:[%s1446 + $0x58] sm:$0xff]
      %v2818 = vld [vmem:[%s1446 + $0x60] sm:$0xff]
      %v2819 = vld [vmem:[%s1446 + $0x68] sm:$0xff]
      %v2820 = vld [vmem:[%s1446 + $0x70] sm:$0xff]
      %v2821 = vld [vmem:[%s1446 + $0x78] sm:$0xff]
      %2822 = vmatprep.subr.mxu0 0.0
      %2823 = vmatpush1.msra.mxu0 %v2806
      %2824 = vmatprep.subr.mxu0 0.0
      %2825 = vmatpush1.msra.mxu0 %v2807
      %2826 = vmatprep.subr.mxu0 0.0
      %2827 = vmatpush1.msra.mxu0 %v2808
      %2828 = vmatprep.subr.mxu0 0.0
      %2829 = vmatpush1.msra.mxu0 %v2809
      %2830 = vmatprep.subr.mxu0 0.0
      %2831 = vmatpush1.msra.mxu0 %v2810
      %2832 = vmatprep.subr.mxu0 0.0
      %2833 = vmatpush1.msra.mxu0 %v2811
      %2834 = vmatprep.subr.mxu0 0.0
      %2835 = vmatpush1.msra.mxu0 %v2812
      %2836 = vmatprep.subr.mxu0 0.0
      %2837 = vmatpush1.msra.mxu0 %v2813
      %2838 = vmatprep.subr.mxu0 0.0
      %2839 = vmatpush1.msra.mxu0 %v2814
      %2840 = vmatprep.subr.mxu0 0.0
      %2841 = vmatpush1.msra.mxu0 %v2815
      %2842 = vmatprep.subr.mxu0 0.0
      %2843 = vmatpush1.msra.mxu0 %v2816
      %2844 = vmatprep.subr.mxu0 0.0
      %2845 = vmatpush1.msra.mxu0 %v2817
      %2846 = vmatprep.subr.mxu0 0.0
      %2847 = vmatpush1.msra.mxu0 %v2818
      %2848 = vmatprep.subr.mxu0 0.0
      %2849 = vmatpush1.msra.mxu0 %v2819
      %2850 = vmatprep.subr.mxu0 0.0
      %2851 = vmatpush1.msra.mxu0 %v2820
      %2852 = vmatprep.subr.mxu0 0.0
      %2853 = vmatpush1.msra.mxu0 %v2821
      %2854 = vmatprep.subr.mxu0 0.0
      %2855 = vmatpush1.msra.mxu0 0.0
      %2856 = vmatprep.subr.mxu0 0.0
      %2857 = vmatpush1.msra.mxu0 0.0
      %2858 = vmatprep.subr.mxu0 0.0
      %2859 = vmatpush1.msra.mxu0 0.0
      %2860 = vmatprep.subr.mxu0 0.0
      %2861 = vmatpush1.msra.mxu0 0.0
      %2862 = vmatprep.subr.mxu0 0.0
      %2863 = vmatpush1.msra.mxu0 0.0
      %2864 = vmatprep.subr.mxu0 0.0
      %2865 = vmatpush1.msra.mxu0 0.0
      %2866 = vmatprep.subr.mxu0 0.0
      %2867 = vmatpush1.msra.mxu0 0.0
      %2868 = vmatprep.subr.mxu0 0.0
      %2869 = vmatpush1.msra.mxu0 0.0
      %2870 = vmatprep.subr.mxu0 0.0
      %2871 = vmatpush1.msra.mxu0 0.0
      %2872 = vmatprep.subr.mxu0 0.0
      %2873 = vmatpush1.msra.mxu0 0.0
      %2874 = vmatprep.subr.mxu0 0.0
      %2875 = vmatpush1.msra.mxu0 0.0
      %2876 = vmatprep.subr.mxu0 0.0
      %2877 = vmatpush1.msra.mxu0 0.0
      %2878 = vmatprep.subr.mxu0 0.0
      %2879 = vmatpush1.msra.mxu0 0.0
      %2880 = vmatprep.subr.mxu0 0.0
      %2881 = vmatpush1.msra.mxu0 0.0
      %2882 = vmatprep.subr.mxu0 0.0
      %2883 = vmatpush1.msra.mxu0 0.0
      %2884 = vmatprep.subr.mxu0 0.0
      %2885 = vmatpush1.msra.mxu0 0.0
      %2886 = vmatprep.mubr.f32.mxu0 0.0
      %2887 = vmatmul.mubr.f32.gmra.mrb[0].mxu0 %v2799
      %v2888 = vpop.f32.mrb[0].mxu0
      %v2889 = vadd.f32 0.0, %v2888
      %v2890 = vpop.f32.mrb[0].mxu0
      %2891 = vmatprep.mubr.f32.mxu0 0.0
      %2892 = vmatmul.mubr.f32.gmra.mrb[0].mxu0 %v2800
      %v2893 = vpop.f32.mrb[0].mxu0
      %v2894 = vadd.f32 0.0, %v2893
      %v2895 = vpop.f32.mrb[0].mxu0
      %2896 = vmatprep.mubr.f32.mxu0 0.0
      %2897 = vmatmul.mubr.f32.gmra.mrb[0].mxu0 %v2801
      %v2898 = vpop.f32.mrb[0].mxu0
      %v2899 = vadd.f32 0.0, %v2898
      %v2900 = vpop.f32.mrb[0].mxu0
      %2901 = vmatprep.mubr.f32.mxu0 0.0
      %2902 = vmatmul.mubr.f32.gmra.mrb[0].mxu0 %v2802
      %v2903 = vpop.f32.mrb[0].mxu0
      %v2904 = vadd.f32 0.0, %v2903
      %v2905 = vpop.f32.mrb[0].mxu0
      %2906 = vmatprep.mubr.f32.mxu0 0.0
      %2907 = vmatmul.mubr.f32.gmra.mrb[0].mxu0 %v2803
      %v2908 = vpop.f32.mrb[0].mxu0
      %v2909 = vadd.f32 0.0, %v2908
      %v2910 = vpop.f32.mrb[0].mxu0
      %2911 = vmatprep.mubr.f32.mxu0 0.0
      %2912 = vmatmul.mubr.f32.gmra.mrb[0].mxu0 %v2804
      %v2913 = vpop.f32.mrb[0].mxu0
      %v2914 = vadd.f32 0.0, %v2913
      %v2915 = vpop.f32.mrb[0].mxu0
      %2916 = vmatprep.mubr.f32.mxu0 0.0
      %2917 = vmatmul.mubr.f32.gmra.mrb[0].mxu0 %v2805
      %v2918 = vpop.f32.mrb[0].mxu0
      %v2919 = vadd.f32 0.0, %v2918
      %v2920 = vpop.f32.mrb[0].mxu0
      %2921 = vdwg.mxu0
      %v2922 = vadd.f32 %v2792, %v2889
      %v2923 = vadd.f32 %v2793, %v2894
      %v2924 = vadd.f32 %v2794, %v2899
      %v2925 = vadd.f32 %v2795, %v2904
      %v2926 = vadd.f32 %v2796, %v2909
      %v2927 = vadd.f32 %v2797, %v2914
      %v2928 = vadd.f32 %v2798, %v2919
      %v2929 = vld [vmem:[#allocation2 + $0x4a] sm:$0xff]
      %v2930 = vld [vmem:[#allocation2 + $0x52] sm:$0xff]
      %v2931 = vld [vmem:[#allocation2 + $0x5a] sm:$0xff]
      %v2932 = vld [vmem:[#allocation2 + $0x62] sm:$0xff]
      %v2933 = vld [vmem:[#allocation2 + $0x6a] sm:$0xff]
      %v2934 = vld [vmem:[#allocation2 + $0x72] sm:$0xff]
      %v2935 = vld [vmem:[#allocation2 + $0x7a] sm:$0x3f]
      %v2936 = vld [vmem:[%s1577] sm:$0xff]
      %v2937 = vld [vmem:[%s1577 + $0x8] sm:$0xff]
      %v2938 = vld [vmem:[%s1577 + $0x10] sm:$0xff]
      %v2939 = vld [vmem:[%s1577 + $0x18] sm:$0xff]
      %v2940 = vld [vmem:[%s1577 + $0x20] sm:$0xff]
      %v2941 = vld [vmem:[%s1577 + $0x28] sm:$0xff]
      %v2942 = vld [vmem:[%s1577 + $0x30] sm:$0xff]
      %v2943 = vld [vmem:[%s1577 + $0x38] sm:$0xff]
      %v2944 = vld [vmem:[%s1577 + $0x40] sm:$0xff]
      %v2945 = vld [vmem:[%s1577 + $0x48] sm:$0xff]
      %v2946 = vld [vmem:[%s1577 + $0x50] sm:$0xff]
      %v2947 = vld [vmem:[%s1577 + $0x58] sm:$0xff]
      %v2948 = vld [vmem:[%s1577 + $0x60] sm:$0xff]
      %v2949 = vld [vmem:[%s1577 + $0x68] sm:$0xff]
      %v2950 = vld [vmem:[%s1577 + $0x70] sm:$0xff]
      %v2951 = vld [vmem:[%s1577 + $0x78] sm:$0xff]
      %2952 = vmatprep.subr.mxu0 0.0
      %2953 = vmatpush1.msra.mxu0 %v2936
      %2954 = vmatprep.subr.mxu0 0.0
      %2955 = vmatpush1.msra.mxu0 %v2937
      %2956 = vmatprep.subr.mxu0 0.0
      %2957 = vmatpush1.msra.mxu0 %v2938
      %2958 = vmatprep.subr.mxu0 0.0
      %2959 = vmatpush1.msra.mxu0 %v2939
      %2960 = vmatprep.subr.mxu0 0.0
      %2961 = vmatpush1.msra.mxu0 %v2940
      %2962 = vmatprep.subr.mxu0 0.0
      %2963 = vmatpush1.msra.mxu0 %v2941
      %2964 = vmatprep.subr.mxu0 0.0
      %2965 = vmatpush1.msra.mxu0 %v2942
      %2966 = vmatprep.subr.mxu0 0.0
      %2967 = vmatpush1.msra.mxu0 %v2943
      %2968 = vmatprep.subr.mxu0 0.0
      %2969 = vmatpush1.msra.mxu0 %v2944
      %2970 = vmatprep.subr.mxu0 0.0
      %2971 = vmatpush1.msra.mxu0 %v2945
      %2972 = vmatprep.subr.mxu0 0.0
      %2973 = vmatpush1.msra.mxu0 %v2946
      %2974 = vmatprep.subr.mxu0 0.0
      %2975 = vmatpush1.msra.mxu0 %v2947
      %2976 = vmatprep.subr.mxu0 0.0
      %2977 = vmatpush1.msra.mxu0 %v2948
      %2978 = vmatprep.subr.mxu0 0.0
      %2979 = vmatpush1.msra.mxu0 %v2949
      %2980 = vmatprep.subr.mxu0 0.0
      %2981 = vmatpush1.msra.mxu0 %v2950
      %2982 = vmatprep.subr.mxu0 0.0
      %2983 = vmatpush1.msra.mxu0 %v2951
      %2984 = vmatprep.subr.mxu0 0.0
      %2985 = vmatpush1.msra.mxu0 0.0
      %2986 = vmatprep.subr.mxu0 0.0
      %2987 = vmatpush1.msra.mxu0 0.0
      %2988 = vmatprep.subr.mxu0 0.0
      %2989 = vmatpush1.msra.mxu0 0.0
      %2990 = vmatprep.subr.mxu0 0.0
      %2991 = vmatpush1.msra.mxu0 0.0
      %2992 = vmatprep.subr.mxu0 0.0
      %2993 = vmatpush1.msra.mxu0 0.0
      %2994 = vmatprep.subr.mxu0 0.0
      %2995 = vmatpush1.msra.mxu0 0.0
      %2996 = vmatprep.subr.mxu0 0.0
      %2997 = vmatpush1.msra.mxu0 0.0
      %2998 = vmatprep.subr.mxu0 0.0
      %2999 = vmatpush1.msra.mxu0 0.0
      %3000 = vmatprep.subr.mxu0 0.0
      %3001 = vmatpush1.msra.mxu0 0.0
      %3002 = vmatprep.subr.mxu0 0.0
      %3003 = vmatpush1.msra.mxu0 0.0
      %3004 = vmatprep.subr.mxu0 0.0
      %3005 = vmatpush1.msra.mxu0 0.0
      %3006 = vmatprep.subr.mxu0 0.0
      %3007 = vmatpush1.msra.mxu0 0.0
      %3008 = vmatprep.subr.mxu0 0.0
      %3009 = vmatpush1.msra.mxu0 0.0
      %3010 = vmatprep.subr.mxu0 0.0
      %3011 = vmatpush1.msra.mxu0 0.0
      %3012 = vmatprep.subr.mxu0 0.0
      %3013 = vmatpush1.msra.mxu0 0.0
      %3014 = vmatprep.subr.mxu0 0.0
      %3015 = vmatpush1.msra.mxu0 0.0
      %3016 = vmatprep.mubr.f32.mxu0 0.0
      %3017 = vmatmul.mubr.f32.gmra.mrb[0].mxu0 %v2929
      %v3018 = vpop.f32.mrb[0].mxu0
      %v3019 = vadd.f32 0.0, %v3018
      %v3020 = vpop.f32.mrb[0].mxu0
      %3021 = vmatprep.mubr.f32.mxu0 0.0
      %3022 = vmatmul.mubr.f32.gmra.mrb[0].mxu0 %v2930
      %v3023 = vpop.f32.mrb[0].mxu0
      %v3024 = vadd.f32 0.0, %v3023
      %v3025 = vpop.f32.mrb[0].mxu0
      %3026 = vmatprep.mubr.f32.mxu0 0.0
      %3027 = vmatmul.mubr.f32.gmra.mrb[0].mxu0 %v2931
      %v3028 = vpop.f32.mrb[0].mxu0
      %v3029 = vadd.f32 0.0, %v3028
      %v3030 = vpop.f32.mrb[0].mxu0
      %3031 = vmatprep.mubr.f32.mxu0 0.0
      %3032 = vmatmul.mubr.f32.gmra.mrb[0].mxu0 %v2932
      %v3033 = vpop.f32.mrb[0].mxu0
      %v3034 = vadd.f32 0.0, %v3033
      %v3035 = vpop.f32.mrb[0].mxu0
      %3036 = vmatprep.mubr.f32.mxu0 0.0
      %3037 = vmatmul.mubr.f32.gmra.mrb[0].mxu0 %v2933
      %v3038 = vpop.f32.mrb[0].mxu0
      %v3039 = vadd.f32 0.0, %v3038
      %v3040 = vpop.f32.mrb[0].mxu0
      %3041 = vmatprep.mubr.f32.mxu0 0.0
      %3042 = vmatmul.mubr.f32.gmra.mrb[0].mxu0 %v2934
      %v3043 = vpop.f32.mrb[0].mxu0
      %v3044 = vadd.f32 0.0, %v3043
      %v3045 = vpop.f32.mrb[0].mxu0
      %3046 = vmatprep.mubr.f32.mxu0 0.0
      %3047 = vmatmul.mubr.f32.gmra.mrb[0].mxu0 %v2935
      %v3048 = vpop.f32.mrb[0].mxu0
      %v3049 = vadd.f32 0.0, %v3048
      %v3050 = vpop.f32.mrb[0].mxu0
      %3051 = vdwg.mxu0
      %v3052 = vadd.f32 %v2922, %v3019
      %v3053 = vadd.f32 %v2923, %v3024
      %v3054 = vadd.f32 %v2924, %v3029
      %v3055 = vadd.f32 %v2925, %v3034
      %v3056 = vadd.f32 %v2926, %v3039
      %v3057 = vadd.f32 %v2927, %v3044
      %v3058 = vadd.f32 %v2928, %v3049
      %v3059 = vld [vmem:[#allocation2 + $0x5a] sm:$0xff]
      %v3060 = vld [vmem:[#allocation2 + $0x62] sm:$0xff]
      %v3061 = vld [vmem:[#allocation2 + $0x6a] sm:$0xff]
      %v3062 = vld [vmem:[#allocation2 + $0x72] sm:$0xff]
      %v3063 = vld [vmem:[#allocation2 + $0x7a] sm:$0xff]
      %v3064 = vld [vmem:[#allocation2 + $0x82] sm:$0xff]
      %v3065 = vld [vmem:[#allocation2 + $0x8a] sm:$0x3f]
      %v3066 = vld [vmem:[%s1708] sm:$0xff]
      %v3067 = vld [vmem:[%s1708 + $0x8] sm:$0xff]
      %v3068 = vld [vmem:[%s1708 + $0x10] sm:$0xff]
      %v3069 = vld [vmem:[%s1708 + $0x18] sm:$0xff]
      %v3070 = vld [vmem:[%s1708 + $0x20] sm:$0xff]
      %v3071 = vld [vmem:[%s1708 + $0x28] sm:$0xff]
      %v3072 = vld [vmem:[%s1708 + $0x30] sm:$0xff]
      %v3073 = vld [vmem:[%s1708 + $0x38] sm:$0xff]
      %v3074 = vld [vmem:[%s1708 + $0x40] sm:$0xff]
      %v3075 = vld [vmem:[%s1708 + $0x48] sm:$0xff]
      %v3076 = vld [vmem:[%s1708 + $0x50] sm:$0xff]
      %v3077 = vld [vmem:[%s1708 + $0x58] sm:$0xff]
      %v3078 = vld [vmem:[%s1708 + $0x60] sm:$0xff]
      %v3079 = vld [vmem:[%s1708 + $0x68] sm:$0xff]
      %v3080 = vld [vmem:[%s1708 + $0x70] sm:$0xff]
      %v3081 = vld [vmem:[%s1708 + $0x78] sm:$0xff]
      %3082 = vmatprep.subr.mxu0 0.0
      %3083 = vmatpush1.msra.mxu0 %v3066
      %3084 = vmatprep.subr.mxu0 0.0
      %3085 = vmatpush1.msra.mxu0 %v3067
      %3086 = vmatprep.subr.mxu0 0.0
      %3087 = vmatpush1.msra.mxu0 %v3068
      %3088 = vmatprep.subr.mxu0 0.0
      %3089 = vmatpush1.msra.mxu0 %v3069
      %3090 = vmatprep.subr.mxu0 0.0
      %3091 = vmatpush1.msra.mxu0 %v3070
      %3092 = vmatprep.subr.mxu0 0.0
      %3093 = vmatpush1.msra.mxu0 %v3071
      %3094 = vmatprep.subr.mxu0 0.0
      %3095 = vmatpush1.msra.mxu0 %v3072
      %3096 = vmatprep.subr.mxu0 0.0
      %3097 = vmatpush1.msra.mxu0 %v3073
      %3098 = vmatprep.subr.mxu0 0.0
      %3099 = vmatpush1.msra.mxu0 %v3074
      %3100 = vmatprep.subr.mxu0 0.0
      %3101 = vmatpush1.msra.mxu0 %v3075
      %3102 = vmatprep.subr.mxu0 0.0
      %3103 = vmatpush1.msra.mxu0 %v3076
      %3104 = vmatprep.subr.mxu0 0.0
      %3105 = vmatpush1.msra.mxu0 %v3077
      %3106 = vmatprep.subr.mxu0 0.0
      %3107 = vmatpush1.msra.mxu0 %v3078
      %3108 = vmatprep.subr.mxu0 0.0
      %3109 = vmatpush1.msra.mxu0 %v3079
      %3110 = vmatprep.subr.mxu0 0.0
      %3111 = vmatpush1.msra.mxu0 %v3080
      %3112 = vmatprep.subr.mxu0 0.0
      %3113 = vmatpush1.msra.mxu0 %v3081
      %3114 = vmatprep.subr.mxu0 0.0
      %3115 = vmatpush1.msra.mxu0 0.0
      %3116 = vmatprep.subr.mxu0 0.0
      %3117 = vmatpush1.msra.mxu0 0.0
      %3118 = vmatprep.subr.mxu0 0.0
      %3119 = vmatpush1.msra.mxu0 0.0
      %3120 = vmatprep.subr.mxu0 0.0
      %3121 = vmatpush1.msra.mxu0 0.0
      %3122 = vmatprep.subr.mxu0 0.0
      %3123 = vmatpush1.msra.mxu0 0.0
      %3124 = vmatprep.subr.mxu0 0.0
      %3125 = vmatpush1.msra.mxu0 0.0
      %3126 = vmatprep.subr.mxu0 0.0
      %3127 = vmatpush1.msra.mxu0 0.0
      %3128 = vmatprep.subr.mxu0 0.0
      %3129 = vmatpush1.msra.mxu0 0.0
      %3130 = vmatprep.subr.mxu0 0.0
      %3131 = vmatpush1.msra.mxu0 0.0
      %3132 = vmatprep.subr.mxu0 0.0
      %3133 = vmatpush1.msra.mxu0 0.0
      %3134 = vmatprep.subr.mxu0 0.0
      %3135 = vmatpush1.msra.mxu0 0.0
      %3136 = vmatprep.subr.mxu0 0.0
      %3137 = vmatpush1.msra.mxu0 0.0
      %3138 = vmatprep.subr.mxu0 0.0
      %3139 = vmatpush1.msra.mxu0 0.0
      %3140 = vmatprep.subr.mxu0 0.0
      %3141 = vmatpush1.msra.mxu0 0.0
      %3142 = vmatprep.subr.mxu0 0.0
      %3143 = vmatpush1.msra.mxu0 0.0
      %3144 = vmatprep.subr.mxu0 0.0
      %3145 = vmatpush1.msra.mxu0 0.0
      %3146 = vmatprep.mubr.f32.mxu0 0.0
      %3147 = vmatmul.mubr.f32.gmra.mrb[0].mxu0 %v3059
      %v3148 = vpop.f32.mrb[0].mxu0
      %v3149 = vadd.f32 0.0, %v3148
      %v3150 = vpop.f32.mrb[0].mxu0
      %3151 = vmatprep.mubr.f32.mxu0 0.0
      %3152 = vmatmul.mubr.f32.gmra.mrb[0].mxu0 %v3060
      %v3153 = vpop.f32.mrb[0].mxu0
      %v3154 = vadd.f32 0.0, %v3153
      %v3155 = vpop.f32.mrb[0].mxu0
      %3156 = vmatprep.mubr.f32.mxu0 0.0
      %3157 = vmatmul.mubr.f32.gmra.mrb[0].mxu0 %v3061
      %v3158 = vpop.f32.mrb[0].mxu0
      %v3159 = vadd.f32 0.0, %v3158
      %v3160 = vpop.f32.mrb[0].mxu0
      %3161 = vmatprep.mubr.f32.mxu0 0.0
      %3162 = vmatmul.mubr.f32.gmra.mrb[0].mxu0 %v3062
      %v3163 = vpop.f32.mrb[0].mxu0
      %v3164 = vadd.f32 0.0, %v3163
      %v3165 = vpop.f32.mrb[0].mxu0
      %3166 = vmatprep.mubr.f32.mxu0 0.0
      %3167 = vmatmul.mubr.f32.gmra.mrb[0].mxu0 %v3063
      %v3168 = vpop.f32.mrb[0].mxu0
      %v3169 = vadd.f32 0.0, %v3168
      %v3170 = vpop.f32.mrb[0].mxu0
      %3171 = vmatprep.mubr.f32.mxu0 0.0
      %3172 = vmatmul.mubr.f32.gmra.mrb[0].mxu0 %v3064
      %v3173 = vpop.f32.mrb[0].mxu0
      %v3174 = vadd.f32 0.0, %v3173
      %v3175 = vpop.f32.mrb[0].mxu0
      %3176 = vmatprep.mubr.f32.mxu0 0.0
      %3177 = vmatmul.mubr.f32.gmra.mrb[0].mxu0 %v3065
      %v3178 = vpop.f32.mrb[0].mxu0
      %v3179 = vadd.f32 0.0, %v3178
      %v3180 = vpop.f32.mrb[0].mxu0
      %3181 = vdwg.mxu0
      %v3182 = vadd.f32 %v3052, %v3149
      %v3183 = vadd.f32 %v3053, %v3154
      %v3184 = vadd.f32 %v3054, %v3159
      %v3185 = vadd.f32 %v3055, %v3164
      %v3186 = vadd.f32 %v3056, %v3169
      %v3187 = vadd.f32 %v3057, %v3174
      %v3188 = vadd.f32 %v3058, %v3179
      %v3189 = vld [vmem:[#allocation2 + $0x5b] sm:$0xff]
      %v3190 = vld [vmem:[#allocation2 + $0x63] sm:$0xff]
      %v3191 = vld [vmem:[#allocation2 + $0x6b] sm:$0xff]
      %v3192 = vld [vmem:[#allocation2 + $0x73] sm:$0xff]
      %v3193 = vld [vmem:[#allocation2 + $0x7b] sm:$0xff]
      %v3194 = vld [vmem:[#allocation2 + $0x83] sm:$0xff]
      %v3195 = vld [vmem:[#allocation2 + $0x8b] sm:$0x3f]
      %v3196 = vld [vmem:[%s1839] sm:$0xff]
      %v3197 = vld [vmem:[%s1839 + $0x8] sm:$0xff]
      %v3198 = vld [vmem:[%s1839 + $0x10] sm:$0xff]
      %v3199 = vld [vmem:[%s1839 + $0x18] sm:$0xff]
      %v3200 = vld [vmem:[%s1839 + $0x20] sm:$0xff]
      %v3201 = vld [vmem:[%s1839 + $0x28] sm:$0xff]
      %v3202 = vld [vmem:[%s1839 + $0x30] sm:$0xff]
      %v3203 = vld [vmem:[%s1839 + $0x38] sm:$0xff]
      %v3204 = vld [vmem:[%s1839 + $0x40] sm:$0xff]
      %v3205 = vld [vmem:[%s1839 + $0x48] sm:$0xff]
      %v3206 = vld [vmem:[%s1839 + $0x50] sm:$0xff]
      %v3207 = vld [vmem:[%s1839 + $0x58] sm:$0xff]
      %v3208 = vld [vmem:[%s1839 + $0x60] sm:$0xff]
      %v3209 = vld [vmem:[%s1839 + $0x68] sm:$0xff]
      %v3210 = vld [vmem:[%s1839 + $0x70] sm:$0xff]
      %v3211 = vld [vmem:[%s1839 + $0x78] sm:$0xff]
      %3212 = vmatprep.subr.mxu0 0.0
      %3213 = vmatpush1.msra.mxu0 %v3196
      %3214 = vmatprep.subr.mxu0 0.0
      %3215 = vmatpush1.msra.mxu0 %v3197
      %3216 = vmatprep.subr.mxu0 0.0
      %3217 = vmatpush1.msra.mxu0 %v3198
      %3218 = vmatprep.subr.mxu0 0.0
      %3219 = vmatpush1.msra.mxu0 %v3199
      %3220 = vmatprep.subr.mxu0 0.0
      %3221 = vmatpush1.msra.mxu0 %v3200
      %3222 = vmatprep.subr.mxu0 0.0
      %3223 = vmatpush1.msra.mxu0 %v3201
      %3224 = vmatprep.subr.mxu0 0.0
      %3225 = vmatpush1.msra.mxu0 %v3202
      %3226 = vmatprep.subr.mxu0 0.0
      %3227 = vmatpush1.msra.mxu0 %v3203
      %3228 = vmatprep.subr.mxu0 0.0
      %3229 = vmatpush1.msra.mxu0 %v3204
      %3230 = vmatprep.subr.mxu0 0.0
      %3231 = vmatpush1.msra.mxu0 %v3205
      %3232 = vmatprep.subr.mxu0 0.0
      %3233 = vmatpush1.msra.mxu0 %v3206
      %3234 = vmatprep.subr.mxu0 0.0
      %3235 = vmatpush1.msra.mxu0 %v3207
      %3236 = vmatprep.subr.mxu0 0.0
      %3237 = vmatpush1.msra.mxu0 %v3208
      %3238 = vmatprep.subr.mxu0 0.0
      %3239 = vmatpush1.msra.mxu0 %v3209
      %3240 = vmatprep.subr.mxu0 0.0
      %3241 = vmatpush1.msra.mxu0 %v3210
      %3242 = vmatprep.subr.mxu0 0.0
      %3243 = vmatpush1.msra.mxu0 %v3211
      %3244 = vmatprep.subr.mxu0 0.0
      %3245 = vmatpush1.msra.mxu0 0.0
      %3246 = vmatprep.subr.mxu0 0.0
      %3247 = vmatpush1.msra.mxu0 0.0
      %3248 = vmatprep.subr.mxu0 0.0
      %3249 = vmatpush1.msra.mxu0 0.0
      %3250 = vmatprep.subr.mxu0 0.0
      %3251 = vmatpush1.msra.mxu0 0.0
      %3252 = vmatprep.subr.mxu0 0.0
      %3253 = vmatpush1.msra.mxu0 0.0
      %3254 = vmatprep.subr.mxu0 0.0
      %3255 = vmatpush1.msra.mxu0 0.0
      %3256 = vmatprep.subr.mxu0 0.0
      %3257 = vmatpush1.msra.mxu0 0.0
      %3258 = vmatprep.subr.mxu0 0.0
      %3259 = vmatpush1.msra.mxu0 0.0
      %3260 = vmatprep.subr.mxu0 0.0
      %3261 = vmatpush1.msra.mxu0 0.0
      %3262 = vmatprep.subr.mxu0 0.0
      %3263 = vmatpush1.msra.mxu0 0.0
      %3264 = vmatprep.subr.mxu0 0.0
      %3265 = vmatpush1.msra.mxu0 0.0
      %3266 = vmatprep.subr.mxu0 0.0
      %3267 = vmatpush1.msra.mxu0 0.0
      %3268 = vmatprep.subr.mxu0 0.0
      %3269 = vmatpush1.msra.mxu0 0.0
      %3270 = vmatprep.subr.mxu0 0.0
      %3271 = vmatpush1.msra.mxu0 0.0
      %3272 = vmatprep.subr.mxu0 0.0
      %3273 = vmatpush1.msra.mxu0 0.0
      %3274 = vmatprep.subr.mxu0 0.0
      %3275 = vmatpush1.msra.mxu0 0.0
      %3276 = vmatprep.mubr.f32.mxu0 0.0
      %3277 = vmatmul.mubr.f32.gmra.mrb[0].mxu0 %v3189
      %v3278 = vpop.f32.mrb[0].mxu0
      %v3279 = vadd.f32 0.0, %v3278
      %v3280 = vpop.f32.mrb[0].mxu0
      %3281 = vmatprep.mubr.f32.mxu0 0.0
      %3282 = vmatmul.mubr.f32.gmra.mrb[0].mxu0 %v3190
      %v3283 = vpop.f32.mrb[0].mxu0
      %v3284 = vadd.f32 0.0, %v3283
      %v3285 = vpop.f32.mrb[0].mxu0
      %3286 = vmatprep.mubr.f32.mxu0 0.0
      %3287 = vmatmul.mubr.f32.gmra.mrb[0].mxu0 %v3191
      %v3288 = vpop.f32.mrb[0].mxu0
      %v3289 = vadd.f32 0.0, %v3288
      %v3290 = vpop.f32.mrb[0].mxu0
      %3291 = vmatprep.mubr.f32.mxu0 0.0
      %3292 = vmatmul.mubr.f32.gmra.mrb[0].mxu0 %v3192
      %v3293 = vpop.f32.mrb[0].mxu0
      %v3294 = vadd.f32 0.0, %v3293
      %v3295 = vpop.f32.mrb[0].mxu0
      %3296 = vmatprep.mubr.f32.mxu0 0.0
      %3297 = vmatmul.mubr.f32.gmra.mrb[0].mxu0 %v3193
      %v3298 = vpop.f32.mrb[0].mxu0
      %v3299 = vadd.f32 0.0, %v3298
      %v3300 = vpop.f32.mrb[0].mxu0
      %3301 = vmatprep.mubr.f32.mxu0 0.0
      %3302 = vmatmul.mubr.f32.gmra.mrb[0].mxu0 %v3194
      %v3303 = vpop.f32.mrb[0].mxu0
      %v3304 = vadd.f32 0.0, %v3303
      %v3305 = vpop.f32.mrb[0].mxu0
      %3306 = vmatprep.mubr.f32.mxu0 0.0
      %3307 = vmatmul.mubr.f32.gmra.mrb[0].mxu0 %v3195
      %v3308 = vpop.f32.mrb[0].mxu0
      %v3309 = vadd.f32 0.0, %v3308
      %v3310 = vpop.f32.mrb[0].mxu0
      %3311 = vdwg.mxu0
      %v3312 = vadd.f32 %v3182, %v3279
      %v3313 = vadd.f32 %v3183, %v3284
      %v3314 = vadd.f32 %v3184, %v3289
      %v3315 = vadd.f32 %v3185, %v3294
      %v3316 = vadd.f32 %v3186, %v3299
      %v3317 = vadd.f32 %v3187, %v3304
      %v3318 = vadd.f32 %v3188, %v3309
      %v3319 = vld [vmem:[#allocation2 + $0x5c] sm:$0xff]
      %v3320 = vld [vmem:[#allocation2 + $0x64] sm:$0xff]
      %v3321 = vld [vmem:[#allocation2 + $0x6c] sm:$0xff]
      %v3322 = vld [vmem:[#allocation2 + $0x74] sm:$0xff]
      %v3323 = vld [vmem:[#allocation2 + $0x7c] sm:$0xff]
      %v3324 = vld [vmem:[#allocation2 + $0x84] sm:$0xff]
      %v3325 = vld [vmem:[#allocation2 + $0x8c] sm:$0x3f]
      %v3326 = vld [vmem:[%s1970] sm:$0xff]
      %v3327 = vld [vmem:[%s1970 + $0x8] sm:$0xff]
      %v3328 = vld [vmem:[%s1970 + $0x10] sm:$0xff]
      %v3329 = vld [vmem:[%s1970 + $0x18] sm:$0xff]
      %v3330 = vld [vmem:[%s1970 + $0x20] sm:$0xff]
      %v3331 = vld [vmem:[%s1970 + $0x28] sm:$0xff]
      %v3332 = vld [vmem:[%s1970 + $0x30] sm:$0xff]
      %v3333 = vld [vmem:[%s1970 + $0x38] sm:$0xff]
      %v3334 = vld [vmem:[%s1970 + $0x40] sm:$0xff]
      %v3335 = vld [vmem:[%s1970 + $0x48] sm:$0xff]
      %v3336 = vld [vmem:[%s1970 + $0x50] sm:$0xff]
      %v3337 = vld [vmem:[%s1970 + $0x58] sm:$0xff]
      %v3338 = vld [vmem:[%s1970 + $0x60] sm:$0xff]
      %v3339 = vld [vmem:[%s1970 + $0x68] sm:$0xff]
      %v3340 = vld [vmem:[%s1970 + $0x70] sm:$0xff]
      %v3341 = vld [vmem:[%s1970 + $0x78] sm:$0xff]
      %3342 = vmatprep.subr.mxu0 0.0
      %3343 = vmatpush1.msra.mxu0 %v3326
      %3344 = vmatprep.subr.mxu0 0.0
      %3345 = vmatpush1.msra.mxu0 %v3327
      %3346 = vmatprep.subr.mxu0 0.0
      %3347 = vmatpush1.msra.mxu0 %v3328
      %3348 = vmatprep.subr.mxu0 0.0
      %3349 = vmatpush1.msra.mxu0 %v3329
      %3350 = vmatprep.subr.mxu0 0.0
      %3351 = vmatpush1.msra.mxu0 %v3330
      %3352 = vmatprep.subr.mxu0 0.0
      %3353 = vmatpush1.msra.mxu0 %v3331
      %3354 = vmatprep.subr.mxu0 0.0
      %3355 = vmatpush1.msra.mxu0 %v3332
      %3356 = vmatprep.subr.mxu0 0.0
      %3357 = vmatpush1.msra.mxu0 %v3333
      %3358 = vmatprep.subr.mxu0 0.0
      %3359 = vmatpush1.msra.mxu0 %v3334
      %3360 = vmatprep.subr.mxu0 0.0
      %3361 = vmatpush1.msra.mxu0 %v3335
      %3362 = vmatprep.subr.mxu0 0.0
      %3363 = vmatpush1.msra.mxu0 %v3336
      %3364 = vmatprep.subr.mxu0 0.0
      %3365 = vmatpush1.msra.mxu0 %v3337
      %3366 = vmatprep.subr.mxu0 0.0
      %3367 = vmatpush1.msra.mxu0 %v3338
      %3368 = vmatprep.subr.mxu0 0.0
      %3369 = vmatpush1.msra.mxu0 %v3339
      %3370 = vmatprep.subr.mxu0 0.0
      %3371 = vmatpush1.msra.mxu0 %v3340
      %3372 = vmatprep.subr.mxu0 0.0
      %3373 = vmatpush1.msra.mxu0 %v3341
      %3374 = vmatprep.subr.mxu0 0.0
      %3375 = vmatpush1.msra.mxu0 0.0
      %3376 = vmatprep.subr.mxu0 0.0
      %3377 = vmatpush1.msra.mxu0 0.0
      %3378 = vmatprep.subr.mxu0 0.0
      %3379 = vmatpush1.msra.mxu0 0.0
      %3380 = vmatprep.subr.mxu0 0.0
      %3381 = vmatpush1.msra.mxu0 0.0
      %3382 = vmatprep.subr.mxu0 0.0
      %3383 = vmatpush1.msra.mxu0 0.0
      %3384 = vmatprep.subr.mxu0 0.0
      %3385 = vmatpush1.msra.mxu0 0.0
      %3386 = vmatprep.subr.mxu0 0.0
      %3387 = vmatpush1.msra.mxu0 0.0
      %3388 = vmatprep.subr.mxu0 0.0
      %3389 = vmatpush1.msra.mxu0 0.0
      %3390 = vmatprep.subr.mxu0 0.0
      %3391 = vmatpush1.msra.mxu0 0.0
      %3392 = vmatprep.subr.mxu0 0.0
      %3393 = vmatpush1.msra.mxu0 0.0
      %3394 = vmatprep.subr.mxu0 0.0
      %3395 = vmatpush1.msra.mxu0 0.0
      %3396 = vmatprep.subr.mxu0 0.0
      %3397 = vmatpush1.msra.mxu0 0.0
      %3398 = vmatprep.subr.mxu0 0.0
      %3399 = vmatpush1.msra.mxu0 0.0
      %3400 = vmatprep.subr.mxu0 0.0
      %3401 = vmatpush1.msra.mxu0 0.0
      %3402 = vmatprep.subr.mxu0 0.0
      %3403 = vmatpush1.msra.mxu0 0.0
      %3404 = vmatprep.subr.mxu0 0.0
      %3405 = vmatpush1.msra.mxu0 0.0
      %3406 = vmatprep.mubr.f32.mxu0 0.0
      %3407 = vmatmul.mubr.f32.gmra.mrb[0].mxu0 %v3319
      %v3408 = vpop.f32.mrb[0].mxu0
      %v3409 = vadd.f32 0.0, %v3408
      %v3410 = vpop.f32.mrb[0].mxu0
      %3411 = vmatprep.mubr.f32.mxu0 0.0
      %3412 = vmatmul.mubr.f32.gmra.mrb[0].mxu0 %v3320
      %v3413 = vpop.f32.mrb[0].mxu0
      %v3414 = vadd.f32 0.0, %v3413
      %v3415 = vpop.f32.mrb[0].mxu0
      %3416 = vmatprep.mubr.f32.mxu0 0.0
      %3417 = vmatmul.mubr.f32.gmra.mrb[0].mxu0 %v3321
      %v3418 = vpop.f32.mrb[0].mxu0
      %v3419 = vadd.f32 0.0, %v3418
      %v3420 = vpop.f32.mrb[0].mxu0
      %3421 = vmatprep.mubr.f32.mxu0 0.0
      %3422 = vmatmul.mubr.f32.gmra.mrb[0].mxu0 %v3322
      %v3423 = vpop.f32.mrb[0].mxu0
      %v3424 = vadd.f32 0.0, %v3423
      %v3425 = vpop.f32.mrb[0].mxu0
      %3426 = vmatprep.mubr.f32.mxu0 0.0
      %3427 = vmatmul.mubr.f32.gmra.mrb[0].mxu0 %v3323
      %v3428 = vpop.f32.mrb[0].mxu0
      %v3429 = vadd.f32 0.0, %v3428
      %v3430 = vpop.f32.mrb[0].mxu0
      %3431 = vmatprep.mubr.f32.mxu0 0.0
      %3432 = vmatmul.mubr.f32.gmra.mrb[0].mxu0 %v3324
      %v3433 = vpop.f32.mrb[0].mxu0
      %v3434 = vadd.f32 0.0, %v3433
      %v3435 = vpop.f32.mrb[0].mxu0
      %3436 = vmatprep.mubr.f32.mxu0 0.0
      %3437 = vmatmul.mubr.f32.gmra.mrb[0].mxu0 %v3325
      %v3438 = vpop.f32.mrb[0].mxu0
      %v3439 = vadd.f32 0.0, %v3438
      %v3440 = vpop.f32.mrb[0].mxu0
      %3441 = vdwg.mxu0
      %v3442 = vadd.f32 %v3312, %v3409
      %v3443 = vadd.f32 %v3313, %v3414
      %v3444 = vadd.f32 %v3314, %v3419
      %v3445 = vadd.f32 %v3315, %v3424
      %v3446 = vadd.f32 %v3316, %v3429
      %v3447 = vadd.f32 %v3317, %v3434
      %v3448 = vadd.f32 %v3318, %v3439
      %v3449 = vld [vmem:[%s4] sm:$0x1]
      %v3451 = vlaneseq
      %v3452 = vshrl.u32 %v3451, 7
      %v3453 = vsub.s32 0, %v3452
      %v3454 = vrot.slane %v3449, %v3453
      %v3456 = vadd.f32 %v3442, %v3454
      %v3457 = vadd.f32 %v3443, %v3454
      %v3458 = vadd.f32 %v3444, %v3454
      %v3459 = vadd.f32 %v3445, %v3454
      %v3460 = vadd.f32 %v3446, %v3454
      %v3461 = vadd.f32 %v3447, %v3454
      %v3462 = vadd.f32 %v3448, %v3454
      %v3463 = vmax.f32 %v3456, 0.0
      %v3464 = vmax.f32 %v3457, 0.0
      %v3465 = vmax.f32 %v3458, 0.0
      %v3466 = vmax.f32 %v3459, 0.0
      %v3467 = vmax.f32 %v3460, 0.0
      %v3468 = vmax.f32 %v3461, 0.0
      %v3469 = vmax.f32 %v3462, 0.0
      %v3470 = vld [vmem:[%s5] sm:$0xff]
      %v3471 = vld [vmem:[%s5 + $0x8] sm:$0xff]
      %v3472 = vld [vmem:[%s5 + $0x10] sm:$0xff]
      %v3473 = vld [vmem:[%s5 + $0x18] sm:$0xff]
      %v3474 = vld [vmem:[%s5 + $0x20] sm:$0xff]
      %v3475 = vld [vmem:[%s5 + $0x28] sm:$0xff]
      %v3476 = vld [vmem:[%s5 + $0x30] sm:$0xff]
      %v3477 = vld [vmem:[%s5 + $0x38] sm:$0xff]
      %v3478 = vld [vmem:[%s5 + $0x40] sm:$0xff]
      %v3479 = vld [vmem:[%s5 + $0x48] sm:$0xff]
      %v3480 = vld [vmem:[%s5 + $0x50] sm:$0xff]
      %v3481 = vld [vmem:[%s5 + $0x58] sm:$0xff]
      %v3482 = vld [vmem:[%s5 + $0x60] sm:$0xff]
      %v3483 = vld [vmem:[%s5 + $0x68] sm:$0xff]
      %v3484 = vld [vmem:[%s5 + $0x70] sm:$0xff]
      %v3485 = vld [vmem:[%s5 + $0x78] sm:$0xff]
      %v3486 = vld [vmem:[%s6] sm:$0x1]
      %v3488 = vlaneseq
      %v3489 = vshrl.u32 %v3488, 7
      %v3490 = vsub.s32 0, %v3489
      %v3491 = vrot.slane %v3486, %v3490
      %3493 = vmatprep.subr.mxu0 0.0
      %3494 = vmatpush1.msra.mxu0 %v3470
      %3495 = vmatprep.subr.mxu0 0.0
      %3496 = vmatpush1.msra.mxu0 %v3471
      %3497 = vmatprep.subr.mxu0 0.0
      %3498 = vmatpush1.msra.mxu0 %v3472
      %3499 = vmatprep.subr.mxu0 0.0
      %3500 = vmatpush1.msra.mxu0 %v3473
      %3501 = vmatprep.subr.mxu0 0.0
      %3502 = vmatpush1.msra.mxu0 %v3474
      %3503 = vmatprep.subr.mxu0 0.0
      %3504 = vmatpush1.msra.mxu0 %v3475
      %3505 = vmatprep.subr.mxu0 0.0
      %3506 = vmatpush1.msra.mxu0 %v3476
      %3507 = vmatprep.subr.mxu0 0.0
      %3508 = vmatpush1.msra.mxu0 %v3477
      %3509 = vmatprep.subr.mxu0 0.0
      %3510 = vmatpush1.msra.mxu0 %v3478
      %3511 = vmatprep.subr.mxu0 0.0
      %3512 = vmatpush1.msra.mxu0 %v3479
      %3513 = vmatprep.subr.mxu0 0.0
      %3514 = vmatpush1.msra.mxu0 %v3480
      %3515 = vmatprep.subr.mxu0 0.0
      %3516 = vmatpush1.msra.mxu0 %v3481
      %3517 = vmatprep.subr.mxu0 0.0
      %3518 = vmatpush1.msra.mxu0 %v3482
      %3519 = vmatprep.subr.mxu0 0.0
      %3520 = vmatpush1.msra.mxu0 %v3483
      %3521 = vmatprep.subr.mxu0 0.0
      %3522 = vmatpush1.msra.mxu0 %v3484
      %3523 = vmatprep.subr.mxu0 0.0
      %3524 = vmatpush1.msra.mxu0 %v3485
      %3525 = vmatprep.subr.mxu0 0.0
      %3526 = vmatpush1.msra.mxu0 0.0
      %3527 = vmatprep.subr.mxu0 0.0
      %3528 = vmatpush1.msra.mxu0 0.0
      %3529 = vmatprep.subr.mxu0 0.0
      %3530 = vmatpush1.msra.mxu0 0.0
      %3531 = vmatprep.subr.mxu0 0.0
      %3532 = vmatpush1.msra.mxu0 0.0
      %3533 = vmatprep.subr.mxu0 0.0
      %3534 = vmatpush1.msra.mxu0 0.0
      %3535 = vmatprep.subr.mxu0 0.0
      %3536 = vmatpush1.msra.mxu0 0.0
      %3537 = vmatprep.subr.mxu0 0.0
      %3538 = vmatpush1.msra.mxu0 0.0
      %3539 = vmatprep.subr.mxu0 0.0
      %3540 = vmatpush1.msra.mxu0 0.0
      %3541 = vmatprep.subr.mxu0 0.0
      %3542 = vmatpush1.msra.mxu0 0.0
      %3543 = vmatprep.subr.mxu0 0.0
      %3544 = vmatpush1.msra.mxu0 0.0
      %3545 = vmatprep.subr.mxu0 0.0
      %3546 = vmatpush1.msra.mxu0 0.0
      %3547 = vmatprep.subr.mxu0 0.0
      %3548 = vmatpush1.msra.mxu0 0.0
      %3549 = vmatprep.subr.mxu0 0.0
      %3550 = vmatpush1.msra.mxu0 0.0
      %3551 = vmatprep.subr.mxu0 0.0
      %3552 = vmatpush1.msra.mxu0 0.0
      %3553 = vmatprep.subr.mxu0 0.0
      %3554 = vmatpush1.msra.mxu0 0.0
      %3555 = vmatprep.subr.mxu0 0.0
      %3556 = vmatpush1.msra.mxu0 0.0
      %3557 = vmatprep.mubr.f32.mxu0 0.0
      %3558 = vmatmul.mubr.f32.gmra.mrb[0].mxu0 %v3463
      %v3559 = vpop.f32.mrb[0].mxu0
      %v3560 = vadd.f32 %v3491, %v3559
      %v3561 = vpop.f32.mrb[0].mxu0
      %3562 = vmatprep.mubr.f32.mxu0 0.0
      %3563 = vmatmul.mubr.f32.gmra.mrb[0].mxu0 %v3464
      %v3564 = vpop.f32.mrb[0].mxu0
      %v3565 = vadd.f32 %v3491, %v3564
      %v3566 = vpop.f32.mrb[0].mxu0
      %3567 = vmatprep.mubr.f32.mxu0 0.0
      %3568 = vmatmul.mubr.f32.gmra.mrb[0].mxu0 %v3465
      %v3569 = vpop.f32.mrb[0].mxu0
      %v3570 = vadd.f32 %v3491, %v3569
      %v3571 = vpop.f32.mrb[0].mxu0
      %3572 = vmatprep.mubr.f32.mxu0 0.0
      %3573 = vmatmul.mubr.f32.gmra.mrb[0].mxu0 %v3466
      %v3574 = vpop.f32.mrb[0].mxu0
      %v3575 = vadd.f32 %v3491, %v3574
      %v3576 = vpop.f32.mrb[0].mxu0
      %3577 = vmatprep.mubr.f32.mxu0 0.0
      %3578 = vmatmul.mubr.f32.gmra.mrb[0].mxu0 %v3467
      %v3579 = vpop.f32.mrb[0].mxu0
      %v3580 = vadd.f32 %v3491, %v3579
      %v3581 = vpop.f32.mrb[0].mxu0
      %3582 = vmatprep.mubr.f32.mxu0 0.0
      %3583 = vmatmul.mubr.f32.gmra.mrb[0].mxu0 %v3468
      %v3584 = vpop.f32.mrb[0].mxu0
      %v3585 = vadd.f32 %v3491, %v3584
      %v3586 = vpop.f32.mrb[0].mxu0
      %3587 = vmatprep.mubr.f32.mxu0 0.0
      %3588 = vmatmul.mubr.f32.gmra.mrb[0].mxu0 %v3469
      %v3589 = vpop.f32.mrb[0].mxu0
      %v3590 = vadd.f32 %v3491, %v3589
      %v3591 = vpop.f32.mrb[0].mxu0
      %3592 = vdwg.mxu0
      %v3593 = vmul.f32 %v3560, 0.8
      %v3594 = vmul.f32 %v3565, 0.8
      %v3595 = vmul.f32 %v3570, 0.8
      %v3596 = vmul.f32 %v3575, 0.8
      %v3597 = vmul.f32 %v3580, 0.8
      %v3598 = vmul.f32 %v3585, 0.8
      %v3599 = vmul.f32 %v3590, 0.8
      %v3600 = vld [vmem:[%s273 + $0x30] sm:$0xff]
      %v3601 = vld [vmem:[%s273 + $0x38] sm:$0xff]
      %v3602 = vadd.f32 %v3593, %v3600
      %v3603 = vadd.f32 %v3594, %v3601
      %v3604 = vmax.f32 %v3602, 0.0
      %v3605 = vmax.f32 %v3603, 0.0
      %3606 = vst [vmem:[%s278 + $0x30] sm:$0xff] %v3604
      %3607 = vst [vmem:[%s278 + $0x38] sm:$0xff] %v3605
      %v3608 = vld [vmem:[%s273 + $0x40] sm:$0xff]
      %v3609 = vld [vmem:[%s273 + $0x48] sm:$0xff]
      %v3612 = vrot.slane %v3608, 6
      %v3613 = vrot.slane %v3609, 6
      %v3614 = vsel %vm2257, %v3612, %v3613
      %v3618 = vadd.f32 %v3595, %v3612
      %v3619 = vadd.f32 %v3596, %v3614
      %v3620 = vadd.f32 %v3597, %v3613
      %v3621 = vmax.f32 %v3618, 0.0
      %v3622 = vmax.f32 %v3619, 0.0
      %v3623 = vmax.f32 %v3620, 0.0
      %3624 = vst [vmem:[%s278 + $0x3e] sm:$0xfc] %v3621
      %3625 = vst [vmem:[%s278 + $0x46] sm:$0xff] %v3622
      %3626 = vst [vmem:[%s278 + $0x4e] sm:$0x3] %v3623
      %v3627 = vld [vmem:[%s273 + $0x50] sm:$0xff]
      %v3628 = vld [vmem:[%s273 + $0x58] sm:$0xff]
      %v3631 = vrot.slane %v3627, 4
      %v3632 = vrot.slane %v3628, 4
      %v3633 = vsel %vm2277, %v3631, %v3632
      %v3637 = vadd.f32 %v3597, %v3631
      %v3638 = vadd.f32 %v3598, %v3633
      %v3639 = vadd.f32 %v3599, %v3632
      %v3640 = vmax.f32 %v3637, 0.0
      %v3641 = vmax.f32 %v3638, 0.0
      %v3642 = vmax.f32 %v3639, 0.0
      %3643 = vst [vmem:[%s278 + $0x4c] sm:$0xf0] %v3640
      %3644 = vst [vmem:[%s278 + $0x54] sm:$0xff] %v3641
      %3645 = vst [vmem:[%s278 + $0x5c] sm:$0xf] %v3642
      %v3646 = vld [vmem:[#allocation2 + $0x6c] sm:$0xff]
      %v3647 = vld [vmem:[#allocation2 + $0x74] sm:$0xff]
      %v3648 = vld [vmem:[#allocation2 + $0x7c] sm:$0xff]
      %v3649 = vld [vmem:[#allocation2 + $0x84] sm:$0xff]
      %v3650 = vld [vmem:[#allocation2 + $0x8c] sm:$0xff]
      %v3651 = vld [vmem:[#allocation2 + $0x94] sm:$0xff]
      %v3652 = vld [vmem:[#allocation2 + $0x9c] sm:$0x3f]
      %v3653 = vld [vmem:[%s3] sm:$0xff]
      %v3654 = vld [vmem:[%s3 + $0x8] sm:$0xff]
      %v3655 = vld [vmem:[%s3 + $0x10] sm:$0xff]
      %v3656 = vld [vmem:[%s3 + $0x18] sm:$0xff]
      %v3657 = vld [vmem:[%s3 + $0x20] sm:$0xff]
      %v3658 = vld [vmem:[%s3 + $0x28] sm:$0xff]
      %v3659 = vld [vmem:[%s3 + $0x30] sm:$0xff]
      %v3660 = vld [vmem:[%s3 + $0x38] sm:$0xff]
      %v3661 = vld [vmem:[%s3 + $0x40] sm:$0xff]
      %v3662 = vld [vmem:[%s3 + $0x48] sm:$0xff]
      %v3663 = vld [vmem:[%s3 + $0x50] sm:$0xff]
      %v3664 = vld [vmem:[%s3 + $0x58] sm:$0xff]
      %v3665 = vld [vmem:[%s3 + $0x60] sm:$0xff]
      %v3666 = vld [vmem:[%s3 + $0x68] sm:$0xff]
      %v3667 = vld [vmem:[%s3 + $0x70] sm:$0xff]
      %v3668 = vld [vmem:[%s3 + $0x78] sm:$0xff]
      %v3669 = vld [vmem:[#allocation2 + $0x6d] sm:$0xff]
      %v3670 = vld [vmem:[#allocation2 + $0x75] sm:$0xff]
      %v3671 = vld [vmem:[#allocation2 + $0x7d] sm:$0xff]
      %v3672 = vld [vmem:[#allocation2 + $0x85] sm:$0xff]
      %v3673 = vld [vmem:[#allocation2 + $0x8d] sm:$0xff]
      %v3674 = vld [vmem:[#allocation2 + $0x95] sm:$0xff]
      %v3675 = vld [vmem:[#allocation2 + $0x9d] sm:$0x3f]
      %v3676 = vld [vmem:[%s960] sm:$0xff]
      %v3677 = vld [vmem:[%s960 + $0x8] sm:$0xff]
      %v3678 = vld [vmem:[%s960 + $0x10] sm:$0xff]
      %v3679 = vld [vmem:[%s960 + $0x18] sm:$0xff]
      %v3680 = vld [vmem:[%s960 + $0x20] sm:$0xff]
      %v3681 = vld [vmem:[%s960 + $0x28] sm:$0xff]
      %v3682 = vld [vmem:[%s960 + $0x30] sm:$0xff]
      %v3683 = vld [vmem:[%s960 + $0x38] sm:$0xff]
      %v3684 = vld [vmem:[%s960 + $0x40] sm:$0xff]
      %v3685 = vld [vmem:[%s960 + $0x48] sm:$0xff]
      %v3686 = vld [vmem:[%s960 + $0x50] sm:$0xff]
      %v3687 = vld [vmem:[%s960 + $0x58] sm:$0xff]
      %v3688 = vld [vmem:[%s960 + $0x60] sm:$0xff]
      %v3689 = vld [vmem:[%s960 + $0x68] sm:$0xff]
      %v3690 = vld [vmem:[%s960 + $0x70] sm:$0xff]
      %v3691 = vld [vmem:[%s960 + $0x78] sm:$0xff]
      %3692 = vmatprep.subr.mxu0 0.0
      %3693 = vmatpush1.msra.mxu0 %v3676
      %3694 = vmatprep.subr.mxu0 0.0
      %3695 = vmatpush1.msra.mxu0 %v3677
      %3696 = vmatprep.subr.mxu0 0.0
      %3697 = vmatpush1.msra.mxu0 %v3678
      %3698 = vmatprep.subr.mxu0 0.0
      %3699 = vmatpush1.msra.mxu0 %v3679
      %3700 = vmatprep.subr.mxu0 0.0
      %3701 = vmatpush1.msra.mxu0 %v3680
      %3702 = vmatprep.subr.mxu0 0.0
      %3703 = vmatpush1.msra.mxu0 %v3681
      %3704 = vmatprep.subr.mxu0 0.0
      %3705 = vmatpush1.msra.mxu0 %v3682
      %3706 = vmatprep.subr.mxu0 0.0
      %3707 = vmatpush1.msra.mxu0 %v3683
      %3708 = vmatprep.subr.mxu0 0.0
      %3709 = vmatpush1.msra.mxu0 %v3684
      %3710 = vmatprep.subr.mxu0 0.0
      %3711 = vmatpush1.msra.mxu0 %v3685
      %3712 = vmatprep.subr.mxu0 0.0
      %3713 = vmatpush1.msra.mxu0 %v3686
      %3714 = vmatprep.subr.mxu0 0.0
      %3715 = vmatpush1.msra.mxu0 %v3687
      %3716 = vmatprep.subr.mxu0 0.0
      %3717 = vmatpush1.msra.mxu0 %v3688
      %3718 = vmatprep.subr.mxu0 0.0
      %3719 = vmatpush1.msra.mxu0 %v3689
      %3720 = vmatprep.subr.mxu0 0.0
      %3721 = vmatpush1.msra.mxu0 %v3690
      %3722 = vmatprep.subr.mxu0 0.0
      %3723 = vmatpush1.msra.mxu0 %v3691
      %3724 = vmatprep.subr.mxu0 0.0
      %3725 = vmatpush1.msra.mxu0 0.0
      %3726 = vmatprep.subr.mxu0 0.0
      %3727 = vmatpush1.msra.mxu0 0.0
      %3728 = vmatprep.subr.mxu0 0.0
      %3729 = vmatpush1.msra.mxu0 0.0
      %3730 = vmatprep.subr.mxu0 0.0
      %3731 = vmatpush1.msra.mxu0 0.0
      %3732 = vmatprep.subr.mxu0 0.0
      %3733 = vmatpush1.msra.mxu0 0.0
      %3734 = vmatprep.subr.mxu0 0.0
      %3735 = vmatpush1.msra.mxu0 0.0
      %3736 = vmatprep.subr.mxu0 0.0
      %3737 = vmatpush1.msra.mxu0 0.0
      %3738 = vmatprep.subr.mxu0 0.0
      %3739 = vmatpush1.msra.mxu0 0.0
      %3740 = vmatprep.subr.mxu0 0.0
      %3741 = vmatpush1.msra.mxu0 0.0
      %3742 = vmatprep.subr.mxu0 0.0
      %3743 = vmatpush1.msra.mxu0 0.0
      %3744 = vmatprep.subr.mxu0 0.0
      %3745 = vmatpush1.msra.mxu0 0.0
      %3746 = vmatprep.subr.mxu0 0.0
      %3747 = vmatpush1.msra.mxu0 0.0
      %3748 = vmatprep.subr.mxu0 0.0
      %3749 = vmatpush1.msra.mxu0 0.0
      %3750 = vmatprep.subr.mxu0 0.0
      %3751 = vmatpush1.msra.mxu0 0.0
      %3752 = vmatprep.subr.mxu0 0.0
      %3753 = vmatpush1.msra.mxu0 0.0
      %3754 = vmatprep.subr.mxu0 0.0
      %3755 = vmatpush1.msra.mxu0 0.0
      %3756 = vmatprep.mubr.f32.mxu0 0.0
      %3757 = vmatmul.mubr.f32.gmra.mrb[0].mxu0 %v3669
      %v3758 = vpop.f32.mrb[0].mxu0
      %v3759 = vadd.f32 0.0, %v3758
      %v3760 = vpop.f32.mrb[0].mxu0
      %3761 = vmatprep.mubr.f32.mxu0 0.0
      %3762 = vmatmul.mubr.f32.gmra.mrb[0].mxu0 %v3670
      %v3763 = vpop.f32.mrb[0].mxu0
      %v3764 = vadd.f32 0.0, %v3763
      %v3765 = vpop.f32.mrb[0].mxu0
      %3766 = vmatprep.mubr.f32.mxu0 0.0
      %3767 = vmatmul.mubr.f32.gmra.mrb[0].mxu0 %v3671
      %v3768 = vpop.f32.mrb[0].mxu0
      %v3769 = vadd.f32 0.0, %v3768
      %v3770 = vpop.f32.mrb[0].mxu0
      %3771 = vmatprep.mubr.f32.mxu0 0.0
      %3772 = vmatmul.mubr.f32.gmra.mrb[0].mxu0 %v3672
      %v3773 = vpop.f32.mrb[0].mxu0
      %v3774 = vadd.f32 0.0, %v3773
      %v3775 = vpop.f32.mrb[0].mxu0
      %3776 = vmatprep.mubr.f32.mxu0 0.0
      %3777 = vmatmul.mubr.f32.gmra.mrb[0].mxu0 %v3673
      %v3778 = vpop.f32.mrb[0].mxu0
      %v3779 = vadd.f32 0.0, %v3778
      %v3780 = vpop.f32.mrb[0].mxu0
      %3781 = vmatprep.mubr.f32.mxu0 0.0
      %3782 = vmatmul.mubr.f32.gmra.mrb[0].mxu0 %v3674
      %v3783 = vpop.f32.mrb[0].mxu0
      %v3784 = vadd.f32 0.0, %v3783
      %v3785 = vpop.f32.mrb[0].mxu0
      %3786 = vmatprep.mubr.f32.mxu0 0.0
      %3787 = vmatmul.mubr.f32.gmra.mrb[0].mxu0 %v3675
      %v3788 = vpop.f32.mrb[0].mxu0
      %v3789 = vadd.f32 0.0, %v3788
      %v3790 = vpop.f32.mrb[0].mxu0
      %3791 = vdwg.mxu0
      %3792 = vmatprep.subr.mxu0 0.0
      %3793 = vmatpush1.msra.mxu0 %v3653
      %3794 = vmatprep.subr.mxu0 0.0
      %3795 = vmatpush1.msra.mxu0 %v3654
      %3796 = vmatprep.subr.mxu0 0.0
      %3797 = vmatpush1.msra.mxu0 %v3655
      %3798 = vmatprep.subr.mxu0 0.0
      %3799 = vmatpush1.msra.mxu0 %v3656
      %3800 = vmatprep.subr.mxu0 0.0
      %3801 = vmatpush1.msra.mxu0 %v3657
      %3802 = vmatprep.subr.mxu0 0.0
      %3803 = vmatpush1.msra.mxu0 %v3658
      %3804 = vmatprep.subr.mxu0 0.0
      %3805 = vmatpush1.msra.mxu0 %v3659
      %3806 = vmatprep.subr.mxu0 0.0
      %3807 = vmatpush1.msra.mxu0 %v3660
      %3808 = vmatprep.subr.mxu0 0.0
      %3809 = vmatpush1.msra.mxu0 %v3661
      %3810 = vmatprep.subr.mxu0 0.0
      %3811 = vmatpush1.msra.mxu0 %v3662
      %3812 = vmatprep.subr.mxu0 0.0
      %3813 = vmatpush1.msra.mxu0 %v3663
      %3814 = vmatprep.subr.mxu0 0.0
      %3815 = vmatpush1.msra.mxu0 %v3664
      %3816 = vmatprep.subr.mxu0 0.0
      %3817 = vmatpush1.msra.mxu0 %v3665
      %3818 = vmatprep.subr.mxu0 0.0
      %3819 = vmatpush1.msra.mxu0 %v3666
      %3820 = vmatprep.subr.mxu0 0.0
      %3821 = vmatpush1.msra.mxu0 %v3667
      %3822 = vmatprep.subr.mxu0 0.0
      %3823 = vmatpush1.msra.mxu0 %v3668
      %3824 = vmatprep.subr.mxu0 0.0
      %3825 = vmatpush1.msra.mxu0 0.0
      %3826 = vmatprep.subr.mxu0 0.0
      %3827 = vmatpush1.msra.mxu0 0.0
      %3828 = vmatprep.subr.mxu0 0.0
      %3829 = vmatpush1.msra.mxu0 0.0
      %3830 = vmatprep.subr.mxu0 0.0
      %3831 = vmatpush1.msra.mxu0 0.0
      %3832 = vmatprep.subr.mxu0 0.0
      %3833 = vmatpush1.msra.mxu0 0.0
      %3834 = vmatprep.subr.mxu0 0.0
      %3835 = vmatpush1.msra.mxu0 0.0
      %3836 = vmatprep.subr.mxu0 0.0
      %3837 = vmatpush1.msra.mxu0 0.0
      %3838 = vmatprep.subr.mxu0 0.0
      %3839 = vmatpush1.msra.mxu0 0.0
      %3840 = vmatprep.subr.mxu0 0.0
      %3841 = vmatpush1.msra.mxu0 0.0
      %3842 = vmatprep.subr.mxu0 0.0
      %3843 = vmatpush1.msra.mxu0 0.0
      %3844 = vmatprep.subr.mxu0 0.0
      %3845 = vmatpush1.msra.mxu0 0.0
      %3846 = vmatprep.subr.mxu0 0.0
      %3847 = vmatpush1.msra.mxu0 0.0
      %3848 = vmatprep.subr.mxu0 0.0
      %3849 = vmatpush1.msra.mxu0 0.0
      %3850 = vmatprep.subr.mxu0 0.0
      %3851 = vmatpush1.msra.mxu0 0.0
      %3852 = vmatprep.subr.mxu0 0.0
      %3853 = vmatpush1.msra.mxu0 0.0
      %3854 = vmatprep.subr.mxu0 0.0
      %3855 = vmatpush1.msra.mxu0 0.0
      %3856 = vmatprep.mubr.f32.mxu0 0.0
      %3857 = vmatmul.mubr.f32.gmra.mrb[0].mxu0 %v3646
      %v3858 = vpop.f32.mrb[0].mxu0
      %v3859 = vadd.f32 %v3759, %v3858
      %v3860 = vpop.f32.mrb[0].mxu0
      %3861 = vmatprep.mubr.f32.mxu0 0.0
      %3862 = vmatmul.mubr.f32.gmra.mrb[0].mxu0 %v3647
      %v3863 = vpop.f32.mrb[0].mxu0
      %v3864 = vadd.f32 %v3764, %v3863
      %v3865 = vpop.f32.mrb[0].mxu0
      %3866 = vmatprep.mubr.f32.mxu0 0.0
      %3867 = vmatmul.mubr.f32.gmra.mrb[0].mxu0 %v3648
      %v3868 = vpop.f32.mrb[0].mxu0
      %v3869 = vadd.f32 %v3769, %v3868
      %v3870 = vpop.f32.mrb[0].mxu0
      %3871 = vmatprep.mubr.f32.mxu0 0.0
      %3872 = vmatmul.mubr.f32.gmra.mrb[0].mxu0 %v3649
      %v3873 = vpop.f32.mrb[0].mxu0
      %v3874 = vadd.f32 %v3774, %v3873
      %v3875 = vpop.f32.mrb[0].mxu0
      %3876 = vmatprep.mubr.f32.mxu0 0.0
      %3877 = vmatmul.mubr.f32.gmra.mrb[0].mxu0 %v3650
      %v3878 = vpop.f32.mrb[0].mxu0
      %v3879 = vadd.f32 %v3779, %v3878
      %v3880 = vpop.f32.mrb[0].mxu0
      %3881 = vmatprep.mubr.f32.mxu0 0.0
      %3882 = vmatmul.mubr.f32.gmra.mrb[0].mxu0 %v3651
      %v3883 = vpop.f32.mrb[0].mxu0
      %v3884 = vadd.f32 %v3784, %v3883
      %v3885 = vpop.f32.mrb[0].mxu0
      %3886 = vmatprep.mubr.f32.mxu0 0.0
      %3887 = vmatmul.mubr.f32.gmra.mrb[0].mxu0 %v3652
      %v3888 = vpop.f32.mrb[0].mxu0
      %v3889 = vadd.f32 %v3789, %v3888
      %v3890 = vpop.f32.mrb[0].mxu0
      %3891 = vdwg.mxu0
      %v3892 = vld [vmem:[#allocation2 + $0x6e] sm:$0xff]
      %v3893 = vld [vmem:[#allocation2 + $0x76] sm:$0xff]
      %v3894 = vld [vmem:[#allocation2 + $0x7e] sm:$0xff]
      %v3895 = vld [vmem:[#allocation2 + $0x86] sm:$0xff]
      %v3896 = vld [vmem:[#allocation2 + $0x8e] sm:$0xff]
      %v3897 = vld [vmem:[#allocation2 + $0x96] sm:$0xff]
      %v3898 = vld [vmem:[#allocation2 + $0x9e] sm:$0x3f]
      %v3899 = vld [vmem:[%s1184] sm:$0xff]
      %v3900 = vld [vmem:[%s1184 + $0x8] sm:$0xff]
      %v3901 = vld [vmem:[%s1184 + $0x10] sm:$0xff]
      %v3902 = vld [vmem:[%s1184 + $0x18] sm:$0xff]
      %v3903 = vld [vmem:[%s1184 + $0x20] sm:$0xff]
      %v3904 = vld [vmem:[%s1184 + $0x28] sm:$0xff]
      %v3905 = vld [vmem:[%s1184 + $0x30] sm:$0xff]
      %v3906 = vld [vmem:[%s1184 + $0x38] sm:$0xff]
      %v3907 = vld [vmem:[%s1184 + $0x40] sm:$0xff]
      %v3908 = vld [vmem:[%s1184 + $0x48] sm:$0xff]
      %v3909 = vld [vmem:[%s1184 + $0x50] sm:$0xff]
      %v3910 = vld [vmem:[%s1184 + $0x58] sm:$0xff]
      %v3911 = vld [vmem:[%s1184 + $0x60] sm:$0xff]
      %v3912 = vld [vmem:[%s1184 + $0x68] sm:$0xff]
      %v3913 = vld [vmem:[%s1184 + $0x70] sm:$0xff]
      %v3914 = vld [vmem:[%s1184 + $0x78] sm:$0xff]
      %3915 = vmatprep.subr.mxu0 0.0
      %3916 = vmatpush1.msra.mxu0 %v3899
      %3917 = vmatprep.subr.mxu0 0.0
      %3918 = vmatpush1.msra.mxu0 %v3900
      %3919 = vmatprep.subr.mxu0 0.0
      %3920 = vmatpush1.msra.mxu0 %v3901
      %3921 = vmatprep.subr.mxu0 0.0
      %3922 = vmatpush1.msra.mxu0 %v3902
      %3923 = vmatprep.subr.mxu0 0.0
      %3924 = vmatpush1.msra.mxu0 %v3903
      %3925 = vmatprep.subr.mxu0 0.0
      %3926 = vmatpush1.msra.mxu0 %v3904
      %3927 = vmatprep.subr.mxu0 0.0
      %3928 = vmatpush1.msra.mxu0 %v3905
      %3929 = vmatprep.subr.mxu0 0.0
      %3930 = vmatpush1.msra.mxu0 %v3906
      %3931 = vmatprep.subr.mxu0 0.0
      %3932 = vmatpush1.msra.mxu0 %v3907
      %3933 = vmatprep.subr.mxu0 0.0
      %3934 = vmatpush1.msra.mxu0 %v3908
      %3935 = vmatprep.subr.mxu0 0.0
      %3936 = vmatpush1.msra.mxu0 %v3909
      %3937 = vmatprep.subr.mxu0 0.0
      %3938 = vmatpush1.msra.mxu0 %v3910
      %3939 = vmatprep.subr.mxu0 0.0
      %3940 = vmatpush1.msra.mxu0 %v3911
      %3941 = vmatprep.subr.mxu0 0.0
      %3942 = vmatpush1.msra.mxu0 %v3912
      %3943 = vmatprep.subr.mxu0 0.0
      %3944 = vmatpush1.msra.mxu0 %v3913
      %3945 = vmatprep.subr.mxu0 0.0
      %3946 = vmatpush1.msra.mxu0 %v3914
      %3947 = vmatprep.subr.mxu0 0.0
      %3948 = vmatpush1.msra.mxu0 0.0
      %3949 = vmatprep.subr.mxu0 0.0
      %3950 = vmatpush1.msra.mxu0 0.0
      %3951 = vmatprep.subr.mxu0 0.0
      %3952 = vmatpush1.msra.mxu0 0.0
      %3953 = vmatprep.subr.mxu0 0.0
      %3954 = vmatpush1.msra.mxu0 0.0
      %3955 = vmatprep.subr.mxu0 0.0
      %3956 = vmatpush1.msra.mxu0 0.0
      %3957 = vmatprep.subr.mxu0 0.0
      %3958 = vmatpush1.msra.mxu0 0.0
      %3959 = vmatprep.subr.mxu0 0.0
      %3960 = vmatpush1.msra.mxu0 0.0
      %3961 = vmatprep.subr.mxu0 0.0
      %3962 = vmatpush1.msra.mxu0 0.0
      %3963 = vmatprep.subr.mxu0 0.0
      %3964 = vmatpush1.msra.mxu0 0.0
      %3965 = vmatprep.subr.mxu0 0.0
      %3966 = vmatpush1.msra.mxu0 0.0
      %3967 = vmatprep.subr.mxu0 0.0
      %3968 = vmatpush1.msra.mxu0 0.0
      %3969 = vmatprep.subr.mxu0 0.0
      %3970 = vmatpush1.msra.mxu0 0.0
      %3971 = vmatprep.subr.mxu0 0.0
      %3972 = vmatpush1.msra.mxu0 0.0
      %3973 = vmatprep.subr.mxu0 0.0
      %3974 = vmatpush1.msra.mxu0 0.0
      %3975 = vmatprep.subr.mxu0 0.0
      %3976 = vmatpush1.msra.mxu0 0.0
      %3977 = vmatprep.subr.mxu0 0.0
      %3978 = vmatpush1.msra.mxu0 0.0
      %3979 = vmatprep.mubr.f32.mxu0 0.0
      %3980 = vmatmul.mubr.f32.gmra.mrb[0].mxu0 %v3892
      %v3981 = vpop.f32.mrb[0].mxu0
      %v3982 = vadd.f32 0.0, %v3981
      %v3983 = vpop.f32.mrb[0].mxu0
      %3984 = vmatprep.mubr.f32.mxu0 0.0
      %3985 = vmatmul.mubr.f32.gmra.mrb[0].mxu0 %v3893
      %v3986 = vpop.f32.mrb[0].mxu0
      %v3987 = vadd.f32 0.0, %v3986
      %v3988 = vpop.f32.mrb[0].mxu0
      %3989 = vmatprep.mubr.f32.mxu0 0.0
      %3990 = vmatmul.mubr.f32.gmra.mrb[0].mxu0 %v3894
      %v3991 = vpop.f32.mrb[0].mxu0
      %v3992 = vadd.f32 0.0, %v3991
      %v3993 = vpop.f32.mrb[0].mxu0
      %3994 = vmatprep.mubr.f32.mxu0 0.0
      %3995 = vmatmul.mubr.f32.gmra.mrb[0].mxu0 %v3895
      %v3996 = vpop.f32.mrb[0].mxu0
      %v3997 = vadd.f32 0.0, %v3996
      %v3998 = vpop.f32.mrb[0].mxu0
      %3999 = vmatprep.mubr.f32.mxu0 0.0
      %4000 = vmatmul.mubr.f32.gmra.mrb[0].mxu0 %v3896
      %v4001 = vpop.f32.mrb[0].mxu0
      %v4002 = vadd.f32 0.0, %v4001
      %v4003 = vpop.f32.mrb[0].mxu0
      %4004 = vmatprep.mubr.f32.mxu0 0.0
      %4005 = vmatmul.mubr.f32.gmra.mrb[0].mxu0 %v3897
      %v4006 = vpop.f32.mrb[0].mxu0
      %v4007 = vadd.f32 0.0, %v4006
      %v4008 = vpop.f32.mrb[0].mxu0
      %4009 = vmatprep.mubr.f32.mxu0 0.0
      %4010 = vmatmul.mubr.f32.gmra.mrb[0].mxu0 %v3898
      %v4011 = vpop.f32.mrb[0].mxu0
      %v4012 = vadd.f32 0.0, %v4011
      %v4013 = vpop.f32.mrb[0].mxu0
      %4014 = vdwg.mxu0
      %v4015 = vadd.f32 %v3859, %v3982
      %v4016 = vadd.f32 %v3864, %v3987
      %v4017 = vadd.f32 %v3869, %v3992
      %v4018 = vadd.f32 %v3874, %v3997
      %v4019 = vadd.f32 %v3879, %v4002
      %v4020 = vadd.f32 %v3884, %v4007
      %v4021 = vadd.f32 %v3889, %v4012
      %v4022 = vld [vmem:[#allocation2 + $0x7e] sm:$0xff]
      %v4023 = vld [vmem:[#allocation2 + $0x86] sm:$0xff]
      %v4024 = vld [vmem:[#allocation2 + $0x8e] sm:$0xff]
      %v4025 = vld [vmem:[#allocation2 + $0x96] sm:$0xff]
      %v4026 = vld [vmem:[#allocation2 + $0x9e] sm:$0xff]
      %v4027 = vld [vmem:[#allocation2 + $0xa6] sm:$0xff]
      %v4028 = vld [vmem:[#allocation2 + $0xae] sm:$0x3f]
      %v4029 = vld [vmem:[%s1315] sm:$0xff]
      %v4030 = vld [vmem:[%s1315 + $0x8] sm:$0xff]
      %v4031 = vld [vmem:[%s1315 + $0x10] sm:$0xff]
      %v4032 = vld [vmem:[%s1315 + $0x18] sm:$0xff]
      %v4033 = vld [vmem:[%s1315 + $0x20] sm:$0xff]
      %v4034 = vld [vmem:[%s1315 + $0x28] sm:$0xff]
      %v4035 = vld [vmem:[%s1315 + $0x30] sm:$0xff]
      %v4036 = vld [vmem:[%s1315 + $0x38] sm:$0xff]
      %v4037 = vld [vmem:[%s1315 + $0x40] sm:$0xff]
      %v4038 = vld [vmem:[%s1315 + $0x48] sm:$0xff]
      %v4039 = vld [vmem:[%s1315 + $0x50] sm:$0xff]
      %v4040 = vld [vmem:[%s1315 + $0x58] sm:$0xff]
      %v4041 = vld [vmem:[%s1315 + $0x60] sm:$0xff]
      %v4042 = vld [vmem:[%s1315 + $0x68] sm:$0xff]
      %v4043 = vld [vmem:[%s1315 + $0x70] sm:$0xff]
      %v4044 = vld [vmem:[%s1315 + $0x78] sm:$0xff]
      %4045 = vmatprep.subr.mxu0 0.0
      %4046 = vmatpush1.msra.mxu0 %v4029
      %4047 = vmatprep.subr.mxu0 0.0
      %4048 = vmatpush1.msra.mxu0 %v4030
      %4049 = vmatprep.subr.mxu0 0.0
      %4050 = vmatpush1.msra.mxu0 %v4031
      %4051 = vmatprep.subr.mxu0 0.0
      %4052 = vmatpush1.msra.mxu0 %v4032
      %4053 = vmatprep.subr.mxu0 0.0
      %4054 = vmatpush1.msra.mxu0 %v4033
      %4055 = vmatprep.subr.mxu0 0.0
      %4056 = vmatpush1.msra.mxu0 %v4034
      %4057 = vmatprep.subr.mxu0 0.0
      %4058 = vmatpush1.msra.mxu0 %v4035
      %4059 = vmatprep.subr.mxu0 0.0
      %4060 = vmatpush1.msra.mxu0 %v4036
      %4061 = vmatprep.subr.mxu0 0.0
      %4062 = vmatpush1.msra.mxu0 %v4037
      %4063 = vmatprep.subr.mxu0 0.0
      %4064 = vmatpush1.msra.mxu0 %v4038
      %4065 = vmatprep.subr.mxu0 0.0
      %4066 = vmatpush1.msra.mxu0 %v4039
      %4067 = vmatprep.subr.mxu0 0.0
      %4068 = vmatpush1.msra.mxu0 %v4040
      %4069 = vmatprep.subr.mxu0 0.0
      %4070 = vmatpush1.msra.mxu0 %v4041
      %4071 = vmatprep.subr.mxu0 0.0
      %4072 = vmatpush1.msra.mxu0 %v4042
      %4073 = vmatprep.subr.mxu0 0.0
      %4074 = vmatpush1.msra.mxu0 %v4043
      %4075 = vmatprep.subr.mxu0 0.0
      %4076 = vmatpush1.msra.mxu0 %v4044
      %4077 = vmatprep.subr.mxu0 0.0
      %4078 = vmatpush1.msra.mxu0 0.0
      %4079 = vmatprep.subr.mxu0 0.0
      %4080 = vmatpush1.msra.mxu0 0.0
      %4081 = vmatprep.subr.mxu0 0.0
      %4082 = vmatpush1.msra.mxu0 0.0
      %4083 = vmatprep.subr.mxu0 0.0
      %4084 = vmatpush1.msra.mxu0 0.0
      %4085 = vmatprep.subr.mxu0 0.0
      %4086 = vmatpush1.msra.mxu0 0.0
      %4087 = vmatprep.subr.mxu0 0.0
      %4088 = vmatpush1.msra.mxu0 0.0
      %4089 = vmatprep.subr.mxu0 0.0
      %4090 = vmatpush1.msra.mxu0 0.0
      %4091 = vmatprep.subr.mxu0 0.0
      %4092 = vmatpush1.msra.mxu0 0.0
      %4093 = vmatprep.subr.mxu0 0.0
      %4094 = vmatpush1.msra.mxu0 0.0
      %4095 = vmatprep.subr.mxu0 0.0
      %4096 = vmatpush1.msra.mxu0 0.0
      %4097 = vmatprep.subr.mxu0 0.0
      %4098 = vmatpush1.msra.mxu0 0.0
      %4099 = vmatprep.subr.mxu0 0.0
      %4100 = vmatpush1.msra.mxu0 0.0
      %4101 = vmatprep.subr.mxu0 0.0
      %4102 = vmatpush1.msra.mxu0 0.0
      %4103 = vmatprep.subr.mxu0 0.0
      %4104 = vmatpush1.msra.mxu0 0.0
      %4105 = vmatprep.subr.mxu0 0.0
      %4106 = vmatpush1.msra.mxu0 0.0
      %4107 = vmatprep.subr.mxu0 0.0
      %4108 = vmatpush1.msra.mxu0 0.0
      %4109 = vmatprep.mubr.f32.mxu0 0.0
      %4110 = vmatmul.mubr.f32.gmra.mrb[0].mxu0 %v4022
      %v4111 = vpop.f32.mrb[0].mxu0
      %v4112 = vadd.f32 0.0, %v4111
      %v4113 = vpop.f32.mrb[0].mxu0
      %4114 = vmatprep.mubr.f32.mxu0 0.0
      %4115 = vmatmul.mubr.f32.gmra.mrb[0].mxu0 %v4023
      %v4116 = vpop.f32.mrb[0].mxu0
      %v4117 = vadd.f32 0.0, %v4116
      %v4118 = vpop.f32.mrb[0].mxu0
      %4119 = vmatprep.mubr.f32.mxu0 0.0
      %4120 = vmatmul.mubr.f32.gmra.mrb[0].mxu0 %v4024
      %v4121 = vpop.f32.mrb[0].mxu0
      %v4122 = vadd.f32 0.0, %v4121
      %v4123 = vpop.f32.mrb[0].mxu0
      %4124 = vmatprep.mubr.f32.mxu0 0.0
      %4125 = vmatmul.mubr.f32.gmra.mrb[0].mxu0 %v4025
      %v4126 = vpop.f32.mrb[0].mxu0
      %v4127 = vadd.f32 0.0, %v4126
      %v4128 = vpop.f32.mrb[0].mxu0
      %4129 = vmatprep.mubr.f32.mxu0 0.0
      %4130 = vmatmul.mubr.f32.gmra.mrb[0].mxu0 %v4026
      %v4131 = vpop.f32.mrb[0].mxu0
      %v4132 = vadd.f32 0.0, %v4131
      %v4133 = vpop.f32.mrb[0].mxu0
      %4134 = vmatprep.mubr.f32.mxu0 0.0
      %4135 = vmatmul.mubr.f32.gmra.mrb[0].mxu0 %v4027
      %v4136 = vpop.f32.mrb[0].mxu0
      %v4137 = vadd.f32 0.0, %v4136
      %v4138 = vpop.f32.mrb[0].mxu0
      %4139 = vmatprep.mubr.f32.mxu0 0.0
      %4140 = vmatmul.mubr.f32.gmra.mrb[0].mxu0 %v4028
      %v4141 = vpop.f32.mrb[0].mxu0
      %v4142 = vadd.f32 0.0, %v4141
      %v4143 = vpop.f32.mrb[0].mxu0
      %4144 = vdwg.mxu0
      %v4145 = vadd.f32 %v4015, %v4112
      %v4146 = vadd.f32 %v4016, %v4117
      %v4147 = vadd.f32 %v4017, %v4122
      %v4148 = vadd.f32 %v4018, %v4127
      %v4149 = vadd.f32 %v4019, %v4132
      %v4150 = vadd.f32 %v4020, %v4137
      %v4151 = vadd.f32 %v4021, %v4142
      %v4152 = vld [vmem:[#allocation2 + $0x7f] sm:$0xff]
      %v4153 = vld [vmem:[#allocation2 + $0x87] sm:$0xff]
      %v4154 = vld [vmem:[#allocation2 + $0x8f] sm:$0xff]
      %v4155 = vld [vmem:[#allocation2 + $0x97] sm:$0xff]
      %v4156 = vld [vmem:[#allocation2 + $0x9f] sm:$0xff]
      %v4157 = vld [vmem:[#allocation2 + $0xa7] sm:$0xff]
      %v4158 = vld [vmem:[#allocation2 + $0xaf] sm:$0x3f]
      %v4159 = vld [vmem:[%s1446] sm:$0xff]
      %v4160 = vld [vmem:[%s1446 + $0x8] sm:$0xff]
      %v4161 = vld [vmem:[%s1446 + $0x10] sm:$0xff]
      %v4162 = vld [vmem:[%s1446 + $0x18] sm:$0xff]
      %v4163 = vld [vmem:[%s1446 + $0x20] sm:$0xff]
      %v4164 = vld [vmem:[%s1446 + $0x28] sm:$0xff]
      %v4165 = vld [vmem:[%s1446 + $0x30] sm:$0xff]
      %v4166 = vld [vmem:[%s1446 + $0x38] sm:$0xff]
      %v4167 = vld [vmem:[%s1446 + $0x40] sm:$0xff]
      %v4168 = vld [vmem:[%s1446 + $0x48] sm:$0xff]
      %v4169 = vld [vmem:[%s1446 + $0x50] sm:$0xff]
      %v4170 = vld [vmem:[%s1446 + $0x58] sm:$0xff]
      %v4171 = vld [vmem:[%s1446 + $0x60] sm:$0xff]
      %v4172 = vld [vmem:[%s1446 + $0x68] sm:$0xff]
      %v4173 = vld [vmem:[%s1446 + $0x70] sm:$0xff]
      %v4174 = vld [vmem:[%s1446 + $0x78] sm:$0xff]
      %4175 = vmatprep.subr.mxu0 0.0
      %4176 = vmatpush1.msra.mxu0 %v4159
      %4177 = vmatprep.subr.mxu0 0.0
      %4178 = vmatpush1.msra.mxu0 %v4160
      %4179 = vmatprep.subr.mxu0 0.0
      %4180 = vmatpush1.msra.mxu0 %v4161
      %4181 = vmatprep.subr.mxu0 0.0
      %4182 = vmatpush1.msra.mxu0 %v4162
      %4183 = vmatprep.subr.mxu0 0.0
      %4184 = vmatpush1.msra.mxu0 %v4163
      %4185 = vmatprep.subr.mxu0 0.0
      %4186 = vmatpush1.msra.mxu0 %v4164
      %4187 = vmatprep.subr.mxu0 0.0
      %4188 = vmatpush1.msra.mxu0 %v4165
      %4189 = vmatprep.subr.mxu0 0.0
      %4190 = vmatpush1.msra.mxu0 %v4166
      %4191 = vmatprep.subr.mxu0 0.0
      %4192 = vmatpush1.msra.mxu0 %v4167
      %4193 = vmatprep.subr.mxu0 0.0
      %4194 = vmatpush1.msra.mxu0 %v4168
      %4195 = vmatprep.subr.mxu0 0.0
      %4196 = vmatpush1.msra.mxu0 %v4169
      %4197 = vmatprep.subr.mxu0 0.0
      %4198 = vmatpush1.msra.mxu0 %v4170
      %4199 = vmatprep.subr.mxu0 0.0
      %4200 = vmatpush1.msra.mxu0 %v4171
      %4201 = vmatprep.subr.mxu0 0.0
      %4202 = vmatpush1.msra.mxu0 %v4172
      %4203 = vmatprep.subr.mxu0 0.0
      %4204 = vmatpush1.msra.mxu0 %v4173
      %4205 = vmatprep.subr.mxu0 0.0
      %4206 = vmatpush1.msra.mxu0 %v4174
      %4207 = vmatprep.subr.mxu0 0.0
      %4208 = vmatpush1.msra.mxu0 0.0
      %4209 = vmatprep.subr.mxu0 0.0
      %4210 = vmatpush1.msra.mxu0 0.0
      %4211 = vmatprep.subr.mxu0 0.0
      %4212 = vmatpush1.msra.mxu0 0.0
      %4213 = vmatprep.subr.mxu0 0.0
      %4214 = vmatpush1.msra.mxu0 0.0
      %4215 = vmatprep.subr.mxu0 0.0
      %4216 = vmatpush1.msra.mxu0 0.0
      %4217 = vmatprep.subr.mxu0 0.0
      %4218 = vmatpush1.msra.mxu0 0.0
      %4219 = vmatprep.subr.mxu0 0.0
      %4220 = vmatpush1.msra.mxu0 0.0
      %4221 = vmatprep.subr.mxu0 0.0
      %4222 = vmatpush1.msra.mxu0 0.0
      %4223 = vmatprep.subr.mxu0 0.0
      %4224 = vmatpush1.msra.mxu0 0.0
      %4225 = vmatprep.subr.mxu0 0.0
      %4226 = vmatpush1.msra.mxu0 0.0
      %4227 = vmatprep.subr.mxu0 0.0
      %4228 = vmatpush1.msra.mxu0 0.0
      %4229 = vmatprep.subr.mxu0 0.0
      %4230 = vmatpush1.msra.mxu0 0.0
      %4231 = vmatprep.subr.mxu0 0.0
      %4232 = vmatpush1.msra.mxu0 0.0
      %4233 = vmatprep.subr.mxu0 0.0
      %4234 = vmatpush1.msra.mxu0 0.0
      %4235 = vmatprep.subr.mxu0 0.0
      %4236 = vmatpush1.msra.mxu0 0.0
      %4237 = vmatprep.subr.mxu0 0.0
      %4238 = vmatpush1.msra.mxu0 0.0
      %4239 = vmatprep.mubr.f32.mxu0 0.0
      %4240 = vmatmul.mubr.f32.gmra.mrb[0].mxu0 %v4152
      %v4241 = vpop.f32.mrb[0].mxu0
      %v4242 = vadd.f32 0.0, %v4241
      %v4243 = vpop.f32.mrb[0].mxu0
      %4244 = vmatprep.mubr.f32.mxu0 0.0
      %4245 = vmatmul.mubr.f32.gmra.mrb[0].mxu0 %v4153
      %v4246 = vpop.f32.mrb[0].mxu0
      %v4247 = vadd.f32 0.0, %v4246
      %v4248 = vpop.f32.mrb[0].mxu0
      %4249 = vmatprep.mubr.f32.mxu0 0.0
      %4250 = vmatmul.mubr.f32.gmra.mrb[0].mxu0 %v4154
      %v4251 = vpop.f32.mrb[0].mxu0
      %v4252 = vadd.f32 0.0, %v4251
      %v4253 = vpop.f32.mrb[0].mxu0
      %4254 = vmatprep.mubr.f32.mxu0 0.0
      %4255 = vmatmul.mubr.f32.gmra.mrb[0].mxu0 %v4155
      %v4256 = vpop.f32.mrb[0].mxu0
      %v4257 = vadd.f32 0.0, %v4256
      %v4258 = vpop.f32.mrb[0].mxu0
      %4259 = vmatprep.mubr.f32.mxu0 0.0
      %4260 = vmatmul.mubr.f32.gmra.mrb[0].mxu0 %v4156
      %v4261 = vpop.f32.mrb[0].mxu0
      %v4262 = vadd.f32 0.0, %v4261
      %v4263 = vpop.f32.mrb[0].mxu0
      %4264 = vmatprep.mubr.f32.mxu0 0.0
      %4265 = vmatmul.mubr.f32.gmra.mrb[0].mxu0 %v4157
      %v4266 = vpop.f32.mrb[0].mxu0
      %v4267 = vadd.f32 0.0, %v4266
      %v4268 = vpop.f32.mrb[0].mxu0
      %4269 = vmatprep.mubr.f32.mxu0 0.0
      %4270 = vmatmul.mubr.f32.gmra.mrb[0].mxu0 %v4158
      %v4271 = vpop.f32.mrb[0].mxu0
      %v4272 = vadd.f32 0.0, %v4271
      %v4273 = vpop.f32.mrb[0].mxu0
      %4274 = vdwg.mxu0
      %v4275 = vadd.f32 %v4145, %v4242
      %v4276 = vadd.f32 %v4146, %v4247
      %v4277 = vadd.f32 %v4147, %v4252
      %v4278 = vadd.f32 %v4148, %v4257
      %v4279 = vadd.f32 %v4149, %v4262
      %v4280 = vadd.f32 %v4150, %v4267
      %v4281 = vadd.f32 %v4151, %v4272
      %v4282 = vld [vmem:[#allocation2 + $0x80] sm:$0xff]
      %v4283 = vld [vmem:[#allocation2 + $0x88] sm:$0xff]
      %v4284 = vld [vmem:[#allocation2 + $0x90] sm:$0xff]
      %v4285 = vld [vmem:[#allocation2 + $0x98] sm:$0xff]
      %v4286 = vld [vmem:[#allocation2 + $0xa0] sm:$0xff]
      %v4287 = vld [vmem:[#allocation2 + $0xa8] sm:$0xff]
      %v4288 = vld [vmem:[#allocation2 + $0xb0] sm:$0x3f]
      %v4289 = vld [vmem:[%s1577] sm:$0xff]
      %v4290 = vld [vmem:[%s1577 + $0x8] sm:$0xff]
      %v4291 = vld [vmem:[%s1577 + $0x10] sm:$0xff]
      %v4292 = vld [vmem:[%s1577 + $0x18] sm:$0xff]
      %v4293 = vld [vmem:[%s1577 + $0x20] sm:$0xff]
      %v4294 = vld [vmem:[%s1577 + $0x28] sm:$0xff]
      %v4295 = vld [vmem:[%s1577 + $0x30] sm:$0xff]
      %v4296 = vld [vmem:[%s1577 + $0x38] sm:$0xff]
      %v4297 = vld [vmem:[%s1577 + $0x40] sm:$0xff]
      %v4298 = vld [vmem:[%s1577 + $0x48] sm:$0xff]
      %v4299 = vld [vmem:[%s1577 + $0x50] sm:$0xff]
      %v4300 = vld [vmem:[%s1577 + $0x58] sm:$0xff]
      %v4301 = vld [vmem:[%s1577 + $0x60] sm:$0xff]
      %v4302 = vld [vmem:[%s1577 + $0x68] sm:$0xff]
      %v4303 = vld [vmem:[%s1577 + $0x70] sm:$0xff]
      %v4304 = vld [vmem:[%s1577 + $0x78] sm:$0xff]
      %4305 = vmatprep.subr.mxu0 0.0
      %4306 = vmatpush1.msra.mxu0 %v4289
      %4307 = vmatprep.subr.mxu0 0.0
      %4308 = vmatpush1.msra.mxu0 %v4290
      %4309 = vmatprep.subr.mxu0 0.0
      %4310 = vmatpush1.msra.mxu0 %v4291
      %4311 = vmatprep.subr.mxu0 0.0
      %4312 = vmatpush1.msra.mxu0 %v4292
      %4313 = vmatprep.subr.mxu0 0.0
      %4314 = vmatpush1.msra.mxu0 %v4293
      %4315 = vmatprep.subr.mxu0 0.0
      %4316 = vmatpush1.msra.mxu0 %v4294
      %4317 = vmatprep.subr.mxu0 0.0
      %4318 = vmatpush1.msra.mxu0 %v4295
      %4319 = vmatprep.subr.mxu0 0.0
      %4320 = vmatpush1.msra.mxu0 %v4296
      %4321 = vmatprep.subr.mxu0 0.0
      %4322 = vmatpush1.msra.mxu0 %v4297
      %4323 = vmatprep.subr.mxu0 0.0
      %4324 = vmatpush1.msra.mxu0 %v4298
      %4325 = vmatprep.subr.mxu0 0.0
      %4326 = vmatpush1.msra.mxu0 %v4299
      %4327 = vmatprep.subr.mxu0 0.0
      %4328 = vmatpush1.msra.mxu0 %v4300
      %4329 = vmatprep.subr.mxu0 0.0
      %4330 = vmatpush1.msra.mxu0 %v4301
      %4331 = vmatprep.subr.mxu0 0.0
      %4332 = vmatpush1.msra.mxu0 %v4302
      %4333 = vmatprep.subr.mxu0 0.0
      %4334 = vmatpush1.msra.mxu0 %v4303
      %4335 = vmatprep.subr.mxu0 0.0
      %4336 = vmatpush1.msra.mxu0 %v4304
      %4337 = vmatprep.subr.mxu0 0.0
      %4338 = vmatpush1.msra.mxu0 0.0
      %4339 = vmatprep.subr.mxu0 0.0
      %4340 = vmatpush1.msra.mxu0 0.0
      %4341 = vmatprep.subr.mxu0 0.0
      %4342 = vmatpush1.msra.mxu0 0.0
      %4343 = vmatprep.subr.mxu0 0.0
      %4344 = vmatpush1.msra.mxu0 0.0
      %4345 = vmatprep.subr.mxu0 0.0
      %4346 = vmatpush1.msra.mxu0 0.0
      %4347 = vmatprep.subr.mxu0 0.0
      %4348 = vmatpush1.msra.mxu0 0.0
      %4349 = vmatprep.subr.mxu0 0.0
      %4350 = vmatpush1.msra.mxu0 0.0
      %4351 = vmatprep.subr.mxu0 0.0
      %4352 = vmatpush1.msra.mxu0 0.0
      %4353 = vmatprep.subr.mxu0 0.0
      %4354 = vmatpush1.msra.mxu0 0.0
      %4355 = vmatprep.subr.mxu0 0.0
      %4356 = vmatpush1.msra.mxu0 0.0
      %4357 = vmatprep.subr.mxu0 0.0
      %4358 = vmatpush1.msra.mxu0 0.0
      %4359 = vmatprep.subr.mxu0 0.0
      %4360 = vmatpush1.msra.mxu0 0.0
      %4361 = vmatprep.subr.mxu0 0.0
      %4362 = vmatpush1.msra.mxu0 0.0
      %4363 = vmatprep.subr.mxu0 0.0
      %4364 = vmatpush1.msra.mxu0 0.0
      %4365 = vmatprep.subr.mxu0 0.0
      %4366 = vmatpush1.msra.mxu0 0.0
      %4367 = vmatprep.subr.mxu0 0.0
      %4368 = vmatpush1.msra.mxu0 0.0
      %4369 = vmatprep.mubr.f32.mxu0 0.0
      %4370 = vmatmul.mubr.f32.gmra.mrb[0].mxu0 %v4282
      %v4371 = vpop.f32.mrb[0].mxu0
      %v4372 = vadd.f32 0.0, %v4371
      %v4373 = vpop.f32.mrb[0].mxu0
      %4374 = vmatprep.mubr.f32.mxu0 0.0
      %4375 = vmatmul.mubr.f32.gmra.mrb[0].mxu0 %v4283
      %v4376 = vpop.f32.mrb[0].mxu0
      %v4377 = vadd.f32 0.0, %v4376
      %v4378 = vpop.f32.mrb[0].mxu0
      %4379 = vmatprep.mubr.f32.mxu0 0.0
      %4380 = vmatmul.mubr.f32.gmra.mrb[0].mxu0 %v4284
      %v4381 = vpop.f32.mrb[0].mxu0
      %v4382 = vadd.f32 0.0, %v4381
      %v4383 = vpop.f32.mrb[0].mxu0
      %4384 = vmatprep.mubr.f32.mxu0 0.0
      %4385 = vmatmul.mubr.f32.gmra.mrb[0].mxu0 %v4285
      %v4386 = vpop.f32.mrb[0].mxu0
      %v4387 = vadd.f32 0.0, %v4386
      %v4388 = vpop.f32.mrb[0].mxu0
      %4389 = vmatprep.mubr.f32.mxu0 0.0
      %4390 = vmatmul.mubr.f32.gmra.mrb[0].mxu0 %v4286
      %v4391 = vpop.f32.mrb[0].mxu0
      %v4392 = vadd.f32 0.0, %v4391
      %v4393 = vpop.f32.mrb[0].mxu0
      %4394 = vmatprep.mubr.f32.mxu0 0.0
      %4395 = vmatmul.mubr.f32.gmra.mrb[0].mxu0 %v4287
      %v4396 = vpop.f32.mrb[0].mxu0
      %v4397 = vadd.f32 0.0, %v4396
      %v4398 = vpop.f32.mrb[0].mxu0
      %4399 = vmatprep.mubr.f32.mxu0 0.0
      %4400 = vmatmul.mubr.f32.gmra.mrb[0].mxu0 %v4288
      %v4401 = vpop.f32.mrb[0].mxu0
      %v4402 = vadd.f32 0.0, %v4401
      %v4403 = vpop.f32.mrb[0].mxu0
      %4404 = vdwg.mxu0
      %v4405 = vadd.f32 %v4275, %v4372
      %v4406 = vadd.f32 %v4276, %v4377
      %v4407 = vadd.f32 %v4277, %v4382
      %v4408 = vadd.f32 %v4278, %v4387
      %v4409 = vadd.f32 %v4279, %v4392
      %v4410 = vadd.f32 %v4280, %v4397
      %v4411 = vadd.f32 %v4281, %v4402
      %v4412 = vld [vmem:[#allocation2 + $0x90] sm:$0xff]
      %v4413 = vld [vmem:[#allocation2 + $0x98] sm:$0xff]
      %v4414 = vld [vmem:[#allocation2 + $0xa0] sm:$0xff]
      %v4415 = vld [vmem:[#allocation2 + $0xa8] sm:$0xff]
      %v4416 = vld [vmem:[#allocation2 + $0xb0] sm:$0xff]
      %v4417 = vld [vmem:[#allocation2 + $0xb8] sm:$0xff]
      %v4418 = vld [vmem:[#allocation2 + $0xc0] sm:$0x3f]
      %v4419 = vld [vmem:[%s1708] sm:$0xff]
      %v4420 = vld [vmem:[%s1708 + $0x8] sm:$0xff]
      %v4421 = vld [vmem:[%s1708 + $0x10] sm:$0xff]
      %v4422 = vld [vmem:[%s1708 + $0x18] sm:$0xff]
      %v4423 = vld [vmem:[%s1708 + $0x20] sm:$0xff]
      %v4424 = vld [vmem:[%s1708 + $0x28] sm:$0xff]
      %v4425 = vld [vmem:[%s1708 + $0x30] sm:$0xff]
      %v4426 = vld [vmem:[%s1708 + $0x38] sm:$0xff]
      %v4427 = vld [vmem:[%s1708 + $0x40] sm:$0xff]
      %v4428 = vld [vmem:[%s1708 + $0x48] sm:$0xff]
      %v4429 = vld [vmem:[%s1708 + $0x50] sm:$0xff]
      %v4430 = vld [vmem:[%s1708 + $0x58] sm:$0xff]
      %v4431 = vld [vmem:[%s1708 + $0x60] sm:$0xff]
      %v4432 = vld [vmem:[%s1708 + $0x68] sm:$0xff]
      %v4433 = vld [vmem:[%s1708 + $0x70] sm:$0xff]
      %v4434 = vld [vmem:[%s1708 + $0x78] sm:$0xff]
      %4435 = vmatprep.subr.mxu0 0.0
      %4436 = vmatpush1.msra.mxu0 %v4419
      %4437 = vmatprep.subr.mxu0 0.0
      %4438 = vmatpush1.msra.mxu0 %v4420
      %4439 = vmatprep.subr.mxu0 0.0
      %4440 = vmatpush1.msra.mxu0 %v4421
      %4441 = vmatprep.subr.mxu0 0.0
      %4442 = vmatpush1.msra.mxu0 %v4422
      %4443 = vmatprep.subr.mxu0 0.0
      %4444 = vmatpush1.msra.mxu0 %v4423
      %4445 = vmatprep.subr.mxu0 0.0
      %4446 = vmatpush1.msra.mxu0 %v4424
      %4447 = vmatprep.subr.mxu0 0.0
      %4448 = vmatpush1.msra.mxu0 %v4425
      %4449 = vmatprep.subr.mxu0 0.0
      %4450 = vmatpush1.msra.mxu0 %v4426
      %4451 = vmatprep.subr.mxu0 0.0
      %4452 = vmatpush1.msra.mxu0 %v4427
      %4453 = vmatprep.subr.mxu0 0.0
      %4454 = vmatpush1.msra.mxu0 %v4428
      %4455 = vmatprep.subr.mxu0 0.0
      %4456 = vmatpush1.msra.mxu0 %v4429
      %4457 = vmatprep.subr.mxu0 0.0
      %4458 = vmatpush1.msra.mxu0 %v4430
      %4459 = vmatprep.subr.mxu0 0.0
      %4460 = vmatpush1.msra.mxu0 %v4431
      %4461 = vmatprep.subr.mxu0 0.0
      %4462 = vmatpush1.msra.mxu0 %v4432
      %4463 = vmatprep.subr.mxu0 0.0
      %4464 = vmatpush1.msra.mxu0 %v4433
      %4465 = vmatprep.subr.mxu0 0.0
      %4466 = vmatpush1.msra.mxu0 %v4434
      %4467 = vmatprep.subr.mxu0 0.0
      %4468 = vmatpush1.msra.mxu0 0.0
      %4469 = vmatprep.subr.mxu0 0.0
      %4470 = vmatpush1.msra.mxu0 0.0
      %4471 = vmatprep.subr.mxu0 0.0
      %4472 = vmatpush1.msra.mxu0 0.0
      %4473 = vmatprep.subr.mxu0 0.0
      %4474 = vmatpush1.msra.mxu0 0.0
      %4475 = vmatprep.subr.mxu0 0.0
      %4476 = vmatpush1.msra.mxu0 0.0
      %4477 = vmatprep.subr.mxu0 0.0
      %4478 = vmatpush1.msra.mxu0 0.0
      %4479 = vmatprep.subr.mxu0 0.0
      %4480 = vmatpush1.msra.mxu0 0.0
      %4481 = vmatprep.subr.mxu0 0.0
      %4482 = vmatpush1.msra.mxu0 0.0
      %4483 = vmatprep.subr.mxu0 0.0
      %4484 = vmatpush1.msra.mxu0 0.0
      %4485 = vmatprep.subr.mxu0 0.0
      %4486 = vmatpush1.msra.mxu0 0.0
      %4487 = vmatprep.subr.mxu0 0.0
      %4488 = vmatpush1.msra.mxu0 0.0
      %4489 = vmatprep.subr.mxu0 0.0
      %4490 = vmatpush1.msra.mxu0 0.0
      %4491 = vmatprep.subr.mxu0 0.0
      %4492 = vmatpush1.msra.mxu0 0.0
      %4493 = vmatprep.subr.mxu0 0.0
      %4494 = vmatpush1.msra.mxu0 0.0
      %4495 = vmatprep.subr.mxu0 0.0
      %4496 = vmatpush1.msra.mxu0 0.0
      %4497 = vmatprep.subr.mxu0 0.0
      %4498 = vmatpush1.msra.mxu0 0.0
      %4499 = vmatprep.mubr.f32.mxu0 0.0
      %4500 = vmatmul.mubr.f32.gmra.mrb[0].mxu0 %v4412
      %v4501 = vpop.f32.mrb[0].mxu0
      %v4502 = vadd.f32 0.0, %v4501
      %v4503 = vpop.f32.mrb[0].mxu0
      %4504 = vmatprep.mubr.f32.mxu0 0.0
      %4505 = vmatmul.mubr.f32.gmra.mrb[0].mxu0 %v4413
      %v4506 = vpop.f32.mrb[0].mxu0
      %v4507 = vadd.f32 0.0, %v4506
      %v4508 = vpop.f32.mrb[0].mxu0
      %4509 = vmatprep.mubr.f32.mxu0 0.0
      %4510 = vmatmul.mubr.f32.gmra.mrb[0].mxu0 %v4414
      %v4511 = vpop.f32.mrb[0].mxu0
      %v4512 = vadd.f32 0.0, %v4511
      %v4513 = vpop.f32.mrb[0].mxu0
      %4514 = vmatprep.mubr.f32.mxu0 0.0
      %4515 = vmatmul.mubr.f32.gmra.mrb[0].mxu0 %v4415
      %v4516 = vpop.f32.mrb[0].mxu0
      %v4517 = vadd.f32 0.0, %v4516
      %v4518 = vpop.f32.mrb[0].mxu0
      %4519 = vmatprep.mubr.f32.mxu0 0.0
      %4520 = vmatmul.mubr.f32.gmra.mrb[0].mxu0 %v4416
      %v4521 = vpop.f32.mrb[0].mxu0
      %v4522 = vadd.f32 0.0, %v4521
      %v4523 = vpop.f32.mrb[0].mxu0
      %4524 = vmatprep.mubr.f32.mxu0 0.0
      %4525 = vmatmul.mubr.f32.gmra.mrb[0].mxu0 %v4417
      %v4526 = vpop.f32.mrb[0].mxu0
      %v4527 = vadd.f32 0.0, %v4526
      %v4528 = vpop.f32.mrb[0].mxu0
      %4529 = vmatprep.mubr.f32.mxu0 0.0
      %4530 = vmatmul.mubr.f32.gmra.mrb[0].mxu0 %v4418
      %v4531 = vpop.f32.mrb[0].mxu0
      %v4532 = vadd.f32 0.0, %v4531
      %v4533 = vpop.f32.mrb[0].mxu0
      %4534 = vdwg.mxu0
      %v4535 = vadd.f32 %v4405, %v4502
      %v4536 = vadd.f32 %v4406, %v4507
      %v4537 = vadd.f32 %v4407, %v4512
      %v4538 = vadd.f32 %v4408, %v4517
      %v4539 = vadd.f32 %v4409, %v4522
      %v4540 = vadd.f32 %v4410, %v4527
      %v4541 = vadd.f32 %v4411, %v4532
      %v4542 = vld [vmem:[#allocation2 + $0x91] sm:$0xff]
      %v4543 = vld [vmem:[#allocation2 + $0x99] sm:$0xff]
      %v4544 = vld [vmem:[#allocation2 + $0xa1] sm:$0xff]
      %v4545 = vld [vmem:[#allocation2 + $0xa9] sm:$0xff]
      %v4546 = vld [vmem:[#allocation2 + $0xb1] sm:$0xff]
      %v4547 = vld [vmem:[#allocation2 + $0xb9] sm:$0xff]
      %v4548 = vld [vmem:[#allocation2 + $0xc1] sm:$0x3f]
      %v4549 = vld [vmem:[%s1839] sm:$0xff]
      %v4550 = vld [vmem:[%s1839 + $0x8] sm:$0xff]
      %v4551 = vld [vmem:[%s1839 + $0x10] sm:$0xff]
      %v4552 = vld [vmem:[%s1839 + $0x18] sm:$0xff]
      %v4553 = vld [vmem:[%s1839 + $0x20] sm:$0xff]
      %v4554 = vld [vmem:[%s1839 + $0x28] sm:$0xff]
      %v4555 = vld [vmem:[%s1839 + $0x30] sm:$0xff]
      %v4556 = vld [vmem:[%s1839 + $0x38] sm:$0xff]
      %v4557 = vld [vmem:[%s1839 + $0x40] sm:$0xff]
      %v4558 = vld [vmem:[%s1839 + $0x48] sm:$0xff]
      %v4559 = vld [vmem:[%s1839 + $0x50] sm:$0xff]
      %v4560 = vld [vmem:[%s1839 + $0x58] sm:$0xff]
      %v4561 = vld [vmem:[%s1839 + $0x60] sm:$0xff]
      %v4562 = vld [vmem:[%s1839 + $0x68] sm:$0xff]
      %v4563 = vld [vmem:[%s1839 + $0x70] sm:$0xff]
      %v4564 = vld [vmem:[%s1839 + $0x78] sm:$0xff]
      %4565 = vmatprep.subr.mxu0 0.0
      %4566 = vmatpush1.msra.mxu0 %v4549
      %4567 = vmatprep.subr.mxu0 0.0
      %4568 = vmatpush1.msra.mxu0 %v4550
      %4569 = vmatprep.subr.mxu0 0.0
      %4570 = vmatpush1.msra.mxu0 %v4551
      %4571 = vmatprep.subr.mxu0 0.0
      %4572 = vmatpush1.msra.mxu0 %v4552
      %4573 = vmatprep.subr.mxu0 0.0
      %4574 = vmatpush1.msra.mxu0 %v4553
      %4575 = vmatprep.subr.mxu0 0.0
      %4576 = vmatpush1.msra.mxu0 %v4554
      %4577 = vmatprep.subr.mxu0 0.0
      %4578 = vmatpush1.msra.mxu0 %v4555
      %4579 = vmatprep.subr.mxu0 0.0
      %4580 = vmatpush1.msra.mxu0 %v4556
      %4581 = vmatprep.subr.mxu0 0.0
      %4582 = vmatpush1.msra.mxu0 %v4557
      %4583 = vmatprep.subr.mxu0 0.0
      %4584 = vmatpush1.msra.mxu0 %v4558
      %4585 = vmatprep.subr.mxu0 0.0
      %4586 = vmatpush1.msra.mxu0 %v4559
      %4587 = vmatprep.subr.mxu0 0.0
      %4588 = vmatpush1.msra.mxu0 %v4560
      %4589 = vmatprep.subr.mxu0 0.0
      %4590 = vmatpush1.msra.mxu0 %v4561
      %4591 = vmatprep.subr.mxu0 0.0
      %4592 = vmatpush1.msra.mxu0 %v4562
      %4593 = vmatprep.subr.mxu0 0.0
      %4594 = vmatpush1.msra.mxu0 %v4563
      %4595 = vmatprep.subr.mxu0 0.0
      %4596 = vmatpush1.msra.mxu0 %v4564
      %4597 = vmatprep.subr.mxu0 0.0
      %4598 = vmatpush1.msra.mxu0 0.0
      %4599 = vmatprep.subr.mxu0 0.0
      %4600 = vmatpush1.msra.mxu0 0.0
      %4601 = vmatprep.subr.mxu0 0.0
      %4602 = vmatpush1.msra.mxu0 0.0
      %4603 = vmatprep.subr.mxu0 0.0
      %4604 = vmatpush1.msra.mxu0 0.0
      %4605 = vmatprep.subr.mxu0 0.0
      %4606 = vmatpush1.msra.mxu0 0.0
      %4607 = vmatprep.subr.mxu0 0.0
      %4608 = vmatpush1.msra.mxu0 0.0
      %4609 = vmatprep.subr.mxu0 0.0
      %4610 = vmatpush1.msra.mxu0 0.0
      %4611 = vmatprep.subr.mxu0 0.0
      %4612 = vmatpush1.msra.mxu0 0.0
      %4613 = vmatprep.subr.mxu0 0.0
      %4614 = vmatpush1.msra.mxu0 0.0
      %4615 = vmatprep.subr.mxu0 0.0
      %4616 = vmatpush1.msra.mxu0 0.0
      %4617 = vmatprep.subr.mxu0 0.0
      %4618 = vmatpush1.msra.mxu0 0.0
      %4619 = vmatprep.subr.mxu0 0.0
      %4620 = vmatpush1.msra.mxu0 0.0
      %4621 = vmatprep.subr.mxu0 0.0
      %4622 = vmatpush1.msra.mxu0 0.0
      %4623 = vmatprep.subr.mxu0 0.0
      %4624 = vmatpush1.msra.mxu0 0.0
      %4625 = vmatprep.subr.mxu0 0.0
      %4626 = vmatpush1.msra.mxu0 0.0
      %4627 = vmatprep.subr.mxu0 0.0
      %4628 = vmatpush1.msra.mxu0 0.0
      %4629 = vmatprep.mubr.f32.mxu0 0.0
      %4630 = vmatmul.mubr.f32.gmra.mrb[0].mxu0 %v4542
      %v4631 = vpop.f32.mrb[0].mxu0
      %v4632 = vadd.f32 0.0, %v4631
      %v4633 = vpop.f32.mrb[0].mxu0
      %4634 = vmatprep.mubr.f32.mxu0 0.0
      %4635 = vmatmul.mubr.f32.gmra.mrb[0].mxu0 %v4543
      %v4636 = vpop.f32.mrb[0].mxu0
      %v4637 = vadd.f32 0.0, %v4636
      %v4638 = vpop.f32.mrb[0].mxu0
      %4639 = vmatprep.mubr.f32.mxu0 0.0
      %4640 = vmatmul.mubr.f32.gmra.mrb[0].mxu0 %v4544
      %v4641 = vpop.f32.mrb[0].mxu0
      %v4642 = vadd.f32 0.0, %v4641
      %v4643 = vpop.f32.mrb[0].mxu0
      %4644 = vmatprep.mubr.f32.mxu0 0.0
      %4645 = vmatmul.mubr.f32.gmra.mrb[0].mxu0 %v4545
      %v4646 = vpop.f32.mrb[0].mxu0
      %v4647 = vadd.f32 0.0, %v4646
      %v4648 = vpop.f32.mrb[0].mxu0
      %4649 = vmatprep.mubr.f32.mxu0 0.0
      %4650 = vmatmul.mubr.f32.gmra.mrb[0].mxu0 %v4546
      %v4651 = vpop.f32.mrb[0].mxu0
      %v4652 = vadd.f32 0.0, %v4651
      %v4653 = vpop.f32.mrb[0].mxu0
      %4654 = vmatprep.mubr.f32.mxu0 0.0
      %4655 = vmatmul.mubr.f32.gmra.mrb[0].mxu0 %v4547
      %v4656 = vpop.f32.mrb[0].mxu0
      %v4657 = vadd.f32 0.0, %v4656
      %v4658 = vpop.f32.mrb[0].mxu0
      %4659 = vmatprep.mubr.f32.mxu0 0.0
      %4660 = vmatmul.mubr.f32.gmra.mrb[0].mxu0 %v4548
      %v4661 = vpop.f32.mrb[0].mxu0
      %v4662 = vadd.f32 0.0, %v4661
      %v4663 = vpop.f32.mrb[0].mxu0
      %4664 = vdwg.mxu0
      %v4665 = vadd.f32 %v4535, %v4632
      %v4666 = vadd.f32 %v4536, %v4637
      %v4667 = vadd.f32 %v4537, %v4642
      %v4668 = vadd.f32 %v4538, %v4647
      %v4669 = vadd.f32 %v4539, %v4652
      %v4670 = vadd.f32 %v4540, %v4657
      %v4671 = vadd.f32 %v4541, %v4662
      %v4672 = vld [vmem:[#allocation2 + $0x92] sm:$0xff]
      %v4673 = vld [vmem:[#allocation2 + $0x9a] sm:$0xff]
      %v4674 = vld [vmem:[#allocation2 + $0xa2] sm:$0xff]
      %v4675 = vld [vmem:[#allocation2 + $0xaa] sm:$0xff]
      %v4676 = vld [vmem:[#allocation2 + $0xb2] sm:$0xff]
      %v4677 = vld [vmem:[#allocation2 + $0xba] sm:$0xff]
      %v4678 = vld [vmem:[#allocation2 + $0xc2] sm:$0x3f]
      %v4679 = vld [vmem:[%s1970] sm:$0xff]
      %v4680 = vld [vmem:[%s1970 + $0x8] sm:$0xff]
      %v4681 = vld [vmem:[%s1970 + $0x10] sm:$0xff]
      %v4682 = vld [vmem:[%s1970 + $0x18] sm:$0xff]
      %v4683 = vld [vmem:[%s1970 + $0x20] sm:$0xff]
      %v4684 = vld [vmem:[%s1970 + $0x28] sm:$0xff]
      %v4685 = vld [vmem:[%s1970 + $0x30] sm:$0xff]
      %v4686 = vld [vmem:[%s1970 + $0x38] sm:$0xff]
      %v4687 = vld [vmem:[%s1970 + $0x40] sm:$0xff]
      %v4688 = vld [vmem:[%s1970 + $0x48] sm:$0xff]
      %v4689 = vld [vmem:[%s1970 + $0x50] sm:$0xff]
      %v4690 = vld [vmem:[%s1970 + $0x58] sm:$0xff]
      %v4691 = vld [vmem:[%s1970 + $0x60] sm:$0xff]
      %v4692 = vld [vmem:[%s1970 + $0x68] sm:$0xff]
      %v4693 = vld [vmem:[%s1970 + $0x70] sm:$0xff]
      %v4694 = vld [vmem:[%s1970 + $0x78] sm:$0xff]
      %4695 = vmatprep.subr.mxu0 0.0
      %4696 = vmatpush1.msra.mxu0 %v4679
      %4697 = vmatprep.subr.mxu0 0.0
      %4698 = vmatpush1.msra.mxu0 %v4680
      %4699 = vmatprep.subr.mxu0 0.0
      %4700 = vmatpush1.msra.mxu0 %v4681
      %4701 = vmatprep.subr.mxu0 0.0
      %4702 = vmatpush1.msra.mxu0 %v4682
      %4703 = vmatprep.subr.mxu0 0.0
      %4704 = vmatpush1.msra.mxu0 %v4683
      %4705 = vmatprep.subr.mxu0 0.0
      %4706 = vmatpush1.msra.mxu0 %v4684
      %4707 = vmatprep.subr.mxu0 0.0
      %4708 = vmatpush1.msra.mxu0 %v4685
      %4709 = vmatprep.subr.mxu0 0.0
      %4710 = vmatpush1.msra.mxu0 %v4686
      %4711 = vmatprep.subr.mxu0 0.0
      %4712 = vmatpush1.msra.mxu0 %v4687
      %4713 = vmatprep.subr.mxu0 0.0
      %4714 = vmatpush1.msra.mxu0 %v4688
      %4715 = vmatprep.subr.mxu0 0.0
      %4716 = vmatpush1.msra.mxu0 %v4689
      %4717 = vmatprep.subr.mxu0 0.0
      %4718 = vmatpush1.msra.mxu0 %v4690
      %4719 = vmatprep.subr.mxu0 0.0
      %4720 = vmatpush1.msra.mxu0 %v4691
      %4721 = vmatprep.subr.mxu0 0.0
      %4722 = vmatpush1.msra.mxu0 %v4692
      %4723 = vmatprep.subr.mxu0 0.0
      %4724 = vmatpush1.msra.mxu0 %v4693
      %4725 = vmatprep.subr.mxu0 0.0
      %4726 = vmatpush1.msra.mxu0 %v4694
      %4727 = vmatprep.subr.mxu0 0.0
      %4728 = vmatpush1.msra.mxu0 0.0
      %4729 = vmatprep.subr.mxu0 0.0
      %4730 = vmatpush1.msra.mxu0 0.0
      %4731 = vmatprep.subr.mxu0 0.0
      %4732 = vmatpush1.msra.mxu0 0.0
      %4733 = vmatprep.subr.mxu0 0.0
      %4734 = vmatpush1.msra.mxu0 0.0
      %4735 = vmatprep.subr.mxu0 0.0
      %4736 = vmatpush1.msra.mxu0 0.0
      %4737 = vmatprep.subr.mxu0 0.0
      %4738 = vmatpush1.msra.mxu0 0.0
      %4739 = vmatprep.subr.mxu0 0.0
      %4740 = vmatpush1.msra.mxu0 0.0
      %4741 = vmatprep.subr.mxu0 0.0
      %4742 = vmatpush1.msra.mxu0 0.0
      %4743 = vmatprep.subr.mxu0 0.0
      %4744 = vmatpush1.msra.mxu0 0.0
      %4745 = vmatprep.subr.mxu0 0.0
      %4746 = vmatpush1.msra.mxu0 0.0
      %4747 = vmatprep.subr.mxu0 0.0
      %4748 = vmatpush1.msra.mxu0 0.0
      %4749 = vmatprep.subr.mxu0 0.0
      %4750 = vmatpush1.msra.mxu0 0.0
      %4751 = vmatprep.subr.mxu0 0.0
      %4752 = vmatpush1.msra.mxu0 0.0
      %4753 = vmatprep.subr.mxu0 0.0
      %4754 = vmatpush1.msra.mxu0 0.0
      %4755 = vmatprep.subr.mxu0 0.0
      %4756 = vmatpush1.msra.mxu0 0.0
      %4757 = vmatprep.subr.mxu0 0.0
      %4758 = vmatpush1.msra.mxu0 0.0
      %4759 = vmatprep.mubr.f32.mxu0 0.0
      %4760 = vmatmul.mubr.f32.gmra.mrb[0].mxu0 %v4672
      %v4761 = vpop.f32.mrb[0].mxu0
      %v4762 = vadd.f32 0.0, %v4761
      %v4763 = vpop.f32.mrb[0].mxu0
      %4764 = vmatprep.mubr.f32.mxu0 0.0
      %4765 = vmatmul.mubr.f32.gmra.mrb[0].mxu0 %v4673
      %v4766 = vpop.f32.mrb[0].mxu0
      %v4767 = vadd.f32 0.0, %v4766
      %v4768 = vpop.f32.mrb[0].mxu0
      %4769 = vmatprep.mubr.f32.mxu0 0.0
      %4770 = vmatmul.mubr.f32.gmra.mrb[0].mxu0 %v4674
      %v4771 = vpop.f32.mrb[0].mxu0
      %v4772 = vadd.f32 0.0, %v4771
      %v4773 = vpop.f32.mrb[0].mxu0
      %4774 = vmatprep.mubr.f32.mxu0 0.0
      %4775 = vmatmul.mubr.f32.gmra.mrb[0].mxu0 %v4675
      %v4776 = vpop.f32.mrb[0].mxu0
      %v4777 = vadd.f32 0.0, %v4776
      %v4778 = vpop.f32.mrb[0].mxu0
      %4779 = vmatprep.mubr.f32.mxu0 0.0
      %4780 = vmatmul.mubr.f32.gmra.mrb[0].mxu0 %v4676
      %v4781 = vpop.f32.mrb[0].mxu0
      %v4782 = vadd.f32 0.0, %v4781
      %v4783 = vpop.f32.mrb[0].mxu0
      %4784 = vmatprep.mubr.f32.mxu0 0.0
      %4785 = vmatmul.mubr.f32.gmra.mrb[0].mxu0 %v4677
      %v4786 = vpop.f32.mrb[0].mxu0
      %v4787 = vadd.f32 0.0, %v4786
      %v4788 = vpop.f32.mrb[0].mxu0
      %4789 = vmatprep.mubr.f32.mxu0 0.0
      %4790 = vmatmul.mubr.f32.gmra.mrb[0].mxu0 %v4678
      %v4791 = vpop.f32.mrb[0].mxu0
      %v4792 = vadd.f32 0.0, %v4791
      %v4793 = vpop.f32.mrb[0].mxu0
      %4794 = vdwg.mxu0
      %v4795 = vadd.f32 %v4665, %v4762
      %v4796 = vadd.f32 %v4666, %v4767
      %v4797 = vadd.f32 %v4667, %v4772
      %v4798 = vadd.f32 %v4668, %v4777
      %v4799 = vadd.f32 %v4669, %v4782
      %v4800 = vadd.f32 %v4670, %v4787
      %v4801 = vadd.f32 %v4671, %v4792
      %v4802 = vld [vmem:[%s4] sm:$0x1]
      %v4804 = vlaneseq
      %v4805 = vshrl.u32 %v4804, 7
      %v4806 = vsub.s32 0, %v4805
      %v4807 = vrot.slane %v4802, %v4806
      %v4809 = vadd.f32 %v4795, %v4807
      %v4810 = vadd.f32 %v4796, %v4807
      %v4811 = vadd.f32 %v4797, %v4807
      %v4812 = vadd.f32 %v4798, %v4807
      %v4813 = vadd.f32 %v4799, %v4807
      %v4814 = vadd.f32 %v4800, %v4807
      %v4815 = vadd.f32 %v4801, %v4807
      %v4816 = vmax.f32 %v4809, 0.0
      %v4817 = vmax.f32 %v4810, 0.0
      %v4818 = vmax.f32 %v4811, 0.0
      %v4819 = vmax.f32 %v4812, 0.0
      %v4820 = vmax.f32 %v4813, 0.0
      %v4821 = vmax.f32 %v4814, 0.0
      %v4822 = vmax.f32 %v4815, 0.0
      %v4823 = vld [vmem:[%s5] sm:$0xff]
      %v4824 = vld [vmem:[%s5 + $0x8] sm:$0xff]
      %v4825 = vld [vmem:[%s5 + $0x10] sm:$0xff]
      %v4826 = vld [vmem:[%s5 + $0x18] sm:$0xff]
      %v4827 = vld [vmem:[%s5 + $0x20] sm:$0xff]
      %v4828 = vld [vmem:[%s5 + $0x28] sm:$0xff]
      %v4829 = vld [vmem:[%s5 + $0x30] sm:$0xff]
      %v4830 = vld [vmem:[%s5 + $0x38] sm:$0xff]
      %v4831 = vld [vmem:[%s5 + $0x40] sm:$0xff]
      %v4832 = vld [vmem:[%s5 + $0x48] sm:$0xff]
      %v4833 = vld [vmem:[%s5 + $0x50] sm:$0xff]
      %v4834 = vld [vmem:[%s5 + $0x58] sm:$0xff]
      %v4835 = vld [vmem:[%s5 + $0x60] sm:$0xff]
      %v4836 = vld [vmem:[%s5 + $0x68] sm:$0xff]
      %v4837 = vld [vmem:[%s5 + $0x70] sm:$0xff]
      %v4838 = vld [vmem:[%s5 + $0x78] sm:$0xff]
      %v4839 = vld [vmem:[%s6] sm:$0x1]
      %v4841 = vlaneseq
      %v4842 = vshrl.u32 %v4841, 7
      %v4843 = vsub.s32 0, %v4842
      %v4844 = vrot.slane %v4839, %v4843
      %4846 = vmatprep.subr.mxu0 0.0
      %4847 = vmatpush1.msra.mxu0 %v4823
      %4848 = vmatprep.subr.mxu0 0.0
      %4849 = vmatpush1.msra.mxu0 %v4824
      %4850 = vmatprep.subr.mxu0 0.0
      %4851 = vmatpush1.msra.mxu0 %v4825
      %4852 = vmatprep.subr.mxu0 0.0
      %4853 = vmatpush1.msra.mxu0 %v4826
      %4854 = vmatprep.subr.mxu0 0.0
      %4855 = vmatpush1.msra.mxu0 %v4827
      %4856 = vmatprep.subr.mxu0 0.0
      %4857 = vmatpush1.msra.mxu0 %v4828
      %4858 = vmatprep.subr.mxu0 0.0
      %4859 = vmatpush1.msra.mxu0 %v4829
      %4860 = vmatprep.subr.mxu0 0.0
      %4861 = vmatpush1.msra.mxu0 %v4830
      %4862 = vmatprep.subr.mxu0 0.0
      %4863 = vmatpush1.msra.mxu0 %v4831
      %4864 = vmatprep.subr.mxu0 0.0
      %4865 = vmatpush1.msra.mxu0 %v4832
      %4866 = vmatprep.subr.mxu0 0.0
      %4867 = vmatpush1.msra.mxu0 %v4833
      %4868 = vmatprep.subr.mxu0 0.0
      %4869 = vmatpush1.msra.mxu0 %v4834
      %4870 = vmatprep.subr.mxu0 0.0
      %4871 = vmatpush1.msra.mxu0 %v4835
      %4872 = vmatprep.subr.mxu0 0.0
      %4873 = vmatpush1.msra.mxu0 %v4836
      %4874 = vmatprep.subr.mxu0 0.0
      %4875 = vmatpush1.msra.mxu0 %v4837
      %4876 = vmatprep.subr.mxu0 0.0
      %4877 = vmatpush1.msra.mxu0 %v4838
      %4878 = vmatprep.subr.mxu0 0.0
      %4879 = vmatpush1.msra.mxu0 0.0
      %4880 = vmatprep.subr.mxu0 0.0
      %4881 = vmatpush1.msra.mxu0 0.0
      %4882 = vmatprep.subr.mxu0 0.0
      %4883 = vmatpush1.msra.mxu0 0.0
      %4884 = vmatprep.subr.mxu0 0.0
      %4885 = vmatpush1.msra.mxu0 0.0
      %4886 = vmatprep.subr.mxu0 0.0
      %4887 = vmatpush1.msra.mxu0 0.0
      %4888 = vmatprep.subr.mxu0 0.0
      %4889 = vmatpush1.msra.mxu0 0.0
      %4890 = vmatprep.subr.mxu0 0.0
      %4891 = vmatpush1.msra.mxu0 0.0
      %4892 = vmatprep.subr.mxu0 0.0
      %4893 = vmatpush1.msra.mxu0 0.0
      %4894 = vmatprep.subr.mxu0 0.0
      %4895 = vmatpush1.msra.mxu0 0.0
      %4896 = vmatprep.subr.mxu0 0.0
      %4897 = vmatpush1.msra.mxu0 0.0
      %4898 = vmatprep.subr.mxu0 0.0
      %4899 = vmatpush1.msra.mxu0 0.0
      %4900 = vmatprep.subr.mxu0 0.0
      %4901 = vmatpush1.msra.mxu0 0.0
      %4902 = vmatprep.subr.mxu0 0.0
      %4903 = vmatpush1.msra.mxu0 0.0
      %4904 = vmatprep.subr.mxu0 0.0
      %4905 = vmatpush1.msra.mxu0 0.0
      %4906 = vmatprep.subr.mxu0 0.0
      %4907 = vmatpush1.msra.mxu0 0.0
      %4908 = vmatprep.subr.mxu0 0.0
      %4909 = vmatpush1.msra.mxu0 0.0
      %4910 = vmatprep.mubr.f32.mxu0 0.0
      %4911 = vmatmul.mubr.f32.gmra.mrb[0].mxu0 %v4816
      %v4912 = vpop.f32.mrb[0].mxu0
      %v4913 = vadd.f32 %v4844, %v4912
      %v4914 = vpop.f32.mrb[0].mxu0
      %4915 = vmatprep.mubr.f32.mxu0 0.0
      %4916 = vmatmul.mubr.f32.gmra.mrb[0].mxu0 %v4817
      %v4917 = vpop.f32.mrb[0].mxu0
      %v4918 = vadd.f32 %v4844, %v4917
      %v4919 = vpop.f32.mrb[0].mxu0
      %4920 = vmatprep.mubr.f32.mxu0 0.0
      %4921 = vmatmul.mubr.f32.gmra.mrb[0].mxu0 %v4818
      %v4922 = vpop.f32.mrb[0].mxu0
      %v4923 = vadd.f32 %v4844, %v4922
      %v4924 = vpop.f32.mrb[0].mxu0
      %4925 = vmatprep.mubr.f32.mxu0 0.0
      %4926 = vmatmul.mubr.f32.gmra.mrb[0].mxu0 %v4819
      %v4927 = vpop.f32.mrb[0].mxu0
      %v4928 = vadd.f32 %v4844, %v4927
      %v4929 = vpop.f32.mrb[0].mxu0
      %4930 = vmatprep.mubr.f32.mxu0 0.0
      %4931 = vmatmul.mubr.f32.gmra.mrb[0].mxu0 %v4820
      %v4932 = vpop.f32.mrb[0].mxu0
      %v4933 = vadd.f32 %v4844, %v4932
      %v4934 = vpop.f32.mrb[0].mxu0
      %4935 = vmatprep.mubr.f32.mxu0 0.0
      %4936 = vmatmul.mubr.f32.gmra.mrb[0].mxu0 %v4821
      %v4937 = vpop.f32.mrb[0].mxu0
      %v4938 = vadd.f32 %v4844, %v4937
      %v4939 = vpop.f32.mrb[0].mxu0
      %4940 = vmatprep.mubr.f32.mxu0 0.0
      %4941 = vmatmul.mubr.f32.gmra.mrb[0].mxu0 %v4822
      %v4942 = vpop.f32.mrb[0].mxu0
      %v4943 = vadd.f32 %v4844, %v4942
      %v4944 = vpop.f32.mrb[0].mxu0
      %4945 = vdwg.mxu0
      %v4946 = vmul.f32 %v4913, 0.8
      %v4947 = vmul.f32 %v4918, 0.8
      %v4948 = vmul.f32 %v4923, 0.8
      %v4949 = vmul.f32 %v4928, 0.8
      %v4950 = vmul.f32 %v4933, 0.8
      %v4951 = vmul.f32 %v4938, 0.8
      %v4952 = vmul.f32 %v4943, 0.8
      %v4953 = vld [vmem:[%s273 + $0x60] sm:$0xff]
      %v4954 = vld [vmem:[%s273 + $0x68] sm:$0xff]
      %v4955 = vadd.f32 %v4946, %v4953
      %v4956 = vadd.f32 %v4947, %v4954
      %v4957 = vmax.f32 %v4955, 0.0
      %v4958 = vmax.f32 %v4956, 0.0
      %4959 = vst [vmem:[%s278 + $0x60] sm:$0xff] %v4957
      %4960 = vst [vmem:[%s278 + $0x68] sm:$0xff] %v4958
      %v4961 = vld [vmem:[%s273 + $0x70] sm:$0xff]
      %v4962 = vld [vmem:[%s273 + $0x78] sm:$0xff]
      %v4965 = vrot.slane %v4961, 6
      %v4966 = vrot.slane %v4962, 6
      %v4967 = vsel %vm2257, %v4965, %v4966
      %v4971 = vadd.f32 %v4948, %v4965
      %v4972 = vadd.f32 %v4949, %v4967
      %v4973 = vadd.f32 %v4950, %v4966
      %v4974 = vmax.f32 %v4971, 0.0
      %v4975 = vmax.f32 %v4972, 0.0
      %v4976 = vmax.f32 %v4973, 0.0
      %4977 = vst [vmem:[%s278 + $0x6e] sm:$0xfc] %v4974
      %4978 = vst [vmem:[%s278 + $0x76] sm:$0xff] %v4975
      %4979 = vst [vmem:[%s278 + $0x7e] sm:$0x3] %v4976
      %v4980 = vld [vmem:[%s273 + $0x80] sm:$0xff]
      %v4981 = vld [vmem:[%s273 + $0x88] sm:$0xff]
      %v4984 = vrot.slane %v4980, 4
      %v4985 = vrot.slane %v4981, 4
      %v4986 = vsel %vm2277, %v4984, %v4985
      %v4990 = vadd.f32 %v4950, %v4984
      %v4991 = vadd.f32 %v4951, %v4986
      %v4992 = vadd.f32 %v4952, %v4985
      %v4993 = vmax.f32 %v4990, 0.0
      %v4994 = vmax.f32 %v4991, 0.0
      %v4995 = vmax.f32 %v4992, 0.0
      %4996 = vst [vmem:[%s278 + $0x7c] sm:$0xf0] %v4993
      %4997 = vst [vmem:[%s278 + $0x84] sm:$0xff] %v4994
      %4998 = vst [vmem:[%s278 + $0x8c] sm:$0xf] %v4995
      %v4999 = vld [vmem:[#allocation2 + $0xa2] sm:$0xff]
      %v5000 = vld [vmem:[#allocation2 + $0xaa] sm:$0xff]
      %v5001 = vld [vmem:[#allocation2 + $0xb2] sm:$0xff]
      %v5002 = vld [vmem:[#allocation2 + $0xba] sm:$0xff]
      %v5003 = vld [vmem:[#allocation2 + $0xc2] sm:$0xff]
      %v5004 = vld [vmem:[#allocation2 + $0xca] sm:$0xff]
      %v5005 = vld [vmem:[#allocation2 + $0xd2] sm:$0x3f]
      %v5006 = vld [vmem:[%s3] sm:$0xff]
      %v5007 = vld [vmem:[%s3 + $0x8] sm:$0xff]
      %v5008 = vld [vmem:[%s3 + $0x10] sm:$0xff]
      %v5009 = vld [vmem:[%s3 + $0x18] sm:$0xff]
      %v5010 = vld [vmem:[%s3 + $0x20] sm:$0xff]
      %v5011 = vld [vmem:[%s3 + $0x28] sm:$0xff]
      %v5012 = vld [vmem:[%s3 + $0x30] sm:$0xff]
      %v5013 = vld [vmem:[%s3 + $0x38] sm:$0xff]
      %v5014 = vld [vmem:[%s3 + $0x40] sm:$0xff]
      %v5015 = vld [vmem:[%s3 + $0x48] sm:$0xff]
      %v5016 = vld [vmem:[%s3 + $0x50] sm:$0xff]
      %v5017 = vld [vmem:[%s3 + $0x58] sm:$0xff]
      %v5018 = vld [vmem:[%s3 + $0x60] sm:$0xff]
      %v5019 = vld [vmem:[%s3 + $0x68] sm:$0xff]
      %v5020 = vld [vmem:[%s3 + $0x70] sm:$0xff]
      %v5021 = vld [vmem:[%s3 + $0x78] sm:$0xff]
      %v5022 = vld [vmem:[#allocation2 + $0xa3] sm:$0xff]
      %v5023 = vld [vmem:[#allocation2 + $0xab] sm:$0xff]
      %v5024 = vld [vmem:[#allocation2 + $0xb3] sm:$0xff]
      %v5025 = vld [vmem:[#allocation2 + $0xbb] sm:$0xff]
      %v5026 = vld [vmem:[#allocation2 + $0xc3] sm:$0xff]
      %v5027 = vld [vmem:[#allocation2 + $0xcb] sm:$0xff]
      %v5028 = vld [vmem:[#allocation2 + $0xd3] sm:$0x3f]
      %v5029 = vld [vmem:[%s960] sm:$0xff]
      %v5030 = vld [vmem:[%s960 + $0x8] sm:$0xff]
      %v5031 = vld [vmem:[%s960 + $0x10] sm:$0xff]
      %v5032 = vld [vmem:[%s960 + $0x18] sm:$0xff]
      %v5033 = vld [vmem:[%s960 + $0x20] sm:$0xff]
      %v5034 = vld [vmem:[%s960 + $0x28] sm:$0xff]
      %v5035 = vld [vmem:[%s960 + $0x30] sm:$0xff]
      %v5036 = vld [vmem:[%s960 + $0x38] sm:$0xff]
      %v5037 = vld [vmem:[%s960 + $0x40] sm:$0xff]
      %v5038 = vld [vmem:[%s960 + $0x48] sm:$0xff]
      %v5039 = vld [vmem:[%s960 + $0x50] sm:$0xff]
      %v5040 = vld [vmem:[%s960 + $0x58] sm:$0xff]
      %v5041 = vld [vmem:[%s960 + $0x60] sm:$0xff]
      %v5042 = vld [vmem:[%s960 + $0x68] sm:$0xff]
      %v5043 = vld [vmem:[%s960 + $0x70] sm:$0xff]
      %v5044 = vld [vmem:[%s960 + $0x78] sm:$0xff]
      %5045 = vmatprep.subr.mxu0 0.0
      %5046 = vmatpush1.msra.mxu0 %v5029
      %5047 = vmatprep.subr.mxu0 0.0
      %5048 = vmatpush1.msra.mxu0 %v5030
      %5049 = vmatprep.subr.mxu0 0.0
      %5050 = vmatpush1.msra.mxu0 %v5031
      %5051 = vmatprep.subr.mxu0 0.0
      %5052 = vmatpush1.msra.mxu0 %v5032
      %5053 = vmatprep.subr.mxu0 0.0
      %5054 = vmatpush1.msra.mxu0 %v5033
      %5055 = vmatprep.subr.mxu0 0.0
      %5056 = vmatpush1.msra.mxu0 %v5034
      %5057 = vmatprep.subr.mxu0 0.0
      %5058 = vmatpush1.msra.mxu0 %v5035
      %5059 = vmatprep.subr.mxu0 0.0
      %5060 = vmatpush1.msra.mxu0 %v5036
      %5061 = vmatprep.subr.mxu0 0.0
      %5062 = vmatpush1.msra.mxu0 %v5037
      %5063 = vmatprep.subr.mxu0 0.0
      %5064 = vmatpush1.msra.mxu0 %v5038
      %5065 = vmatprep.subr.mxu0 0.0
      %5066 = vmatpush1.msra.mxu0 %v5039
      %5067 = vmatprep.subr.mxu0 0.0
      %5068 = vmatpush1.msra.mxu0 %v5040
      %5069 = vmatprep.subr.mxu0 0.0
      %5070 = vmatpush1.msra.mxu0 %v5041
      %5071 = vmatprep.subr.mxu0 0.0
      %5072 = vmatpush1.msra.mxu0 %v5042
      %5073 = vmatprep.subr.mxu0 0.0
      %5074 = vmatpush1.msra.mxu0 %v5043
      %5075 = vmatprep.subr.mxu0 0.0
      %5076 = vmatpush1.msra.mxu0 %v5044
      %5077 = vmatprep.subr.mxu0 0.0
      %5078 = vmatpush1.msra.mxu0 0.0
      %5079 = vmatprep.subr.mxu0 0.0
      %5080 = vmatpush1.msra.mxu0 0.0
      %5081 = vmatprep.subr.mxu0 0.0
      %5082 = vmatpush1.msra.mxu0 0.0
      %5083 = vmatprep.subr.mxu0 0.0
      %5084 = vmatpush1.msra.mxu0 0.0
      %5085 = vmatprep.subr.mxu0 0.0
      %5086 = vmatpush1.msra.mxu0 0.0
      %5087 = vmatprep.subr.mxu0 0.0
      %5088 = vmatpush1.msra.mxu0 0.0
      %5089 = vmatprep.subr.mxu0 0.0
      %5090 = vmatpush1.msra.mxu0 0.0
      %5091 = vmatprep.subr.mxu0 0.0
      %5092 = vmatpush1.msra.mxu0 0.0
      %5093 = vmatprep.subr.mxu0 0.0
      %5094 = vmatpush1.msra.mxu0 0.0
      %5095 = vmatprep.subr.mxu0 0.0
      %5096 = vmatpush1.msra.mxu0 0.0
      %5097 = vmatprep.subr.mxu0 0.0
      %5098 = vmatpush1.msra.mxu0 0.0
      %5099 = vmatprep.subr.mxu0 0.0
      %5100 = vmatpush1.msra.mxu0 0.0
      %5101 = vmatprep.subr.mxu0 0.0
      %5102 = vmatpush1.msra.mxu0 0.0
      %5103 = vmatprep.subr.mxu0 0.0
      %5104 = vmatpush1.msra.mxu0 0.0
      %5105 = vmatprep.subr.mxu0 0.0
      %5106 = vmatpush1.msra.mxu0 0.0
      %5107 = vmatprep.subr.mxu0 0.0
      %5108 = vmatpush1.msra.mxu0 0.0
      %5109 = vmatprep.mubr.f32.mxu0 0.0
      %5110 = vmatmul.mubr.f32.gmra.mrb[0].mxu0 %v5022
      %v5111 = vpop.f32.mrb[0].mxu0
      %v5112 = vadd.f32 0.0, %v5111
      %v5113 = vpop.f32.mrb[0].mxu0
      %5114 = vmatprep.mubr.f32.mxu0 0.0
      %5115 = vmatmul.mubr.f32.gmra.mrb[0].mxu0 %v5023
      %v5116 = vpop.f32.mrb[0].mxu0
      %v5117 = vadd.f32 0.0, %v5116
      %v5118 = vpop.f32.mrb[0].mxu0
      %5119 = vmatprep.mubr.f32.mxu0 0.0
      %5120 = vmatmul.mubr.f32.gmra.mrb[0].mxu0 %v5024
      %v5121 = vpop.f32.mrb[0].mxu0
      %v5122 = vadd.f32 0.0, %v5121
      %v5123 = vpop.f32.mrb[0].mxu0
      %5124 = vmatprep.mubr.f32.mxu0 0.0
      %5125 = vmatmul.mubr.f32.gmra.mrb[0].mxu0 %v5025
      %v5126 = vpop.f32.mrb[0].mxu0
      %v5127 = vadd.f32 0.0, %v5126
      %v5128 = vpop.f32.mrb[0].mxu0
      %5129 = vmatprep.mubr.f32.mxu0 0.0
      %5130 = vmatmul.mubr.f32.gmra.mrb[0].mxu0 %v5026
      %v5131 = vpop.f32.mrb[0].mxu0
      %v5132 = vadd.f32 0.0, %v5131
      %v5133 = vpop.f32.mrb[0].mxu0
      %5134 = vmatprep.mubr.f32.mxu0 0.0
      %5135 = vmatmul.mubr.f32.gmra.mrb[0].mxu0 %v5027
      %v5136 = vpop.f32.mrb[0].mxu0
      %v5137 = vadd.f32 0.0, %v5136
      %v5138 = vpop.f32.mrb[0].mxu0
      %5139 = vmatprep.mubr.f32.mxu0 0.0
      %5140 = vmatmul.mubr.f32.gmra.mrb[0].mxu0 %v5028
      %v5141 = vpop.f32.mrb[0].mxu0
      %v5142 = vadd.f32 0.0, %v5141
      %v5143 = vpop.f32.mrb[0].mxu0
      %5144 = vdwg.mxu0
      %5145 = vmatprep.subr.mxu0 0.0
      %5146 = vmatpush1.msra.mxu0 %v5006
      %5147 = vmatprep.subr.mxu0 0.0
      %5148 = vmatpush1.msra.mxu0 %v5007
      %5149 = vmatprep.subr.mxu0 0.0
      %5150 = vmatpush1.msra.mxu0 %v5008
      %5151 = vmatprep.subr.mxu0 0.0
      %5152 = vmatpush1.msra.mxu0 %v5009
      %5153 = vmatprep.subr.mxu0 0.0
      %5154 = vmatpush1.msra.mxu0 %v5010
      %5155 = vmatprep.subr.mxu0 0.0
      %5156 = vmatpush1.msra.mxu0 %v5011
      %5157 = vmatprep.subr.mxu0 0.0
      %5158 = vmatpush1.msra.mxu0 %v5012
      %5159 = vmatprep.subr.mxu0 0.0
      %5160 = vmatpush1.msra.mxu0 %v5013
      %5161 = vmatprep.subr.mxu0 0.0
      %5162 = vmatpush1.msra.mxu0 %v5014
      %5163 = vmatprep.subr.mxu0 0.0
      %5164 = vmatpush1.msra.mxu0 %v5015
      %5165 = vmatprep.subr.mxu0 0.0
      %5166 = vmatpush1.msra.mxu0 %v5016
      %5167 = vmatprep.subr.mxu0 0.0
      %5168 = vmatpush1.msra.mxu0 %v5017
      %5169 = vmatprep.subr.mxu0 0.0
      %5170 = vmatpush1.msra.mxu0 %v5018
      %5171 = vmatprep.subr.mxu0 0.0
      %5172 = vmatpush1.msra.mxu0 %v5019
      %5173 = vmatprep.subr.mxu0 0.0
      %5174 = vmatpush1.msra.mxu0 %v5020
      %5175 = vmatprep.subr.mxu0 0.0
      %5176 = vmatpush1.msra.mxu0 %v5021
      %5177 = vmatprep.subr.mxu0 0.0
      %5178 = vmatpush1.msra.mxu0 0.0
      %5179 = vmatprep.subr.mxu0 0.0
      %5180 = vmatpush1.msra.mxu0 0.0
      %5181 = vmatprep.subr.mxu0 0.0
      %5182 = vmatpush1.msra.mxu0 0.0
      %5183 = vmatprep.subr.mxu0 0.0
      %5184 = vmatpush1.msra.mxu0 0.0
      %5185 = vmatprep.subr.mxu0 0.0
      %5186 = vmatpush1.msra.mxu0 0.0
      %5187 = vmatprep.subr.mxu0 0.0
      %5188 = vmatpush1.msra.mxu0 0.0
      %5189 = vmatprep.subr.mxu0 0.0
      %5190 = vmatpush1.msra.mxu0 0.0
      %5191 = vmatprep.subr.mxu0 0.0
      %5192 = vmatpush1.msra.mxu0 0.0
      %5193 = vmatprep.subr.mxu0 0.0
      %5194 = vmatpush1.msra.mxu0 0.0
      %5195 = vmatprep.subr.mxu0 0.0
      %5196 = vmatpush1.msra.mxu0 0.0
      %5197 = vmatprep.subr.mxu0 0.0
      %5198 = vmatpush1.msra.mxu0 0.0
      %5199 = vmatprep.subr.mxu0 0.0
      %5200 = vmatpush1.msra.mxu0 0.0
      %5201 = vmatprep.subr.mxu0 0.0
      %5202 = vmatpush1.msra.mxu0 0.0
      %5203 = vmatprep.subr.mxu0 0.0
      %5204 = vmatpush1.msra.mxu0 0.0
      %5205 = vmatprep.subr.mxu0 0.0
      %5206 = vmatpush1.msra.mxu0 0.0
      %5207 = vmatprep.subr.mxu0 0.0
      %5208 = vmatpush1.msra.mxu0 0.0
      %5209 = vmatprep.mubr.f32.mxu0 0.0
      %5210 = vmatmul.mubr.f32.gmra.mrb[0].mxu0 %v4999
      %v5211 = vpop.f32.mrb[0].mxu0
      %v5212 = vadd.f32 %v5112, %v5211
      %v5213 = vpop.f32.mrb[0].mxu0
      %5214 = vmatprep.mubr.f32.mxu0 0.0
      %5215 = vmatmul.mubr.f32.gmra.mrb[0].mxu0 %v5000
      %v5216 = vpop.f32.mrb[0].mxu0
      %v5217 = vadd.f32 %v5117, %v5216
      %v5218 = vpop.f32.mrb[0].mxu0
      %5219 = vmatprep.mubr.f32.mxu0 0.0
      %5220 = vmatmul.mubr.f32.gmra.mrb[0].mxu0 %v5001
      %v5221 = vpop.f32.mrb[0].mxu0
      %v5222 = vadd.f32 %v5122, %v5221
      %v5223 = vpop.f32.mrb[0].mxu0
      %5224 = vmatprep.mubr.f32.mxu0 0.0
      %5225 = vmatmul.mubr.f32.gmra.mrb[0].mxu0 %v5002
      %v5226 = vpop.f32.mrb[0].mxu0
      %v5227 = vadd.f32 %v5127, %v5226
      %v5228 = vpop.f32.mrb[0].mxu0
      %5229 = vmatprep.mubr.f32.mxu0 0.0
      %5230 = vmatmul.mubr.f32.gmra.mrb[0].mxu0 %v5003
      %v5231 = vpop.f32.mrb[0].mxu0
      %v5232 = vadd.f32 %v5132, %v5231
      %v5233 = vpop.f32.mrb[0].mxu0
      %5234 = vmatprep.mubr.f32.mxu0 0.0
      %5235 = vmatmul.mubr.f32.gmra.mrb[0].mxu0 %v5004
      %v5236 = vpop.f32.mrb[0].mxu0
      %v5237 = vadd.f32 %v5137, %v5236
      %v5238 = vpop.f32.mrb[0].mxu0
      %5239 = vmatprep.mubr.f32.mxu0 0.0
      %5240 = vmatmul.mubr.f32.gmra.mrb[0].mxu0 %v5005
      %v5241 = vpop.f32.mrb[0].mxu0
      %v5242 = vadd.f32 %v5142, %v5241
      %v5243 = vpop.f32.mrb[0].mxu0
      %5244 = vdwg.mxu0
      %v5245 = vld [vmem:[#allocation2 + $0xa4] sm:$0xff]
      %v5246 = vld [vmem:[#allocation2 + $0xac] sm:$0xff]
      %v5247 = vld [vmem:[#allocation2 + $0xb4] sm:$0xff]
      %v5248 = vld [vmem:[#allocation2 + $0xbc] sm:$0xff]
      %v5249 = vld [vmem:[#allocation2 + $0xc4] sm:$0xff]
      %v5250 = vld [vmem:[#allocation2 + $0xcc] sm:$0xff]
      %v5251 = vld [vmem:[#allocation2 + $0xd4] sm:$0x3f]
      %v5252 = vld [vmem:[%s1184] sm:$0xff]
      %v5253 = vld [vmem:[%s1184 + $0x8] sm:$0xff]
      %v5254 = vld [vmem:[%s1184 + $0x10] sm:$0xff]
      %v5255 = vld [vmem:[%s1184 + $0x18] sm:$0xff]
      %v5256 = vld [vmem:[%s1184 + $0x20] sm:$0xff]
      %v5257 = vld [vmem:[%s1184 + $0x28] sm:$0xff]
      %v5258 = vld [vmem:[%s1184 + $0x30] sm:$0xff]
      %v5259 = vld [vmem:[%s1184 + $0x38] sm:$0xff]
      %v5260 = vld [vmem:[%s1184 + $0x40] sm:$0xff]
      %v5261 = vld [vmem:[%s1184 + $0x48] sm:$0xff]
      %v5262 = vld [vmem:[%s1184 + $0x50] sm:$0xff]
      %v5263 = vld [vmem:[%s1184 + $0x58] sm:$0xff]
      %v5264 = vld [vmem:[%s1184 + $0x60] sm:$0xff]
      %v5265 = vld [vmem:[%s1184 + $0x68] sm:$0xff]
      %v5266 = vld [vmem:[%s1184 + $0x70] sm:$0xff]
      %v5267 = vld [vmem:[%s1184 + $0x78] sm:$0xff]
      %5268 = vmatprep.subr.mxu0 0.0
      %5269 = vmatpush1.msra.mxu0 %v5252
      %5270 = vmatprep.subr.mxu0 0.0
      %5271 = vmatpush1.msra.mxu0 %v5253
      %5272 = vmatprep.subr.mxu0 0.0
      %5273 = vmatpush1.msra.mxu0 %v5254
      %5274 = vmatprep.subr.mxu0 0.0
      %5275 = vmatpush1.msra.mxu0 %v5255
      %5276 = vmatprep.subr.mxu0 0.0
      %5277 = vmatpush1.msra.mxu0 %v5256
      %5278 = vmatprep.subr.mxu0 0.0
      %5279 = vmatpush1.msra.mxu0 %v5257
      %5280 = vmatprep.subr.mxu0 0.0
      %5281 = vmatpush1.msra.mxu0 %v5258
      %5282 = vmatprep.subr.mxu0 0.0
      %5283 = vmatpush1.msra.mxu0 %v5259
      %5284 = vmatprep.subr.mxu0 0.0
      %5285 = vmatpush1.msra.mxu0 %v5260
      %5286 = vmatprep.subr.mxu0 0.0
      %5287 = vmatpush1.msra.mxu0 %v5261
      %5288 = vmatprep.subr.mxu0 0.0
      %5289 = vmatpush1.msra.mxu0 %v5262
      %5290 = vmatprep.subr.mxu0 0.0
      %5291 = vmatpush1.msra.mxu0 %v5263
      %5292 = vmatprep.subr.mxu0 0.0
      %5293 = vmatpush1.msra.mxu0 %v5264
      %5294 = vmatprep.subr.mxu0 0.0
      %5295 = vmatpush1.msra.mxu0 %v5265
      %5296 = vmatprep.subr.mxu0 0.0
      %5297 = vmatpush1.msra.mxu0 %v5266
      %5298 = vmatprep.subr.mxu0 0.0
      %5299 = vmatpush1.msra.mxu0 %v5267
      %5300 = vmatprep.subr.mxu0 0.0
      %5301 = vmatpush1.msra.mxu0 0.0
      %5302 = vmatprep.subr.mxu0 0.0
      %5303 = vmatpush1.msra.mxu0 0.0
      %5304 = vmatprep.subr.mxu0 0.0
      %5305 = vmatpush1.msra.mxu0 0.0
      %5306 = vmatprep.subr.mxu0 0.0
      %5307 = vmatpush1.msra.mxu0 0.0
      %5308 = vmatprep.subr.mxu0 0.0
      %5309 = vmatpush1.msra.mxu0 0.0
      %5310 = vmatprep.subr.mxu0 0.0
      %5311 = vmatpush1.msra.mxu0 0.0
      %5312 = vmatprep.subr.mxu0 0.0
      %5313 = vmatpush1.msra.mxu0 0.0
      %5314 = vmatprep.subr.mxu0 0.0
      %5315 = vmatpush1.msra.mxu0 0.0
      %5316 = vmatprep.subr.mxu0 0.0
      %5317 = vmatpush1.msra.mxu0 0.0
      %5318 = vmatprep.subr.mxu0 0.0
      %5319 = vmatpush1.msra.mxu0 0.0
      %5320 = vmatprep.subr.mxu0 0.0
      %5321 = vmatpush1.msra.mxu0 0.0
      %5322 = vmatprep.subr.mxu0 0.0
      %5323 = vmatpush1.msra.mxu0 0.0
      %5324 = vmatprep.subr.mxu0 0.0
      %5325 = vmatpush1.msra.mxu0 0.0
      %5326 = vmatprep.subr.mxu0 0.0
      %5327 = vmatpush1.msra.mxu0 0.0
      %5328 = vmatprep.subr.mxu0 0.0
      %5329 = vmatpush1.msra.mxu0 0.0
      %5330 = vmatprep.subr.mxu0 0.0
      %5331 = vmatpush1.msra.mxu0 0.0
      %5332 = vmatprep.mubr.f32.mxu0 0.0
      %5333 = vmatmul.mubr.f32.gmra.mrb[0].mxu0 %v5245
      %v5334 = vpop.f32.mrb[0].mxu0
      %v5335 = vadd.f32 0.0, %v5334
      %v5336 = vpop.f32.mrb[0].mxu0
      %5337 = vmatprep.mubr.f32.mxu0 0.0
      %5338 = vmatmul.mubr.f32.gmra.mrb[0].mxu0 %v5246
      %v5339 = vpop.f32.mrb[0].mxu0
      %v5340 = vadd.f32 0.0, %v5339
      %v5341 = vpop.f32.mrb[0].mxu0
      %5342 = vmatprep.mubr.f32.mxu0 0.0
      %5343 = vmatmul.mubr.f32.gmra.mrb[0].mxu0 %v5247
      %v5344 = vpop.f32.mrb[0].mxu0
      %v5345 = vadd.f32 0.0, %v5344
      %v5346 = vpop.f32.mrb[0].mxu0
      %5347 = vmatprep.mubr.f32.mxu0 0.0
      %5348 = vmatmul.mubr.f32.gmra.mrb[0].mxu0 %v5248
      %v5349 = vpop.f32.mrb[0].mxu0
      %v5350 = vadd.f32 0.0, %v5349
      %v5351 = vpop.f32.mrb[0].mxu0
      %5352 = vmatprep.mubr.f32.mxu0 0.0
      %5353 = vmatmul.mubr.f32.gmra.mrb[0].mxu0 %v5249
      %v5354 = vpop.f32.mrb[0].mxu0
      %v5355 = vadd.f32 0.0, %v5354
      %v5356 = vpop.f32.mrb[0].mxu0
      %5357 = vmatprep.mubr.f32.mxu0 0.0
      %5358 = vmatmul.mubr.f32.gmra.mrb[0].mxu0 %v5250
      %v5359 = vpop.f32.mrb[0].mxu0
      %v5360 = vadd.f32 0.0, %v5359
      %v5361 = vpop.f32.mrb[0].mxu0
      %5362 = vmatprep.mubr.f32.mxu0 0.0
      %5363 = vmatmul.mubr.f32.gmra.mrb[0].mxu0 %v5251
      %v5364 = vpop.f32.mrb[0].mxu0
      %v5365 = vadd.f32 0.0, %v5364
      %v5366 = vpop.f32.mrb[0].mxu0
      %5367 = vdwg.mxu0
      %v5368 = vadd.f32 %v5212, %v5335
      %v5369 = vadd.f32 %v5217, %v5340
      %v5370 = vadd.f32 %v5222, %v5345
      %v5371 = vadd.f32 %v5227, %v5350
      %v5372 = vadd.f32 %v5232, %v5355
      %v5373 = vadd.f32 %v5237, %v5360
      %v5374 = vadd.f32 %v5242, %v5365
      %v5375 = vld [vmem:[#allocation2 + $0xb4] sm:$0xff]
      %v5376 = vld [vmem:[#allocation2 + $0xbc] sm:$0xff]
      %v5377 = vld [vmem:[#allocation2 + $0xc4] sm:$0xff]
      %v5378 = vld [vmem:[#allocation2 + $0xcc] sm:$0xff]
      %v5379 = vld [vmem:[#allocation2 + $0xd4] sm:$0xff]
      %v5380 = vld [vmem:[#allocation2 + $0xdc] sm:$0xff]
      %v5381 = vld [vmem:[#allocation2 + $0xe4] sm:$0x3f]
      %v5382 = vld [vmem:[%s1315] sm:$0xff]
      %v5383 = vld [vmem:[%s1315 + $0x8] sm:$0xff]
      %v5384 = vld [vmem:[%s1315 + $0x10] sm:$0xff]
      %v5385 = vld [vmem:[%s1315 + $0x18] sm:$0xff]
      %v5386 = vld [vmem:[%s1315 + $0x20] sm:$0xff]
      %v5387 = vld [vmem:[%s1315 + $0x28] sm:$0xff]
      %v5388 = vld [vmem:[%s1315 + $0x30] sm:$0xff]
      %v5389 = vld [vmem:[%s1315 + $0x38] sm:$0xff]
      %v5390 = vld [vmem:[%s1315 + $0x40] sm:$0xff]
      %v5391 = vld [vmem:[%s1315 + $0x48] sm:$0xff]
      %v5392 = vld [vmem:[%s1315 + $0x50] sm:$0xff]
      %v5393 = vld [vmem:[%s1315 + $0x58] sm:$0xff]
      %v5394 = vld [vmem:[%s1315 + $0x60] sm:$0xff]
      %v5395 = vld [vmem:[%s1315 + $0x68] sm:$0xff]
      %v5396 = vld [vmem:[%s1315 + $0x70] sm:$0xff]
      %v5397 = vld [vmem:[%s1315 + $0x78] sm:$0xff]
      %5398 = vmatprep.subr.mxu0 0.0
      %5399 = vmatpush1.msra.mxu0 %v5382
      %5400 = vmatprep.subr.mxu0 0.0
      %5401 = vmatpush1.msra.mxu0 %v5383
      %5402 = vmatprep.subr.mxu0 0.0
      %5403 = vmatpush1.msra.mxu0 %v5384
      %5404 = vmatprep.subr.mxu0 0.0
      %5405 = vmatpush1.msra.mxu0 %v5385
      %5406 = vmatprep.subr.mxu0 0.0
      %5407 = vmatpush1.msra.mxu0 %v5386
      %5408 = vmatprep.subr.mxu0 0.0
      %5409 = vmatpush1.msra.mxu0 %v5387
      %5410 = vmatprep.subr.mxu0 0.0
      %5411 = vmatpush1.msra.mxu0 %v5388
      %5412 = vmatprep.subr.mxu0 0.0
      %5413 = vmatpush1.msra.mxu0 %v5389
      %5414 = vmatprep.subr.mxu0 0.0
      %5415 = vmatpush1.msra.mxu0 %v5390
      %5416 = vmatprep.subr.mxu0 0.0
      %5417 = vmatpush1.msra.mxu0 %v5391
      %5418 = vmatprep.subr.mxu0 0.0
      %5419 = vmatpush1.msra.mxu0 %v5392
      %5420 = vmatprep.subr.mxu0 0.0
      %5421 = vmatpush1.msra.mxu0 %v5393
      %5422 = vmatprep.subr.mxu0 0.0
      %5423 = vmatpush1.msra.mxu0 %v5394
      %5424 = vmatprep.subr.mxu0 0.0
      %5425 = vmatpush1.msra.mxu0 %v5395
      %5426 = vmatprep.subr.mxu0 0.0
      %5427 = vmatpush1.msra.mxu0 %v5396
      %5428 = vmatprep.subr.mxu0 0.0
      %5429 = vmatpush1.msra.mxu0 %v5397
      %5430 = vmatprep.subr.mxu0 0.0
      %5431 = vmatpush1.msra.mxu0 0.0
      %5432 = vmatprep.subr.mxu0 0.0
      %5433 = vmatpush1.msra.mxu0 0.0
      %5434 = vmatprep.subr.mxu0 0.0
      %5435 = vmatpush1.msra.mxu0 0.0
      %5436 = vmatprep.subr.mxu0 0.0
      %5437 = vmatpush1.msra.mxu0 0.0
      %5438 = vmatprep.subr.mxu0 0.0
      %5439 = vmatpush1.msra.mxu0 0.0
      %5440 = vmatprep.subr.mxu0 0.0
      %5441 = vmatpush1.msra.mxu0 0.0
      %5442 = vmatprep.subr.mxu0 0.0
      %5443 = vmatpush1.msra.mxu0 0.0
      %5444 = vmatprep.subr.mxu0 0.0
      %5445 = vmatpush1.msra.mxu0 0.0
      %5446 = vmatprep.subr.mxu0 0.0
      %5447 = vmatpush1.msra.mxu0 0.0
      %5448 = vmatprep.subr.mxu0 0.0
      %5449 = vmatpush1.msra.mxu0 0.0
      %5450 = vmatprep.subr.mxu0 0.0
      %5451 = vmatpush1.msra.mxu0 0.0
      %5452 = vmatprep.subr.mxu0 0.0
      %5453 = vmatpush1.msra.mxu0 0.0
      %5454 = vmatprep.subr.mxu0 0.0
      %5455 = vmatpush1.msra.mxu0 0.0
      %5456 = vmatprep.subr.mxu0 0.0
      %5457 = vmatpush1.msra.mxu0 0.0
      %5458 = vmatprep.subr.mxu0 0.0
      %5459 = vmatpush1.msra.mxu0 0.0
      %5460 = vmatprep.subr.mxu0 0.0
      %5461 = vmatpush1.msra.mxu0 0.0
      %5462 = vmatprep.mubr.f32.mxu0 0.0
      %5463 = vmatmul.mubr.f32.gmra.mrb[0].mxu0 %v5375
      %v5464 = vpop.f32.mrb[0].mxu0
      %v5465 = vadd.f32 0.0, %v5464
      %v5466 = vpop.f32.mrb[0].mxu0
      %5467 = vmatprep.mubr.f32.mxu0 0.0
      %5468 = vmatmul.mubr.f32.gmra.mrb[0].mxu0 %v5376
      %v5469 = vpop.f32.mrb[0].mxu0
      %v5470 = vadd.f32 0.0, %v5469
      %v5471 = vpop.f32.mrb[0].mxu0
      %5472 = vmatprep.mubr.f32.mxu0 0.0
      %5473 = vmatmul.mubr.f32.gmra.mrb[0].mxu0 %v5377
      %v5474 = vpop.f32.mrb[0].mxu0
      %v5475 = vadd.f32 0.0, %v5474
      %v5476 = vpop.f32.mrb[0].mxu0
      %5477 = vmatprep.mubr.f32.mxu0 0.0
      %5478 = vmatmul.mubr.f32.gmra.mrb[0].mxu0 %v5378
      %v5479 = vpop.f32.mrb[0].mxu0
      %v5480 = vadd.f32 0.0, %v5479
      %v5481 = vpop.f32.mrb[0].mxu0
      %5482 = vmatprep.mubr.f32.mxu0 0.0
      %5483 = vmatmul.mubr.f32.gmra.mrb[0].mxu0 %v5379
      %v5484 = vpop.f32.mrb[0].mxu0
      %v5485 = vadd.f32 0.0, %v5484
      %v5486 = vpop.f32.mrb[0].mxu0
      %5487 = vmatprep.mubr.f32.mxu0 0.0
      %5488 = vmatmul.mubr.f32.gmra.mrb[0].mxu0 %v5380
      %v5489 = vpop.f32.mrb[0].mxu0
      %v5490 = vadd.f32 0.0, %v5489
      %v5491 = vpop.f32.mrb[0].mxu0
      %5492 = vmatprep.mubr.f32.mxu0 0.0
      %5493 = vmatmul.mubr.f32.gmra.mrb[0].mxu0 %v5381
      %v5494 = vpop.f32.mrb[0].mxu0
      %v5495 = vadd.f32 0.0, %v5494
      %v5496 = vpop.f32.mrb[0].mxu0
      %5497 = vdwg.mxu0
      %v5498 = vadd.f32 %v5368, %v5465
      %v5499 = vadd.f32 %v5369, %v5470
      %v5500 = vadd.f32 %v5370, %v5475
      %v5501 = vadd.f32 %v5371, %v5480
      %v5502 = vadd.f32 %v5372, %v5485
      %v5503 = vadd.f32 %v5373, %v5490
      %v5504 = vadd.f32 %v5374, %v5495
      %v5505 = vld [vmem:[#allocation2 + $0xb5] sm:$0xff]
      %v5506 = vld [vmem:[#allocation2 + $0xbd] sm:$0xff]
      %v5507 = vld [vmem:[#allocation2 + $0xc5] sm:$0xff]
      %v5508 = vld [vmem:[#allocation2 + $0xcd] sm:$0xff]
      %v5509 = vld [vmem:[#allocation2 + $0xd5] sm:$0xff]
      %v5510 = vld [vmem:[#allocation2 + $0xdd] sm:$0xff]
      %v5511 = vld [vmem:[#allocation2 + $0xe5] sm:$0x3f]
      %v5512 = vld [vmem:[%s1446] sm:$0xff]
      %v5513 = vld [vmem:[%s1446 + $0x8] sm:$0xff]
      %v5514 = vld [vmem:[%s1446 + $0x10] sm:$0xff]
      %v5515 = vld [vmem:[%s1446 + $0x18] sm:$0xff]
      %v5516 = vld [vmem:[%s1446 + $0x20] sm:$0xff]
      %v5517 = vld [vmem:[%s1446 + $0x28] sm:$0xff]
      %v5518 = vld [vmem:[%s1446 + $0x30] sm:$0xff]
      %v5519 = vld [vmem:[%s1446 + $0x38] sm:$0xff]
      %v5520 = vld [vmem:[%s1446 + $0x40] sm:$0xff]
      %v5521 = vld [vmem:[%s1446 + $0x48] sm:$0xff]
      %v5522 = vld [vmem:[%s1446 + $0x50] sm:$0xff]
      %v5523 = vld [vmem:[%s1446 + $0x58] sm:$0xff]
      %v5524 = vld [vmem:[%s1446 + $0x60] sm:$0xff]
      %v5525 = vld [vmem:[%s1446 + $0x68] sm:$0xff]
      %v5526 = vld [vmem:[%s1446 + $0x70] sm:$0xff]
      %v5527 = vld [vmem:[%s1446 + $0x78] sm:$0xff]
      %5528 = vmatprep.subr.mxu0 0.0
      %5529 = vmatpush1.msra.mxu0 %v5512
      %5530 = vmatprep.subr.mxu0 0.0
      %5531 = vmatpush1.msra.mxu0 %v5513
      %5532 = vmatprep.subr.mxu0 0.0
      %5533 = vmatpush1.msra.mxu0 %v5514
      %5534 = vmatprep.subr.mxu0 0.0
      %5535 = vmatpush1.msra.mxu0 %v5515
      %5536 = vmatprep.subr.mxu0 0.0
      %5537 = vmatpush1.msra.mxu0 %v5516
      %5538 = vmatprep.subr.mxu0 0.0
      %5539 = vmatpush1.msra.mxu0 %v5517
      %5540 = vmatprep.subr.mxu0 0.0
      %5541 = vmatpush1.msra.mxu0 %v5518
      %5542 = vmatprep.subr.mxu0 0.0
      %5543 = vmatpush1.msra.mxu0 %v5519
      %5544 = vmatprep.subr.mxu0 0.0
      %5545 = vmatpush1.msra.mxu0 %v5520
      %5546 = vmatprep.subr.mxu0 0.0
      %5547 = vmatpush1.msra.mxu0 %v5521
      %5548 = vmatprep.subr.mxu0 0.0
      %5549 = vmatpush1.msra.mxu0 %v5522
      %5550 = vmatprep.subr.mxu0 0.0
      %5551 = vmatpush1.msra.mxu0 %v5523
      %5552 = vmatprep.subr.mxu0 0.0
      %5553 = vmatpush1.msra.mxu0 %v5524
      %5554 = vmatprep.subr.mxu0 0.0
      %5555 = vmatpush1.msra.mxu0 %v5525
      %5556 = vmatprep.subr.mxu0 0.0
      %5557 = vmatpush1.msra.mxu0 %v5526
      %5558 = vmatprep.subr.mxu0 0.0
      %5559 = vmatpush1.msra.mxu0 %v5527
      %5560 = vmatprep.subr.mxu0 0.0
      %5561 = vmatpush1.msra.mxu0 0.0
      %5562 = vmatprep.subr.mxu0 0.0
      %5563 = vmatpush1.msra.mxu0 0.0
      %5564 = vmatprep.subr.mxu0 0.0
      %5565 = vmatpush1.msra.mxu0 0.0
      %5566 = vmatprep.subr.mxu0 0.0
      %5567 = vmatpush1.msra.mxu0 0.0
      %5568 = vmatprep.subr.mxu0 0.0
      %5569 = vmatpush1.msra.mxu0 0.0
      %5570 = vmatprep.subr.mxu0 0.0
      %5571 = vmatpush1.msra.mxu0 0.0
      %5572 = vmatprep.subr.mxu0 0.0
      %5573 = vmatpush1.msra.mxu0 0.0
      %5574 = vmatprep.subr.mxu0 0.0
      %5575 = vmatpush1.msra.mxu0 0.0
      %5576 = vmatprep.subr.mxu0 0.0
      %5577 = vmatpush1.msra.mxu0 0.0
      %5578 = vmatprep.subr.mxu0 0.0
      %5579 = vmatpush1.msra.mxu0 0.0
      %5580 = vmatprep.subr.mxu0 0.0
      %5581 = vmatpush1.msra.mxu0 0.0
      %5582 = vmatprep.subr.mxu0 0.0
      %5583 = vmatpush1.msra.mxu0 0.0
      %5584 = vmatprep.subr.mxu0 0.0
      %5585 = vmatpush1.msra.mxu0 0.0
      %5586 = vmatprep.subr.mxu0 0.0
      %5587 = vmatpush1.msra.mxu0 0.0
      %5588 = vmatprep.subr.mxu0 0.0
      %5589 = vmatpush1.msra.mxu0 0.0
      %5590 = vmatprep.subr.mxu0 0.0
      %5591 = vmatpush1.msra.mxu0 0.0
      %5592 = vmatprep.mubr.f32.mxu0 0.0
      %5593 = vmatmul.mubr.f32.gmra.mrb[0].mxu0 %v5505
      %v5594 = vpop.f32.mrb[0].mxu0
      %v5595 = vadd.f32 0.0, %v5594
      %v5596 = vpop.f32.mrb[0].mxu0
      %5597 = vmatprep.mubr.f32.mxu0 0.0
      %5598 = vmatmul.mubr.f32.gmra.mrb[0].mxu0 %v5506
      %v5599 = vpop.f32.mrb[0].mxu0
      %v5600 = vadd.f32 0.0, %v5599
      %v5601 = vpop.f32.mrb[0].mxu0
      %5602 = vmatprep.mubr.f32.mxu0 0.0
      %5603 = vmatmul.mubr.f32.gmra.mrb[0].mxu0 %v5507
      %v5604 = vpop.f32.mrb[0].mxu0
      %v5605 = vadd.f32 0.0, %v5604
      %v5606 = vpop.f32.mrb[0].mxu0
      %5607 = vmatprep.mubr.f32.mxu0 0.0
      %5608 = vmatmul.mubr.f32.gmra.mrb[0].mxu0 %v5508
      %v5609 = vpop.f32.mrb[0].mxu0
      %v5610 = vadd.f32 0.0, %v5609
      %v5611 = vpop.f32.mrb[0].mxu0
      %5612 = vmatprep.mubr.f32.mxu0 0.0
      %5613 = vmatmul.mubr.f32.gmra.mrb[0].mxu0 %v5509
      %v5614 = vpop.f32.mrb[0].mxu0
      %v5615 = vadd.f32 0.0, %v5614
      %v5616 = vpop.f32.mrb[0].mxu0
      %5617 = vmatprep.mubr.f32.mxu0 0.0
      %5618 = vmatmul.mubr.f32.gmra.mrb[0].mxu0 %v5510
      %v5619 = vpop.f32.mrb[0].mxu0
      %v5620 = vadd.f32 0.0, %v5619
      %v5621 = vpop.f32.mrb[0].mxu0
      %5622 = vmatprep.mubr.f32.mxu0 0.0
      %5623 = vmatmul.mubr.f32.gmra.mrb[0].mxu0 %v5511
      %v5624 = vpop.f32.mrb[0].mxu0
      %v5625 = vadd.f32 0.0, %v5624
      %v5626 = vpop.f32.mrb[0].mxu0
      %5627 = vdwg.mxu0
      %v5628 = vadd.f32 %v5498, %v5595
      %v5629 = vadd.f32 %v5499, %v5600
      %v5630 = vadd.f32 %v5500, %v5605
      %v5631 = vadd.f32 %v5501, %v5610
      %v5632 = vadd.f32 %v5502, %v5615
      %v5633 = vadd.f32 %v5503, %v5620
      %v5634 = vadd.f32 %v5504, %v5625
      %v5635 = vld [vmem:[#allocation2 + $0xb6] sm:$0xff]
      %v5636 = vld [vmem:[#allocation2 + $0xbe] sm:$0xff]
      %v5637 = vld [vmem:[#allocation2 + $0xc6] sm:$0xff]
      %v5638 = vld [vmem:[#allocation2 + $0xce] sm:$0xff]
      %v5639 = vld [vmem:[#allocation2 + $0xd6] sm:$0xff]
      %v5640 = vld [vmem:[#allocation2 + $0xde] sm:$0xff]
      %v5641 = vld [vmem:[#allocation2 + $0xe6] sm:$0x3f]
      %v5642 = vld [vmem:[%s1577] sm:$0xff]
      %v5643 = vld [vmem:[%s1577 + $0x8] sm:$0xff]
      %v5644 = vld [vmem:[%s1577 + $0x10] sm:$0xff]
      %v5645 = vld [vmem:[%s1577 + $0x18] sm:$0xff]
      %v5646 = vld [vmem:[%s1577 + $0x20] sm:$0xff]
      %v5647 = vld [vmem:[%s1577 + $0x28] sm:$0xff]
      %v5648 = vld [vmem:[%s1577 + $0x30] sm:$0xff]
      %v5649 = vld [vmem:[%s1577 + $0x38] sm:$0xff]
      %v5650 = vld [vmem:[%s1577 + $0x40] sm:$0xff]
      %v5651 = vld [vmem:[%s1577 + $0x48] sm:$0xff]
      %v5652 = vld [vmem:[%s1577 + $0x50] sm:$0xff]
      %v5653 = vld [vmem:[%s1577 + $0x58] sm:$0xff]
      %v5654 = vld [vmem:[%s1577 + $0x60] sm:$0xff]
      %v5655 = vld [vmem:[%s1577 + $0x68] sm:$0xff]
      %v5656 = vld [vmem:[%s1577 + $0x70] sm:$0xff]
      %v5657 = vld [vmem:[%s1577 + $0x78] sm:$0xff]
      %5658 = vmatprep.subr.mxu0 0.0
      %5659 = vmatpush1.msra.mxu0 %v5642
      %5660 = vmatprep.subr.mxu0 0.0
      %5661 = vmatpush1.msra.mxu0 %v5643
      %5662 = vmatprep.subr.mxu0 0.0
      %5663 = vmatpush1.msra.mxu0 %v5644
      %5664 = vmatprep.subr.mxu0 0.0
      %5665 = vmatpush1.msra.mxu0 %v5645
      %5666 = vmatprep.subr.mxu0 0.0
      %5667 = vmatpush1.msra.mxu0 %v5646
      %5668 = vmatprep.subr.mxu0 0.0
      %5669 = vmatpush1.msra.mxu0 %v5647
      %5670 = vmatprep.subr.mxu0 0.0
      %5671 = vmatpush1.msra.mxu0 %v5648
      %5672 = vmatprep.subr.mxu0 0.0
      %5673 = vmatpush1.msra.mxu0 %v5649
      %5674 = vmatprep.subr.mxu0 0.0
      %5675 = vmatpush1.msra.mxu0 %v5650
      %5676 = vmatprep.subr.mxu0 0.0
      %5677 = vmatpush1.msra.mxu0 %v5651
      %5678 = vmatprep.subr.mxu0 0.0
      %5679 = vmatpush1.msra.mxu0 %v5652
      %5680 = vmatprep.subr.mxu0 0.0
      %5681 = vmatpush1.msra.mxu0 %v5653
      %5682 = vmatprep.subr.mxu0 0.0
      %5683 = vmatpush1.msra.mxu0 %v5654
      %5684 = vmatprep.subr.mxu0 0.0
      %5685 = vmatpush1.msra.mxu0 %v5655
      %5686 = vmatprep.subr.mxu0 0.0
      %5687 = vmatpush1.msra.mxu0 %v5656
      %5688 = vmatprep.subr.mxu0 0.0
      %5689 = vmatpush1.msra.mxu0 %v5657
      %5690 = vmatprep.subr.mxu0 0.0
      %5691 = vmatpush1.msra.mxu0 0.0
      %5692 = vmatprep.subr.mxu0 0.0
      %5693 = vmatpush1.msra.mxu0 0.0
      %5694 = vmatprep.subr.mxu0 0.0
      %5695 = vmatpush1.msra.mxu0 0.0
      %5696 = vmatprep.subr.mxu0 0.0
      %5697 = vmatpush1.msra.mxu0 0.0
      %5698 = vmatprep.subr.mxu0 0.0
      %5699 = vmatpush1.msra.mxu0 0.0
      %5700 = vmatprep.subr.mxu0 0.0
      %5701 = vmatpush1.msra.mxu0 0.0
      %5702 = vmatprep.subr.mxu0 0.0
      %5703 = vmatpush1.msra.mxu0 0.0
      %5704 = vmatprep.subr.mxu0 0.0
      %5705 = vmatpush1.msra.mxu0 0.0
      %5706 = vmatprep.subr.mxu0 0.0
      %5707 = vmatpush1.msra.mxu0 0.0
      %5708 = vmatprep.subr.mxu0 0.0
      %5709 = vmatpush1.msra.mxu0 0.0
      %5710 = vmatprep.subr.mxu0 0.0
      %5711 = vmatpush1.msra.mxu0 0.0
      %5712 = vmatprep.subr.mxu0 0.0
      %5713 = vmatpush1.msra.mxu0 0.0
      %5714 = vmatprep.subr.mxu0 0.0
      %5715 = vmatpush1.msra.mxu0 0.0
      %5716 = vmatprep.subr.mxu0 0.0
      %5717 = vmatpush1.msra.mxu0 0.0
      %5718 = vmatprep.subr.mxu0 0.0
      %5719 = vmatpush1.msra.mxu0 0.0
      %5720 = vmatprep.subr.mxu0 0.0
      %5721 = vmatpush1.msra.mxu0 0.0
      %5722 = vmatprep.mubr.f32.mxu0 0.0
      %5723 = vmatmul.mubr.f32.gmra.mrb[0].mxu0 %v5635
      %v5724 = vpop.f32.mrb[0].mxu0
      %v5725 = vadd.f32 0.0, %v5724
      %v5726 = vpop.f32.mrb[0].mxu0
      %5727 = vmatprep.mubr.f32.mxu0 0.0
      %5728 = vmatmul.mubr.f32.gmra.mrb[0].mxu0 %v5636
      %v5729 = vpop.f32.mrb[0].mxu0
      %v5730 = vadd.f32 0.0, %v5729
      %v5731 = vpop.f32.mrb[0].mxu0
      %5732 = vmatprep.mubr.f32.mxu0 0.0
      %5733 = vmatmul.mubr.f32.gmra.mrb[0].mxu0 %v5637
      %v5734 = vpop.f32.mrb[0].mxu0
      %v5735 = vadd.f32 0.0, %v5734
      %v5736 = vpop.f32.mrb[0].mxu0
      %5737 = vmatprep.mubr.f32.mxu0 0.0
      %5738 = vmatmul.mubr.f32.gmra.mrb[0].mxu0 %v5638
      %v5739 = vpop.f32.mrb[0].mxu0
      %v5740 = vadd.f32 0.0, %v5739
      %v5741 = vpop.f32.mrb[0].mxu0
      %5742 = vmatprep.mubr.f32.mxu0 0.0
      %5743 = vmatmul.mubr.f32.gmra.mrb[0].mxu0 %v5639
      %v5744 = vpop.f32.mrb[0].mxu0
      %v5745 = vadd.f32 0.0, %v5744
      %v5746 = vpop.f32.mrb[0].mxu0
      %5747 = vmatprep.mubr.f32.mxu0 0.0
      %5748 = vmatmul.mubr.f32.gmra.mrb[0].mxu0 %v5640
      %v5749 = vpop.f32.mrb[0].mxu0
      %v5750 = vadd.f32 0.0, %v5749
      %v5751 = vpop.f32.mrb[0].mxu0
      %5752 = vmatprep.mubr.f32.mxu0 0.0
      %5753 = vmatmul.mubr.f32.gmra.mrb[0].mxu0 %v5641
      %v5754 = vpop.f32.mrb[0].mxu0
      %v5755 = vadd.f32 0.0, %v5754
      %v5756 = vpop.f32.mrb[0].mxu0
      %5757 = vdwg.mxu0
      %v5758 = vadd.f32 %v5628, %v5725
      %v5759 = vadd.f32 %v5629, %v5730
      %v5760 = vadd.f32 %v5630, %v5735
      %v5761 = vadd.f32 %v5631, %v5740
      %v5762 = vadd.f32 %v5632, %v5745
      %v5763 = vadd.f32 %v5633, %v5750
      %v5764 = vadd.f32 %v5634, %v5755
      %v5765 = vld [vmem:[#allocation2 + $0xc6] sm:$0xff]
      %v5766 = vld [vmem:[#allocation2 + $0xce] sm:$0xff]
      %v5767 = vld [vmem:[#allocation2 + $0xd6] sm:$0xff]
      %v5768 = vld [vmem:[#allocation2 + $0xde] sm:$0xff]
      %v5769 = vld [vmem:[#allocation2 + $0xe6] sm:$0xff]
      %v5770 = vld [vmem:[#allocation2 + $0xee] sm:$0xff]
      %v5771 = vld [vmem:[#allocation2 + $0xf6] sm:$0x3f]
      %v5772 = vld [vmem:[%s1708] sm:$0xff]
      %v5773 = vld [vmem:[%s1708 + $0x8] sm:$0xff]
      %v5774 = vld [vmem:[%s1708 + $0x10] sm:$0xff]
      %v5775 = vld [vmem:[%s1708 + $0x18] sm:$0xff]
      %v5776 = vld [vmem:[%s1708 + $0x20] sm:$0xff]
      %v5777 = vld [vmem:[%s1708 + $0x28] sm:$0xff]
      %v5778 = vld [vmem:[%s1708 + $0x30] sm:$0xff]
      %v5779 = vld [vmem:[%s1708 + $0x38] sm:$0xff]
      %v5780 = vld [vmem:[%s1708 + $0x40] sm:$0xff]
      %v5781 = vld [vmem:[%s1708 + $0x48] sm:$0xff]
      %v5782 = vld [vmem:[%s1708 + $0x50] sm:$0xff]
      %v5783 = vld [vmem:[%s1708 + $0x58] sm:$0xff]
      %v5784 = vld [vmem:[%s1708 + $0x60] sm:$0xff]
      %v5785 = vld [vmem:[%s1708 + $0x68] sm:$0xff]
      %v5786 = vld [vmem:[%s1708 + $0x70] sm:$0xff]
      %v5787 = vld [vmem:[%s1708 + $0x78] sm:$0xff]
      %5788 = vmatprep.subr.mxu0 0.0
      %5789 = vmatpush1.msra.mxu0 %v5772
      %5790 = vmatprep.subr.mxu0 0.0
      %5791 = vmatpush1.msra.mxu0 %v5773
      %5792 = vmatprep.subr.mxu0 0.0
      %5793 = vmatpush1.msra.mxu0 %v5774
      %5794 = vmatprep.subr.mxu0 0.0
      %5795 = vmatpush1.msra.mxu0 %v5775
      %5796 = vmatprep.subr.mxu0 0.0
      %5797 = vmatpush1.msra.mxu0 %v5776
      %5798 = vmatprep.subr.mxu0 0.0
      %5799 = vmatpush1.msra.mxu0 %v5777
      %5800 = vmatprep.subr.mxu0 0.0
      %5801 = vmatpush1.msra.mxu0 %v5778
      %5802 = vmatprep.subr.mxu0 0.0
      %5803 = vmatpush1.msra.mxu0 %v5779
      %5804 = vmatprep.subr.mxu0 0.0
      %5805 = vmatpush1.msra.mxu0 %v5780
      %5806 = vmatprep.subr.mxu0 0.0
      %5807 = vmatpush1.msra.mxu0 %v5781
      %5808 = vmatprep.subr.mxu0 0.0
      %5809 = vmatpush1.msra.mxu0 %v5782
      %5810 = vmatprep.subr.mxu0 0.0
      %5811 = vmatpush1.msra.mxu0 %v5783
      %5812 = vmatprep.subr.mxu0 0.0
      %5813 = vmatpush1.msra.mxu0 %v5784
      %5814 = vmatprep.subr.mxu0 0.0
      %5815 = vmatpush1.msra.mxu0 %v5785
      %5816 = vmatprep.subr.mxu0 0.0
      %5817 = vmatpush1.msra.mxu0 %v5786
      %5818 = vmatprep.subr.mxu0 0.0
      %5819 = vmatpush1.msra.mxu0 %v5787
      %5820 = vmatprep.subr.mxu0 0.0
      %5821 = vmatpush1.msra.mxu0 0.0
      %5822 = vmatprep.subr.mxu0 0.0
      %5823 = vmatpush1.msra.mxu0 0.0
      %5824 = vmatprep.subr.mxu0 0.0
      %5825 = vmatpush1.msra.mxu0 0.0
      %5826 = vmatprep.subr.mxu0 0.0
      %5827 = vmatpush1.msra.mxu0 0.0
      %5828 = vmatprep.subr.mxu0 0.0
      %5829 = vmatpush1.msra.mxu0 0.0
      %5830 = vmatprep.subr.mxu0 0.0
      %5831 = vmatpush1.msra.mxu0 0.0
      %5832 = vmatprep.subr.mxu0 0.0
      %5833 = vmatpush1.msra.mxu0 0.0
      %5834 = vmatprep.subr.mxu0 0.0
      %5835 = vmatpush1.msra.mxu0 0.0
      %5836 = vmatprep.subr.mxu0 0.0
      %5837 = vmatpush1.msra.mxu0 0.0
      %5838 = vmatprep.subr.mxu0 0.0
      %5839 = vmatpush1.msra.mxu0 0.0
      %5840 = vmatprep.subr.mxu0 0.0
      %5841 = vmatpush1.msra.mxu0 0.0
      %5842 = vmatprep.subr.mxu0 0.0
      %5843 = vmatpush1.msra.mxu0 0.0
      %5844 = vmatprep.subr.mxu0 0.0
      %5845 = vmatpush1.msra.mxu0 0.0
      %5846 = vmatprep.subr.mxu0 0.0
      %5847 = vmatpush1.msra.mxu0 0.0
      %5848 = vmatprep.subr.mxu0 0.0
      %5849 = vmatpush1.msra.mxu0 0.0
      %5850 = vmatprep.subr.mxu0 0.0
      %5851 = vmatpush1.msra.mxu0 0.0
      %5852 = vmatprep.mubr.f32.mxu0 0.0
      %5853 = vmatmul.mubr.f32.gmra.mrb[0].mxu0 %v5765
      %v5854 = vpop.f32.mrb[0].mxu0
      %v5855 = vadd.f32 0.0, %v5854
      %v5856 = vpop.f32.mrb[0].mxu0
      %5857 = vmatprep.mubr.f32.mxu0 0.0
      %5858 = vmatmul.mubr.f32.gmra.mrb[0].mxu0 %v5766
      %v5859 = vpop.f32.mrb[0].mxu0
      %v5860 = vadd.f32 0.0, %v5859
      %v5861 = vpop.f32.mrb[0].mxu0
      %5862 = vmatprep.mubr.f32.mxu0 0.0
      %5863 = vmatmul.mubr.f32.gmra.mrb[0].mxu0 %v5767
      %v5864 = vpop.f32.mrb[0].mxu0
      %v5865 = vadd.f32 0.0, %v5864
      %v5866 = vpop.f32.mrb[0].mxu0
      %5867 = vmatprep.mubr.f32.mxu0 0.0
      %5868 = vmatmul.mubr.f32.gmra.mrb[0].mxu0 %v5768
      %v5869 = vpop.f32.mrb[0].mxu0
      %v5870 = vadd.f32 0.0, %v5869
      %v5871 = vpop.f32.mrb[0].mxu0
      %5872 = vmatprep.mubr.f32.mxu0 0.0
      %5873 = vmatmul.mubr.f32.gmra.mrb[0].mxu0 %v5769
      %v5874 = vpop.f32.mrb[0].mxu0
      %v5875 = vadd.f32 0.0, %v5874
      %v5876 = vpop.f32.mrb[0].mxu0
      %5877 = vmatprep.mubr.f32.mxu0 0.0
      %5878 = vmatmul.mubr.f32.gmra.mrb[0].mxu0 %v5770
      %v5879 = vpop.f32.mrb[0].mxu0
      %v5880 = vadd.f32 0.0, %v5879
      %v5881 = vpop.f32.mrb[0].mxu0
      %5882 = vmatprep.mubr.f32.mxu0 0.0
      %5883 = vmatmul.mubr.f32.gmra.mrb[0].mxu0 %v5771
      %v5884 = vpop.f32.mrb[0].mxu0
      %v5885 = vadd.f32 0.0, %v5884
      %v5886 = vpop.f32.mrb[0].mxu0
      %5887 = vdwg.mxu0
      %v5888 = vadd.f32 %v5758, %v5855
      %v5889 = vadd.f32 %v5759, %v5860
      %v5890 = vadd.f32 %v5760, %v5865
      %v5891 = vadd.f32 %v5761, %v5870
      %v5892 = vadd.f32 %v5762, %v5875
      %v5893 = vadd.f32 %v5763, %v5880
      %v5894 = vadd.f32 %v5764, %v5885
      %v5895 = vld [vmem:[#allocation2 + $0xc7] sm:$0xff]
      %v5896 = vld [vmem:[#allocation2 + $0xcf] sm:$0xff]
      %v5897 = vld [vmem:[#allocation2 + $0xd7] sm:$0xff]
      %v5898 = vld [vmem:[#allocation2 + $0xdf] sm:$0xff]
      %v5899 = vld [vmem:[#allocation2 + $0xe7] sm:$0xff]
      %v5900 = vld [vmem:[#allocation2 + $0xef] sm:$0xff]
      %v5901 = vld [vmem:[#allocation2 + $0xf7] sm:$0x3f]
      %v5902 = vld [vmem:[%s1839] sm:$0xff]
      %v5903 = vld [vmem:[%s1839 + $0x8] sm:$0xff]
      %v5904 = vld [vmem:[%s1839 + $0x10] sm:$0xff]
      %v5905 = vld [vmem:[%s1839 + $0x18] sm:$0xff]
      %v5906 = vld [vmem:[%s1839 + $0x20] sm:$0xff]
      %v5907 = vld [vmem:[%s1839 + $0x28] sm:$0xff]
      %v5908 = vld [vmem:[%s1839 + $0x30] sm:$0xff]
      %v5909 = vld [vmem:[%s1839 + $0x38] sm:$0xff]
      %v5910 = vld [vmem:[%s1839 + $0x40] sm:$0xff]
      %v5911 = vld [vmem:[%s1839 + $0x48] sm:$0xff]
      %v5912 = vld [vmem:[%s1839 + $0x50] sm:$0xff]
      %v5913 = vld [vmem:[%s1839 + $0x58] sm:$0xff]
      %v5914 = vld [vmem:[%s1839 + $0x60] sm:$0xff]
      %v5915 = vld [vmem:[%s1839 + $0x68] sm:$0xff]
      %v5916 = vld [vmem:[%s1839 + $0x70] sm:$0xff]
      %v5917 = vld [vmem:[%s1839 + $0x78] sm:$0xff]
      %5918 = vmatprep.subr.mxu0 0.0
      %5919 = vmatpush1.msra.mxu0 %v5902
      %5920 = vmatprep.subr.mxu0 0.0
      %5921 = vmatpush1.msra.mxu0 %v5903
      %5922 = vmatprep.subr.mxu0 0.0
      %5923 = vmatpush1.msra.mxu0 %v5904
      %5924 = vmatprep.subr.mxu0 0.0
      %5925 = vmatpush1.msra.mxu0 %v5905
      %5926 = vmatprep.subr.mxu0 0.0
      %5927 = vmatpush1.msra.mxu0 %v5906
      %5928 = vmatprep.subr.mxu0 0.0
      %5929 = vmatpush1.msra.mxu0 %v5907
      %5930 = vmatprep.subr.mxu0 0.0
      %5931 = vmatpush1.msra.mxu0 %v5908
      %5932 = vmatprep.subr.mxu0 0.0
      %5933 = vmatpush1.msra.mxu0 %v5909
      %5934 = vmatprep.subr.mxu0 0.0
      %5935 = vmatpush1.msra.mxu0 %v5910
      %5936 = vmatprep.subr.mxu0 0.0
      %5937 = vmatpush1.msra.mxu0 %v5911
      %5938 = vmatprep.subr.mxu0 0.0
      %5939 = vmatpush1.msra.mxu0 %v5912
      %5940 = vmatprep.subr.mxu0 0.0
      %5941 = vmatpush1.msra.mxu0 %v5913
      %5942 = vmatprep.subr.mxu0 0.0
      %5943 = vmatpush1.msra.mxu0 %v5914
      %5944 = vmatprep.subr.mxu0 0.0
      %5945 = vmatpush1.msra.mxu0 %v5915
      %5946 = vmatprep.subr.mxu0 0.0
      %5947 = vmatpush1.msra.mxu0 %v5916
      %5948 = vmatprep.subr.mxu0 0.0
      %5949 = vmatpush1.msra.mxu0 %v5917
      %5950 = vmatprep.subr.mxu0 0.0
      %5951 = vmatpush1.msra.mxu0 0.0
      %5952 = vmatprep.subr.mxu0 0.0
      %5953 = vmatpush1.msra.mxu0 0.0
      %5954 = vmatprep.subr.mxu0 0.0
      %5955 = vmatpush1.msra.mxu0 0.0
      %5956 = vmatprep.subr.mxu0 0.0
      %5957 = vmatpush1.msra.mxu0 0.0
      %5958 = vmatprep.subr.mxu0 0.0
      %5959 = vmatpush1.msra.mxu0 0.0
      %5960 = vmatprep.subr.mxu0 0.0
      %5961 = vmatpush1.msra.mxu0 0.0
      %5962 = vmatprep.subr.mxu0 0.0
      %5963 = vmatpush1.msra.mxu0 0.0
      %5964 = vmatprep.subr.mxu0 0.0
      %5965 = vmatpush1.msra.mxu0 0.0
      %5966 = vmatprep.subr.mxu0 0.0
      %5967 = vmatpush1.msra.mxu0 0.0
      %5968 = vmatprep.subr.mxu0 0.0
      %5969 = vmatpush1.msra.mxu0 0.0
      %5970 = vmatprep.subr.mxu0 0.0
      %5971 = vmatpush1.msra.mxu0 0.0
      %5972 = vmatprep.subr.mxu0 0.0
      %5973 = vmatpush1.msra.mxu0 0.0
      %5974 = vmatprep.subr.mxu0 0.0
      %5975 = vmatpush1.msra.mxu0 0.0
      %5976 = vmatprep.subr.mxu0 0.0
      %5977 = vmatpush1.msra.mxu0 0.0
      %5978 = vmatprep.subr.mxu0 0.0
      %5979 = vmatpush1.msra.mxu0 0.0
      %5980 = vmatprep.subr.mxu0 0.0
      %5981 = vmatpush1.msra.mxu0 0.0
      %5982 = vmatprep.mubr.f32.mxu0 0.0
      %5983 = vmatmul.mubr.f32.gmra.mrb[0].mxu0 %v5895
      %v5984 = vpop.f32.mrb[0].mxu0
      %v5985 = vadd.f32 0.0, %v5984
      %v5986 = vpop.f32.mrb[0].mxu0
      %5987 = vmatprep.mubr.f32.mxu0 0.0
      %5988 = vmatmul.mubr.f32.gmra.mrb[0].mxu0 %v5896
      %v5989 = vpop.f32.mrb[0].mxu0
      %v5990 = vadd.f32 0.0, %v5989
      %v5991 = vpop.f32.mrb[0].mxu0
      %5992 = vmatprep.mubr.f32.mxu0 0.0
      %5993 = vmatmul.mubr.f32.gmra.mrb[0].mxu0 %v5897
      %v5994 = vpop.f32.mrb[0].mxu0
      %v5995 = vadd.f32 0.0, %v5994
      %v5996 = vpop.f32.mrb[0].mxu0
      %5997 = vmatprep.mubr.f32.mxu0 0.0
      %5998 = vmatmul.mubr.f32.gmra.mrb[0].mxu0 %v5898
      %v5999 = vpop.f32.mrb[0].mxu0
      %v6000 = vadd.f32 0.0, %v5999
      %v6001 = vpop.f32.mrb[0].mxu0
      %6002 = vmatprep.mubr.f32.mxu0 0.0
      %6003 = vmatmul.mubr.f32.gmra.mrb[0].mxu0 %v5899
      %v6004 = vpop.f32.mrb[0].mxu0
      %v6005 = vadd.f32 0.0, %v6004
      %v6006 = vpop.f32.mrb[0].mxu0
      %6007 = vmatprep.mubr.f32.mxu0 0.0
      %6008 = vmatmul.mubr.f32.gmra.mrb[0].mxu0 %v5900
      %v6009 = vpop.f32.mrb[0].mxu0
      %v6010 = vadd.f32 0.0, %v6009
      %v6011 = vpop.f32.mrb[0].mxu0
      %6012 = vmatprep.mubr.f32.mxu0 0.0
      %6013 = vmatmul.mubr.f32.gmra.mrb[0].mxu0 %v5901
      %v6014 = vpop.f32.mrb[0].mxu0
      %v6015 = vadd.f32 0.0, %v6014
      %v6016 = vpop.f32.mrb[0].mxu0
      %6017 = vdwg.mxu0
      %v6018 = vadd.f32 %v5888, %v5985
      %v6019 = vadd.f32 %v5889, %v5990
      %v6020 = vadd.f32 %v5890, %v5995
      %v6021 = vadd.f32 %v5891, %v6000
      %v6022 = vadd.f32 %v5892, %v6005
      %v6023 = vadd.f32 %v5893, %v6010
      %v6024 = vadd.f32 %v5894, %v6015
      %v6025 = vld [vmem:[#allocation2 + $0xc8] sm:$0xff]
      %v6026 = vld [vmem:[#allocation2 + $0xd0] sm:$0xff]
      %v6027 = vld [vmem:[#allocation2 + $0xd8] sm:$0xff]
      %v6028 = vld [vmem:[#allocation2 + $0xe0] sm:$0xff]
      %v6029 = vld [vmem:[#allocation2 + $0xe8] sm:$0xff]
      %v6030 = vld [vmem:[#allocation2 + $0xf0] sm:$0xff]
      %v6031 = vld [vmem:[#allocation2 + $0xf8] sm:$0x3f]
      %v6032 = vld [vmem:[%s1970] sm:$0xff]
      %v6033 = vld [vmem:[%s1970 + $0x8] sm:$0xff]
      %v6034 = vld [vmem:[%s1970 + $0x10] sm:$0xff]
      %v6035 = vld [vmem:[%s1970 + $0x18] sm:$0xff]
      %v6036 = vld [vmem:[%s1970 + $0x20] sm:$0xff]
      %v6037 = vld [vmem:[%s1970 + $0x28] sm:$0xff]
      %v6038 = vld [vmem:[%s1970 + $0x30] sm:$0xff]
      %v6039 = vld [vmem:[%s1970 + $0x38] sm:$0xff]
      %v6040 = vld [vmem:[%s1970 + $0x40] sm:$0xff]
      %v6041 = vld [vmem:[%s1970 + $0x48] sm:$0xff]
      %v6042 = vld [vmem:[%s1970 + $0x50] sm:$0xff]
      %v6043 = vld [vmem:[%s1970 + $0x58] sm:$0xff]
      %v6044 = vld [vmem:[%s1970 + $0x60] sm:$0xff]
      %v6045 = vld [vmem:[%s1970 + $0x68] sm:$0xff]
      %v6046 = vld [vmem:[%s1970 + $0x70] sm:$0xff]
      %v6047 = vld [vmem:[%s1970 + $0x78] sm:$0xff]
      %6048 = vmatprep.subr.mxu0 0.0
      %6049 = vmatpush1.msra.mxu0 %v6032
      %6050 = vmatprep.subr.mxu0 0.0
      %6051 = vmatpush1.msra.mxu0 %v6033
      %6052 = vmatprep.subr.mxu0 0.0
      %6053 = vmatpush1.msra.mxu0 %v6034
      %6054 = vmatprep.subr.mxu0 0.0
      %6055 = vmatpush1.msra.mxu0 %v6035
      %6056 = vmatprep.subr.mxu0 0.0
      %6057 = vmatpush1.msra.mxu0 %v6036
      %6058 = vmatprep.subr.mxu0 0.0
      %6059 = vmatpush1.msra.mxu0 %v6037
      %6060 = vmatprep.subr.mxu0 0.0
      %6061 = vmatpush1.msra.mxu0 %v6038
      %6062 = vmatprep.subr.mxu0 0.0
      %6063 = vmatpush1.msra.mxu0 %v6039
      %6064 = vmatprep.subr.mxu0 0.0
      %6065 = vmatpush1.msra.mxu0 %v6040
      %6066 = vmatprep.subr.mxu0 0.0
      %6067 = vmatpush1.msra.mxu0 %v6041
      %6068 = vmatprep.subr.mxu0 0.0
      %6069 = vmatpush1.msra.mxu0 %v6042
      %6070 = vmatprep.subr.mxu0 0.0
      %6071 = vmatpush1.msra.mxu0 %v6043
      %6072 = vmatprep.subr.mxu0 0.0
      %6073 = vmatpush1.msra.mxu0 %v6044
      %6074 = vmatprep.subr.mxu0 0.0
      %6075 = vmatpush1.msra.mxu0 %v6045
      %6076 = vmatprep.subr.mxu0 0.0
      %6077 = vmatpush1.msra.mxu0 %v6046
      %6078 = vmatprep.subr.mxu0 0.0
      %6079 = vmatpush1.msra.mxu0 %v6047
      %6080 = vmatprep.subr.mxu0 0.0
      %6081 = vmatpush1.msra.mxu0 0.0
      %6082 = vmatprep.subr.mxu0 0.0
      %6083 = vmatpush1.msra.mxu0 0.0
      %6084 = vmatprep.subr.mxu0 0.0
      %6085 = vmatpush1.msra.mxu0 0.0
      %6086 = vmatprep.subr.mxu0 0.0
      %6087 = vmatpush1.msra.mxu0 0.0
      %6088 = vmatprep.subr.mxu0 0.0
      %6089 = vmatpush1.msra.mxu0 0.0
      %6090 = vmatprep.subr.mxu0 0.0
      %6091 = vmatpush1.msra.mxu0 0.0
      %6092 = vmatprep.subr.mxu0 0.0
      %6093 = vmatpush1.msra.mxu0 0.0
      %6094 = vmatprep.subr.mxu0 0.0
      %6095 = vmatpush1.msra.mxu0 0.0
      %6096 = vmatprep.subr.mxu0 0.0
      %6097 = vmatpush1.msra.mxu0 0.0
      %6098 = vmatprep.subr.mxu0 0.0
      %6099 = vmatpush1.msra.mxu0 0.0
      %6100 = vmatprep.subr.mxu0 0.0
      %6101 = vmatpush1.msra.mxu0 0.0
      %6102 = vmatprep.subr.mxu0 0.0
      %6103 = vmatpush1.msra.mxu0 0.0
      %6104 = vmatprep.subr.mxu0 0.0
      %6105 = vmatpush1.msra.mxu0 0.0
      %6106 = vmatprep.subr.mxu0 0.0
      %6107 = vmatpush1.msra.mxu0 0.0
      %6108 = vmatprep.subr.mxu0 0.0
      %6109 = vmatpush1.msra.mxu0 0.0
      %6110 = vmatprep.subr.mxu0 0.0
      %6111 = vmatpush1.msra.mxu0 0.0
      %6112 = vmatprep.mubr.f32.mxu0 0.0
      %6113 = vmatmul.mubr.f32.gmra.mrb[0].mxu0 %v6025
      %v6114 = vpop.f32.mrb[0].mxu0
      %v6115 = vadd.f32 0.0, %v6114
      %v6116 = vpop.f32.mrb[0].mxu0
      %6117 = vmatprep.mubr.f32.mxu0 0.0
      %6118 = vmatmul.mubr.f32.gmra.mrb[0].mxu0 %v6026
      %v6119 = vpop.f32.mrb[0].mxu0
      %v6120 = vadd.f32 0.0, %v6119
      %v6121 = vpop.f32.mrb[0].mxu0
      %6122 = vmatprep.mubr.f32.mxu0 0.0
      %6123 = vmatmul.mubr.f32.gmra.mrb[0].mxu0 %v6027
      %v6124 = vpop.f32.mrb[0].mxu0
      %v6125 = vadd.f32 0.0, %v6124
      %v6126 = vpop.f32.mrb[0].mxu0
      %6127 = vmatprep.mubr.f32.mxu0 0.0
      %6128 = vmatmul.mubr.f32.gmra.mrb[0].mxu0 %v6028
      %v6129 = vpop.f32.mrb[0].mxu0
      %v6130 = vadd.f32 0.0, %v6129
      %v6131 = vpop.f32.mrb[0].mxu0
      %6132 = vmatprep.mubr.f32.mxu0 0.0
      %6133 = vmatmul.mubr.f32.gmra.mrb[0].mxu0 %v6029
      %v6134 = vpop.f32.mrb[0].mxu0
      %v6135 = vadd.f32 0.0, %v6134
      %v6136 = vpop.f32.mrb[0].mxu0
      %6137 = vmatprep.mubr.f32.mxu0 0.0
      %6138 = vmatmul.mubr.f32.gmra.mrb[0].mxu0 %v6030
      %v6139 = vpop.f32.mrb[0].mxu0
      %v6140 = vadd.f32 0.0, %v6139
      %v6141 = vpop.f32.mrb[0].mxu0
      %6142 = vmatprep.mubr.f32.mxu0 0.0
      %6143 = vmatmul.mubr.f32.gmra.mrb[0].mxu0 %v6031
      %v6144 = vpop.f32.mrb[0].mxu0
      %v6145 = vadd.f32 0.0, %v6144
      %v6146 = vpop.f32.mrb[0].mxu0
      %6147 = vdwg.mxu0
      %v6148 = vadd.f32 %v6018, %v6115
      %v6149 = vadd.f32 %v6019, %v6120
      %v6150 = vadd.f32 %v6020, %v6125
      %v6151 = vadd.f32 %v6021, %v6130
      %v6152 = vadd.f32 %v6022, %v6135
      %v6153 = vadd.f32 %v6023, %v6140
      %v6154 = vadd.f32 %v6024, %v6145
      %v6155 = vld [vmem:[%s4] sm:$0x1]
      %v6157 = vlaneseq
      %v6158 = vshrl.u32 %v6157, 7
      %v6159 = vsub.s32 0, %v6158
      %v6160 = vrot.slane %v6155, %v6159
      %v6162 = vadd.f32 %v6148, %v6160
      %v6163 = vadd.f32 %v6149, %v6160
      %v6164 = vadd.f32 %v6150, %v6160
      %v6165 = vadd.f32 %v6151, %v6160
      %v6166 = vadd.f32 %v6152, %v6160
      %v6167 = vadd.f32 %v6153, %v6160
      %v6168 = vadd.f32 %v6154, %v6160
      %v6169 = vmax.f32 %v6162, 0.0
      %v6170 = vmax.f32 %v6163, 0.0
      %v6171 = vmax.f32 %v6164, 0.0
      %v6172 = vmax.f32 %v6165, 0.0
      %v6173 = vmax.f32 %v6166, 0.0
      %v6174 = vmax.f32 %v6167, 0.0
      %v6175 = vmax.f32 %v6168, 0.0
      %v6176 = vld [vmem:[%s5] sm:$0xff]
      %v6177 = vld [vmem:[%s5 + $0x8] sm:$0xff]
      %v6178 = vld [vmem:[%s5 + $0x10] sm:$0xff]
      %v6179 = vld [vmem:[%s5 + $0x18] sm:$0xff]
      %v6180 = vld [vmem:[%s5 + $0x20] sm:$0xff]
      %v6181 = vld [vmem:[%s5 + $0x28] sm:$0xff]
      %v6182 = vld [vmem:[%s5 + $0x30] sm:$0xff]
      %v6183 = vld [vmem:[%s5 + $0x38] sm:$0xff]
      %v6184 = vld [vmem:[%s5 + $0x40] sm:$0xff]
      %v6185 = vld [vmem:[%s5 + $0x48] sm:$0xff]
      %v6186 = vld [vmem:[%s5 + $0x50] sm:$0xff]
      %v6187 = vld [vmem:[%s5 + $0x58] sm:$0xff]
      %v6188 = vld [vmem:[%s5 + $0x60] sm:$0xff]
      %v6189 = vld [vmem:[%s5 + $0x68] sm:$0xff]
      %v6190 = vld [vmem:[%s5 + $0x70] sm:$0xff]
      %v6191 = vld [vmem:[%s5 + $0x78] sm:$0xff]
      %v6192 = vld [vmem:[%s6] sm:$0x1]
      %v6194 = vlaneseq
      %v6195 = vshrl.u32 %v6194, 7
      %v6196 = vsub.s32 0, %v6195
      %v6197 = vrot.slane %v6192, %v6196
      %6199 = vmatprep.subr.mxu0 0.0
      %6200 = vmatpush1.msra.mxu0 %v6176
      %6201 = vmatprep.subr.mxu0 0.0
      %6202 = vmatpush1.msra.mxu0 %v6177
      %6203 = vmatprep.subr.mxu0 0.0
      %6204 = vmatpush1.msra.mxu0 %v6178
      %6205 = vmatprep.subr.mxu0 0.0
      %6206 = vmatpush1.msra.mxu0 %v6179
      %6207 = vmatprep.subr.mxu0 0.0
      %6208 = vmatpush1.msra.mxu0 %v6180
      %6209 = vmatprep.subr.mxu0 0.0
      %6210 = vmatpush1.msra.mxu0 %v6181
      %6211 = vmatprep.subr.mxu0 0.0
      %6212 = vmatpush1.msra.mxu0 %v6182
      %6213 = vmatprep.subr.mxu0 0.0
      %6214 = vmatpush1.msra.mxu0 %v6183
      %6215 = vmatprep.subr.mxu0 0.0
      %6216 = vmatpush1.msra.mxu0 %v6184
      %6217 = vmatprep.subr.mxu0 0.0
      %6218 = vmatpush1.msra.mxu0 %v6185
      %6219 = vmatprep.subr.mxu0 0.0
      %6220 = vmatpush1.msra.mxu0 %v6186
      %6221 = vmatprep.subr.mxu0 0.0
      %6222 = vmatpush1.msra.mxu0 %v6187
      %6223 = vmatprep.subr.mxu0 0.0
      %6224 = vmatpush1.msra.mxu0 %v6188
      %6225 = vmatprep.subr.mxu0 0.0
      %6226 = vmatpush1.msra.mxu0 %v6189
      %6227 = vmatprep.subr.mxu0 0.0
      %6228 = vmatpush1.msra.mxu0 %v6190
      %6229 = vmatprep.subr.mxu0 0.0
      %6230 = vmatpush1.msra.mxu0 %v6191
      %6231 = vmatprep.subr.mxu0 0.0
      %6232 = vmatpush1.msra.mxu0 0.0
      %6233 = vmatprep.subr.mxu0 0.0
      %6234 = vmatpush1.msra.mxu0 0.0
      %6235 = vmatprep.subr.mxu0 0.0
      %6236 = vmatpush1.msra.mxu0 0.0
      %6237 = vmatprep.subr.mxu0 0.0
      %6238 = vmatpush1.msra.mxu0 0.0
      %6239 = vmatprep.subr.mxu0 0.0
      %6240 = vmatpush1.msra.mxu0 0.0
      %6241 = vmatprep.subr.mxu0 0.0
      %6242 = vmatpush1.msra.mxu0 0.0
      %6243 = vmatprep.subr.mxu0 0.0
      %6244 = vmatpush1.msra.mxu0 0.0
      %6245 = vmatprep.subr.mxu0 0.0
      %6246 = vmatpush1.msra.mxu0 0.0
      %6247 = vmatprep.subr.mxu0 0.0
      %6248 = vmatpush1.msra.mxu0 0.0
      %6249 = vmatprep.subr.mxu0 0.0
      %6250 = vmatpush1.msra.mxu0 0.0
      %6251 = vmatprep.subr.mxu0 0.0
      %6252 = vmatpush1.msra.mxu0 0.0
      %6253 = vmatprep.subr.mxu0 0.0
      %6254 = vmatpush1.msra.mxu0 0.0
      %6255 = vmatprep.subr.mxu0 0.0
      %6256 = vmatpush1.msra.mxu0 0.0
      %6257 = vmatprep.subr.mxu0 0.0
      %6258 = vmatpush1.msra.mxu0 0.0
      %6259 = vmatprep.subr.mxu0 0.0
      %6260 = vmatpush1.msra.mxu0 0.0
      %6261 = vmatprep.subr.mxu0 0.0
      %6262 = vmatpush1.msra.mxu0 0.0
      %6263 = vmatprep.mubr.f32.mxu0 0.0
      %6264 = vmatmul.mubr.f32.gmra.mrb[0].mxu0 %v6169
      %v6265 = vpop.f32.mrb[0].mxu0
      %v6266 = vadd.f32 %v6197, %v6265
      %v6267 = vpop.f32.mrb[0].mxu0
      %6268 = vmatprep.mubr.f32.mxu0 0.0
      %6269 = vmatmul.mubr.f32.gmra.mrb[0].mxu0 %v6170
      %v6270 = vpop.f32.mrb[0].mxu0
      %v6271 = vadd.f32 %v6197, %v6270
      %v6272 = vpop.f32.mrb[0].mxu0
      %6273 = vmatprep.mubr.f32.mxu0 0.0
      %6274 = vmatmul.mubr.f32.gmra.mrb[0].mxu0 %v6171
      %v6275 = vpop.f32.mrb[0].mxu0
      %v6276 = vadd.f32 %v6197, %v6275
      %v6277 = vpop.f32.mrb[0].mxu0
      %6278 = vmatprep.mubr.f32.mxu0 0.0
      %6279 = vmatmul.mubr.f32.gmra.mrb[0].mxu0 %v6172
      %v6280 = vpop.f32.mrb[0].mxu0
      %v6281 = vadd.f32 %v6197, %v6280
      %v6282 = vpop.f32.mrb[0].mxu0
      %6283 = vmatprep.mubr.f32.mxu0 0.0
      %6284 = vmatmul.mubr.f32.gmra.mrb[0].mxu0 %v6173
      %v6285 = vpop.f32.mrb[0].mxu0
      %v6286 = vadd.f32 %v6197, %v6285
      %v6287 = vpop.f32.mrb[0].mxu0
      %6288 = vmatprep.mubr.f32.mxu0 0.0
      %6289 = vmatmul.mubr.f32.gmra.mrb[0].mxu0 %v6174
      %v6290 = vpop.f32.mrb[0].mxu0
      %v6291 = vadd.f32 %v6197, %v6290
      %v6292 = vpop.f32.mrb[0].mxu0
      %6293 = vmatprep.mubr.f32.mxu0 0.0
      %6294 = vmatmul.mubr.f32.gmra.mrb[0].mxu0 %v6175
      %v6295 = vpop.f32.mrb[0].mxu0
      %v6296 = vadd.f32 %v6197, %v6295
      %v6297 = vpop.f32.mrb[0].mxu0
      %6298 = vdwg.mxu0
      %v6299 = vmul.f32 %v6266, 0.8
      %v6300 = vmul.f32 %v6271, 0.8
      %v6301 = vmul.f32 %v6276, 0.8
      %v6302 = vmul.f32 %v6281, 0.8
      %v6303 = vmul.f32 %v6286, 0.8
      %v6304 = vmul.f32 %v6291, 0.8
      %v6305 = vmul.f32 %v6296, 0.8
      %v6306 = vld [vmem:[%s273 + $0x90] sm:$0xff]
      %v6307 = vld [vmem:[%s273 + $0x98] sm:$0xff]
      %v6308 = vadd.f32 %v6299, %v6306
      %v6309 = vadd.f32 %v6300, %v6307
      %v6310 = vmax.f32 %v6308, 0.0
      %v6311 = vmax.f32 %v6309, 0.0
      %6312 = vst [vmem:[%s278 + $0x90] sm:$0xff] %v6310
      %6313 = vst [vmem:[%s278 + $0x98] sm:$0xff] %v6311
      %v6314 = vld [vmem:[%s273 + $0xa0] sm:$0xff]
      %v6315 = vld [vmem:[%s273 + $0xa8] sm:$0xff]
      %v6318 = vrot.slane %v6314, 6
      %v6319 = vrot.slane %v6315, 6
      %v6320 = vsel %vm2257, %v6318, %v6319
      %v6324 = vadd.f32 %v6301, %v6318
      %v6325 = vadd.f32 %v6302, %v6320
      %v6326 = vadd.f32 %v6303, %v6319
      %v6327 = vmax.f32 %v6324, 0.0
      %v6328 = vmax.f32 %v6325, 0.0
      %v6329 = vmax.f32 %v6326, 0.0
      %6330 = vst [vmem:[%s278 + $0x9e] sm:$0xfc] %v6327
      %6331 = vst [vmem:[%s278 + $0xa6] sm:$0xff] %v6328
      %6332 = vst [vmem:[%s278 + $0xae] sm:$0x3] %v6329
      %v6333 = vld [vmem:[%s273 + $0xb0] sm:$0xff]
      %v6334 = vld [vmem:[%s273 + $0xb8] sm:$0xff]
      %v6337 = vrot.slane %v6333, 4
      %v6338 = vrot.slane %v6334, 4
      %v6339 = vsel %vm2277, %v6337, %v6338
      %v6343 = vadd.f32 %v6303, %v6337
      %v6344 = vadd.f32 %v6304, %v6339
      %v6345 = vadd.f32 %v6305, %v6338
      %v6346 = vmax.f32 %v6343, 0.0
      %v6347 = vmax.f32 %v6344, 0.0
      %v6348 = vmax.f32 %v6345, 0.0
      %6349 = vst [vmem:[%s278 + $0xac] sm:$0xf0] %v6346
      %6350 = vst [vmem:[%s278 + $0xb4] sm:$0xff] %v6347
      %6351 = vst [vmem:[%s278 + $0xbc] sm:$0xf] %v6348
      %v6352 = vld [vmem:[#allocation2 + $0xd8] sm:$0xff]
      %v6353 = vld [vmem:[#allocation2 + $0xe0] sm:$0xff]
      %v6354 = vld [vmem:[#allocation2 + $0xe8] sm:$0xff]
      %v6355 = vld [vmem:[#allocation2 + $0xf0] sm:$0xff]
      %v6356 = vld [vmem:[#allocation2 + $0xf8] sm:$0xff]
      %v6357 = vld [vmem:[#allocation2 + $0x100] sm:$0xff]
      %v6358 = vld [vmem:[#allocation2 + $0x108] sm:$0x3f]
      %v6359 = vld [vmem:[%s3] sm:$0xff]
      %v6360 = vld [vmem:[%s3 + $0x8] sm:$0xff]
      %v6361 = vld [vmem:[%s3 + $0x10] sm:$0xff]
      %v6362 = vld [vmem:[%s3 + $0x18] sm:$0xff]
      %v6363 = vld [vmem:[%s3 + $0x20] sm:$0xff]
      %v6364 = vld [vmem:[%s3 + $0x28] sm:$0xff]
      %v6365 = vld [vmem:[%s3 + $0x30] sm:$0xff]
      %v6366 = vld [vmem:[%s3 + $0x38] sm:$0xff]
      %v6367 = vld [vmem:[%s3 + $0x40] sm:$0xff]
      %v6368 = vld [vmem:[%s3 + $0x48] sm:$0xff]
      %v6369 = vld [vmem:[%s3 + $0x50] sm:$0xff]
      %v6370 = vld [vmem:[%s3 + $0x58] sm:$0xff]
      %v6371 = vld [vmem:[%s3 + $0x60] sm:$0xff]
      %v6372 = vld [vmem:[%s3 + $0x68] sm:$0xff]
      %v6373 = vld [vmem:[%s3 + $0x70] sm:$0xff]
      %v6374 = vld [vmem:[%s3 + $0x78] sm:$0xff]
      %v6375 = vld [vmem:[#allocation2 + $0xd9] sm:$0xff]
      %v6376 = vld [vmem:[#allocation2 + $0xe1] sm:$0xff]
      %v6377 = vld [vmem:[#allocation2 + $0xe9] sm:$0xff]
      %v6378 = vld [vmem:[#allocation2 + $0xf1] sm:$0xff]
      %v6379 = vld [vmem:[#allocation2 + $0xf9] sm:$0xff]
      %v6380 = vld [vmem:[#allocation2 + $0x101] sm:$0xff]
      %v6381 = vld [vmem:[#allocation2 + $0x109] sm:$0x3f]
      %v6382 = vld [vmem:[%s960] sm:$0xff]
      %v6383 = vld [vmem:[%s960 + $0x8] sm:$0xff]
      %v6384 = vld [vmem:[%s960 + $0x10] sm:$0xff]
      %v6385 = vld [vmem:[%s960 + $0x18] sm:$0xff]
      %v6386 = vld [vmem:[%s960 + $0x20] sm:$0xff]
      %v6387 = vld [vmem:[%s960 + $0x28] sm:$0xff]
      %v6388 = vld [vmem:[%s960 + $0x30] sm:$0xff]
      %v6389 = vld [vmem:[%s960 + $0x38] sm:$0xff]
      %v6390 = vld [vmem:[%s960 + $0x40] sm:$0xff]
      %v6391 = vld [vmem:[%s960 + $0x48] sm:$0xff]
      %v6392 = vld [vmem:[%s960 + $0x50] sm:$0xff]
      %v6393 = vld [vmem:[%s960 + $0x58] sm:$0xff]
      %v6394 = vld [vmem:[%s960 + $0x60] sm:$0xff]
      %v6395 = vld [vmem:[%s960 + $0x68] sm:$0xff]
      %v6396 = vld [vmem:[%s960 + $0x70] sm:$0xff]
      %v6397 = vld [vmem:[%s960 + $0x78] sm:$0xff]
      %6398 = vmatprep.subr.mxu0 0.0
      %6399 = vmatpush1.msra.mxu0 %v6382
      %6400 = vmatprep.subr.mxu0 0.0
      %6401 = vmatpush1.msra.mxu0 %v6383
      %6402 = vmatprep.subr.mxu0 0.0
      %6403 = vmatpush1.msra.mxu0 %v6384
      %6404 = vmatprep.subr.mxu0 0.0
      %6405 = vmatpush1.msra.mxu0 %v6385
      %6406 = vmatprep.subr.mxu0 0.0
      %6407 = vmatpush1.msra.mxu0 %v6386
      %6408 = vmatprep.subr.mxu0 0.0
      %6409 = vmatpush1.msra.mxu0 %v6387
      %6410 = vmatprep.subr.mxu0 0.0
      %6411 = vmatpush1.msra.mxu0 %v6388
      %6412 = vmatprep.subr.mxu0 0.0
      %6413 = vmatpush1.msra.mxu0 %v6389
      %6414 = vmatprep.subr.mxu0 0.0
      %6415 = vmatpush1.msra.mxu0 %v6390
      %6416 = vmatprep.subr.mxu0 0.0
      %6417 = vmatpush1.msra.mxu0 %v6391
      %6418 = vmatprep.subr.mxu0 0.0
      %6419 = vmatpush1.msra.mxu0 %v6392
      %6420 = vmatprep.subr.mxu0 0.0
      %6421 = vmatpush1.msra.mxu0 %v6393
      %6422 = vmatprep.subr.mxu0 0.0
      %6423 = vmatpush1.msra.mxu0 %v6394
      %6424 = vmatprep.subr.mxu0 0.0
      %6425 = vmatpush1.msra.mxu0 %v6395
      %6426 = vmatprep.subr.mxu0 0.0
      %6427 = vmatpush1.msra.mxu0 %v6396
      %6428 = vmatprep.subr.mxu0 0.0
      %6429 = vmatpush1.msra.mxu0 %v6397
      %6430 = vmatprep.subr.mxu0 0.0
      %6431 = vmatpush1.msra.mxu0 0.0
      %6432 = vmatprep.subr.mxu0 0.0
      %6433 = vmatpush1.msra.mxu0 0.0
      %6434 = vmatprep.subr.mxu0 0.0
      %6435 = vmatpush1.msra.mxu0 0.0
      %6436 = vmatprep.subr.mxu0 0.0
      %6437 = vmatpush1.msra.mxu0 0.0
      %6438 = vmatprep.subr.mxu0 0.0
      %6439 = vmatpush1.msra.mxu0 0.0
      %6440 = vmatprep.subr.mxu0 0.0
      %6441 = vmatpush1.msra.mxu0 0.0
      %6442 = vmatprep.subr.mxu0 0.0
      %6443 = vmatpush1.msra.mxu0 0.0
      %6444 = vmatprep.subr.mxu0 0.0
      %6445 = vmatpush1.msra.mxu0 0.0
      %6446 = vmatprep.subr.mxu0 0.0
      %6447 = vmatpush1.msra.mxu0 0.0
      %6448 = vmatprep.subr.mxu0 0.0
      %6449 = vmatpush1.msra.mxu0 0.0
      %6450 = vmatprep.subr.mxu0 0.0
      %6451 = vmatpush1.msra.mxu0 0.0
      %6452 = vmatprep.subr.mxu0 0.0
      %6453 = vmatpush1.msra.mxu0 0.0
      %6454 = vmatprep.subr.mxu0 0.0
      %6455 = vmatpush1.msra.mxu0 0.0
      %6456 = vmatprep.subr.mxu0 0.0
      %6457 = vmatpush1.msra.mxu0 0.0
      %6458 = vmatprep.subr.mxu0 0.0
      %6459 = vmatpush1.msra.mxu0 0.0
      %6460 = vmatprep.subr.mxu0 0.0
      %6461 = vmatpush1.msra.mxu0 0.0
      %6462 = vmatprep.mubr.f32.mxu0 0.0
      %6463 = vmatmul.mubr.f32.gmra.mrb[0].mxu0 %v6375
      %v6464 = vpop.f32.mrb[0].mxu0
      %v6465 = vadd.f32 0.0, %v6464
      %v6466 = vpop.f32.mrb[0].mxu0
      %6467 = vmatprep.mubr.f32.mxu0 0.0
      %6468 = vmatmul.mubr.f32.gmra.mrb[0].mxu0 %v6376
      %v6469 = vpop.f32.mrb[0].mxu0
      %v6470 = vadd.f32 0.0, %v6469
      %v6471 = vpop.f32.mrb[0].mxu0
      %6472 = vmatprep.mubr.f32.mxu0 0.0
      %6473 = vmatmul.mubr.f32.gmra.mrb[0].mxu0 %v6377
      %v6474 = vpop.f32.mrb[0].mxu0
      %v6475 = vadd.f32 0.0, %v6474
      %v6476 = vpop.f32.mrb[0].mxu0
      %6477 = vmatprep.mubr.f32.mxu0 0.0
      %6478 = vmatmul.mubr.f32.gmra.mrb[0].mxu0 %v6378
      %v6479 = vpop.f32.mrb[0].mxu0
      %v6480 = vadd.f32 0.0, %v6479
      %v6481 = vpop.f32.mrb[0].mxu0
      %6482 = vmatprep.mubr.f32.mxu0 0.0
      %6483 = vmatmul.mubr.f32.gmra.mrb[0].mxu0 %v6379
      %v6484 = vpop.f32.mrb[0].mxu0
      %v6485 = vadd.f32 0.0, %v6484
      %v6486 = vpop.f32.mrb[0].mxu0
      %6487 = vmatprep.mubr.f32.mxu0 0.0
      %6488 = vmatmul.mubr.f32.gmra.mrb[0].mxu0 %v6380
      %v6489 = vpop.f32.mrb[0].mxu0
      %v6490 = vadd.f32 0.0, %v6489
      %v6491 = vpop.f32.mrb[0].mxu0
      %6492 = vmatprep.mubr.f32.mxu0 0.0
      %6493 = vmatmul.mubr.f32.gmra.mrb[0].mxu0 %v6381
      %v6494 = vpop.f32.mrb[0].mxu0
      %v6495 = vadd.f32 0.0, %v6494
      %v6496 = vpop.f32.mrb[0].mxu0
      %6497 = vdwg.mxu0
      %6498 = vmatprep.subr.mxu0 0.0
      %6499 = vmatpush1.msra.mxu0 %v6359
      %6500 = vmatprep.subr.mxu0 0.0
      %6501 = vmatpush1.msra.mxu0 %v6360
      %6502 = vmatprep.subr.mxu0 0.0
      %6503 = vmatpush1.msra.mxu0 %v6361
      %6504 = vmatprep.subr.mxu0 0.0
      %6505 = vmatpush1.msra.mxu0 %v6362
      %6506 = vmatprep.subr.mxu0 0.0
      %6507 = vmatpush1.msra.mxu0 %v6363
      %6508 = vmatprep.subr.mxu0 0.0
      %6509 = vmatpush1.msra.mxu0 %v6364
      %6510 = vmatprep.subr.mxu0 0.0
      %6511 = vmatpush1.msra.mxu0 %v6365
      %6512 = vmatprep.subr.mxu0 0.0
      %6513 = vmatpush1.msra.mxu0 %v6366
      %6514 = vmatprep.subr.mxu0 0.0
      %6515 = vmatpush1.msra.mxu0 %v6367
      %6516 = vmatprep.subr.mxu0 0.0
      %6517 = vmatpush1.msra.mxu0 %v6368
      %6518 = vmatprep.subr.mxu0 0.0
      %6519 = vmatpush1.msra.mxu0 %v6369
      %6520 = vmatprep.subr.mxu0 0.0
      %6521 = vmatpush1.msra.mxu0 %v6370
      %6522 = vmatprep.subr.mxu0 0.0
      %6523 = vmatpush1.msra.mxu0 %v6371
      %6524 = vmatprep.subr.mxu0 0.0
      %6525 = vmatpush1.msra.mxu0 %v6372
      %6526 = vmatprep.subr.mxu0 0.0
      %6527 = vmatpush1.msra.mxu0 %v6373
      %6528 = vmatprep.subr.mxu0 0.0
      %6529 = vmatpush1.msra.mxu0 %v6374
      %6530 = vmatprep.subr.mxu0 0.0
      %6531 = vmatpush1.msra.mxu0 0.0
      %6532 = vmatprep.subr.mxu0 0.0
      %6533 = vmatpush1.msra.mxu0 0.0
      %6534 = vmatprep.subr.mxu0 0.0
      %6535 = vmatpush1.msra.mxu0 0.0
      %6536 = vmatprep.subr.mxu0 0.0
      %6537 = vmatpush1.msra.mxu0 0.0
      %6538 = vmatprep.subr.mxu0 0.0
      %6539 = vmatpush1.msra.mxu0 0.0
      %6540 = vmatprep.subr.mxu0 0.0
      %6541 = vmatpush1.msra.mxu0 0.0
      %6542 = vmatprep.subr.mxu0 0.0
      %6543 = vmatpush1.msra.mxu0 0.0
      %6544 = vmatprep.subr.mxu0 0.0
      %6545 = vmatpush1.msra.mxu0 0.0
      %6546 = vmatprep.subr.mxu0 0.0
      %6547 = vmatpush1.msra.mxu0 0.0
      %6548 = vmatprep.subr.mxu0 0.0
      %6549 = vmatpush1.msra.mxu0 0.0
      %6550 = vmatprep.subr.mxu0 0.0
      %6551 = vmatpush1.msra.mxu0 0.0
      %6552 = vmatprep.subr.mxu0 0.0
      %6553 = vmatpush1.msra.mxu0 0.0
      %6554 = vmatprep.subr.mxu0 0.0
      %6555 = vmatpush1.msra.mxu0 0.0
      %6556 = vmatprep.subr.mxu0 0.0
      %6557 = vmatpush1.msra.mxu0 0.0
      %6558 = vmatprep.subr.mxu0 0.0
      %6559 = vmatpush1.msra.mxu0 0.0
      %6560 = vmatprep.subr.mxu0 0.0
      %6561 = vmatpush1.msra.mxu0 0.0
      %6562 = vmatprep.mubr.f32.mxu0 0.0
      %6563 = vmatmul.mubr.f32.gmra.mrb[0].mxu0 %v6352
      %v6564 = vpop.f32.mrb[0].mxu0
      %v6565 = vadd.f32 %v6465, %v6564
      %v6566 = vpop.f32.mrb[0].mxu0
      %6567 = vmatprep.mubr.f32.mxu0 0.0
      %6568 = vmatmul.mubr.f32.gmra.mrb[0].mxu0 %v6353
      %v6569 = vpop.f32.mrb[0].mxu0
      %v6570 = vadd.f32 %v6470, %v6569
      %v6571 = vpop.f32.mrb[0].mxu0
      %6572 = vmatprep.mubr.f32.mxu0 0.0
      %6573 = vmatmul.mubr.f32.gmra.mrb[0].mxu0 %v6354
      %v6574 = vpop.f32.mrb[0].mxu0
      %v6575 = vadd.f32 %v6475, %v6574
      %v6576 = vpop.f32.mrb[0].mxu0
      %6577 = vmatprep.mubr.f32.mxu0 0.0
      %6578 = vmatmul.mubr.f32.gmra.mrb[0].mxu0 %v6355
      %v6579 = vpop.f32.mrb[0].mxu0
      %v6580 = vadd.f32 %v6480, %v6579
      %v6581 = vpop.f32.mrb[0].mxu0
      %6582 = vmatprep.mubr.f32.mxu0 0.0
      %6583 = vmatmul.mubr.f32.gmra.mrb[0].mxu0 %v6356
      %v6584 = vpop.f32.mrb[0].mxu0
      %v6585 = vadd.f32 %v6485, %v6584
      %v6586 = vpop.f32.mrb[0].mxu0
      %6587 = vmatprep.mubr.f32.mxu0 0.0
      %6588 = vmatmul.mubr.f32.gmra.mrb[0].mxu0 %v6357
      %v6589 = vpop.f32.mrb[0].mxu0
      %v6590 = vadd.f32 %v6490, %v6589
      %v6591 = vpop.f32.mrb[0].mxu0
      %6592 = vmatprep.mubr.f32.mxu0 0.0
      %6593 = vmatmul.mubr.f32.gmra.mrb[0].mxu0 %v6358
      %v6594 = vpop.f32.mrb[0].mxu0
      %v6595 = vadd.f32 %v6495, %v6594
      %v6596 = vpop.f32.mrb[0].mxu0
      %6597 = vdwg.mxu0
      %v6598 = vld [vmem:[#allocation2 + $0xda] sm:$0xff]
      %v6599 = vld [vmem:[#allocation2 + $0xe2] sm:$0xff]
      %v6600 = vld [vmem:[#allocation2 + $0xea] sm:$0xff]
      %v6601 = vld [vmem:[#allocation2 + $0xf2] sm:$0xff]
      %v6602 = vld [vmem:[#allocation2 + $0xfa] sm:$0xff]
      %v6603 = vld [vmem:[#allocation2 + $0x102] sm:$0xff]
      %v6604 = vld [vmem:[#allocation2 + $0x10a] sm:$0x3f]
      %v6605 = vld [vmem:[%s1184] sm:$0xff]
      %v6606 = vld [vmem:[%s1184 + $0x8] sm:$0xff]
      %v6607 = vld [vmem:[%s1184 + $0x10] sm:$0xff]
      %v6608 = vld [vmem:[%s1184 + $0x18] sm:$0xff]
      %v6609 = vld [vmem:[%s1184 + $0x20] sm:$0xff]
      %v6610 = vld [vmem:[%s1184 + $0x28] sm:$0xff]
      %v6611 = vld [vmem:[%s1184 + $0x30] sm:$0xff]
      %v6612 = vld [vmem:[%s1184 + $0x38] sm:$0xff]
      %v6613 = vld [vmem:[%s1184 + $0x40] sm:$0xff]
      %v6614 = vld [vmem:[%s1184 + $0x48] sm:$0xff]
      %v6615 = vld [vmem:[%s1184 + $0x50] sm:$0xff]
      %v6616 = vld [vmem:[%s1184 + $0x58] sm:$0xff]
      %v6617 = vld [vmem:[%s1184 + $0x60] sm:$0xff]
      %v6618 = vld [vmem:[%s1184 + $0x68] sm:$0xff]
      %v6619 = vld [vmem:[%s1184 + $0x70] sm:$0xff]
      %v6620 = vld [vmem:[%s1184 + $0x78] sm:$0xff]
      %6621 = vmatprep.subr.mxu0 0.0
      %6622 = vmatpush1.msra.mxu0 %v6605
      %6623 = vmatprep.subr.mxu0 0.0
      %6624 = vmatpush1.msra.mxu0 %v6606
      %6625 = vmatprep.subr.mxu0 0.0
      %6626 = vmatpush1.msra.mxu0 %v6607
      %6627 = vmatprep.subr.mxu0 0.0
      %6628 = vmatpush1.msra.mxu0 %v6608
      %6629 = vmatprep.subr.mxu0 0.0
      %6630 = vmatpush1.msra.mxu0 %v6609
      %6631 = vmatprep.subr.mxu0 0.0
      %6632 = vmatpush1.msra.mxu0 %v6610
      %6633 = vmatprep.subr.mxu0 0.0
      %6634 = vmatpush1.msra.mxu0 %v6611
      %6635 = vmatprep.subr.mxu0 0.0
      %6636 = vmatpush1.msra.mxu0 %v6612
      %6637 = vmatprep.subr.mxu0 0.0
      %6638 = vmatpush1.msra.mxu0 %v6613
      %6639 = vmatprep.subr.mxu0 0.0
      %6640 = vmatpush1.msra.mxu0 %v6614
      %6641 = vmatprep.subr.mxu0 0.0
      %6642 = vmatpush1.msra.mxu0 %v6615
      %6643 = vmatprep.subr.mxu0 0.0
      %6644 = vmatpush1.msra.mxu0 %v6616
      %6645 = vmatprep.subr.mxu0 0.0
      %6646 = vmatpush1.msra.mxu0 %v6617
      %6647 = vmatprep.subr.mxu0 0.0
      %6648 = vmatpush1.msra.mxu0 %v6618
      %6649 = vmatprep.subr.mxu0 0.0
      %6650 = vmatpush1.msra.mxu0 %v6619
      %6651 = vmatprep.subr.mxu0 0.0
      %6652 = vmatpush1.msra.mxu0 %v6620
      %6653 = vmatprep.subr.mxu0 0.0
      %6654 = vmatpush1.msra.mxu0 0.0
      %6655 = vmatprep.subr.mxu0 0.0
      %6656 = vmatpush1.msra.mxu0 0.0
      %6657 = vmatprep.subr.mxu0 0.0
      %6658 = vmatpush1.msra.mxu0 0.0
      %6659 = vmatprep.subr.mxu0 0.0
      %6660 = vmatpush1.msra.mxu0 0.0
      %6661 = vmatprep.subr.mxu0 0.0
      %6662 = vmatpush1.msra.mxu0 0.0
      %6663 = vmatprep.subr.mxu0 0.0
      %6664 = vmatpush1.msra.mxu0 0.0
      %6665 = vmatprep.subr.mxu0 0.0
      %6666 = vmatpush1.msra.mxu0 0.0
      %6667 = vmatprep.subr.mxu0 0.0
      %6668 = vmatpush1.msra.mxu0 0.0
      %6669 = vmatprep.subr.mxu0 0.0
      %6670 = vmatpush1.msra.mxu0 0.0
      %6671 = vmatprep.subr.mxu0 0.0
      %6672 = vmatpush1.msra.mxu0 0.0
      %6673 = vmatprep.subr.mxu0 0.0
      %6674 = vmatpush1.msra.mxu0 0.0
      %6675 = vmatprep.subr.mxu0 0.0
      %6676 = vmatpush1.msra.mxu0 0.0
      %6677 = vmatprep.subr.mxu0 0.0
      %6678 = vmatpush1.msra.mxu0 0.0
      %6679 = vmatprep.subr.mxu0 0.0
      %6680 = vmatpush1.msra.mxu0 0.0
      %6681 = vmatprep.subr.mxu0 0.0
      %6682 = vmatpush1.msra.mxu0 0.0
      %6683 = vmatprep.subr.mxu0 0.0
      %6684 = vmatpush1.msra.mxu0 0.0
      %6685 = vmatprep.mubr.f32.mxu0 0.0
      %6686 = vmatmul.mubr.f32.gmra.mrb[0].mxu0 %v6598
      %v6687 = vpop.f32.mrb[0].mxu0
      %v6688 = vadd.f32 0.0, %v6687
      %v6689 = vpop.f32.mrb[0].mxu0
      %6690 = vmatprep.mubr.f32.mxu0 0.0
      %6691 = vmatmul.mubr.f32.gmra.mrb[0].mxu0 %v6599
      %v6692 = vpop.f32.mrb[0].mxu0
      %v6693 = vadd.f32 0.0, %v6692
      %v6694 = vpop.f32.mrb[0].mxu0
      %6695 = vmatprep.mubr.f32.mxu0 0.0
      %6696 = vmatmul.mubr.f32.gmra.mrb[0].mxu0 %v6600
      %v6697 = vpop.f32.mrb[0].mxu0
      %v6698 = vadd.f32 0.0, %v6697
      %v6699 = vpop.f32.mrb[0].mxu0
      %6700 = vmatprep.mubr.f32.mxu0 0.0
      %6701 = vmatmul.mubr.f32.gmra.mrb[0].mxu0 %v6601
      %v6702 = vpop.f32.mrb[0].mxu0
      %v6703 = vadd.f32 0.0, %v6702
      %v6704 = vpop.f32.mrb[0].mxu0
      %6705 = vmatprep.mubr.f32.mxu0 0.0
      %6706 = vmatmul.mubr.f32.gmra.mrb[0].mxu0 %v6602
      %v6707 = vpop.f32.mrb[0].mxu0
      %v6708 = vadd.f32 0.0, %v6707
      %v6709 = vpop.f32.mrb[0].mxu0
      %6710 = vmatprep.mubr.f32.mxu0 0.0
      %6711 = vmatmul.mubr.f32.gmra.mrb[0].mxu0 %v6603
      %v6712 = vpop.f32.mrb[0].mxu0
      %v6713 = vadd.f32 0.0, %v6712
      %v6714 = vpop.f32.mrb[0].mxu0
      %6715 = vmatprep.mubr.f32.mxu0 0.0
      %6716 = vmatmul.mubr.f32.gmra.mrb[0].mxu0 %v6604
      %v6717 = vpop.f32.mrb[0].mxu0
      %v6718 = vadd.f32 0.0, %v6717
      %v6719 = vpop.f32.mrb[0].mxu0
      %6720 = vdwg.mxu0
      %v6721 = vadd.f32 %v6565, %v6688
      %v6722 = vadd.f32 %v6570, %v6693
      %v6723 = vadd.f32 %v6575, %v6698
      %v6724 = vadd.f32 %v6580, %v6703
      %v6725 = vadd.f32 %v6585, %v6708
      %v6726 = vadd.f32 %v6590, %v6713
      %v6727 = vadd.f32 %v6595, %v6718
      %v6728 = vld [vmem:[#allocation2 + $0xea] sm:$0xff]
      %v6729 = vld [vmem:[#allocation2 + $0xf2] sm:$0xff]
      %v6730 = vld [vmem:[#allocation2 + $0xfa] sm:$0xff]
      %v6731 = vld [vmem:[#allocation2 + $0x102] sm:$0xff]
      %v6732 = vld [vmem:[#allocation2 + $0x10a] sm:$0xff]
      %v6733 = vld [vmem:[#allocation2 + $0x112] sm:$0xff]
      %v6734 = vld [vmem:[#allocation2 + $0x11a] sm:$0x3f]
      %v6735 = vld [vmem:[%s1315] sm:$0xff]
      %v6736 = vld [vmem:[%s1315 + $0x8] sm:$0xff]
      %v6737 = vld [vmem:[%s1315 + $0x10] sm:$0xff]
      %v6738 = vld [vmem:[%s1315 + $0x18] sm:$0xff]
      %v6739 = vld [vmem:[%s1315 + $0x20] sm:$0xff]
      %v6740 = vld [vmem:[%s1315 + $0x28] sm:$0xff]
      %v6741 = vld [vmem:[%s1315 + $0x30] sm:$0xff]
      %v6742 = vld [vmem:[%s1315 + $0x38] sm:$0xff]
      %v6743 = vld [vmem:[%s1315 + $0x40] sm:$0xff]
      %v6744 = vld [vmem:[%s1315 + $0x48] sm:$0xff]
      %v6745 = vld [vmem:[%s1315 + $0x50] sm:$0xff]
      %v6746 = vld [vmem:[%s1315 + $0x58] sm:$0xff]
      %v6747 = vld [vmem:[%s1315 + $0x60] sm:$0xff]
      %v6748 = vld [vmem:[%s1315 + $0x68] sm:$0xff]
      %v6749 = vld [vmem:[%s1315 + $0x70] sm:$0xff]
      %v6750 = vld [vmem:[%s1315 + $0x78] sm:$0xff]
      %6751 = vmatprep.subr.mxu0 0.0
      %6752 = vmatpush1.msra.mxu0 %v6735
      %6753 = vmatprep.subr.mxu0 0.0
      %6754 = vmatpush1.msra.mxu0 %v6736
      %6755 = vmatprep.subr.mxu0 0.0
      %6756 = vmatpush1.msra.mxu0 %v6737
      %6757 = vmatprep.subr.mxu0 0.0
      %6758 = vmatpush1.msra.mxu0 %v6738
      %6759 = vmatprep.subr.mxu0 0.0
      %6760 = vmatpush1.msra.mxu0 %v6739
      %6761 = vmatprep.subr.mxu0 0.0
      %6762 = vmatpush1.msra.mxu0 %v6740
      %6763 = vmatprep.subr.mxu0 0.0
      %6764 = vmatpush1.msra.mxu0 %v6741
      %6765 = vmatprep.subr.mxu0 0.0
      %6766 = vmatpush1.msra.mxu0 %v6742
      %6767 = vmatprep.subr.mxu0 0.0
      %6768 = vmatpush1.msra.mxu0 %v6743
      %6769 = vmatprep.subr.mxu0 0.0
      %6770 = vmatpush1.msra.mxu0 %v6744
      %6771 = vmatprep.subr.mxu0 0.0
      %6772 = vmatpush1.msra.mxu0 %v6745
      %6773 = vmatprep.subr.mxu0 0.0
      %6774 = vmatpush1.msra.mxu0 %v6746
      %6775 = vmatprep.subr.mxu0 0.0
      %6776 = vmatpush1.msra.mxu0 %v6747
      %6777 = vmatprep.subr.mxu0 0.0
      %6778 = vmatpush1.msra.mxu0 %v6748
      %6779 = vmatprep.subr.mxu0 0.0
      %6780 = vmatpush1.msra.mxu0 %v6749
      %6781 = vmatprep.subr.mxu0 0.0
      %6782 = vmatpush1.msra.mxu0 %v6750
      %6783 = vmatprep.subr.mxu0 0.0
      %6784 = vmatpush1.msra.mxu0 0.0
      %6785 = vmatprep.subr.mxu0 0.0
      %6786 = vmatpush1.msra.mxu0 0.0
      %6787 = vmatprep.subr.mxu0 0.0
      %6788 = vmatpush1.msra.mxu0 0.0
      %6789 = vmatprep.subr.mxu0 0.0
      %6790 = vmatpush1.msra.mxu0 0.0
      %6791 = vmatprep.subr.mxu0 0.0
      %6792 = vmatpush1.msra.mxu0 0.0
      %6793 = vmatprep.subr.mxu0 0.0
      %6794 = vmatpush1.msra.mxu0 0.0
      %6795 = vmatprep.subr.mxu0 0.0
      %6796 = vmatpush1.msra.mxu0 0.0
      %6797 = vmatprep.subr.mxu0 0.0
      %6798 = vmatpush1.msra.mxu0 0.0
      %6799 = vmatprep.subr.mxu0 0.0
      %6800 = vmatpush1.msra.mxu0 0.0
      %6801 = vmatprep.subr.mxu0 0.0
      %6802 = vmatpush1.msra.mxu0 0.0
      %6803 = vmatprep.subr.mxu0 0.0
      %6804 = vmatpush1.msra.mxu0 0.0
      %6805 = vmatprep.subr.mxu0 0.0
      %6806 = vmatpush1.msra.mxu0 0.0
      %6807 = vmatprep.subr.mxu0 0.0
      %6808 = vmatpush1.msra.mxu0 0.0
      %6809 = vmatprep.subr.mxu0 0.0
      %6810 = vmatpush1.msra.mxu0 0.0
      %6811 = vmatprep.subr.mxu0 0.0
      %6812 = vmatpush1.msra.mxu0 0.0
      %6813 = vmatprep.subr.mxu0 0.0
      %6814 = vmatpush1.msra.mxu0 0.0
      %6815 = vmatprep.mubr.f32.mxu0 0.0
      %6816 = vmatmul.mubr.f32.gmra.mrb[0].mxu0 %v6728
      %v6817 = vpop.f32.mrb[0].mxu0
      %v6818 = vadd.f32 0.0, %v6817
      %v6819 = vpop.f32.mrb[0].mxu0
      %6820 = vmatprep.mubr.f32.mxu0 0.0
      %6821 = vmatmul.mubr.f32.gmra.mrb[0].mxu0 %v6729
      %v6822 = vpop.f32.mrb[0].mxu0
      %v6823 = vadd.f32 0.0, %v6822
      %v6824 = vpop.f32.mrb[0].mxu0
      %6825 = vmatprep.mubr.f32.mxu0 0.0
      %6826 = vmatmul.mubr.f32.gmra.mrb[0].mxu0 %v6730
      %v6827 = vpop.f32.mrb[0].mxu0
      %v6828 = vadd.f32 0.0, %v6827
      %v6829 = vpop.f32.mrb[0].mxu0
      %6830 = vmatprep.mubr.f32.mxu0 0.0
      %6831 = vmatmul.mubr.f32.gmra.mrb[0].mxu0 %v6731
      %v6832 = vpop.f32.mrb[0].mxu0
      %v6833 = vadd.f32 0.0, %v6832
      %v6834 = vpop.f32.mrb[0].mxu0
      %6835 = vmatprep.mubr.f32.mxu0 0.0
      %6836 = vmatmul.mubr.f32.gmra.mrb[0].mxu0 %v6732
      %v6837 = vpop.f32.mrb[0].mxu0
      %v6838 = vadd.f32 0.0, %v6837
      %v6839 = vpop.f32.mrb[0].mxu0
      %6840 = vmatprep.mubr.f32.mxu0 0.0
      %6841 = vmatmul.mubr.f32.gmra.mrb[0].mxu0 %v6733
      %v6842 = vpop.f32.mrb[0].mxu0
      %v6843 = vadd.f32 0.0, %v6842
      %v6844 = vpop.f32.mrb[0].mxu0
      %6845 = vmatprep.mubr.f32.mxu0 0.0
      %6846 = vmatmul.mubr.f32.gmra.mrb[0].mxu0 %v6734
      %v6847 = vpop.f32.mrb[0].mxu0
      %v6848 = vadd.f32 0.0, %v6847
      %v6849 = vpop.f32.mrb[0].mxu0
      %6850 = vdwg.mxu0
      %v6851 = vadd.f32 %v6721, %v6818
      %v6852 = vadd.f32 %v6722, %v6823
      %v6853 = vadd.f32 %v6723, %v6828
      %v6854 = vadd.f32 %v6724, %v6833
      %v6855 = vadd.f32 %v6725, %v6838
      %v6856 = vadd.f32 %v6726, %v6843
      %v6857 = vadd.f32 %v6727, %v6848
      %v6858 = vld [vmem:[#allocation2 + $0xeb] sm:$0xff]
      %v6859 = vld [vmem:[#allocation2 + $0xf3] sm:$0xff]
      %v6860 = vld [vmem:[#allocation2 + $0xfb] sm:$0xff]
      %v6861 = vld [vmem:[#allocation2 + $0x103] sm:$0xff]
      %v6862 = vld [vmem:[#allocation2 + $0x10b] sm:$0xff]
      %v6863 = vld [vmem:[#allocation2 + $0x113] sm:$0xff]
      %v6864 = vld [vmem:[#allocation2 + $0x11b] sm:$0x3f]
      %v6865 = vld [vmem:[%s1446] sm:$0xff]
      %v6866 = vld [vmem:[%s1446 + $0x8] sm:$0xff]
      %v6867 = vld [vmem:[%s1446 + $0x10] sm:$0xff]
      %v6868 = vld [vmem:[%s1446 + $0x18] sm:$0xff]
      %v6869 = vld [vmem:[%s1446 + $0x20] sm:$0xff]
      %v6870 = vld [vmem:[%s1446 + $0x28] sm:$0xff]
      %v6871 = vld [vmem:[%s1446 + $0x30] sm:$0xff]
      %v6872 = vld [vmem:[%s1446 + $0x38] sm:$0xff]
      %v6873 = vld [vmem:[%s1446 + $0x40] sm:$0xff]
      %v6874 = vld [vmem:[%s1446 + $0x48] sm:$0xff]
      %v6875 = vld [vmem:[%s1446 + $0x50] sm:$0xff]
      %v6876 = vld [vmem:[%s1446 + $0x58] sm:$0xff]
      %v6877 = vld [vmem:[%s1446 + $0x60] sm:$0xff]
      %v6878 = vld [vmem:[%s1446 + $0x68] sm:$0xff]
      %v6879 = vld [vmem:[%s1446 + $0x70] sm:$0xff]
      %v6880 = vld [vmem:[%s1446 + $0x78] sm:$0xff]
      %6881 = vmatprep.subr.mxu0 0.0
      %6882 = vmatpush1.msra.mxu0 %v6865
      %6883 = vmatprep.subr.mxu0 0.0
      %6884 = vmatpush1.msra.mxu0 %v6866
      %6885 = vmatprep.subr.mxu0 0.0
      %6886 = vmatpush1.msra.mxu0 %v6867
      %6887 = vmatprep.subr.mxu0 0.0
      %6888 = vmatpush1.msra.mxu0 %v6868
      %6889 = vmatprep.subr.mxu0 0.0
      %6890 = vmatpush1.msra.mxu0 %v6869
      %6891 = vmatprep.subr.mxu0 0.0
      %6892 = vmatpush1.msra.mxu0 %v6870
      %6893 = vmatprep.subr.mxu0 0.0
      %6894 = vmatpush1.msra.mxu0 %v6871
      %6895 = vmatprep.subr.mxu0 0.0
      %6896 = vmatpush1.msra.mxu0 %v6872
      %6897 = vmatprep.subr.mxu0 0.0
      %6898 = vmatpush1.msra.mxu0 %v6873
      %6899 = vmatprep.subr.mxu0 0.0
      %6900 = vmatpush1.msra.mxu0 %v6874
      %6901 = vmatprep.subr.mxu0 0.0
      %6902 = vmatpush1.msra.mxu0 %v6875
      %6903 = vmatprep.subr.mxu0 0.0
      %6904 = vmatpush1.msra.mxu0 %v6876
      %6905 = vmatprep.subr.mxu0 0.0
      %6906 = vmatpush1.msra.mxu0 %v6877
      %6907 = vmatprep.subr.mxu0 0.0
      %6908 = vmatpush1.msra.mxu0 %v6878
      %6909 = vmatprep.subr.mxu0 0.0
      %6910 = vmatpush1.msra.mxu0 %v6879
      %6911 = vmatprep.subr.mxu0 0.0
      %6912 = vmatpush1.msra.mxu0 %v6880
      %6913 = vmatprep.subr.mxu0 0.0
      %6914 = vmatpush1.msra.mxu0 0.0
      %6915 = vmatprep.subr.mxu0 0.0
      %6916 = vmatpush1.msra.mxu0 0.0
      %6917 = vmatprep.subr.mxu0 0.0
      %6918 = vmatpush1.msra.mxu0 0.0
      %6919 = vmatprep.subr.mxu0 0.0
      %6920 = vmatpush1.msra.mxu0 0.0
      %6921 = vmatprep.subr.mxu0 0.0
      %6922 = vmatpush1.msra.mxu0 0.0
      %6923 = vmatprep.subr.mxu0 0.0
      %6924 = vmatpush1.msra.mxu0 0.0
      %6925 = vmatprep.subr.mxu0 0.0
      %6926 = vmatpush1.msra.mxu0 0.0
      %6927 = vmatprep.subr.mxu0 0.0
      %6928 = vmatpush1.msra.mxu0 0.0
      %6929 = vmatprep.subr.mxu0 0.0
      %6930 = vmatpush1.msra.mxu0 0.0
      %6931 = vmatprep.subr.mxu0 0.0
      %6932 = vmatpush1.msra.mxu0 0.0
      %6933 = vmatprep.subr.mxu0 0.0
      %6934 = vmatpush1.msra.mxu0 0.0
      %6935 = vmatprep.subr.mxu0 0.0
      %6936 = vmatpush1.msra.mxu0 0.0
      %6937 = vmatprep.subr.mxu0 0.0
      %6938 = vmatpush1.msra.mxu0 0.0
      %6939 = vmatprep.subr.mxu0 0.0
      %6940 = vmatpush1.msra.mxu0 0.0
      %6941 = vmatprep.subr.mxu0 0.0
      %6942 = vmatpush1.msra.mxu0 0.0
      %6943 = vmatprep.subr.mxu0 0.0
      %6944 = vmatpush1.msra.mxu0 0.0
      %6945 = vmatprep.mubr.f32.mxu0 0.0
      %6946 = vmatmul.mubr.f32.gmra.mrb[0].mxu0 %v6858
      %v6947 = vpop.f32.mrb[0].mxu0
      %v6948 = vadd.f32 0.0, %v6947
      %v6949 = vpop.f32.mrb[0].mxu0
      %6950 = vmatprep.mubr.f32.mxu0 0.0
      %6951 = vmatmul.mubr.f32.gmra.mrb[0].mxu0 %v6859
      %v6952 = vpop.f32.mrb[0].mxu0
      %v6953 = vadd.f32 0.0, %v6952
      %v6954 = vpop.f32.mrb[0].mxu0
      %6955 = vmatprep.mubr.f32.mxu0 0.0
      %6956 = vmatmul.mubr.f32.gmra.mrb[0].mxu0 %v6860
      %v6957 = vpop.f32.mrb[0].mxu0
      %v6958 = vadd.f32 0.0, %v6957
      %v6959 = vpop.f32.mrb[0].mxu0
      %6960 = vmatprep.mubr.f32.mxu0 0.0
      %6961 = vmatmul.mubr.f32.gmra.mrb[0].mxu0 %v6861
      %v6962 = vpop.f32.mrb[0].mxu0
      %v6963 = vadd.f32 0.0, %v6962
      %v6964 = vpop.f32.mrb[0].mxu0
      %6965 = vmatprep.mubr.f32.mxu0 0.0
      %6966 = vmatmul.mubr.f32.gmra.mrb[0].mxu0 %v6862
      %v6967 = vpop.f32.mrb[0].mxu0
      %v6968 = vadd.f32 0.0, %v6967
      %v6969 = vpop.f32.mrb[0].mxu0
      %6970 = vmatprep.mubr.f32.mxu0 0.0
      %6971 = vmatmul.mubr.f32.gmra.mrb[0].mxu0 %v6863
      %v6972 = vpop.f32.mrb[0].mxu0
      %v6973 = vadd.f32 0.0, %v6972
      %v6974 = vpop.f32.mrb[0].mxu0
      %6975 = vmatprep.mubr.f32.mxu0 0.0
      %6976 = vmatmul.mubr.f32.gmra.mrb[0].mxu0 %v6864
      %v6977 = vpop.f32.mrb[0].mxu0
      %v6978 = vadd.f32 0.0, %v6977
      %v6979 = vpop.f32.mrb[0].mxu0
      %6980 = vdwg.mxu0
      %v6981 = vadd.f32 %v6851, %v6948
      %v6982 = vadd.f32 %v6852, %v6953
      %v6983 = vadd.f32 %v6853, %v6958
      %v6984 = vadd.f32 %v6854, %v6963
      %v6985 = vadd.f32 %v6855, %v6968
      %v6986 = vadd.f32 %v6856, %v6973
      %v6987 = vadd.f32 %v6857, %v6978
      %v6988 = vld [vmem:[#allocation2 + $0xec] sm:$0xff]
      %v6989 = vld [vmem:[#allocation2 + $0xf4] sm:$0xff]
      %v6990 = vld [vmem:[#allocation2 + $0xfc] sm:$0xff]
      %v6991 = vld [vmem:[#allocation2 + $0x104] sm:$0xff]
      %v6992 = vld [vmem:[#allocation2 + $0x10c] sm:$0xff]
      %v6993 = vld [vmem:[#allocation2 + $0x114] sm:$0xff]
      %v6994 = vld [vmem:[#allocation2 + $0x11c] sm:$0x3f]
      %v6995 = vld [vmem:[%s1577] sm:$0xff]
      %v6996 = vld [vmem:[%s1577 + $0x8] sm:$0xff]
      %v6997 = vld [vmem:[%s1577 + $0x10] sm:$0xff]
      %v6998 = vld [vmem:[%s1577 + $0x18] sm:$0xff]
      %v6999 = vld [vmem:[%s1577 + $0x20] sm:$0xff]
      %v7000 = vld [vmem:[%s1577 + $0x28] sm:$0xff]
      %v7001 = vld [vmem:[%s1577 + $0x30] sm:$0xff]
      %v7002 = vld [vmem:[%s1577 + $0x38] sm:$0xff]
      %v7003 = vld [vmem:[%s1577 + $0x40] sm:$0xff]
      %v7004 = vld [vmem:[%s1577 + $0x48] sm:$0xff]
      %v7005 = vld [vmem:[%s1577 + $0x50] sm:$0xff]
      %v7006 = vld [vmem:[%s1577 + $0x58] sm:$0xff]
      %v7007 = vld [vmem:[%s1577 + $0x60] sm:$0xff]
      %v7008 = vld [vmem:[%s1577 + $0x68] sm:$0xff]
      %v7009 = vld [vmem:[%s1577 + $0x70] sm:$0xff]
      %v7010 = vld [vmem:[%s1577 + $0x78] sm:$0xff]
      %7011 = vmatprep.subr.mxu0 0.0
      %7012 = vmatpush1.msra.mxu0 %v6995
      %7013 = vmatprep.subr.mxu0 0.0
      %7014 = vmatpush1.msra.mxu0 %v6996
      %7015 = vmatprep.subr.mxu0 0.0
      %7016 = vmatpush1.msra.mxu0 %v6997
      %7017 = vmatprep.subr.mxu0 0.0
      %7018 = vmatpush1.msra.mxu0 %v6998
      %7019 = vmatprep.subr.mxu0 0.0
      %7020 = vmatpush1.msra.mxu0 %v6999
      %7021 = vmatprep.subr.mxu0 0.0
      %7022 = vmatpush1.msra.mxu0 %v7000
      %7023 = vmatprep.subr.mxu0 0.0
      %7024 = vmatpush1.msra.mxu0 %v7001
      %7025 = vmatprep.subr.mxu0 0.0
      %7026 = vmatpush1.msra.mxu0 %v7002
      %7027 = vmatprep.subr.mxu0 0.0
      %7028 = vmatpush1.msra.mxu0 %v7003
      %7029 = vmatprep.subr.mxu0 0.0
      %7030 = vmatpush1.msra.mxu0 %v7004
      %7031 = vmatprep.subr.mxu0 0.0
      %7032 = vmatpush1.msra.mxu0 %v7005
      %7033 = vmatprep.subr.mxu0 0.0
      %7034 = vmatpush1.msra.mxu0 %v7006
      %7035 = vmatprep.subr.mxu0 0.0
      %7036 = vmatpush1.msra.mxu0 %v7007
      %7037 = vmatprep.subr.mxu0 0.0
      %7038 = vmatpush1.msra.mxu0 %v7008
      %7039 = vmatprep.subr.mxu0 0.0
      %7040 = vmatpush1.msra.mxu0 %v7009
      %7041 = vmatprep.subr.mxu0 0.0
      %7042 = vmatpush1.msra.mxu0 %v7010
      %7043 = vmatprep.subr.mxu0 0.0
      %7044 = vmatpush1.msra.mxu0 0.0
      %7045 = vmatprep.subr.mxu0 0.0
      %7046 = vmatpush1.msra.mxu0 0.0
      %7047 = vmatprep.subr.mxu0 0.0
      %7048 = vmatpush1.msra.mxu0 0.0
      %7049 = vmatprep.subr.mxu0 0.0
      %7050 = vmatpush1.msra.mxu0 0.0
      %7051 = vmatprep.subr.mxu0 0.0
      %7052 = vmatpush1.msra.mxu0 0.0
      %7053 = vmatprep.subr.mxu0 0.0
      %7054 = vmatpush1.msra.mxu0 0.0
      %7055 = vmatprep.subr.mxu0 0.0
      %7056 = vmatpush1.msra.mxu0 0.0
      %7057 = vmatprep.subr.mxu0 0.0
      %7058 = vmatpush1.msra.mxu0 0.0
      %7059 = vmatprep.subr.mxu0 0.0
      %7060 = vmatpush1.msra.mxu0 0.0
      %7061 = vmatprep.subr.mxu0 0.0
      %7062 = vmatpush1.msra.mxu0 0.0
      %7063 = vmatprep.subr.mxu0 0.0
      %7064 = vmatpush1.msra.mxu0 0.0
      %7065 = vmatprep.subr.mxu0 0.0
      %7066 = vmatpush1.msra.mxu0 0.0
      %7067 = vmatprep.subr.mxu0 0.0
      %7068 = vmatpush1.msra.mxu0 0.0
      %7069 = vmatprep.subr.mxu0 0.0
      %7070 = vmatpush1.msra.mxu0 0.0
      %7071 = vmatprep.subr.mxu0 0.0
      %7072 = vmatpush1.msra.mxu0 0.0
      %7073 = vmatprep.subr.mxu0 0.0
      %7074 = vmatpush1.msra.mxu0 0.0
      %7075 = vmatprep.mubr.f32.mxu0 0.0
      %7076 = vmatmul.mubr.f32.gmra.mrb[0].mxu0 %v6988
      %v7077 = vpop.f32.mrb[0].mxu0
      %v7078 = vadd.f32 0.0, %v7077
      %v7079 = vpop.f32.mrb[0].mxu0
      %7080 = vmatprep.mubr.f32.mxu0 0.0
      %7081 = vmatmul.mubr.f32.gmra.mrb[0].mxu0 %v6989
      %v7082 = vpop.f32.mrb[0].mxu0
      %v7083 = vadd.f32 0.0, %v7082
      %v7084 = vpop.f32.mrb[0].mxu0
      %7085 = vmatprep.mubr.f32.mxu0 0.0
      %7086 = vmatmul.mubr.f32.gmra.mrb[0].mxu0 %v6990
      %v7087 = vpop.f32.mrb[0].mxu0
      %v7088 = vadd.f32 0.0, %v7087
      %v7089 = vpop.f32.mrb[0].mxu0
      %7090 = vmatprep.mubr.f32.mxu0 0.0
      %7091 = vmatmul.mubr.f32.gmra.mrb[0].mxu0 %v6991
      %v7092 = vpop.f32.mrb[0].mxu0
      %v7093 = vadd.f32 0.0, %v7092
      %v7094 = vpop.f32.mrb[0].mxu0
      %7095 = vmatprep.mubr.f32.mxu0 0.0
      %7096 = vmatmul.mubr.f32.gmra.mrb[0].mxu0 %v6992
      %v7097 = vpop.f32.mrb[0].mxu0
      %v7098 = vadd.f32 0.0, %v7097
      %v7099 = vpop.f32.mrb[0].mxu0
      %7100 = vmatprep.mubr.f32.mxu0 0.0
      %7101 = vmatmul.mubr.f32.gmra.mrb[0].mxu0 %v6993
      %v7102 = vpop.f32.mrb[0].mxu0
      %v7103 = vadd.f32 0.0, %v7102
      %v7104 = vpop.f32.mrb[0].mxu0
      %7105 = vmatprep.mubr.f32.mxu0 0.0
      %7106 = vmatmul.mubr.f32.gmra.mrb[0].mxu0 %v6994
      %v7107 = vpop.f32.mrb[0].mxu0
      %v7108 = vadd.f32 0.0, %v7107
      %v7109 = vpop.f32.mrb[0].mxu0
      %7110 = vdwg.mxu0
      %v7111 = vadd.f32 %v6981, %v7078
      %v7112 = vadd.f32 %v6982, %v7083
      %v7113 = vadd.f32 %v6983, %v7088
      %v7114 = vadd.f32 %v6984, %v7093
      %v7115 = vadd.f32 %v6985, %v7098
      %v7116 = vadd.f32 %v6986, %v7103
      %v7117 = vadd.f32 %v6987, %v7108
      %v7118 = vld [vmem:[#allocation2 + $0xfc] sm:$0xff]
      %v7119 = vld [vmem:[#allocation2 + $0x104] sm:$0xff]
      %v7120 = vld [vmem:[#allocation2 + $0x10c] sm:$0xff]
      %v7121 = vld [vmem:[#allocation2 + $0x114] sm:$0xff]
      %v7122 = vld [vmem:[#allocation2 + $0x11c] sm:$0xff]
      %v7123 = vld [vmem:[#allocation2 + $0x124] sm:$0xff]
      %v7124 = vld [vmem:[#allocation2 + $0x12c] sm:$0x3f]
      %v7125 = vld [vmem:[%s1708] sm:$0xff]
      %v7126 = vld [vmem:[%s1708 + $0x8] sm:$0xff]
      %v7127 = vld [vmem:[%s1708 + $0x10] sm:$0xff]
      %v7128 = vld [vmem:[%s1708 + $0x18] sm:$0xff]
      %v7129 = vld [vmem:[%s1708 + $0x20] sm:$0xff]
      %v7130 = vld [vmem:[%s1708 + $0x28] sm:$0xff]
      %v7131 = vld [vmem:[%s1708 + $0x30] sm:$0xff]
      %v7132 = vld [vmem:[%s1708 + $0x38] sm:$0xff]
      %v7133 = vld [vmem:[%s1708 + $0x40] sm:$0xff]
      %v7134 = vld [vmem:[%s1708 + $0x48] sm:$0xff]
      %v7135 = vld [vmem:[%s1708 + $0x50] sm:$0xff]
      %v7136 = vld [vmem:[%s1708 + $0x58] sm:$0xff]
      %v7137 = vld [vmem:[%s1708 + $0x60] sm:$0xff]
      %v7138 = vld [vmem:[%s1708 + $0x68] sm:$0xff]
      %v7139 = vld [vmem:[%s1708 + $0x70] sm:$0xff]
      %v7140 = vld [vmem:[%s1708 + $0x78] sm:$0xff]
      %7141 = vmatprep.subr.mxu0 0.0
      %7142 = vmatpush1.msra.mxu0 %v7125
      %7143 = vmatprep.subr.mxu0 0.0
      %7144 = vmatpush1.msra.mxu0 %v7126
      %7145 = vmatprep.subr.mxu0 0.0
      %7146 = vmatpush1.msra.mxu0 %v7127
      %7147 = vmatprep.subr.mxu0 0.0
      %7148 = vmatpush1.msra.mxu0 %v7128
      %7149 = vmatprep.subr.mxu0 0.0
      %7150 = vmatpush1.msra.mxu0 %v7129
      %7151 = vmatprep.subr.mxu0 0.0
      %7152 = vmatpush1.msra.mxu0 %v7130
      %7153 = vmatprep.subr.mxu0 0.0
      %7154 = vmatpush1.msra.mxu0 %v7131
      %7155 = vmatprep.subr.mxu0 0.0
      %7156 = vmatpush1.msra.mxu0 %v7132
      %7157 = vmatprep.subr.mxu0 0.0
      %7158 = vmatpush1.msra.mxu0 %v7133
      %7159 = vmatprep.subr.mxu0 0.0
      %7160 = vmatpush1.msra.mxu0 %v7134
      %7161 = vmatprep.subr.mxu0 0.0
      %7162 = vmatpush1.msra.mxu0 %v7135
      %7163 = vmatprep.subr.mxu0 0.0
      %7164 = vmatpush1.msra.mxu0 %v7136
      %7165 = vmatprep.subr.mxu0 0.0
      %7166 = vmatpush1.msra.mxu0 %v7137
      %7167 = vmatprep.subr.mxu0 0.0
      %7168 = vmatpush1.msra.mxu0 %v7138
      %7169 = vmatprep.subr.mxu0 0.0
      %7170 = vmatpush1.msra.mxu0 %v7139
      %7171 = vmatprep.subr.mxu0 0.0
      %7172 = vmatpush1.msra.mxu0 %v7140
      %7173 = vmatprep.subr.mxu0 0.0
      %7174 = vmatpush1.msra.mxu0 0.0
      %7175 = vmatprep.subr.mxu0 0.0
      %7176 = vmatpush1.msra.mxu0 0.0
      %7177 = vmatprep.subr.mxu0 0.0
      %7178 = vmatpush1.msra.mxu0 0.0
      %7179 = vmatprep.subr.mxu0 0.0
      %7180 = vmatpush1.msra.mxu0 0.0
      %7181 = vmatprep.subr.mxu0 0.0
      %7182 = vmatpush1.msra.mxu0 0.0
      %7183 = vmatprep.subr.mxu0 0.0
      %7184 = vmatpush1.msra.mxu0 0.0
      %7185 = vmatprep.subr.mxu0 0.0
      %7186 = vmatpush1.msra.mxu0 0.0
      %7187 = vmatprep.subr.mxu0 0.0
      %7188 = vmatpush1.msra.mxu0 0.0
      %7189 = vmatprep.subr.mxu0 0.0
      %7190 = vmatpush1.msra.mxu0 0.0
      %7191 = vmatprep.subr.mxu0 0.0
      %7192 = vmatpush1.msra.mxu0 0.0
      %7193 = vmatprep.subr.mxu0 0.0
      %7194 = vmatpush1.msra.mxu0 0.0
      %7195 = vmatprep.subr.mxu0 0.0
      %7196 = vmatpush1.msra.mxu0 0.0
      %7197 = vmatprep.subr.mxu0 0.0
      %7198 = vmatpush1.msra.mxu0 0.0
      %7199 = vmatprep.subr.mxu0 0.0
      %7200 = vmatpush1.msra.mxu0 0.0
      %7201 = vmatprep.subr.mxu0 0.0
      %7202 = vmatpush1.msra.mxu0 0.0
      %7203 = vmatprep.subr.mxu0 0.0
      %7204 = vmatpush1.msra.mxu0 0.0
      %7205 = vmatprep.mubr.f32.mxu0 0.0
      %7206 = vmatmul.mubr.f32.gmra.mrb[0].mxu0 %v7118
      %v7207 = vpop.f32.mrb[0].mxu0
      %v7208 = vadd.f32 0.0, %v7207
      %v7209 = vpop.f32.mrb[0].mxu0
      %7210 = vmatprep.mubr.f32.mxu0 0.0
      %7211 = vmatmul.mubr.f32.gmra.mrb[0].mxu0 %v7119
      %v7212 = vpop.f32.mrb[0].mxu0
      %v7213 = vadd.f32 0.0, %v7212
      %v7214 = vpop.f32.mrb[0].mxu0
      %7215 = vmatprep.mubr.f32.mxu0 0.0
      %7216 = vmatmul.mubr.f32.gmra.mrb[0].mxu0 %v7120
      %v7217 = vpop.f32.mrb[0].mxu0
      %v7218 = vadd.f32 0.0, %v7217
      %v7219 = vpop.f32.mrb[0].mxu0
      %7220 = vmatprep.mubr.f32.mxu0 0.0
      %7221 = vmatmul.mubr.f32.gmra.mrb[0].mxu0 %v7121
      %v7222 = vpop.f32.mrb[0].mxu0
      %v7223 = vadd.f32 0.0, %v7222
      %v7224 = vpop.f32.mrb[0].mxu0
      %7225 = vmatprep.mubr.f32.mxu0 0.0
      %7226 = vmatmul.mubr.f32.gmra.mrb[0].mxu0 %v7122
      %v7227 = vpop.f32.mrb[0].mxu0
      %v7228 = vadd.f32 0.0, %v7227
      %v7229 = vpop.f32.mrb[0].mxu0
      %7230 = vmatprep.mubr.f32.mxu0 0.0
      %7231 = vmatmul.mubr.f32.gmra.mrb[0].mxu0 %v7123
      %v7232 = vpop.f32.mrb[0].mxu0
      %v7233 = vadd.f32 0.0, %v7232
      %v7234 = vpop.f32.mrb[0].mxu0
      %7235 = vmatprep.mubr.f32.mxu0 0.0
      %7236 = vmatmul.mubr.f32.gmra.mrb[0].mxu0 %v7124
      %v7237 = vpop.f32.mrb[0].mxu0
      %v7238 = vadd.f32 0.0, %v7237
      %v7239 = vpop.f32.mrb[0].mxu0
      %7240 = vdwg.mxu0
      %v7241 = vadd.f32 %v7111, %v7208
      %v7242 = vadd.f32 %v7112, %v7213
      %v7243 = vadd.f32 %v7113, %v7218
      %v7244 = vadd.f32 %v7114, %v7223
      %v7245 = vadd.f32 %v7115, %v7228
      %v7246 = vadd.f32 %v7116, %v7233
      %v7247 = vadd.f32 %v7117, %v7238
      %v7248 = vld [vmem:[#allocation2 + $0xfd] sm:$0xff]
      %v7249 = vld [vmem:[#allocation2 + $0x105] sm:$0xff]
      %v7250 = vld [vmem:[#allocation2 + $0x10d] sm:$0xff]
      %v7251 = vld [vmem:[#allocation2 + $0x115] sm:$0xff]
      %v7252 = vld [vmem:[#allocation2 + $0x11d] sm:$0xff]
      %v7253 = vld [vmem:[#allocation2 + $0x125] sm:$0xff]
      %v7254 = vld [vmem:[#allocation2 + $0x12d] sm:$0x3f]
      %v7255 = vld [vmem:[%s1839] sm:$0xff]
      %v7256 = vld [vmem:[%s1839 + $0x8] sm:$0xff]
      %v7257 = vld [vmem:[%s1839 + $0x10] sm:$0xff]
      %v7258 = vld [vmem:[%s1839 + $0x18] sm:$0xff]
      %v7259 = vld [vmem:[%s1839 + $0x20] sm:$0xff]
      %v7260 = vld [vmem:[%s1839 + $0x28] sm:$0xff]
      %v7261 = vld [vmem:[%s1839 + $0x30] sm:$0xff]
      %v7262 = vld [vmem:[%s1839 + $0x38] sm:$0xff]
      %v7263 = vld [vmem:[%s1839 + $0x40] sm:$0xff]
      %v7264 = vld [vmem:[%s1839 + $0x48] sm:$0xff]
      %v7265 = vld [vmem:[%s1839 + $0x50] sm:$0xff]
      %v7266 = vld [vmem:[%s1839 + $0x58] sm:$0xff]
      %v7267 = vld [vmem:[%s1839 + $0x60] sm:$0xff]
      %v7268 = vld [vmem:[%s1839 + $0x68] sm:$0xff]
      %v7269 = vld [vmem:[%s1839 + $0x70] sm:$0xff]
      %v7270 = vld [vmem:[%s1839 + $0x78] sm:$0xff]
      %7271 = vmatprep.subr.mxu0 0.0
      %7272 = vmatpush1.msra.mxu0 %v7255
      %7273 = vmatprep.subr.mxu0 0.0
      %7274 = vmatpush1.msra.mxu0 %v7256
      %7275 = vmatprep.subr.mxu0 0.0
      %7276 = vmatpush1.msra.mxu0 %v7257
      %7277 = vmatprep.subr.mxu0 0.0
      %7278 = vmatpush1.msra.mxu0 %v7258
      %7279 = vmatprep.subr.mxu0 0.0
      %7280 = vmatpush1.msra.mxu0 %v7259
      %7281 = vmatprep.subr.mxu0 0.0
      %7282 = vmatpush1.msra.mxu0 %v7260
      %7283 = vmatprep.subr.mxu0 0.0
      %7284 = vmatpush1.msra.mxu0 %v7261
      %7285 = vmatprep.subr.mxu0 0.0
      %7286 = vmatpush1.msra.mxu0 %v7262
      %7287 = vmatprep.subr.mxu0 0.0
      %7288 = vmatpush1.msra.mxu0 %v7263
      %7289 = vmatprep.subr.mxu0 0.0
      %7290 = vmatpush1.msra.mxu0 %v7264
      %7291 = vmatprep.subr.mxu0 0.0
      %7292 = vmatpush1.msra.mxu0 %v7265
      %7293 = vmatprep.subr.mxu0 0.0
      %7294 = vmatpush1.msra.mxu0 %v7266
      %7295 = vmatprep.subr.mxu0 0.0
      %7296 = vmatpush1.msra.mxu0 %v7267
      %7297 = vmatprep.subr.mxu0 0.0
      %7298 = vmatpush1.msra.mxu0 %v7268
      %7299 = vmatprep.subr.mxu0 0.0
      %7300 = vmatpush1.msra.mxu0 %v7269
      %7301 = vmatprep.subr.mxu0 0.0
      %7302 = vmatpush1.msra.mxu0 %v7270
      %7303 = vmatprep.subr.mxu0 0.0
      %7304 = vmatpush1.msra.mxu0 0.0
      %7305 = vmatprep.subr.mxu0 0.0
      %7306 = vmatpush1.msra.mxu0 0.0
      %7307 = vmatprep.subr.mxu0 0.0
      %7308 = vmatpush1.msra.mxu0 0.0
      %7309 = vmatprep.subr.mxu0 0.0
      %7310 = vmatpush1.msra.mxu0 0.0
      %7311 = vmatprep.subr.mxu0 0.0
      %7312 = vmatpush1.msra.mxu0 0.0
      %7313 = vmatprep.subr.mxu0 0.0
      %7314 = vmatpush1.msra.mxu0 0.0
      %7315 = vmatprep.subr.mxu0 0.0
      %7316 = vmatpush1.msra.mxu0 0.0
      %7317 = vmatprep.subr.mxu0 0.0
      %7318 = vmatpush1.msra.mxu0 0.0
      %7319 = vmatprep.subr.mxu0 0.0
      %7320 = vmatpush1.msra.mxu0 0.0
      %7321 = vmatprep.subr.mxu0 0.0
      %7322 = vmatpush1.msra.mxu0 0.0
      %7323 = vmatprep.subr.mxu0 0.0
      %7324 = vmatpush1.msra.mxu0 0.0
      %7325 = vmatprep.subr.mxu0 0.0
      %7326 = vmatpush1.msra.mxu0 0.0
      %7327 = vmatprep.subr.mxu0 0.0
      %7328 = vmatpush1.msra.mxu0 0.0
      %7329 = vmatprep.subr.mxu0 0.0
      %7330 = vmatpush1.msra.mxu0 0.0
      %7331 = vmatprep.subr.mxu0 0.0
      %7332 = vmatpush1.msra.mxu0 0.0
      %7333 = vmatprep.subr.mxu0 0.0
      %7334 = vmatpush1.msra.mxu0 0.0
      %7335 = vmatprep.mubr.f32.mxu0 0.0
      %7336 = vmatmul.mubr.f32.gmra.mrb[0].mxu0 %v7248
      %v7337 = vpop.f32.mrb[0].mxu0
      %v7338 = vadd.f32 0.0, %v7337
      %v7339 = vpop.f32.mrb[0].mxu0
      %7340 = vmatprep.mubr.f32.mxu0 0.0
      %7341 = vmatmul.mubr.f32.gmra.mrb[0].mxu0 %v7249
      %v7342 = vpop.f32.mrb[0].mxu0
      %v7343 = vadd.f32 0.0, %v7342
      %v7344 = vpop.f32.mrb[0].mxu0
      %7345 = vmatprep.mubr.f32.mxu0 0.0
      %7346 = vmatmul.mubr.f32.gmra.mrb[0].mxu0 %v7250
      %v7347 = vpop.f32.mrb[0].mxu0
      %v7348 = vadd.f32 0.0, %v7347
      %v7349 = vpop.f32.mrb[0].mxu0
      %7350 = vmatprep.mubr.f32.mxu0 0.0
      %7351 = vmatmul.mubr.f32.gmra.mrb[0].mxu0 %v7251
      %v7352 = vpop.f32.mrb[0].mxu0
      %v7353 = vadd.f32 0.0, %v7352
      %v7354 = vpop.f32.mrb[0].mxu0
      %7355 = vmatprep.mubr.f32.mxu0 0.0
      %7356 = vmatmul.mubr.f32.gmra.mrb[0].mxu0 %v7252
      %v7357 = vpop.f32.mrb[0].mxu0
      %v7358 = vadd.f32 0.0, %v7357
      %v7359 = vpop.f32.mrb[0].mxu0
      %7360 = vmatprep.mubr.f32.mxu0 0.0
      %7361 = vmatmul.mubr.f32.gmra.mrb[0].mxu0 %v7253
      %v7362 = vpop.f32.mrb[0].mxu0
      %v7363 = vadd.f32 0.0, %v7362
      %v7364 = vpop.f32.mrb[0].mxu0
      %7365 = vmatprep.mubr.f32.mxu0 0.0
      %7366 = vmatmul.mubr.f32.gmra.mrb[0].mxu0 %v7254
      %v7367 = vpop.f32.mrb[0].mxu0
      %v7368 = vadd.f32 0.0, %v7367
      %v7369 = vpop.f32.mrb[0].mxu0
      %7370 = vdwg.mxu0
      %v7371 = vadd.f32 %v7241, %v7338
      %v7372 = vadd.f32 %v7242, %v7343
      %v7373 = vadd.f32 %v7243, %v7348
      %v7374 = vadd.f32 %v7244, %v7353
      %v7375 = vadd.f32 %v7245, %v7358
      %v7376 = vadd.f32 %v7246, %v7363
      %v7377 = vadd.f32 %v7247, %v7368
      %v7378 = vld [vmem:[#allocation2 + $0xfe] sm:$0xff]
      %v7379 = vld [vmem:[#allocation2 + $0x106] sm:$0xff]
      %v7380 = vld [vmem:[#allocation2 + $0x10e] sm:$0xff]
      %v7381 = vld [vmem:[#allocation2 + $0x116] sm:$0xff]
      %v7382 = vld [vmem:[#allocation2 + $0x11e] sm:$0xff]
      %v7383 = vld [vmem:[#allocation2 + $0x126] sm:$0xff]
      %v7384 = vld [vmem:[#allocation2 + $0x12e] sm:$0x3f]
      %v7385 = vld [vmem:[%s1970] sm:$0xff]
      %v7386 = vld [vmem:[%s1970 + $0x8] sm:$0xff]
      %v7387 = vld [vmem:[%s1970 + $0x10] sm:$0xff]
      %v7388 = vld [vmem:[%s1970 + $0x18] sm:$0xff]
      %v7389 = vld [vmem:[%s1970 + $0x20] sm:$0xff]
      %v7390 = vld [vmem:[%s1970 + $0x28] sm:$0xff]
      %v7391 = vld [vmem:[%s1970 + $0x30] sm:$0xff]
      %v7392 = vld [vmem:[%s1970 + $0x38] sm:$0xff]
      %v7393 = vld [vmem:[%s1970 + $0x40] sm:$0xff]
      %v7394 = vld [vmem:[%s1970 + $0x48] sm:$0xff]
      %v7395 = vld [vmem:[%s1970 + $0x50] sm:$0xff]
      %v7396 = vld [vmem:[%s1970 + $0x58] sm:$0xff]
      %v7397 = vld [vmem:[%s1970 + $0x60] sm:$0xff]
      %v7398 = vld [vmem:[%s1970 + $0x68] sm:$0xff]
      %v7399 = vld [vmem:[%s1970 + $0x70] sm:$0xff]
      %v7400 = vld [vmem:[%s1970 + $0x78] sm:$0xff]
      %7401 = vmatprep.subr.mxu0 0.0
      %7402 = vmatpush1.msra.mxu0 %v7385
      %7403 = vmatprep.subr.mxu0 0.0
      %7404 = vmatpush1.msra.mxu0 %v7386
      %7405 = vmatprep.subr.mxu0 0.0
      %7406 = vmatpush1.msra.mxu0 %v7387
      %7407 = vmatprep.subr.mxu0 0.0
      %7408 = vmatpush1.msra.mxu0 %v7388
      %7409 = vmatprep.subr.mxu0 0.0
      %7410 = vmatpush1.msra.mxu0 %v7389
      %7411 = vmatprep.subr.mxu0 0.0
      %7412 = vmatpush1.msra.mxu0 %v7390
      %7413 = vmatprep.subr.mxu0 0.0
      %7414 = vmatpush1.msra.mxu0 %v7391
      %7415 = vmatprep.subr.mxu0 0.0
      %7416 = vmatpush1.msra.mxu0 %v7392
      %7417 = vmatprep.subr.mxu0 0.0
      %7418 = vmatpush1.msra.mxu0 %v7393
      %7419 = vmatprep.subr.mxu0 0.0
      %7420 = vmatpush1.msra.mxu0 %v7394
      %7421 = vmatprep.subr.mxu0 0.0
      %7422 = vmatpush1.msra.mxu0 %v7395
      %7423 = vmatprep.subr.mxu0 0.0
      %7424 = vmatpush1.msra.mxu0 %v7396
      %7425 = vmatprep.subr.mxu0 0.0
      %7426 = vmatpush1.msra.mxu0 %v7397
      %7427 = vmatprep.subr.mxu0 0.0
      %7428 = vmatpush1.msra.mxu0 %v7398
      %7429 = vmatprep.subr.mxu0 0.0
      %7430 = vmatpush1.msra.mxu0 %v7399
      %7431 = vmatprep.subr.mxu0 0.0
      %7432 = vmatpush1.msra.mxu0 %v7400
      %7433 = vmatprep.subr.mxu0 0.0
      %7434 = vmatpush1.msra.mxu0 0.0
      %7435 = vmatprep.subr.mxu0 0.0
      %7436 = vmatpush1.msra.mxu0 0.0
      %7437 = vmatprep.subr.mxu0 0.0
      %7438 = vmatpush1.msra.mxu0 0.0
      %7439 = vmatprep.subr.mxu0 0.0
      %7440 = vmatpush1.msra.mxu0 0.0
      %7441 = vmatprep.subr.mxu0 0.0
      %7442 = vmatpush1.msra.mxu0 0.0
      %7443 = vmatprep.subr.mxu0 0.0
      %7444 = vmatpush1.msra.mxu0 0.0
      %7445 = vmatprep.subr.mxu0 0.0
      %7446 = vmatpush1.msra.mxu0 0.0
      %7447 = vmatprep.subr.mxu0 0.0
      %7448 = vmatpush1.msra.mxu0 0.0
      %7449 = vmatprep.subr.mxu0 0.0
      %7450 = vmatpush1.msra.mxu0 0.0
      %7451 = vmatprep.subr.mxu0 0.0
      %7452 = vmatpush1.msra.mxu0 0.0
      %7453 = vmatprep.subr.mxu0 0.0
      %7454 = vmatpush1.msra.mxu0 0.0
      %7455 = vmatprep.subr.mxu0 0.0
      %7456 = vmatpush1.msra.mxu0 0.0
      %7457 = vmatprep.subr.mxu0 0.0
      %7458 = vmatpush1.msra.mxu0 0.0
      %7459 = vmatprep.subr.mxu0 0.0
      %7460 = vmatpush1.msra.mxu0 0.0
      %7461 = vmatprep.subr.mxu0 0.0
      %7462 = vmatpush1.msra.mxu0 0.0
      %7463 = vmatprep.subr.mxu0 0.0
      %7464 = vmatpush1.msra.mxu0 0.0
      %7465 = vmatprep.mubr.f32.mxu0 0.0
      %7466 = vmatmul.mubr.f32.gmra.mrb[0].mxu0 %v7378
      %v7467 = vpop.f32.mrb[0].mxu0
      %v7468 = vadd.f32 0.0, %v7467
      %v7469 = vpop.f32.mrb[0].mxu0
      %7470 = vmatprep.mubr.f32.mxu0 0.0
      %7471 = vmatmul.mubr.f32.gmra.mrb[0].mxu0 %v7379
      %v7472 = vpop.f32.mrb[0].mxu0
      %v7473 = vadd.f32 0.0, %v7472
      %v7474 = vpop.f32.mrb[0].mxu0
      %7475 = vmatprep.mubr.f32.mxu0 0.0
      %7476 = vmatmul.mubr.f32.gmra.mrb[0].mxu0 %v7380
      %v7477 = vpop.f32.mrb[0].mxu0
      %v7478 = vadd.f32 0.0, %v7477
      %v7479 = vpop.f32.mrb[0].mxu0
      %7480 = vmatprep.mubr.f32.mxu0 0.0
      %7481 = vmatmul.mubr.f32.gmra.mrb[0].mxu0 %v7381
      %v7482 = vpop.f32.mrb[0].mxu0
      %v7483 = vadd.f32 0.0, %v7482
      %v7484 = vpop.f32.mrb[0].mxu0
      %7485 = vmatprep.mubr.f32.mxu0 0.0
      %7486 = vmatmul.mubr.f32.gmra.mrb[0].mxu0 %v7382
      %v7487 = vpop.f32.mrb[0].mxu0
      %v7488 = vadd.f32 0.0, %v7487
      %v7489 = vpop.f32.mrb[0].mxu0
      %7490 = vmatprep.mubr.f32.mxu0 0.0
      %7491 = vmatmul.mubr.f32.gmra.mrb[0].mxu0 %v7383
      %v7492 = vpop.f32.mrb[0].mxu0
      %v7493 = vadd.f32 0.0, %v7492
      %v7494 = vpop.f32.mrb[0].mxu0
      %7495 = vmatprep.mubr.f32.mxu0 0.0
      %7496 = vmatmul.mubr.f32.gmra.mrb[0].mxu0 %v7384
      %v7497 = vpop.f32.mrb[0].mxu0
      %v7498 = vadd.f32 0.0, %v7497
      %v7499 = vpop.f32.mrb[0].mxu0
      %7500 = vdwg.mxu0
      %v7501 = vadd.f32 %v7371, %v7468
      %v7502 = vadd.f32 %v7372, %v7473
      %v7503 = vadd.f32 %v7373, %v7478
      %v7504 = vadd.f32 %v7374, %v7483
      %v7505 = vadd.f32 %v7375, %v7488
      %v7506 = vadd.f32 %v7376, %v7493
      %v7507 = vadd.f32 %v7377, %v7498
      %v7508 = vld [vmem:[%s4] sm:$0x1]
      %v7510 = vlaneseq
      %v7511 = vshrl.u32 %v7510, 7
      %v7512 = vsub.s32 0, %v7511
      %v7513 = vrot.slane %v7508, %v7512
      %v7515 = vadd.f32 %v7501, %v7513
      %v7516 = vadd.f32 %v7502, %v7513
      %v7517 = vadd.f32 %v7503, %v7513
      %v7518 = vadd.f32 %v7504, %v7513
      %v7519 = vadd.f32 %v7505, %v7513
      %v7520 = vadd.f32 %v7506, %v7513
      %v7521 = vadd.f32 %v7507, %v7513
      %v7522 = vmax.f32 %v7515, 0.0
      %v7523 = vmax.f32 %v7516, 0.0
      %v7524 = vmax.f32 %v7517, 0.0
      %v7525 = vmax.f32 %v7518, 0.0
      %v7526 = vmax.f32 %v7519, 0.0
      %v7527 = vmax.f32 %v7520, 0.0
      %v7528 = vmax.f32 %v7521, 0.0
      %v7529 = vld [vmem:[%s5] sm:$0xff]
      %v7530 = vld [vmem:[%s5 + $0x8] sm:$0xff]
      %v7531 = vld [vmem:[%s5 + $0x10] sm:$0xff]
      %v7532 = vld [vmem:[%s5 + $0x18] sm:$0xff]
      %v7533 = vld [vmem:[%s5 + $0x20] sm:$0xff]
      %v7534 = vld [vmem:[%s5 + $0x28] sm:$0xff]
      %v7535 = vld [vmem:[%s5 + $0x30] sm:$0xff]
      %v7536 = vld [vmem:[%s5 + $0x38] sm:$0xff]
      %v7537 = vld [vmem:[%s5 + $0x40] sm:$0xff]
      %v7538 = vld [vmem:[%s5 + $0x48] sm:$0xff]
      %v7539 = vld [vmem:[%s5 + $0x50] sm:$0xff]
      %v7540 = vld [vmem:[%s5 + $0x58] sm:$0xff]
      %v7541 = vld [vmem:[%s5 + $0x60] sm:$0xff]
      %v7542 = vld [vmem:[%s5 + $0x68] sm:$0xff]
      %v7543 = vld [vmem:[%s5 + $0x70] sm:$0xff]
      %v7544 = vld [vmem:[%s5 + $0x78] sm:$0xff]
      %v7545 = vld [vmem:[%s6] sm:$0x1]
      %v7547 = vlaneseq
      %v7548 = vshrl.u32 %v7547, 7
      %v7549 = vsub.s32 0, %v7548
      %v7550 = vrot.slane %v7545, %v7549
      %7552 = vmatprep.subr.mxu0 0.0
      %7553 = vmatpush1.msra.mxu0 %v7529
      %7554 = vmatprep.subr.mxu0 0.0
      %7555 = vmatpush1.msra.mxu0 %v7530
      %7556 = vmatprep.subr.mxu0 0.0
      %7557 = vmatpush1.msra.mxu0 %v7531
      %7558 = vmatprep.subr.mxu0 0.0
      %7559 = vmatpush1.msra.mxu0 %v7532
      %7560 = vmatprep.subr.mxu0 0.0
      %7561 = vmatpush1.msra.mxu0 %v7533
      %7562 = vmatprep.subr.mxu0 0.0
      %7563 = vmatpush1.msra.mxu0 %v7534
      %7564 = vmatprep.subr.mxu0 0.0
      %7565 = vmatpush1.msra.mxu0 %v7535
      %7566 = vmatprep.subr.mxu0 0.0
      %7567 = vmatpush1.msra.mxu0 %v7536
      %7568 = vmatprep.subr.mxu0 0.0
      %7569 = vmatpush1.msra.mxu0 %v7537
      %7570 = vmatprep.subr.mxu0 0.0
      %7571 = vmatpush1.msra.mxu0 %v7538
      %7572 = vmatprep.subr.mxu0 0.0
      %7573 = vmatpush1.msra.mxu0 %v7539
      %7574 = vmatprep.subr.mxu0 0.0
      %7575 = vmatpush1.msra.mxu0 %v7540
      %7576 = vmatprep.subr.mxu0 0.0
      %7577 = vmatpush1.msra.mxu0 %v7541
      %7578 = vmatprep.subr.mxu0 0.0
      %7579 = vmatpush1.msra.mxu0 %v7542
      %7580 = vmatprep.subr.mxu0 0.0
      %7581 = vmatpush1.msra.mxu0 %v7543
      %7582 = vmatprep.subr.mxu0 0.0
      %7583 = vmatpush1.msra.mxu0 %v7544
      %7584 = vmatprep.subr.mxu0 0.0
      %7585 = vmatpush1.msra.mxu0 0.0
      %7586 = vmatprep.subr.mxu0 0.0
      %7587 = vmatpush1.msra.mxu0 0.0
      %7588 = vmatprep.subr.mxu0 0.0
      %7589 = vmatpush1.msra.mxu0 0.0
      %7590 = vmatprep.subr.mxu0 0.0
      %7591 = vmatpush1.msra.mxu0 0.0
      %7592 = vmatprep.subr.mxu0 0.0
      %7593 = vmatpush1.msra.mxu0 0.0
      %7594 = vmatprep.subr.mxu0 0.0
      %7595 = vmatpush1.msra.mxu0 0.0
      %7596 = vmatprep.subr.mxu0 0.0
      %7597 = vmatpush1.msra.mxu0 0.0
      %7598 = vmatprep.subr.mxu0 0.0
      %7599 = vmatpush1.msra.mxu0 0.0
      %7600 = vmatprep.subr.mxu0 0.0
      %7601 = vmatpush1.msra.mxu0 0.0
      %7602 = vmatprep.subr.mxu0 0.0
      %7603 = vmatpush1.msra.mxu0 0.0
      %7604 = vmatprep.subr.mxu0 0.0
      %7605 = vmatpush1.msra.mxu0 0.0
      %7606 = vmatprep.subr.mxu0 0.0
      %7607 = vmatpush1.msra.mxu0 0.0
      %7608 = vmatprep.subr.mxu0 0.0
      %7609 = vmatpush1.msra.mxu0 0.0
      %7610 = vmatprep.subr.mxu0 0.0
      %7611 = vmatpush1.msra.mxu0 0.0
      %7612 = vmatprep.subr.mxu0 0.0
      %7613 = vmatpush1.msra.mxu0 0.0
      %7614 = vmatprep.subr.mxu0 0.0
      %7615 = vmatpush1.msra.mxu0 0.0
      %7616 = vmatprep.mubr.f32.mxu0 0.0
      %7617 = vmatmul.mubr.f32.gmra.mrb[0].mxu0 %v7522
      %v7618 = vpop.f32.mrb[0].mxu0
      %v7619 = vadd.f32 %v7550, %v7618
      %v7620 = vpop.f32.mrb[0].mxu0
      %7621 = vmatprep.mubr.f32.mxu0 0.0
      %7622 = vmatmul.mubr.f32.gmra.mrb[0].mxu0 %v7523
      %v7623 = vpop.f32.mrb[0].mxu0
      %v7624 = vadd.f32 %v7550, %v7623
      %v7625 = vpop.f32.mrb[0].mxu0
      %7626 = vmatprep.mubr.f32.mxu0 0.0
      %7627 = vmatmul.mubr.f32.gmra.mrb[0].mxu0 %v7524
      %v7628 = vpop.f32.mrb[0].mxu0
      %v7629 = vadd.f32 %v7550, %v7628
      %v7630 = vpop.f32.mrb[0].mxu0
      %7631 = vmatprep.mubr.f32.mxu0 0.0
      %7632 = vmatmul.mubr.f32.gmra.mrb[0].mxu0 %v7525
      %v7633 = vpop.f32.mrb[0].mxu0
      %v7634 = vadd.f32 %v7550, %v7633
      %v7635 = vpop.f32.mrb[0].mxu0
      %7636 = vmatprep.mubr.f32.mxu0 0.0
      %7637 = vmatmul.mubr.f32.gmra.mrb[0].mxu0 %v7526
      %v7638 = vpop.f32.mrb[0].mxu0
      %v7639 = vadd.f32 %v7550, %v7638
      %v7640 = vpop.f32.mrb[0].mxu0
      %7641 = vmatprep.mubr.f32.mxu0 0.0
      %7642 = vmatmul.mubr.f32.gmra.mrb[0].mxu0 %v7527
      %v7643 = vpop.f32.mrb[0].mxu0
      %v7644 = vadd.f32 %v7550, %v7643
      %v7645 = vpop.f32.mrb[0].mxu0
      %7646 = vmatprep.mubr.f32.mxu0 0.0
      %7647 = vmatmul.mubr.f32.gmra.mrb[0].mxu0 %v7528
      %v7648 = vpop.f32.mrb[0].mxu0
      %v7649 = vadd.f32 %v7550, %v7648
      %v7650 = vpop.f32.mrb[0].mxu0
      %7651 = vdwg.mxu0
      %v7652 = vmul.f32 %v7619, 0.8
      %v7653 = vmul.f32 %v7624, 0.8
      %v7654 = vmul.f32 %v7629, 0.8
      %v7655 = vmul.f32 %v7634, 0.8
      %v7656 = vmul.f32 %v7639, 0.8
      %v7657 = vmul.f32 %v7644, 0.8
      %v7658 = vmul.f32 %v7649, 0.8
      %v7659 = vld [vmem:[%s273 + $0xc0] sm:$0xff]
      %v7660 = vld [vmem:[%s273 + $0xc8] sm:$0xff]
      %v7661 = vadd.f32 %v7652, %v7659
      %v7662 = vadd.f32 %v7653, %v7660
      %v7663 = vmax.f32 %v7661, 0.0
      %v7664 = vmax.f32 %v7662, 0.0
      %7665 = vst [vmem:[%s278 + $0xc0] sm:$0xff] %v7663
      %7666 = vst [vmem:[%s278 + $0xc8] sm:$0xff] %v7664
      %v7667 = vld [vmem:[%s273 + $0xd0] sm:$0xff]
      %v7668 = vld [vmem:[%s273 + $0xd8] sm:$0xff]
      %v7671 = vrot.slane %v7667, 6
      %v7672 = vrot.slane %v7668, 6
      %v7673 = vsel %vm2257, %v7671, %v7672
      %v7677 = vadd.f32 %v7654, %v7671
      %v7678 = vadd.f32 %v7655, %v7673
      %v7679 = vadd.f32 %v7656, %v7672
      %v7680 = vmax.f32 %v7677, 0.0
      %v7681 = vmax.f32 %v7678, 0.0
      %v7682 = vmax.f32 %v7679, 0.0
      %7683 = vst [vmem:[%s278 + $0xce] sm:$0xfc] %v7680
      %7684 = vst [vmem:[%s278 + $0xd6] sm:$0xff] %v7681
      %7685 = vst [vmem:[%s278 + $0xde] sm:$0x3] %v7682
      %v7686 = vld [vmem:[%s273 + $0xe0] sm:$0xff]
      %v7687 = vld [vmem:[%s273 + $0xe8] sm:$0xff]
      %v7690 = vrot.slane %v7686, 4
      %v7691 = vrot.slane %v7687, 4
      %v7692 = vsel %vm2277, %v7690, %v7691
      %v7696 = vadd.f32 %v7656, %v7690
      %v7697 = vadd.f32 %v7657, %v7692
      %v7698 = vadd.f32 %v7658, %v7691
      %v7699 = vmax.f32 %v7696, 0.0
      %v7700 = vmax.f32 %v7697, 0.0
      %v7701 = vmax.f32 %v7698, 0.0
      %7702 = vst [vmem:[%s278 + $0xdc] sm:$0xf0] %v7699
      %7703 = vst [vmem:[%s278 + $0xe4] sm:$0xff] %v7700
      %7704 = vst [vmem:[%s278 + $0xec] sm:$0xf] %v7701
      %v7705 = vld [vmem:[#allocation2 + $0x10e] sm:$0xff]
      %v7706 = vld [vmem:[#allocation2 + $0x116] sm:$0xff]
      %v7707 = vld [vmem:[#allocation2 + $0x11e] sm:$0x3]
      %v7708 = vld [vmem:[%s3] sm:$0xff]
      %v7709 = vld [vmem:[%s3 + $0x8] sm:$0xff]
      %v7710 = vld [vmem:[%s3 + $0x10] sm:$0xff]
      %v7711 = vld [vmem:[%s3 + $0x18] sm:$0xff]
      %v7712 = vld [vmem:[%s3 + $0x20] sm:$0xff]
      %v7713 = vld [vmem:[%s3 + $0x28] sm:$0xff]
      %v7714 = vld [vmem:[%s3 + $0x30] sm:$0xff]
      %v7715 = vld [vmem:[%s3 + $0x38] sm:$0xff]
      %v7716 = vld [vmem:[%s3 + $0x40] sm:$0xff]
      %v7717 = vld [vmem:[%s3 + $0x48] sm:$0xff]
      %v7718 = vld [vmem:[%s3 + $0x50] sm:$0xff]
      %v7719 = vld [vmem:[%s3 + $0x58] sm:$0xff]
      %v7720 = vld [vmem:[%s3 + $0x60] sm:$0xff]
      %v7721 = vld [vmem:[%s3 + $0x68] sm:$0xff]
      %v7722 = vld [vmem:[%s3 + $0x70] sm:$0xff]
      %v7723 = vld [vmem:[%s3 + $0x78] sm:$0xff]
      %v7724 = vld [vmem:[#allocation2 + $0x10f] sm:$0xff]
      %v7725 = vld [vmem:[#allocation2 + $0x117] sm:$0xff]
      %v7726 = vld [vmem:[#allocation2 + $0x11f] sm:$0x3]
      %v7727 = vld [vmem:[%s960] sm:$0xff]
      %v7728 = vld [vmem:[%s960 + $0x8] sm:$0xff]
      %v7729 = vld [vmem:[%s960 + $0x10] sm:$0xff]
      %v7730 = vld [vmem:[%s960 + $0x18] sm:$0xff]
      %v7731 = vld [vmem:[%s960 + $0x20] sm:$0xff]
      %v7732 = vld [vmem:[%s960 + $0x28] sm:$0xff]
      %v7733 = vld [vmem:[%s960 + $0x30] sm:$0xff]
      %v7734 = vld [vmem:[%s960 + $0x38] sm:$0xff]
      %v7735 = vld [vmem:[%s960 + $0x40] sm:$0xff]
      %v7736 = vld [vmem:[%s960 + $0x48] sm:$0xff]
      %v7737 = vld [vmem:[%s960 + $0x50] sm:$0xff]
      %v7738 = vld [vmem:[%s960 + $0x58] sm:$0xff]
      %v7739 = vld [vmem:[%s960 + $0x60] sm:$0xff]
      %v7740 = vld [vmem:[%s960 + $0x68] sm:$0xff]
      %v7741 = vld [vmem:[%s960 + $0x70] sm:$0xff]
      %v7742 = vld [vmem:[%s960 + $0x78] sm:$0xff]
      %7743 = vmatprep.subr.mxu0 0.0
      %7744 = vmatpush1.msra.mxu0 %v7727
      %7745 = vmatprep.subr.mxu0 0.0
      %7746 = vmatpush1.msra.mxu0 %v7728
      %7747 = vmatprep.subr.mxu0 0.0
      %7748 = vmatpush1.msra.mxu0 %v7729
      %7749 = vmatprep.subr.mxu0 0.0
      %7750 = vmatpush1.msra.mxu0 %v7730
      %7751 = vmatprep.subr.mxu0 0.0
      %7752 = vmatpush1.msra.mxu0 %v7731
      %7753 = vmatprep.subr.mxu0 0.0
      %7754 = vmatpush1.msra.mxu0 %v7732
      %7755 = vmatprep.subr.mxu0 0.0
      %7756 = vmatpush1.msra.mxu0 %v7733
      %7757 = vmatprep.subr.mxu0 0.0
      %7758 = vmatpush1.msra.mxu0 %v7734
      %7759 = vmatprep.subr.mxu0 0.0
      %7760 = vmatpush1.msra.mxu0 %v7735
      %7761 = vmatprep.subr.mxu0 0.0
      %7762 = vmatpush1.msra.mxu0 %v7736
      %7763 = vmatprep.subr.mxu0 0.0
      %7764 = vmatpush1.msra.mxu0 %v7737
      %7765 = vmatprep.subr.mxu0 0.0
      %7766 = vmatpush1.msra.mxu0 %v7738
      %7767 = vmatprep.subr.mxu0 0.0
      %7768 = vmatpush1.msra.mxu0 %v7739
      %7769 = vmatprep.subr.mxu0 0.0
      %7770 = vmatpush1.msra.mxu0 %v7740
      %7771 = vmatprep.subr.mxu0 0.0
      %7772 = vmatpush1.msra.mxu0 %v7741
      %7773 = vmatprep.subr.mxu0 0.0
      %7774 = vmatpush1.msra.mxu0 %v7742
      %7775 = vmatprep.subr.mxu0 0.0
      %7776 = vmatpush1.msra.mxu0 0.0
      %7777 = vmatprep.subr.mxu0 0.0
      %7778 = vmatpush1.msra.mxu0 0.0
      %7779 = vmatprep.subr.mxu0 0.0
      %7780 = vmatpush1.msra.mxu0 0.0
      %7781 = vmatprep.subr.mxu0 0.0
      %7782 = vmatpush1.msra.mxu0 0.0
      %7783 = vmatprep.subr.mxu0 0.0
      %7784 = vmatpush1.msra.mxu0 0.0
      %7785 = vmatprep.subr.mxu0 0.0
      %7786 = vmatpush1.msra.mxu0 0.0
      %7787 = vmatprep.subr.mxu0 0.0
      %7788 = vmatpush1.msra.mxu0 0.0
      %7789 = vmatprep.subr.mxu0 0.0
      %7790 = vmatpush1.msra.mxu0 0.0
      %7791 = vmatprep.subr.mxu0 0.0
      %7792 = vmatpush1.msra.mxu0 0.0
      %7793 = vmatprep.subr.mxu0 0.0
      %7794 = vmatpush1.msra.mxu0 0.0
      %7795 = vmatprep.subr.mxu0 0.0
      %7796 = vmatpush1.msra.mxu0 0.0
      %7797 = vmatprep.subr.mxu0 0.0
      %7798 = vmatpush1.msra.mxu0 0.0
      %7799 = vmatprep.subr.mxu0 0.0
      %7800 = vmatpush1.msra.mxu0 0.0
      %7801 = vmatprep.subr.mxu0 0.0
      %7802 = vmatpush1.msra.mxu0 0.0
      %7803 = vmatprep.subr.mxu0 0.0
      %7804 = vmatpush1.msra.mxu0 0.0
      %7805 = vmatprep.subr.mxu0 0.0
      %7806 = vmatpush1.msra.mxu0 0.0
      %7807 = vmatprep.mubr.f32.mxu0 0.0
      %7808 = vmatmul.mubr.f32.gmra.mrb[0].mxu0 %v7724
      %v7809 = vpop.f32.mrb[0].mxu0
      %v7810 = vadd.f32 0.0, %v7809
      %v7811 = vpop.f32.mrb[0].mxu0
      %7812 = vmatprep.mubr.f32.mxu0 0.0
      %7813 = vmatmul.mubr.f32.gmra.mrb[0].mxu0 %v7725
      %v7814 = vpop.f32.mrb[0].mxu0
      %v7815 = vadd.f32 0.0, %v7814
      %v7816 = vpop.f32.mrb[0].mxu0
      %7817 = vmatprep.mubr.f32.mxu0 0.0
      %7818 = vmatmul.mubr.f32.gmra.mrb[0].mxu0 %v7726
      %v7819 = vpop.f32.mrb[0].mxu0
      %v7820 = vadd.f32 0.0, %v7819
      %v7821 = vpop.f32.mrb[0].mxu0
      %7822 = vdwg.mxu0
      %7823 = vmatprep.subr.mxu0 0.0
      %7824 = vmatpush1.msra.mxu0 %v7708
      %7825 = vmatprep.subr.mxu0 0.0
      %7826 = vmatpush1.msra.mxu0 %v7709
      %7827 = vmatprep.subr.mxu0 0.0
      %7828 = vmatpush1.msra.mxu0 %v7710
      %7829 = vmatprep.subr.mxu0 0.0
      %7830 = vmatpush1.msra.mxu0 %v7711
      %7831 = vmatprep.subr.mxu0 0.0
      %7832 = vmatpush1.msra.mxu0 %v7712
      %7833 = vmatprep.subr.mxu0 0.0
      %7834 = vmatpush1.msra.mxu0 %v7713
      %7835 = vmatprep.subr.mxu0 0.0
      %7836 = vmatpush1.msra.mxu0 %v7714
      %7837 = vmatprep.subr.mxu0 0.0
      %7838 = vmatpush1.msra.mxu0 %v7715
      %7839 = vmatprep.subr.mxu0 0.0
      %7840 = vmatpush1.msra.mxu0 %v7716
      %7841 = vmatprep.subr.mxu0 0.0
      %7842 = vmatpush1.msra.mxu0 %v7717
      %7843 = vmatprep.subr.mxu0 0.0
      %7844 = vmatpush1.msra.mxu0 %v7718
      %7845 = vmatprep.subr.mxu0 0.0
      %7846 = vmatpush1.msra.mxu0 %v7719
      %7847 = vmatprep.subr.mxu0 0.0
      %7848 = vmatpush1.msra.mxu0 %v7720
      %7849 = vmatprep.subr.mxu0 0.0
      %7850 = vmatpush1.msra.mxu0 %v7721
      %7851 = vmatprep.subr.mxu0 0.0
      %7852 = vmatpush1.msra.mxu0 %v7722
      %7853 = vmatprep.subr.mxu0 0.0
      %7854 = vmatpush1.msra.mxu0 %v7723
      %7855 = vmatprep.subr.mxu0 0.0
      %7856 = vmatpush1.msra.mxu0 0.0
      %7857 = vmatprep.subr.mxu0 0.0
      %7858 = vmatpush1.msra.mxu0 0.0
      %7859 = vmatprep.subr.mxu0 0.0
      %7860 = vmatpush1.msra.mxu0 0.0
      %7861 = vmatprep.subr.mxu0 0.0
      %7862 = vmatpush1.msra.mxu0 0.0
      %7863 = vmatprep.subr.mxu0 0.0
      %7864 = vmatpush1.msra.mxu0 0.0
      %7865 = vmatprep.subr.mxu0 0.0
      %7866 = vmatpush1.msra.mxu0 0.0
      %7867 = vmatprep.subr.mxu0 0.0
      %7868 = vmatpush1.msra.mxu0 0.0
      %7869 = vmatprep.subr.mxu0 0.0
      %7870 = vmatpush1.msra.mxu0 0.0
      %7871 = vmatprep.subr.mxu0 0.0
      %7872 = vmatpush1.msra.mxu0 0.0
      %7873 = vmatprep.subr.mxu0 0.0
      %7874 = vmatpush1.msra.mxu0 0.0
      %7875 = vmatprep.subr.mxu0 0.0
      %7876 = vmatpush1.msra.mxu0 0.0
      %7877 = vmatprep.subr.mxu0 0.0
      %7878 = vmatpush1.msra.mxu0 0.0
      %7879 = vmatprep.subr.mxu0 0.0
      %7880 = vmatpush1.msra.mxu0 0.0
      %7881 = vmatprep.subr.mxu0 0.0
      %7882 = vmatpush1.msra.mxu0 0.0
      %7883 = vmatprep.subr.mxu0 0.0
      %7884 = vmatpush1.msra.mxu0 0.0
      %7885 = vmatprep.subr.mxu0 0.0
      %7886 = vmatpush1.msra.mxu0 0.0
      %7887 = vmatprep.mubr.f32.mxu0 0.0
      %7888 = vmatmul.mubr.f32.gmra.mrb[0].mxu0 %v7705
      %v7889 = vpop.f32.mrb[0].mxu0
      %v7890 = vadd.f32 %v7810, %v7889
      %v7891 = vpop.f32.mrb[0].mxu0
      %7892 = vmatprep.mubr.f32.mxu0 0.0
      %7893 = vmatmul.mubr.f32.gmra.mrb[0].mxu0 %v7706
      %v7894 = vpop.f32.mrb[0].mxu0
      %v7895 = vadd.f32 %v7815, %v7894
      %v7896 = vpop.f32.mrb[0].mxu0
      %7897 = vmatprep.mubr.f32.mxu0 0.0
      %7898 = vmatmul.mubr.f32.gmra.mrb[0].mxu0 %v7707
      %v7899 = vpop.f32.mrb[0].mxu0
      %v7900 = vadd.f32 %v7820, %v7899
      %v7901 = vpop.f32.mrb[0].mxu0
      %7902 = vdwg.mxu0
      %v7903 = vld [vmem:[#allocation2 + $0x110] sm:$0xff]
      %v7904 = vld [vmem:[#allocation2 + $0x118] sm:$0xff]
      %v7905 = vld [vmem:[#allocation2 + $0x120] sm:$0x3]
      %v7906 = vld [vmem:[%s1184] sm:$0xff]
      %v7907 = vld [vmem:[%s1184 + $0x8] sm:$0xff]
      %v7908 = vld [vmem:[%s1184 + $0x10] sm:$0xff]
      %v7909 = vld [vmem:[%s1184 + $0x18] sm:$0xff]
      %v7910 = vld [vmem:[%s1184 + $0x20] sm:$0xff]
      %v7911 = vld [vmem:[%s1184 + $0x28] sm:$0xff]
      %v7912 = vld [vmem:[%s1184 + $0x30] sm:$0xff]
      %v7913 = vld [vmem:[%s1184 + $0x38] sm:$0xff]
      %v7914 = vld [vmem:[%s1184 + $0x40] sm:$0xff]
      %v7915 = vld [vmem:[%s1184 + $0x48] sm:$0xff]
      %v7916 = vld [vmem:[%s1184 + $0x50] sm:$0xff]
      %v7917 = vld [vmem:[%s1184 + $0x58] sm:$0xff]
      %v7918 = vld [vmem:[%s1184 + $0x60] sm:$0xff]
      %v7919 = vld [vmem:[%s1184 + $0x68] sm:$0xff]
      %v7920 = vld [vmem:[%s1184 + $0x70] sm:$0xff]
      %v7921 = vld [vmem:[%s1184 + $0x78] sm:$0xff]
      %7922 = vmatprep.subr.mxu0 0.0
      %7923 = vmatpush1.msra.mxu0 %v7906
      %7924 = vmatprep.subr.mxu0 0.0
      %7925 = vmatpush1.msra.mxu0 %v7907
      %7926 = vmatprep.subr.mxu0 0.0
      %7927 = vmatpush1.msra.mxu0 %v7908
      %7928 = vmatprep.subr.mxu0 0.0
      %7929 = vmatpush1.msra.mxu0 %v7909
      %7930 = vmatprep.subr.mxu0 0.0
      %7931 = vmatpush1.msra.mxu0 %v7910
      %7932 = vmatprep.subr.mxu0 0.0
      %7933 = vmatpush1.msra.mxu0 %v7911
      %7934 = vmatprep.subr.mxu0 0.0
      %7935 = vmatpush1.msra.mxu0 %v7912
      %7936 = vmatprep.subr.mxu0 0.0
      %7937 = vmatpush1.msra.mxu0 %v7913
      %7938 = vmatprep.subr.mxu0 0.0
      %7939 = vmatpush1.msra.mxu0 %v7914
      %7940 = vmatprep.subr.mxu0 0.0
      %7941 = vmatpush1.msra.mxu0 %v7915
      %7942 = vmatprep.subr.mxu0 0.0
      %7943 = vmatpush1.msra.mxu0 %v7916
      %7944 = vmatprep.subr.mxu0 0.0
      %7945 = vmatpush1.msra.mxu0 %v7917
      %7946 = vmatprep.subr.mxu0 0.0
      %7947 = vmatpush1.msra.mxu0 %v7918
      %7948 = vmatprep.subr.mxu0 0.0
      %7949 = vmatpush1.msra.mxu0 %v7919
      %7950 = vmatprep.subr.mxu0 0.0
      %7951 = vmatpush1.msra.mxu0 %v7920
      %7952 = vmatprep.subr.mxu0 0.0
      %7953 = vmatpush1.msra.mxu0 %v7921
      %7954 = vmatprep.subr.mxu0 0.0
      %7955 = vmatpush1.msra.mxu0 0.0
      %7956 = vmatprep.subr.mxu0 0.0
      %7957 = vmatpush1.msra.mxu0 0.0
      %7958 = vmatprep.subr.mxu0 0.0
      %7959 = vmatpush1.msra.mxu0 0.0
      %7960 = vmatprep.subr.mxu0 0.0
      %7961 = vmatpush1.msra.mxu0 0.0
      %7962 = vmatprep.subr.mxu0 0.0
      %7963 = vmatpush1.msra.mxu0 0.0
      %7964 = vmatprep.subr.mxu0 0.0
      %7965 = vmatpush1.msra.mxu0 0.0
      %7966 = vmatprep.subr.mxu0 0.0
      %7967 = vmatpush1.msra.mxu0 0.0
      %7968 = vmatprep.subr.mxu0 0.0
      %7969 = vmatpush1.msra.mxu0 0.0
      %7970 = vmatprep.subr.mxu0 0.0
      %7971 = vmatpush1.msra.mxu0 0.0
      %7972 = vmatprep.subr.mxu0 0.0
      %7973 = vmatpush1.msra.mxu0 0.0
      %7974 = vmatprep.subr.mxu0 0.0
      %7975 = vmatpush1.msra.mxu0 0.0
      %7976 = vmatprep.subr.mxu0 0.0
      %7977 = vmatpush1.msra.mxu0 0.0
      %7978 = vmatprep.subr.mxu0 0.0
      %7979 = vmatpush1.msra.mxu0 0.0
      %7980 = vmatprep.subr.mxu0 0.0
      %7981 = vmatpush1.msra.mxu0 0.0
      %7982 = vmatprep.subr.mxu0 0.0
      %7983 = vmatpush1.msra.mxu0 0.0
      %7984 = vmatprep.subr.mxu0 0.0
      %7985 = vmatpush1.msra.mxu0 0.0
      %7986 = vmatprep.mubr.f32.mxu0 0.0
      %7987 = vmatmul.mubr.f32.gmra.mrb[0].mxu0 %v7903
      %v7988 = vpop.f32.mrb[0].mxu0
      %v7989 = vadd.f32 0.0, %v7988
      %v7990 = vpop.f32.mrb[0].mxu0
      %7991 = vmatprep.mubr.f32.mxu0 0.0
      %7992 = vmatmul.mubr.f32.gmra.mrb[0].mxu0 %v7904
      %v7993 = vpop.f32.mrb[0].mxu0
      %v7994 = vadd.f32 0.0, %v7993
      %v7995 = vpop.f32.mrb[0].mxu0
      %7996 = vmatprep.mubr.f32.mxu0 0.0
      %7997 = vmatmul.mubr.f32.gmra.mrb[0].mxu0 %v7905
      %v7998 = vpop.f32.mrb[0].mxu0
      %v7999 = vadd.f32 0.0, %v7998
      %v8000 = vpop.f32.mrb[0].mxu0
      %8001 = vdwg.mxu0
      %v8002 = vadd.f32 %v7890, %v7989
      %v8003 = vadd.f32 %v7895, %v7994
      %v8004 = vadd.f32 %v7900, %v7999
      %v8005 = vld [vmem:[#allocation2 + $0x120] sm:$0xff]
      %v8006 = vld [vmem:[#allocation2 + $0x128] sm:$0xff]
      %v8007 = vld [vmem:[#allocation2 + $0x130] sm:$0x3]
      %v8008 = vld [vmem:[%s1315] sm:$0xff]
      %v8009 = vld [vmem:[%s1315 + $0x8] sm:$0xff]
      %v8010 = vld [vmem:[%s1315 + $0x10] sm:$0xff]
      %v8011 = vld [vmem:[%s1315 + $0x18] sm:$0xff]
      %v8012 = vld [vmem:[%s1315 + $0x20] sm:$0xff]
      %v8013 = vld [vmem:[%s1315 + $0x28] sm:$0xff]
      %v8014 = vld [vmem:[%s1315 + $0x30] sm:$0xff]
      %v8015 = vld [vmem:[%s1315 + $0x38] sm:$0xff]
      %v8016 = vld [vmem:[%s1315 + $0x40] sm:$0xff]
      %v8017 = vld [vmem:[%s1315 + $0x48] sm:$0xff]
      %v8018 = vld [vmem:[%s1315 + $0x50] sm:$0xff]
      %v8019 = vld [vmem:[%s1315 + $0x58] sm:$0xff]
      %v8020 = vld [vmem:[%s1315 + $0x60] sm:$0xff]
      %v8021 = vld [vmem:[%s1315 + $0x68] sm:$0xff]
      %v8022 = vld [vmem:[%s1315 + $0x70] sm:$0xff]
      %v8023 = vld [vmem:[%s1315 + $0x78] sm:$0xff]
      %8024 = vmatprep.subr.mxu0 0.0
      %8025 = vmatpush1.msra.mxu0 %v8008
      %8026 = vmatprep.subr.mxu0 0.0
      %8027 = vmatpush1.msra.mxu0 %v8009
      %8028 = vmatprep.subr.mxu0 0.0
      %8029 = vmatpush1.msra.mxu0 %v8010
      %8030 = vmatprep.subr.mxu0 0.0
      %8031 = vmatpush1.msra.mxu0 %v8011
      %8032 = vmatprep.subr.mxu0 0.0
      %8033 = vmatpush1.msra.mxu0 %v8012
      %8034 = vmatprep.subr.mxu0 0.0
      %8035 = vmatpush1.msra.mxu0 %v8013
      %8036 = vmatprep.subr.mxu0 0.0
      %8037 = vmatpush1.msra.mxu0 %v8014
      %8038 = vmatprep.subr.mxu0 0.0
      %8039 = vmatpush1.msra.mxu0 %v8015
      %8040 = vmatprep.subr.mxu0 0.0
      %8041 = vmatpush1.msra.mxu0 %v8016
      %8042 = vmatprep.subr.mxu0 0.0
      %8043 = vmatpush1.msra.mxu0 %v8017
      %8044 = vmatprep.subr.mxu0 0.0
      %8045 = vmatpush1.msra.mxu0 %v8018
      %8046 = vmatprep.subr.mxu0 0.0
      %8047 = vmatpush1.msra.mxu0 %v8019
      %8048 = vmatprep.subr.mxu0 0.0
      %8049 = vmatpush1.msra.mxu0 %v8020
      %8050 = vmatprep.subr.mxu0 0.0
      %8051 = vmatpush1.msra.mxu0 %v8021
      %8052 = vmatprep.subr.mxu0 0.0
      %8053 = vmatpush1.msra.mxu0 %v8022
      %8054 = vmatprep.subr.mxu0 0.0
      %8055 = vmatpush1.msra.mxu0 %v8023
      %8056 = vmatprep.subr.mxu0 0.0
      %8057 = vmatpush1.msra.mxu0 0.0
      %8058 = vmatprep.subr.mxu0 0.0
      %8059 = vmatpush1.msra.mxu0 0.0
      %8060 = vmatprep.subr.mxu0 0.0
      %8061 = vmatpush1.msra.mxu0 0.0
      %8062 = vmatprep.subr.mxu0 0.0
      %8063 = vmatpush1.msra.mxu0 0.0
      %8064 = vmatprep.subr.mxu0 0.0
      %8065 = vmatpush1.msra.mxu0 0.0
      %8066 = vmatprep.subr.mxu0 0.0
      %8067 = vmatpush1.msra.mxu0 0.0
      %8068 = vmatprep.subr.mxu0 0.0
      %8069 = vmatpush1.msra.mxu0 0.0
      %8070 = vmatprep.subr.mxu0 0.0
      %8071 = vmatpush1.msra.mxu0 0.0
      %8072 = vmatprep.subr.mxu0 0.0
      %8073 = vmatpush1.msra.mxu0 0.0
      %8074 = vmatprep.subr.mxu0 0.0
      %8075 = vmatpush1.msra.mxu0 0.0
      %8076 = vmatprep.subr.mxu0 0.0
      %8077 = vmatpush1.msra.mxu0 0.0
      %8078 = vmatprep.subr.mxu0 0.0
      %8079 = vmatpush1.msra.mxu0 0.0
      %8080 = vmatprep.subr.mxu0 0.0
      %8081 = vmatpush1.msra.mxu0 0.0
      %8082 = vmatprep.subr.mxu0 0.0
      %8083 = vmatpush1.msra.mxu0 0.0
      %8084 = vmatprep.subr.mxu0 0.0
      %8085 = vmatpush1.msra.mxu0 0.0
      %8086 = vmatprep.subr.mxu0 0.0
      %8087 = vmatpush1.msra.mxu0 0.0
      %8088 = vmatprep.mubr.f32.mxu0 0.0
      %8089 = vmatmul.mubr.f32.gmra.mrb[0].mxu0 %v8005
      %v8090 = vpop.f32.mrb[0].mxu0
      %v8091 = vadd.f32 0.0, %v8090
      %v8092 = vpop.f32.mrb[0].mxu0
      %8093 = vmatprep.mubr.f32.mxu0 0.0
      %8094 = vmatmul.mubr.f32.gmra.mrb[0].mxu0 %v8006
      %v8095 = vpop.f32.mrb[0].mxu0
      %v8096 = vadd.f32 0.0, %v8095
      %v8097 = vpop.f32.mrb[0].mxu0
      %8098 = vmatprep.mubr.f32.mxu0 0.0
      %8099 = vmatmul.mubr.f32.gmra.mrb[0].mxu0 %v8007
      %v8100 = vpop.f32.mrb[0].mxu0
      %v8101 = vadd.f32 0.0, %v8100
      %v8102 = vpop.f32.mrb[0].mxu0
      %8103 = vdwg.mxu0
      %v8104 = vadd.f32 %v8002, %v8091
      %v8105 = vadd.f32 %v8003, %v8096
      %v8106 = vadd.f32 %v8004, %v8101
      %v8107 = vld [vmem:[#allocation2 + $0x121] sm:$0xff]
      %v8108 = vld [vmem:[#allocation2 + $0x129] sm:$0xff]
      %v8109 = vld [vmem:[#allocation2 + $0x131] sm:$0x3]
      %v8110 = vld [vmem:[%s1446] sm:$0xff]
      %v8111 = vld [vmem:[%s1446 + $0x8] sm:$0xff]
      %v8112 = vld [vmem:[%s1446 + $0x10] sm:$0xff]
      %v8113 = vld [vmem:[%s1446 + $0x18] sm:$0xff]
      %v8114 = vld [vmem:[%s1446 + $0x20] sm:$0xff]
      %v8115 = vld [vmem:[%s1446 + $0x28] sm:$0xff]
      %v8116 = vld [vmem:[%s1446 + $0x30] sm:$0xff]
      %v8117 = vld [vmem:[%s1446 + $0x38] sm:$0xff]
      %v8118 = vld [vmem:[%s1446 + $0x40] sm:$0xff]
      %v8119 = vld [vmem:[%s1446 + $0x48] sm:$0xff]
      %v8120 = vld [vmem:[%s1446 + $0x50] sm:$0xff]
      %v8121 = vld [vmem:[%s1446 + $0x58] sm:$0xff]
      %v8122 = vld [vmem:[%s1446 + $0x60] sm:$0xff]
      %v8123 = vld [vmem:[%s1446 + $0x68] sm:$0xff]
      %v8124 = vld [vmem:[%s1446 + $0x70] sm:$0xff]
      %v8125 = vld [vmem:[%s1446 + $0x78] sm:$0xff]
      %8126 = vmatprep.subr.mxu0 0.0
      %8127 = vmatpush1.msra.mxu0 %v8110
      %8128 = vmatprep.subr.mxu0 0.0
      %8129 = vmatpush1.msra.mxu0 %v8111
      %8130 = vmatprep.subr.mxu0 0.0
      %8131 = vmatpush1.msra.mxu0 %v8112
      %8132 = vmatprep.subr.mxu0 0.0
      %8133 = vmatpush1.msra.mxu0 %v8113
      %8134 = vmatprep.subr.mxu0 0.0
      %8135 = vmatpush1.msra.mxu0 %v8114
      %8136 = vmatprep.subr.mxu0 0.0
      %8137 = vmatpush1.msra.mxu0 %v8115
      %8138 = vmatprep.subr.mxu0 0.0
      %8139 = vmatpush1.msra.mxu0 %v8116
      %8140 = vmatprep.subr.mxu0 0.0
      %8141 = vmatpush1.msra.mxu0 %v8117
      %8142 = vmatprep.subr.mxu0 0.0
      %8143 = vmatpush1.msra.mxu0 %v8118
      %8144 = vmatprep.subr.mxu0 0.0
      %8145 = vmatpush1.msra.mxu0 %v8119
      %8146 = vmatprep.subr.mxu0 0.0
      %8147 = vmatpush1.msra.mxu0 %v8120
      %8148 = vmatprep.subr.mxu0 0.0
      %8149 = vmatpush1.msra.mxu0 %v8121
      %8150 = vmatprep.subr.mxu0 0.0
      %8151 = vmatpush1.msra.mxu0 %v8122
      %8152 = vmatprep.subr.mxu0 0.0
      %8153 = vmatpush1.msra.mxu0 %v8123
      %8154 = vmatprep.subr.mxu0 0.0
      %8155 = vmatpush1.msra.mxu0 %v8124
      %8156 = vmatprep.subr.mxu0 0.0
      %8157 = vmatpush1.msra.mxu0 %v8125
      %8158 = vmatprep.subr.mxu0 0.0
      %8159 = vmatpush1.msra.mxu0 0.0
      %8160 = vmatprep.subr.mxu0 0.0
      %8161 = vmatpush1.msra.mxu0 0.0
      %8162 = vmatprep.subr.mxu0 0.0
      %8163 = vmatpush1.msra.mxu0 0.0
      %8164 = vmatprep.subr.mxu0 0.0
      %8165 = vmatpush1.msra.mxu0 0.0
      %8166 = vmatprep.subr.mxu0 0.0
      %8167 = vmatpush1.msra.mxu0 0.0
      %8168 = vmatprep.subr.mxu0 0.0
      %8169 = vmatpush1.msra.mxu0 0.0
      %8170 = vmatprep.subr.mxu0 0.0
      %8171 = vmatpush1.msra.mxu0 0.0
      %8172 = vmatprep.subr.mxu0 0.0
      %8173 = vmatpush1.msra.mxu0 0.0
      %8174 = vmatprep.subr.mxu0 0.0
      %8175 = vmatpush1.msra.mxu0 0.0
      %8176 = vmatprep.subr.mxu0 0.0
      %8177 = vmatpush1.msra.mxu0 0.0
      %8178 = vmatprep.subr.mxu0 0.0
      %8179 = vmatpush1.msra.mxu0 0.0
      %8180 = vmatprep.subr.mxu0 0.0
      %8181 = vmatpush1.msra.mxu0 0.0
      %8182 = vmatprep.subr.mxu0 0.0
      %8183 = vmatpush1.msra.mxu0 0.0
      %8184 = vmatprep.subr.mxu0 0.0
      %8185 = vmatpush1.msra.mxu0 0.0
      %8186 = vmatprep.subr.mxu0 0.0
      %8187 = vmatpush1.msra.mxu0 0.0
      %8188 = vmatprep.subr.mxu0 0.0
      %8189 = vmatpush1.msra.mxu0 0.0
      %8190 = vmatprep.mubr.f32.mxu0 0.0
      %8191 = vmatmul.mubr.f32.gmra.mrb[0].mxu0 %v8107
      %v8192 = vpop.f32.mrb[0].mxu0
      %v8193 = vadd.f32 0.0, %v8192
      %v8194 = vpop.f32.mrb[0].mxu0
      %8195 = vmatprep.mubr.f32.mxu0 0.0
      %8196 = vmatmul.mubr.f32.gmra.mrb[0].mxu0 %v8108
      %v8197 = vpop.f32.mrb[0].mxu0
      %v8198 = vadd.f32 0.0, %v8197
      %v8199 = vpop.f32.mrb[0].mxu0
      %8200 = vmatprep.mubr.f32.mxu0 0.0
      %8201 = vmatmul.mubr.f32.gmra.mrb[0].mxu0 %v8109
      %v8202 = vpop.f32.mrb[0].mxu0
      %v8203 = vadd.f32 0.0, %v8202
      %v8204 = vpop.f32.mrb[0].mxu0
      %8205 = vdwg.mxu0
      %v8206 = vadd.f32 %v8104, %v8193
      %v8207 = vadd.f32 %v8105, %v8198
      %v8208 = vadd.f32 %v8106, %v8203
      %v8209 = vld [vmem:[#allocation2 + $0x122] sm:$0xff]
      %v8210 = vld [vmem:[#allocation2 + $0x12a] sm:$0xff]
      %v8211 = vld [vmem:[#allocation2 + $0x132] sm:$0x3]
      %v8212 = vld [vmem:[%s1577] sm:$0xff]
      %v8213 = vld [vmem:[%s1577 + $0x8] sm:$0xff]
      %v8214 = vld [vmem:[%s1577 + $0x10] sm:$0xff]
      %v8215 = vld [vmem:[%s1577 + $0x18] sm:$0xff]
      %v8216 = vld [vmem:[%s1577 + $0x20] sm:$0xff]
      %v8217 = vld [vmem:[%s1577 + $0x28] sm:$0xff]
      %v8218 = vld [vmem:[%s1577 + $0x30] sm:$0xff]
      %v8219 = vld [vmem:[%s1577 + $0x38] sm:$0xff]
      %v8220 = vld [vmem:[%s1577 + $0x40] sm:$0xff]
      %v8221 = vld [vmem:[%s1577 + $0x48] sm:$0xff]
      %v8222 = vld [vmem:[%s1577 + $0x50] sm:$0xff]
      %v8223 = vld [vmem:[%s1577 + $0x58] sm:$0xff]
      %v8224 = vld [vmem:[%s1577 + $0x60] sm:$0xff]
      %v8225 = vld [vmem:[%s1577 + $0x68] sm:$0xff]
      %v8226 = vld [vmem:[%s1577 + $0x70] sm:$0xff]
      %v8227 = vld [vmem:[%s1577 + $0x78] sm:$0xff]
      %8228 = vmatprep.subr.mxu0 0.0
      %8229 = vmatpush1.msra.mxu0 %v8212
      %8230 = vmatprep.subr.mxu0 0.0
      %8231 = vmatpush1.msra.mxu0 %v8213
      %8232 = vmatprep.subr.mxu0 0.0
      %8233 = vmatpush1.msra.mxu0 %v8214
      %8234 = vmatprep.subr.mxu0 0.0
      %8235 = vmatpush1.msra.mxu0 %v8215
      %8236 = vmatprep.subr.mxu0 0.0
      %8237 = vmatpush1.msra.mxu0 %v8216
      %8238 = vmatprep.subr.mxu0 0.0
      %8239 = vmatpush1.msra.mxu0 %v8217
      %8240 = vmatprep.subr.mxu0 0.0
      %8241 = vmatpush1.msra.mxu0 %v8218
      %8242 = vmatprep.subr.mxu0 0.0
      %8243 = vmatpush1.msra.mxu0 %v8219
      %8244 = vmatprep.subr.mxu0 0.0
      %8245 = vmatpush1.msra.mxu0 %v8220
      %8246 = vmatprep.subr.mxu0 0.0
      %8247 = vmatpush1.msra.mxu0 %v8221
      %8248 = vmatprep.subr.mxu0 0.0
      %8249 = vmatpush1.msra.mxu0 %v8222
      %8250 = vmatprep.subr.mxu0 0.0
      %8251 = vmatpush1.msra.mxu0 %v8223
      %8252 = vmatprep.subr.mxu0 0.0
      %8253 = vmatpush1.msra.mxu0 %v8224
      %8254 = vmatprep.subr.mxu0 0.0
      %8255 = vmatpush1.msra.mxu0 %v8225
      %8256 = vmatprep.subr.mxu0 0.0
      %8257 = vmatpush1.msra.mxu0 %v8226
      %8258 = vmatprep.subr.mxu0 0.0
      %8259 = vmatpush1.msra.mxu0 %v8227
      %8260 = vmatprep.subr.mxu0 0.0
      %8261 = vmatpush1.msra.mxu0 0.0
      %8262 = vmatprep.subr.mxu0 0.0
      %8263 = vmatpush1.msra.mxu0 0.0
      %8264 = vmatprep.subr.mxu0 0.0
      %8265 = vmatpush1.msra.mxu0 0.0
      %8266 = vmatprep.subr.mxu0 0.0
      %8267 = vmatpush1.msra.mxu0 0.0
      %8268 = vmatprep.subr.mxu0 0.0
      %8269 = vmatpush1.msra.mxu0 0.0
      %8270 = vmatprep.subr.mxu0 0.0
      %8271 = vmatpush1.msra.mxu0 0.0
      %8272 = vmatprep.subr.mxu0 0.0
      %8273 = vmatpush1.msra.mxu0 0.0
      %8274 = vmatprep.subr.mxu0 0.0
      %8275 = vmatpush1.msra.mxu0 0.0
      %8276 = vmatprep.subr.mxu0 0.0
      %8277 = vmatpush1.msra.mxu0 0.0
      %8278 = vmatprep.subr.mxu0 0.0
      %8279 = vmatpush1.msra.mxu0 0.0
      %8280 = vmatprep.subr.mxu0 0.0
      %8281 = vmatpush1.msra.mxu0 0.0
      %8282 = vmatprep.subr.mxu0 0.0
      %8283 = vmatpush1.msra.mxu0 0.0
      %8284 = vmatprep.subr.mxu0 0.0
      %8285 = vmatpush1.msra.mxu0 0.0
      %8286 = vmatprep.subr.mxu0 0.0
      %8287 = vmatpush1.msra.mxu0 0.0
      %8288 = vmatprep.subr.mxu0 0.0
      %8289 = vmatpush1.msra.mxu0 0.0
      %8290 = vmatprep.subr.mxu0 0.0
      %8291 = vmatpush1.msra.mxu0 0.0
      %8292 = vmatprep.mubr.f32.mxu0 0.0
      %8293 = vmatmul.mubr.f32.gmra.mrb[0].mxu0 %v8209
      %v8294 = vpop.f32.mrb[0].mxu0
      %v8295 = vadd.f32 0.0, %v8294
      %v8296 = vpop.f32.mrb[0].mxu0
      %8297 = vmatprep.mubr.f32.mxu0 0.0
      %8298 = vmatmul.mubr.f32.gmra.mrb[0].mxu0 %v8210
      %v8299 = vpop.f32.mrb[0].mxu0
      %v8300 = vadd.f32 0.0, %v8299
      %v8301 = vpop.f32.mrb[0].mxu0
      %8302 = vmatprep.mubr.f32.mxu0 0.0
      %8303 = vmatmul.mubr.f32.gmra.mrb[0].mxu0 %v8211
      %v8304 = vpop.f32.mrb[0].mxu0
      %v8305 = vadd.f32 0.0, %v8304
      %v8306 = vpop.f32.mrb[0].mxu0
      %8307 = vdwg.mxu0
      %v8308 = vadd.f32 %v8206, %v8295
      %v8309 = vadd.f32 %v8207, %v8300
      %v8310 = vadd.f32 %v8208, %v8305
      %v8311 = vld [vmem:[#allocation2 + $0x132] sm:$0xff]
      %v8312 = vld [vmem:[#allocation2 + $0x13a] sm:$0xff]
      %v8313 = vld [vmem:[#allocation2 + $0x142] sm:$0x3]
      %v8314 = vld [vmem:[%s1708] sm:$0xff]
      %v8315 = vld [vmem:[%s1708 + $0x8] sm:$0xff]
      %v8316 = vld [vmem:[%s1708 + $0x10] sm:$0xff]
      %v8317 = vld [vmem:[%s1708 + $0x18] sm:$0xff]
      %v8318 = vld [vmem:[%s1708 + $0x20] sm:$0xff]
      %v8319 = vld [vmem:[%s1708 + $0x28] sm:$0xff]
      %v8320 = vld [vmem:[%s1708 + $0x30] sm:$0xff]
      %v8321 = vld [vmem:[%s1708 + $0x38] sm:$0xff]
      %v8322 = vld [vmem:[%s1708 + $0x40] sm:$0xff]
      %v8323 = vld [vmem:[%s1708 + $0x48] sm:$0xff]
      %v8324 = vld [vmem:[%s1708 + $0x50] sm:$0xff]
      %v8325 = vld [vmem:[%s1708 + $0x58] sm:$0xff]
      %v8326 = vld [vmem:[%s1708 + $0x60] sm:$0xff]
      %v8327 = vld [vmem:[%s1708 + $0x68] sm:$0xff]
      %v8328 = vld [vmem:[%s1708 + $0x70] sm:$0xff]
      %v8329 = vld [vmem:[%s1708 + $0x78] sm:$0xff]
      %8330 = vmatprep.subr.mxu0 0.0
      %8331 = vmatpush1.msra.mxu0 %v8314
      %8332 = vmatprep.subr.mxu0 0.0
      %8333 = vmatpush1.msra.mxu0 %v8315
      %8334 = vmatprep.subr.mxu0 0.0
      %8335 = vmatpush1.msra.mxu0 %v8316
      %8336 = vmatprep.subr.mxu0 0.0
      %8337 = vmatpush1.msra.mxu0 %v8317
      %8338 = vmatprep.subr.mxu0 0.0
      %8339 = vmatpush1.msra.mxu0 %v8318
      %8340 = vmatprep.subr.mxu0 0.0
      %8341 = vmatpush1.msra.mxu0 %v8319
      %8342 = vmatprep.subr.mxu0 0.0
      %8343 = vmatpush1.msra.mxu0 %v8320
      %8344 = vmatprep.subr.mxu0 0.0
      %8345 = vmatpush1.msra.mxu0 %v8321
      %8346 = vmatprep.subr.mxu0 0.0
      %8347 = vmatpush1.msra.mxu0 %v8322
      %8348 = vmatprep.subr.mxu0 0.0
      %8349 = vmatpush1.msra.mxu0 %v8323
      %8350 = vmatprep.subr.mxu0 0.0
      %8351 = vmatpush1.msra.mxu0 %v8324
      %8352 = vmatprep.subr.mxu0 0.0
      %8353 = vmatpush1.msra.mxu0 %v8325
      %8354 = vmatprep.subr.mxu0 0.0
      %8355 = vmatpush1.msra.mxu0 %v8326
      %8356 = vmatprep.subr.mxu0 0.0
      %8357 = vmatpush1.msra.mxu0 %v8327
      %8358 = vmatprep.subr.mxu0 0.0
      %8359 = vmatpush1.msra.mxu0 %v8328
      %8360 = vmatprep.subr.mxu0 0.0
      %8361 = vmatpush1.msra.mxu0 %v8329
      %8362 = vmatprep.subr.mxu0 0.0
      %8363 = vmatpush1.msra.mxu0 0.0
      %8364 = vmatprep.subr.mxu0 0.0
      %8365 = vmatpush1.msra.mxu0 0.0
      %8366 = vmatprep.subr.mxu0 0.0
      %8367 = vmatpush1.msra.mxu0 0.0
      %8368 = vmatprep.subr.mxu0 0.0
      %8369 = vmatpush1.msra.mxu0 0.0
      %8370 = vmatprep.subr.mxu0 0.0
      %8371 = vmatpush1.msra.mxu0 0.0
      %8372 = vmatprep.subr.mxu0 0.0
      %8373 = vmatpush1.msra.mxu0 0.0
      %8374 = vmatprep.subr.mxu0 0.0
      %8375 = vmatpush1.msra.mxu0 0.0
      %8376 = vmatprep.subr.mxu0 0.0
      %8377 = vmatpush1.msra.mxu0 0.0
      %8378 = vmatprep.subr.mxu0 0.0
      %8379 = vmatpush1.msra.mxu0 0.0
      %8380 = vmatprep.subr.mxu0 0.0
      %8381 = vmatpush1.msra.mxu0 0.0
      %8382 = vmatprep.subr.mxu0 0.0
      %8383 = vmatpush1.msra.mxu0 0.0
      %8384 = vmatprep.subr.mxu0 0.0
      %8385 = vmatpush1.msra.mxu0 0.0
      %8386 = vmatprep.subr.mxu0 0.0
      %8387 = vmatpush1.msra.mxu0 0.0
      %8388 = vmatprep.subr.mxu0 0.0
      %8389 = vmatpush1.msra.mxu0 0.0
      %8390 = vmatprep.subr.mxu0 0.0
      %8391 = vmatpush1.msra.mxu0 0.0
      %8392 = vmatprep.subr.mxu0 0.0
      %8393 = vmatpush1.msra.mxu0 0.0
      %8394 = vmatprep.mubr.f32.mxu0 0.0
      %8395 = vmatmul.mubr.f32.gmra.mrb[0].mxu0 %v8311
      %v8396 = vpop.f32.mrb[0].mxu0
      %v8397 = vadd.f32 0.0, %v8396
      %v8398 = vpop.f32.mrb[0].mxu0
      %8399 = vmatprep.mubr.f32.mxu0 0.0
      %8400 = vmatmul.mubr.f32.gmra.mrb[0].mxu0 %v8312
      %v8401 = vpop.f32.mrb[0].mxu0
      %v8402 = vadd.f32 0.0, %v8401
      %v8403 = vpop.f32.mrb[0].mxu0
      %8404 = vmatprep.mubr.f32.mxu0 0.0
      %8405 = vmatmul.mubr.f32.gmra.mrb[0].mxu0 %v8313
      %v8406 = vpop.f32.mrb[0].mxu0
      %v8407 = vadd.f32 0.0, %v8406
      %v8408 = vpop.f32.mrb[0].mxu0
      %8409 = vdwg.mxu0
      %v8410 = vadd.f32 %v8308, %v8397
      %v8411 = vadd.f32 %v8309, %v8402
      %v8412 = vadd.f32 %v8310, %v8407
      %v8413 = vld [vmem:[#allocation2 + $0x133] sm:$0xff]
      %v8414 = vld [vmem:[#allocation2 + $0x13b] sm:$0xff]
      %v8415 = vld [vmem:[#allocation2 + $0x143] sm:$0x3]
      %v8416 = vld [vmem:[%s1839] sm:$0xff]
      %v8417 = vld [vmem:[%s1839 + $0x8] sm:$0xff]
      %v8418 = vld [vmem:[%s1839 + $0x10] sm:$0xff]
      %v8419 = vld [vmem:[%s1839 + $0x18] sm:$0xff]
      %v8420 = vld [vmem:[%s1839 + $0x20] sm:$0xff]
      %v8421 = vld [vmem:[%s1839 + $0x28] sm:$0xff]
      %v8422 = vld [vmem:[%s1839 + $0x30] sm:$0xff]
      %v8423 = vld [vmem:[%s1839 + $0x38] sm:$0xff]
      %v8424 = vld [vmem:[%s1839 + $0x40] sm:$0xff]
      %v8425 = vld [vmem:[%s1839 + $0x48] sm:$0xff]
      %v8426 = vld [vmem:[%s1839 + $0x50] sm:$0xff]
      %v8427 = vld [vmem:[%s1839 + $0x58] sm:$0xff]
      %v8428 = vld [vmem:[%s1839 + $0x60] sm:$0xff]
      %v8429 = vld [vmem:[%s1839 + $0x68] sm:$0xff]
      %v8430 = vld [vmem:[%s1839 + $0x70] sm:$0xff]
      %v8431 = vld [vmem:[%s1839 + $0x78] sm:$0xff]
      %8432 = vmatprep.subr.mxu0 0.0
      %8433 = vmatpush1.msra.mxu0 %v8416
      %8434 = vmatprep.subr.mxu0 0.0
      %8435 = vmatpush1.msra.mxu0 %v8417
      %8436 = vmatprep.subr.mxu0 0.0
      %8437 = vmatpush1.msra.mxu0 %v8418
      %8438 = vmatprep.subr.mxu0 0.0
      %8439 = vmatpush1.msra.mxu0 %v8419
      %8440 = vmatprep.subr.mxu0 0.0
      %8441 = vmatpush1.msra.mxu0 %v8420
      %8442 = vmatprep.subr.mxu0 0.0
      %8443 = vmatpush1.msra.mxu0 %v8421
      %8444 = vmatprep.subr.mxu0 0.0
      %8445 = vmatpush1.msra.mxu0 %v8422
      %8446 = vmatprep.subr.mxu0 0.0
      %8447 = vmatpush1.msra.mxu0 %v8423
      %8448 = vmatprep.subr.mxu0 0.0
      %8449 = vmatpush1.msra.mxu0 %v8424
      %8450 = vmatprep.subr.mxu0 0.0
      %8451 = vmatpush1.msra.mxu0 %v8425
      %8452 = vmatprep.subr.mxu0 0.0
      %8453 = vmatpush1.msra.mxu0 %v8426
      %8454 = vmatprep.subr.mxu0 0.0
      %8455 = vmatpush1.msra.mxu0 %v8427
      %8456 = vmatprep.subr.mxu0 0.0
      %8457 = vmatpush1.msra.mxu0 %v8428
      %8458 = vmatprep.subr.mxu0 0.0
      %8459 = vmatpush1.msra.mxu0 %v8429
      %8460 = vmatprep.subr.mxu0 0.0
      %8461 = vmatpush1.msra.mxu0 %v8430
      %8462 = vmatprep.subr.mxu0 0.0
      %8463 = vmatpush1.msra.mxu0 %v8431
      %8464 = vmatprep.subr.mxu0 0.0
      %8465 = vmatpush1.msra.mxu0 0.0
      %8466 = vmatprep.subr.mxu0 0.0
      %8467 = vmatpush1.msra.mxu0 0.0
      %8468 = vmatprep.subr.mxu0 0.0
      %8469 = vmatpush1.msra.mxu0 0.0
      %8470 = vmatprep.subr.mxu0 0.0
      %8471 = vmatpush1.msra.mxu0 0.0
      %8472 = vmatprep.subr.mxu0 0.0
      %8473 = vmatpush1.msra.mxu0 0.0
      %8474 = vmatprep.subr.mxu0 0.0
      %8475 = vmatpush1.msra.mxu0 0.0
      %8476 = vmatprep.subr.mxu0 0.0
      %8477 = vmatpush1.msra.mxu0 0.0
      %8478 = vmatprep.subr.mxu0 0.0
      %8479 = vmatpush1.msra.mxu0 0.0
      %8480 = vmatprep.subr.mxu0 0.0
      %8481 = vmatpush1.msra.mxu0 0.0
      %8482 = vmatprep.subr.mxu0 0.0
      %8483 = vmatpush1.msra.mxu0 0.0
      %8484 = vmatprep.subr.mxu0 0.0
      %8485 = vmatpush1.msra.mxu0 0.0
      %8486 = vmatprep.subr.mxu0 0.0
      %8487 = vmatpush1.msra.mxu0 0.0
      %8488 = vmatprep.subr.mxu0 0.0
      %8489 = vmatpush1.msra.mxu0 0.0
      %8490 = vmatprep.subr.mxu0 0.0
      %8491 = vmatpush1.msra.mxu0 0.0
      %8492 = vmatprep.subr.mxu0 0.0
      %8493 = vmatpush1.msra.mxu0 0.0
      %8494 = vmatprep.subr.mxu0 0.0
      %8495 = vmatpush1.msra.mxu0 0.0
      %8496 = vmatprep.mubr.f32.mxu0 0.0
      %8497 = vmatmul.mubr.f32.gmra.mrb[0].mxu0 %v8413
      %v8498 = vpop.f32.mrb[0].mxu0
      %v8499 = vadd.f32 0.0, %v8498
      %v8500 = vpop.f32.mrb[0].mxu0
      %8501 = vmatprep.mubr.f32.mxu0 0.0
      %8502 = vmatmul.mubr.f32.gmra.mrb[0].mxu0 %v8414
      %v8503 = vpop.f32.mrb[0].mxu0
      %v8504 = vadd.f32 0.0, %v8503
      %v8505 = vpop.f32.mrb[0].mxu0
      %8506 = vmatprep.mubr.f32.mxu0 0.0
      %8507 = vmatmul.mubr.f32.gmra.mrb[0].mxu0 %v8415
      %v8508 = vpop.f32.mrb[0].mxu0
      %v8509 = vadd.f32 0.0, %v8508
      %v8510 = vpop.f32.mrb[0].mxu0
      %8511 = vdwg.mxu0
      %v8512 = vadd.f32 %v8410, %v8499
      %v8513 = vadd.f32 %v8411, %v8504
      %v8514 = vadd.f32 %v8412, %v8509
      %v8515 = vld [vmem:[#allocation2 + $0x134] sm:$0xff]
      %v8516 = vld [vmem:[#allocation2 + $0x13c] sm:$0xff]
      %v8517 = vld [vmem:[#allocation2 + $0x144] sm:$0x3]
      %v8518 = vld [vmem:[%s1970] sm:$0xff]
      %v8519 = vld [vmem:[%s1970 + $0x8] sm:$0xff]
      %v8520 = vld [vmem:[%s1970 + $0x10] sm:$0xff]
      %v8521 = vld [vmem:[%s1970 + $0x18] sm:$0xff]
      %v8522 = vld [vmem:[%s1970 + $0x20] sm:$0xff]
      %v8523 = vld [vmem:[%s1970 + $0x28] sm:$0xff]
      %v8524 = vld [vmem:[%s1970 + $0x30] sm:$0xff]
      %v8525 = vld [vmem:[%s1970 + $0x38] sm:$0xff]
      %v8526 = vld [vmem:[%s1970 + $0x40] sm:$0xff]
      %v8527 = vld [vmem:[%s1970 + $0x48] sm:$0xff]
      %v8528 = vld [vmem:[%s1970 + $0x50] sm:$0xff]
      %v8529 = vld [vmem:[%s1970 + $0x58] sm:$0xff]
      %v8530 = vld [vmem:[%s1970 + $0x60] sm:$0xff]
      %v8531 = vld [vmem:[%s1970 + $0x68] sm:$0xff]
      %v8532 = vld [vmem:[%s1970 + $0x70] sm:$0xff]
      %v8533 = vld [vmem:[%s1970 + $0x78] sm:$0xff]
      %8534 = vmatprep.subr.mxu0 0.0
      %8535 = vmatpush1.msra.mxu0 %v8518
      %8536 = vmatprep.subr.mxu0 0.0
      %8537 = vmatpush1.msra.mxu0 %v8519
      %8538 = vmatprep.subr.mxu0 0.0
      %8539 = vmatpush1.msra.mxu0 %v8520
      %8540 = vmatprep.subr.mxu0 0.0
      %8541 = vmatpush1.msra.mxu0 %v8521
      %8542 = vmatprep.subr.mxu0 0.0
      %8543 = vmatpush1.msra.mxu0 %v8522
      %8544 = vmatprep.subr.mxu0 0.0
      %8545 = vmatpush1.msra.mxu0 %v8523
      %8546 = vmatprep.subr.mxu0 0.0
      %8547 = vmatpush1.msra.mxu0 %v8524
      %8548 = vmatprep.subr.mxu0 0.0
      %8549 = vmatpush1.msra.mxu0 %v8525
      %8550 = vmatprep.subr.mxu0 0.0
      %8551 = vmatpush1.msra.mxu0 %v8526
      %8552 = vmatprep.subr.mxu0 0.0
      %8553 = vmatpush1.msra.mxu0 %v8527
      %8554 = vmatprep.subr.mxu0 0.0
      %8555 = vmatpush1.msra.mxu0 %v8528
      %8556 = vmatprep.subr.mxu0 0.0
      %8557 = vmatpush1.msra.mxu0 %v8529
      %8558 = vmatprep.subr.mxu0 0.0
      %8559 = vmatpush1.msra.mxu0 %v8530
      %8560 = vmatprep.subr.mxu0 0.0
      %8561 = vmatpush1.msra.mxu0 %v8531
      %8562 = vmatprep.subr.mxu0 0.0
      %8563 = vmatpush1.msra.mxu0 %v8532
      %8564 = vmatprep.subr.mxu0 0.0
      %8565 = vmatpush1.msra.mxu0 %v8533
      %8566 = vmatprep.subr.mxu0 0.0
      %8567 = vmatpush1.msra.mxu0 0.0
      %8568 = vmatprep.subr.mxu0 0.0
      %8569 = vmatpush1.msra.mxu0 0.0
      %8570 = vmatprep.subr.mxu0 0.0
      %8571 = vmatpush1.msra.mxu0 0.0
      %8572 = vmatprep.subr.mxu0 0.0
      %8573 = vmatpush1.msra.mxu0 0.0
      %8574 = vmatprep.subr.mxu0 0.0
      %8575 = vmatpush1.msra.mxu0 0.0
      %8576 = vmatprep.subr.mxu0 0.0
      %8577 = vmatpush1.msra.mxu0 0.0
      %8578 = vmatprep.subr.mxu0 0.0
      %8579 = vmatpush1.msra.mxu0 0.0
      %8580 = vmatprep.subr.mxu0 0.0
      %8581 = vmatpush1.msra.mxu0 0.0
      %8582 = vmatprep.subr.mxu0 0.0
      %8583 = vmatpush1.msra.mxu0 0.0
      %8584 = vmatprep.subr.mxu0 0.0
      %8585 = vmatpush1.msra.mxu0 0.0
      %8586 = vmatprep.subr.mxu0 0.0
      %8587 = vmatpush1.msra.mxu0 0.0
      %8588 = vmatprep.subr.mxu0 0.0
      %8589 = vmatpush1.msra.mxu0 0.0
      %8590 = vmatprep.subr.mxu0 0.0
      %8591 = vmatpush1.msra.mxu0 0.0
      %8592 = vmatprep.subr.mxu0 0.0
      %8593 = vmatpush1.msra.mxu0 0.0
      %8594 = vmatprep.subr.mxu0 0.0
      %8595 = vmatpush1.msra.mxu0 0.0
      %8596 = vmatprep.subr.mxu0 0.0
      %8597 = vmatpush1.msra.mxu0 0.0
      %8598 = vmatprep.mubr.f32.mxu0 0.0
      %8599 = vmatmul.mubr.f32.gmra.mrb[0].mxu0 %v8515
      %v8600 = vpop.f32.mrb[0].mxu0
      %v8601 = vadd.f32 0.0, %v8600
      %v8602 = vpop.f32.mrb[0].mxu0
      %8603 = vmatprep.mubr.f32.mxu0 0.0
      %8604 = vmatmul.mubr.f32.gmra.mrb[0].mxu0 %v8516
      %v8605 = vpop.f32.mrb[0].mxu0
      %v8606 = vadd.f32 0.0, %v8605
      %v8607 = vpop.f32.mrb[0].mxu0
      %8608 = vmatprep.mubr.f32.mxu0 0.0
      %8609 = vmatmul.mubr.f32.gmra.mrb[0].mxu0 %v8517
      %v8610 = vpop.f32.mrb[0].mxu0
      %v8611 = vadd.f32 0.0, %v8610
      %v8612 = vpop.f32.mrb[0].mxu0
      %8613 = vdwg.mxu0
      %v8614 = vadd.f32 %v8512, %v8601
      %v8615 = vadd.f32 %v8513, %v8606
      %v8616 = vadd.f32 %v8514, %v8611
      %v8617 = vld [vmem:[%s4] sm:$0x1]
      %v8619 = vlaneseq
      %v8620 = vshrl.u32 %v8619, 7
      %v8621 = vsub.s32 0, %v8620
      %v8622 = vrot.slane %v8617, %v8621
      %v8624 = vadd.f32 %v8614, %v8622
      %v8625 = vadd.f32 %v8615, %v8622
      %v8626 = vadd.f32 %v8616, %v8622
      %v8627 = vmax.f32 %v8624, 0.0
      %v8628 = vmax.f32 %v8625, 0.0
      %v8629 = vmax.f32 %v8626, 0.0
      %v8630 = vld [vmem:[%s5] sm:$0xff]
      %v8631 = vld [vmem:[%s5 + $0x8] sm:$0xff]
      %v8632 = vld [vmem:[%s5 + $0x10] sm:$0xff]
      %v8633 = vld [vmem:[%s5 + $0x18] sm:$0xff]
      %v8634 = vld [vmem:[%s5 + $0x20] sm:$0xff]
      %v8635 = vld [vmem:[%s5 + $0x28] sm:$0xff]
      %v8636 = vld [vmem:[%s5 + $0x30] sm:$0xff]
      %v8637 = vld [vmem:[%s5 + $0x38] sm:$0xff]
      %v8638 = vld [vmem:[%s5 + $0x40] sm:$0xff]
      %v8639 = vld [vmem:[%s5 + $0x48] sm:$0xff]
      %v8640 = vld [vmem:[%s5 + $0x50] sm:$0xff]
      %v8641 = vld [vmem:[%s5 + $0x58] sm:$0xff]
      %v8642 = vld [vmem:[%s5 + $0x60] sm:$0xff]
      %v8643 = vld [vmem:[%s5 + $0x68] sm:$0xff]
      %v8644 = vld [vmem:[%s5 + $0x70] sm:$0xff]
      %v8645 = vld [vmem:[%s5 + $0x78] sm:$0xff]
      %v8646 = vld [vmem:[%s6] sm:$0x1]
      %v8648 = vlaneseq
      %v8649 = vshrl.u32 %v8648, 7
      %v8650 = vsub.s32 0, %v8649
      %v8651 = vrot.slane %v8646, %v8650
      %8653 = vmatprep.subr.mxu0 0.0
      %8654 = vmatpush1.msra.mxu0 %v8630
      %8655 = vmatprep.subr.mxu0 0.0
      %8656 = vmatpush1.msra.mxu0 %v8631
      %8657 = vmatprep.subr.mxu0 0.0
      %8658 = vmatpush1.msra.mxu0 %v8632
      %8659 = vmatprep.subr.mxu0 0.0
      %8660 = vmatpush1.msra.mxu0 %v8633
      %8661 = vmatprep.subr.mxu0 0.0
      %8662 = vmatpush1.msra.mxu0 %v8634
      %8663 = vmatprep.subr.mxu0 0.0
      %8664 = vmatpush1.msra.mxu0 %v8635
      %8665 = vmatprep.subr.mxu0 0.0
      %8666 = vmatpush1.msra.mxu0 %v8636
      %8667 = vmatprep.subr.mxu0 0.0
      %8668 = vmatpush1.msra.mxu0 %v8637
      %8669 = vmatprep.subr.mxu0 0.0
      %8670 = vmatpush1.msra.mxu0 %v8638
      %8671 = vmatprep.subr.mxu0 0.0
      %8672 = vmatpush1.msra.mxu0 %v8639
      %8673 = vmatprep.subr.mxu0 0.0
      %8674 = vmatpush1.msra.mxu0 %v8640
      %8675 = vmatprep.subr.mxu0 0.0
      %8676 = vmatpush1.msra.mxu0 %v8641
      %8677 = vmatprep.subr.mxu0 0.0
      %8678 = vmatpush1.msra.mxu0 %v8642
      %8679 = vmatprep.subr.mxu0 0.0
      %8680 = vmatpush1.msra.mxu0 %v8643
      %8681 = vmatprep.subr.mxu0 0.0
      %8682 = vmatpush1.msra.mxu0 %v8644
      %8683 = vmatprep.subr.mxu0 0.0
      %8684 = vmatpush1.msra.mxu0 %v8645
      %8685 = vmatprep.subr.mxu0 0.0
      %8686 = vmatpush1.msra.mxu0 0.0
      %8687 = vmatprep.subr.mxu0 0.0
      %8688 = vmatpush1.msra.mxu0 0.0
      %8689 = vmatprep.subr.mxu0 0.0
      %8690 = vmatpush1.msra.mxu0 0.0
      %8691 = vmatprep.subr.mxu0 0.0
      %8692 = vmatpush1.msra.mxu0 0.0
      %8693 = vmatprep.subr.mxu0 0.0
      %8694 = vmatpush1.msra.mxu0 0.0
      %8695 = vmatprep.subr.mxu0 0.0
      %8696 = vmatpush1.msra.mxu0 0.0
      %8697 = vmatprep.subr.mxu0 0.0
      %8698 = vmatpush1.msra.mxu0 0.0
      %8699 = vmatprep.subr.mxu0 0.0
      %8700 = vmatpush1.msra.mxu0 0.0
      %8701 = vmatprep.subr.mxu0 0.0
      %8702 = vmatpush1.msra.mxu0 0.0
      %8703 = vmatprep.subr.mxu0 0.0
      %8704 = vmatpush1.msra.mxu0 0.0
      %8705 = vmatprep.subr.mxu0 0.0
      %8706 = vmatpush1.msra.mxu0 0.0
      %8707 = vmatprep.subr.mxu0 0.0
      %8708 = vmatpush1.msra.mxu0 0.0
      %8709 = vmatprep.subr.mxu0 0.0
      %8710 = vmatpush1.msra.mxu0 0.0
      %8711 = vmatprep.subr.mxu0 0.0
      %8712 = vmatpush1.msra.mxu0 0.0
      %8713 = vmatprep.subr.mxu0 0.0
      %8714 = vmatpush1.msra.mxu0 0.0
      %8715 = vmatprep.subr.mxu0 0.0
      %8716 = vmatpush1.msra.mxu0 0.0
      %8717 = vmatprep.mubr.f32.mxu0 0.0
      %8718 = vmatmul.mubr.f32.gmra.mrb[0].mxu0 %v8627
      %v8719 = vpop.f32.mrb[0].mxu0
      %v8720 = vadd.f32 %v8651, %v8719
      %v8721 = vpop.f32.mrb[0].mxu0
      %8722 = vmatprep.mubr.f32.mxu0 0.0
      %8723 = vmatmul.mubr.f32.gmra.mrb[0].mxu0 %v8628
      %v8724 = vpop.f32.mrb[0].mxu0
      %v8725 = vadd.f32 %v8651, %v8724
      %v8726 = vpop.f32.mrb[0].mxu0
      %8727 = vmatprep.mubr.f32.mxu0 0.0
      %8728 = vmatmul.mubr.f32.gmra.mrb[0].mxu0 %v8629
      %v8729 = vpop.f32.mrb[0].mxu0
      %v8730 = vpop.f32.mrb[0].mxu0
      %8731 = vdwg.mxu0
      %v8732 = vmul.f32 %v8720, 0.8
      %v8733 = vmul.f32 %v8725, 0.8
      %v8734 = vld [vmem:[%s273 + $0xf0] sm:$0xff]
      %v8735 = vld [vmem:[%s273 + $0xf8] sm:$0xff]
      %v8736 = vadd.f32 %v8732, %v8734
      %v8737 = vadd.f32 %v8733, %v8735
      %v8738 = vmax.f32 %v8736, 0.0
      %v8739 = vmax.f32 %v8737, 0.0
      %8740 = vst [vmem:[%s278 + $0xf0] sm:$0xff] %v8738
      %8741 = vst [vmem:[%s278 + $0xf8] sm:$0xff] %v8739
      %p8742 = scmp.lt.s32.totalorder %s18, 1
      %s8743 = scalar_select %p8742, %s18, 1
      %s8744 = smul.addr %s8743, 32
      %s8745 = smul.addr %s8744, 8
      %s8746 = scalar_lea.vmem %s7, %s8745
      // Predicated region
      $region49: #{bottleneck_forward.1} parent=47 // pred_check
        %p8747 = pneg %p188
      $region50: #{bottleneck_forward.1} parent=47 // pred_check_branch
        %8749 = sbr.rel (%p8747) target = $region52
      $region51: #{bottleneck_forward.1} parent=47 // pred_region
        _
      $region52: #{bottleneck_forward.1} parent=47 // pred_fallthru
        _
    $region48: #{bottleneck_forward.1} parent=5 // pred_fallthru
      _
    %p8750 = scmp.le.s32.totalorder 2, %s13
    // Predicated region
    $region53: #{bottleneck_forward.1} parent=5 // pred_check
      %p8751 = pneg %p8750
    $region54: #{bottleneck_forward.1} parent=5 // pred_check_branch
      %8753 = sbr.rel (%p8751) target = $region56
    $region55: #{bottleneck_forward.1} parent=5 // pred_region
      %s8754 = ssub.s32 %s13, 2
      // Predicated region
      $region57: #{bottleneck_forward.1} parent=55 // pred_check
        %p8755 = pneg %p194
      $region58: #{bottleneck_forward.1} parent=55 // pred_check_branch
        %8757 = sbr.rel (%p8755) target = $region60
      $region59: #{bottleneck_forward.1} parent=55 // pred_region
        %p8758 = scmp.lt.s32.totalorder %s19, 1
        %s8759 = scalar_select %p8758, %s19, 1
        %s8760 = smul.addr %s8759, 32
        %s8761 = smul.addr %s8760, 8
        %s8762 = scalar_lea.vmem %s7, %s8761
      $region60: #{bottleneck_forward.1} parent=55 // pred_fallthru
        _
    $region56: #{bottleneck_forward.1} parent=5 // pred_fallthru
      _
  $region6: #{bottleneck_forward.1} parent=0 // loop_footer
    %s17 = sadd.s32 1, %s13
  $region7: #{bottleneck_forward.1} parent=0 // loop_footer_branch
    %12 = sbr.rel target = $region3
  $region8: #{bottleneck_forward.1} parent=0 // loop_exit
    _

</llo_original>
